<compile_context>
chip_gen: v5e
topology: v5e:2x2
jax: 0.10.0
libtpu: 0.0.40
codegen_flags: <defaults>
</compile_context>

<pallas_src>
import numpy as np
import jax
import jax.numpy as jnp
from jax.experimental import pallas as pl
from jax.experimental.pallas import tpu as pltpu

EPS = 1e-5

N1 = 49 * 30          # stage-1 logical width (49 positions x 30 channels)
N1P = 1536            # padded to a multiple of 128
N2 = 49 * 40          # stage-2 logical width (49 positions x 2x2x10 outputs)
N2P = 2048            # padded to a multiple of 128


def _round_up(n, m):
    return ((n + m - 1) // m) * m


# ---------------------------------------------------------------------------
# Fused kernel: two lane-dense matmuls.
#   z = ReLU(x @ W1 + b1)        W1: (10, 1536)  = Linear ∘ ConvT2d(1,30) ∘ BN1
#   y = ReLU(z @ W2 + b2)        W2: (1536,2048) = block-diag ConvT2d(30,10,s2) ∘ BN2
# ---------------------------------------------------------------------------
def _generator_kernel(x_ref, w1_ref, b1_ref, w2_ref, b2_ref, o_ref):
    xb = x_ref[...].astype(jnp.bfloat16)                                  # (tb, 10)
    z = jnp.dot(xb, w1_ref[...], preferred_element_type=jnp.float32) + b1_ref[...]
    z = jnp.maximum(z, 0.0)                                               # ReLU; Dropout2d eval = id
    y = jnp.dot(z.astype(jnp.bfloat16), w2_ref[...],
                preferred_element_type=jnp.float32) + b2_ref[...]
    o_ref[...] = jnp.maximum(y, 0.0)                                      # (tb, 2048) full-width store


def _choose_tb(B):
    if B < 16:
        return _round_up(max(B, 1), 8)
    # >=2 grid steps so both v7x TensorCores get work; cap tile at 256 rows.
    return min(256, _round_up((B + 1) // 2, 8))


def generator_forward(x, prep):
    B = x.shape[0]
    tb = _choose_tb(B)
    Bp = _round_up(B, tb)
    if Bp != B:
        x = jnp.pad(x, ((0, Bp - B), (0, 0)))

    out = pl.pallas_call(
        _generator_kernel,
        out_shape=jax.ShapeDtypeStruct((Bp, N2P), jnp.float32),
        grid=(Bp // tb,),
        in_specs=[
            pl.BlockSpec((tb, 10), lambda i: (i, 0)),        # x, batch-tiled
            pl.BlockSpec((10, N1P), lambda i: (0, 0)),       # fused stage-1 weight (resident)
            pl.BlockSpec((1, N1P), lambda i: (0, 0)),        # fused stage-1 bias
            pl.BlockSpec((N1P, N2P), lambda i: (0, 0)),      # block-diag stage-2 weight (resident)
            pl.BlockSpec((1, N2P), lambda i: (0, 0)),        # fused stage-2 bias
        ],
        out_specs=pl.BlockSpec((tb, N2P), lambda i: (i, 0)),
        compiler_params=pltpu.CompilerParams(
            dimension_semantics=("parallel",),               # v7x: 2 TCs split the batch
            vmem_limit_bytes=48 * 1024 * 1024,               # headroom under v7x 64 MiB/TC
        ),
    )(x, prep["w1"], prep["b1"], prep["w2"], prep["b2"])

    # --- glue: drop padding, stride-2 pixel shuffle (no overlaps for k=2,s=2) ---
    out = out[:B, :N2]                                       # col = (oh*7+ow)*40 + kh*20 + kw*10 + co
    out = out.reshape(B, 7, 7, 2, 2, 10)                     # (b, oh, ow, kh, kw, co)
    out = jnp.transpose(out, (0, 5, 1, 3, 2, 4))             # (b, co, oh, kh, ow, kw)
    return out.reshape(B, 10, 14, 14)


# ---------------------------------------------------------------------------
# Parameters (deterministic, PyTorch-style fan-in uniform init) + one-time prep
# ---------------------------------------------------------------------------
def init_params(key):
    ks = jax.random.split(key, 6)

    def u(k, shape, fan_in):
        bound = 1.0 / np.sqrt(fan_in)
        return jax.random.uniform(k, shape, jnp.float32, -bound, bound)

    p = {}
    p["Wl"] = u(ks[0], (36, 10), 10)                  # nn.Linear(10, 36)
    p["bl"] = u(ks[1], (36,), 10)
    p["W2"] = u(ks[2], (1, 30, 2, 2), 1 * 2 * 2)      # ConvTranspose2d(1, 30, 2, 1)
    p["b2"] = u(ks[3], (30,), 1 * 2 * 2)
    p["W3"] = u(ks[4], (30, 10, 2, 2), 30 * 2 * 2)    # ConvTranspose2d(30, 10, 2, 2)
    p["b3"] = u(ks[5], (10,), 30 * 2 * 2)
    # BatchNorm2d defaults: gamma=1, beta=0, running_mean=0, running_var=1
    p["gamma1"] = jnp.ones((30,), jnp.float32)
    p["beta1"] = jnp.zeros((30,), jnp.float32)
    p["mean1"] = jnp.zeros((30,), jnp.float32)
    p["var1"] = jnp.ones((30,), jnp.float32)
    p["gamma2"] = jnp.ones((10,), jnp.float32)
    p["beta2"] = jnp.zeros((10,), jnp.float32)
    p["mean2"] = jnp.zeros((10,), jnp.float32)
    p["var2"] = jnp.ones((10,), jnp.float32)
    return p


def prepare_params(p):
    """One-time host-side (numpy, f64) weight folding:
       Linear + ConvT2d(1,30,k2,s1) + BN1  ->  W1 (10, 1536), b1 (1, 1536)
       ConvT2d(30,10,k2,s2) + BN2          ->  block-diag W2 (1536, 2048), b2 (1, 2048)
    """
    pn = {k: np.asarray(v, np.float64) for k, v in p.items()}

    scale1 = pn["gamma1"] / np.sqrt(pn["var1"] + EPS)
    shift1 = pn["beta1"] - pn["mean1"] * scale1
    scale2 = pn["gamma2"] / np.sqrt(pn["var2"] + EPS)
    shift2 = pn["beta2"] - pn["mean2"] * scale2

    # ConvT2d(1,30,k2,s1): per-output-position (36 -> 30) maps via scatter matrix S.
    # S[p, i, k] = 1 iff output position p=(oh,ow) receives input i=(ih,iw) via tap
    # k=(kh,kw): ih = oh - kh, iw = ow - kw (valid range).
    S = np.zeros((49, 36, 4), np.float64)
    for oh in range(7):
        for ow in range(7):
            for kh in range(2):
                for kw in range(2):
                    ih, iw = oh - kh, ow - kw
                    if 0 <= ih < 6 and 0 <= iw < 6:
                        S[oh * 7 + ow, ih * 6 + iw, kh * 2 + kw] = 1.0
    w2k = np.transpose(pn["W2"][0], (1, 2, 0)).reshape(4, 30)            # [kh*2+kw, co]
    wc2 = np.einsum("pik,kc->pic", S, w2k) * scale1[None, None, :]       # (49, 36, 30), BN1 folded
    bc2 = pn["b2"] * scale1 + shift1                                     # (30,)

    # Fold Linear(10->36) into stage 1 (no nonlinearity in between).
    wc2_flat = np.transpose(wc2, (1, 0, 2)).reshape(36, N1)              # col = p*30 + c
    w1 = pn["Wl"].T @ wc2_flat                                           # (10, 1470)
    b1 = pn["bl"] @ wc2_flat + np.tile(bc2, 49)                          # (1470,)
    w1 = np.pad(w1, ((0, 0), (0, N1P - N1)))                             # padded cols -> 0 after ReLU
    b1 = np.pad(b1, (0, N1P - N1))

    # ConvT2d(30,10,k2,s2) + BN2 as a (30 -> 40) matrix, col = kh*20 + kw*10 + co,
    # then block-diagonal over the 49 positions.
    w3 = np.transpose(pn["W3"], (0, 2, 3, 1)).reshape(30, 40)
    w3 = w3 * np.tile(scale2, 4)[None, :]
    b3 = np.tile(pn["b3"] * scale2 + shift2, 4)                          # (40,)

    w2bd = np.zeros((N1P, N2P), np.float64)
    for pidx in range(49):
        w2bd[pidx * 30:(pidx + 1) * 30, pidx * 40:(pidx + 1) * 40] = w3
    b2full = np.pad(np.tile(b3, 49), (0, N2P - N2))

    return {
        "w1": jnp.asarray(w1, jnp.bfloat16),
        "b1": jnp.asarray(b1.reshape(1, N1P), jnp.float32),
        "w2": jnp.asarray(w2bd, jnp.bfloat16),
        "b2": jnp.asarray(b2full.reshape(1, N2P), jnp.float32),
    }


# ---------------------------------------------------------------------------
# Pure-numpy reference (direct transposed-conv scatter formulation, eval-mode BN)
# ---------------------------------------------------------------------------
def reference_forward(x, p):
    B = x.shape[0]
    h = x @ p["Wl"].T + p["bl"]
    x1 = h.reshape(B, 1, 6, 6)
    out1 = np.zeros((B, 30, 7, 7), np.float32)
    for kh in range(2):
        for kw in range(2):
            out1[:, :, kh:kh + 6, kw:kw + 6] += (
                x1[:, 0, None, :, :] * p["W2"][0, :, kh, kw][None, :, None, None])
    out1 += p["b2"][None, :, None, None]
    s1 = p["gamma1"] / np.sqrt(p["var1"] + EPS)
    out1 = ((out1 - p["mean1"][None, :, None, None]) * s1[None, :, None, None]
            + p["beta1"][None, :, None, None])
    out1 = np.maximum(out1, 0.0)
    out2 = np.zeros((B, 10, 14, 14), np.float32)
    for kh in range(2):
        for kw in range(2):
            out2[:, :, kh::2, kw::2] += np.einsum(
                "bcij,cd->bdij", out1, p["W3"][:, :, kh, kw])
    out2 += p["b3"][None, :, None, None]
    s2 = p["gamma2"] / np.sqrt(p["var2"] + EPS)
    out2 = ((out2 - p["mean2"][None, :, None, None]) * s2[None, :, None, None]
            + p["beta2"][None, :, None, None])
    return np.maximum(out2, 0.0)


if __name__ == "__main__":
    key = jax.random.PRNGKey(0)
    pkey, xkey = jax.random.split(key)
    params = init_params(pkey)
    prep = prepare_params(params)

    B = 2
    x = jax.random.normal(xkey, (B, 10), jnp.float32)

    fwd = jax.jit(generator_forward)
    out = jax.block_until_ready(fwd(x, prep))
    assert out.shape == (B, 10, 14, 14), out.shape

    ref = reference_forward(np.asarray(x), {k: np.asarray(v) for k, v in params.items()})
    np.testing.assert_allclose(np.asarray(out), ref, rtol=5e-2, atol=5e-2)

    print("KERNEL_OK")
</pallas_src>

<mosaic_0001>
module attributes {stable_mosaic.version = 11 : i64} {
  func.func @_generator_kernel(%arg0: i32, %arg1: memref<8x10xf32, #tpu.memory_space<vmem>>, %arg2: memref<10x1536xbf16, #tpu.memory_space<vmem>>, %arg3: memref<1x1536xf32, #tpu.memory_space<vmem>>, %arg4: memref<1536x2048xbf16, #tpu.memory_space<vmem>>, %arg5: memref<1x2048xf32, #tpu.memory_space<vmem>>, %arg6: memref<8x2048xf32, #tpu.memory_space<vmem>>) attributes {dimension_semantics = [#tpu.dimension_semantics<parallel>], iteration_bounds = array<i64: 1>, scalar_prefetch = 0 : i64, scratch_operands = 0 : i64, tpu.core_type = #tpu.core_type<tc>, window_params = [{transform_indices = @transform_0, window_bounds = array<i64: 8, 10>}, {pipeline_mode = #tpu.pipeline_mode<synchronous>, transform_indices = @transform_1, window_bounds = array<i64: 10, 1536>}, {pipeline_mode = #tpu.pipeline_mode<synchronous>, transform_indices = @transform_2, window_bounds = array<i64: 1, 1536>}, {pipeline_mode = #tpu.pipeline_mode<synchronous>, transform_indices = @transform_3, window_bounds = array<i64: 1536, 2048>}, {pipeline_mode = #tpu.pipeline_mode<synchronous>, transform_indices = @transform_4, window_bounds = array<i64: 1, 2048>}, {transform_indices = @transform_5, window_bounds = array<i64: 8, 2048>}]} {
    %c0 = arith.constant 0 : index
    %c0_0 = arith.constant 0 : index
    %0 = vector.load %arg1[%c0, %c0_0] : memref<8x10xf32, #tpu.memory_space<vmem>>, vector<8x10xf32>
    %1 = arith.truncf %0 : vector<8x10xf32> to vector<8x10xbf16>
    %c0_1 = arith.constant 0 : index
    %c0_2 = arith.constant 0 : index
    %2 = vector.load %arg2[%c0_1, %c0_2] : memref<10x1536xbf16, #tpu.memory_space<vmem>>, vector<10x1536xbf16>
    %cst = arith.constant dense<0.000000e+00> : vector<8x1536xf32>
    %3 = tpu.matmul %1, %2, %cst {dimension_numbers = #tpu.dot_dimension_numbers<[1], [0], [0], [1], [0, 0, 1, 1], [], []>} : vector<8x10xbf16>, vector<10x1536xbf16>, vector<8x1536xf32> -> vector<8x1536xf32>
    %c0_3 = arith.constant 0 : index
    %c0_4 = arith.constant 0 : index
    %4 = vector.load %arg3[%c0_3, %c0_4] : memref<1x1536xf32, #tpu.memory_space<vmem>>, vector<1x1536xf32>
    %5 = vector.broadcast %4 : vector<1x1536xf32> to vector<8x1536xf32>
    %6 = arith.addf %3, %5 : vector<8x1536xf32>
    %cst_5 = arith.constant 0.000000e+00 : f32
    %7 = vector.broadcast %cst_5 : f32 to vector<8x1536xf32>
    %8 = arith.maximumf %6, %7 : vector<8x1536xf32>
    %9 = arith.truncf %8 : vector<8x1536xf32> to vector<8x1536xbf16>
    %c0_6 = arith.constant 0 : index
    %c0_7 = arith.constant 0 : index
    %10 = vector.load %arg4[%c0_6, %c0_7] : memref<1536x2048xbf16, #tpu.memory_space<vmem>>, vector<1536x2048xbf16>
    %cst_8 = arith.constant dense<0.000000e+00> : vector<8x2048xf32>
    %11 = tpu.matmul %9, %10, %cst_8 {dimension_numbers = #tpu.dot_dimension_numbers<[1], [0], [0], [1], [0, 0, 1, 1], [], []>} : vector<8x1536xbf16>, vector<1536x2048xbf16>, vector<8x2048xf32> -> vector<8x2048xf32>
    %c0_9 = arith.constant 0 : index
    %c0_10 = arith.constant 0 : index
    %12 = vector.load %arg5[%c0_9, %c0_10] : memref<1x2048xf32, #tpu.memory_space<vmem>>, vector<1x2048xf32>
    %13 = vector.broadcast %12 : vector<1x2048xf32> to vector<8x2048xf32>
    %14 = arith.addf %11, %13 : vector<8x2048xf32>
    %cst_11 = arith.constant 0.000000e+00 : f32
    %15 = vector.broadcast %cst_11 : f32 to vector<8x2048xf32>
    %16 = arith.maximumf %14, %15 : vector<8x2048xf32>
    %c0_12 = arith.constant 0 : index
    %c0_13 = arith.constant 0 : index
    %17 = vector.load %arg6[%c0_12, %c0_13] : memref<8x2048xf32, #tpu.memory_space<vmem>>, vector<8x2048xf32>
    tpu.vector_store %arg6[%c0_12, %c0_13], %16 {strides = array<i32>} : memref<8x2048xf32, #tpu.memory_space<vmem>>, vector<8x2048xf32>,
    return
  }
  func.func @transform_0(%arg0: i32) -> (i32, i32) {
    %c0_i32 = arith.constant 0 : i32
    %c0_i32_0 = arith.constant 0 : i32
    return %arg0, %c0_i32 : i32, i32
  }
  func.func @transform_1(%arg0: i32) -> (i32, i32) {
    %c0_i32 = arith.constant 0 : i32
    %c0_i32_0 = arith.constant 0 : i32
    %c0_i32_1 = arith.constant 0 : i32
    return %c0_i32, %c0_i32_0 : i32, i32
  }
  func.func @transform_2(%arg0: i32) -> (i32, i32) {
    %c0_i32 = arith.constant 0 : i32
    %c0_i32_0 = arith.constant 0 : i32
    %c0_i32_1 = arith.constant 0 : i32
    return %c0_i32, %c0_i32_0 : i32, i32
  }
  func.func @transform_3(%arg0: i32) -> (i32, i32) {
    %c0_i32 = arith.constant 0 : i32
    %c0_i32_0 = arith.constant 0 : i32
    %c0_i32_1 = arith.constant 0 : i32
    return %c0_i32, %c0_i32_0 : i32, i32
  }
  func.func @transform_4(%arg0: i32) -> (i32, i32) {
    %c0_i32 = arith.constant 0 : i32
    %c0_i32_0 = arith.constant 0 : i32
    %c0_i32_1 = arith.constant 0 : i32
    return %c0_i32, %c0_i32_0 : i32, i32
  }
  func.func @transform_5(%arg0: i32) -> (i32, i32) {
    %c0_i32 = arith.constant 0 : i32
    %c0_i32_0 = arith.constant 0 : i32
    return %arg0, %c0_i32 : i32, i32
  }
}

</mosaic_0001>

<llo_original>
// kernel: generator_forward.1
$region0: #{generator_forward.1}
  #allocation0 [shape = 'u32[]', space=smem, size = 0x4, offset = 0x4, fixed_abs, tag = 'smem constant byte address 0x4 - core index']
  #allocation1 [shape = 'u32[72,128]{1,0:T(1,128)}', space=vmem, size = 0x9000, scoped, tag = 'internal scratch']
  %s0 = inlined_call_operand.vmem [shape: f32[8,10], index: 0, kind: input, shape index: {}]
  %s1 = inlined_call_operand.hbm [shape: bf16[10,1536], index: 1, kind: input, shape index: {}]
  %s2 = inlined_call_operand.hbm [shape: f32[1,1536], index: 2, kind: input, shape index: {}]
  %s3 = inlined_call_operand.hbm [shape: bf16[1536,2048], index: 3, kind: input, shape index: {}]
  %s4 = inlined_call_operand.hbm [shape: f32[1,2048], index: 4, kind: input, shape index: {}]
  %s5 = inlined_call_operand.vmem [shape: f32[8,2048], index: 5, kind: output, shape index: {}]
  %s6 = sld [smem:[#allocation0]]
  $region46: #{generator_forward.1} parent=0
    _
  %s8 = ssub.s32 1, %s6
  %s9 = scalar_select 0, %s8, %s6
  $region1: #{generator_forward.1} parent=0
    #allocation2 [shape = 'u8[49152]{0}', space=vmem, size = 0xc000, scoped, tag = 'input window, operand 1, single buffered']
    #allocation3 [shape = 's32[1]{0}', space=sflag, size = 0x4, scoped, tag = 'scoped memory for generator_forward.1']
    #allocation4 [shape = 'u8[6144]{0}', space=vmem, size = 0x1800, scoped, tag = 'input window, operand 2, single buffered']
    #allocation5 [shape = 's32[1]{0}', space=sflag, size = 0x4, scoped, tag = 'scoped memory for generator_forward.1']
    #allocation6 [shape = 'u8[6291456]{0}', space=vmem, size = 0x600000, scoped, tag = 'input window, operand 3, single buffered']
    #allocation7 [shape = 'u8[8192]{0}', space=vmem, size = 0x2000, scoped, tag = 'input window, operand 4, single buffered']
    #allocation8 [shape = 's32[1]{0}', space=sflag, size = 0x4, scoped, tag = 'scoped memory for generator_forward.1']
    %10 = vsyncpa [#allocation3], 0
    %11 = vsyncpa [#allocation5], 0
    %12 = vsyncpa [#allocation8], 0
    // Predicated region
    $region2: #{generator_forward.1} parent=1 // pred_check
      _
    $region3: #{generator_forward.1} parent=1 // pred_check_branch
      %14 = sbr.rel (0) target = $region5
    $region4: #{generator_forward.1} parent=1 // pred_region
      _
    $region5: #{generator_forward.1} parent=1 // pred_fallthru
      _
    // Predicated region
    $region6: #{generator_forward.1} parent=1 // pred_check
      _
    $region7: #{generator_forward.1} parent=1 // pred_check_branch
      %16 = sbr.rel (0) target = $region9
    $region8: #{generator_forward.1} parent=1 // pred_region
      %18 = vsyncadd [#allocation3], 0
      %s19 = sshll.u32 %s1, 4
      %s20 = int_to_ptr.hbm [resolvable:$true] %s19
      %s21 = sshll.u32 [#allocation2], 4
      %s22 = int_to_ptr.vmem [resolvable:$true] %s21
      %27 = dma.hbm_to_vmem [thread:$0]  %s20, 1536, %s22, [#allocation3], 768, 768, 48
    $region9: #{generator_forward.1} parent=1 // pred_fallthru
      _
    // Predicated region
    $region10: #{generator_forward.1} parent=1 // pred_check
      _
    $region11: #{generator_forward.1} parent=1 // pred_check_branch
      %29 = sbr.rel (0) target = $region13
    $region12: #{generator_forward.1} parent=1 // pred_region
      %31 = vsyncadd [#allocation5], 0
      %s33 = sshll.u32 %s2, 4
      %s34 = int_to_ptr.hbm [resolvable:$true] %s33
      %s35 = sshll.u32 [#allocation4], 4
      %s36 = int_to_ptr.vmem [resolvable:$true] %s35
      %38 = dma.hbm_to_vmem [thread:$0]  %s34, 192, %s36, [#allocation5]
    $region13: #{generator_forward.1} parent=1 // pred_fallthru
      _
    // Predicated region
    $region14: #{generator_forward.1} parent=1 // pred_check
      _
    $region15: #{generator_forward.1} parent=1 // pred_check_branch
      %40 = sbr.rel (0) target = $region17
    $region16: #{generator_forward.1} parent=1 // pred_region
      %42 = vsyncadd [#allocation5], 0
      %s43 = sshll.u32 %s3, 4
      %s44 = int_to_ptr.hbm [resolvable:$true] %s43
      %s45 = sshll.u32 [#allocation6], 4
      %s46 = int_to_ptr.vmem [resolvable:$true] %s45
      %51 = dma.hbm_to_vmem [thread:$0]  %s44, 196608, %s46, [#allocation5], 1024, 1024, 64
    $region17: #{generator_forward.1} parent=1 // pred_fallthru
      _
    // Predicated region
    $region18: #{generator_forward.1} parent=1 // pred_check
      _
    $region19: #{generator_forward.1} parent=1 // pred_check_branch
      %53 = sbr.rel (0) target = $region21
    $region20: #{generator_forward.1} parent=1 // pred_region
      %55 = vsyncadd [#allocation8], 0
      %s57 = sshll.u32 %s4, 4
      %s58 = int_to_ptr.hbm [resolvable:$true] %s57
      %s59 = sshll.u32 [#allocation7], 4
      %s60 = int_to_ptr.vmem [resolvable:$true] %s59
      %62 = dma.hbm_to_vmem [thread:$0]  %s58, 256, %s60, [#allocation8]
    $region21: #{generator_forward.1} parent=1 // pred_fallthru
      _
    // Predicated region
    $region22: #{generator_forward.1} parent=1 // pred_check
      _
    $region23: #{generator_forward.1} parent=1 // pred_check_branch
      %64 = sbr.rel (0) target = $region25
    $region24: #{generator_forward.1} parent=1 // pred_region
      %66 = dma.done [#allocation3], 1536
    $region25: #{generator_forward.1} parent=1 // pred_fallthru
      _
    // Predicated region
    $region26: #{generator_forward.1} parent=1 // pred_check
      _
    $region27: #{generator_forward.1} parent=1 // pred_check_branch
      %68 = sbr.rel (0) target = $region29
    $region28: #{generator_forward.1} parent=1 // pred_region
      %70 = dma.done [#allocation5], 192
    $region29: #{generator_forward.1} parent=1 // pred_fallthru
      _
    // Predicated region
    $region30: #{generator_forward.1} parent=1 // pred_check
      _
    $region31: #{generator_forward.1} parent=1 // pred_check_branch
      %72 = sbr.rel (0) target = $region33
    $region32: #{generator_forward.1} parent=1 // pred_region
      %74 = dma.done [#allocation5], 196608
    $region33: #{generator_forward.1} parent=1 // pred_fallthru
      _
    // Predicated region
    $region34: #{generator_forward.1} parent=1 // pred_check
      _
    $region35: #{generator_forward.1} parent=1 // pred_check_branch
      %76 = sbr.rel (0) target = $region37
    $region36: #{generator_forward.1} parent=1 // pred_region
      %78 = dma.done [#allocation8], 256
    $region37: #{generator_forward.1} parent=1 // pred_fallthru
      _
    %v80 = vld [vmem:[%s0] sm:$0xff]
    %v81 = vpack.c.bf16 %v80, %v80
    %v82 = vld [vmem:[#allocation2] sm:$0xff]
    %v83 = vld [vmem:[#allocation2 + $0x8] sm:$0xff]
    %v84 = vld [vmem:[#allocation2 + $0x10] sm:$0xff]
    %v85 = vld [vmem:[#allocation2 + $0x18] sm:$0xff]
    %v86 = vld [vmem:[#allocation2 + $0x20] sm:$0xff]
    %v87 = vld [vmem:[#allocation2 + $0x28] sm:$0xff]
    %v88 = vld [vmem:[#allocation2 + $0x30] sm:$0x11]
    %v89 = vld [vmem:[#allocation2 + $0x38] sm:$0x11]
    %v90 = vld [vmem:[#allocation2 + $0x40] sm:$0x11]
    %v91 = vld [vmem:[#allocation2 + $0x48] sm:$0x11]
    %v92 = vld [vmem:[#allocation2 + $0x50] sm:$0x11]
    %v93 = vld [vmem:[#allocation2 + $0x58] sm:$0x11]
    %v94 = vld [vmem:[#allocation4] sm:$0xff]
    %v95 = vld [vmem:[#allocation4 + $0x8] sm:$0xf]
    %v98 = vperm.slane %v94, 0
    %v99 = vperm.slane %v94, 1
    %v100 = vperm.slane %v94, 2
    %v101 = vperm.slane %v94, 3
    %v102 = vperm.slane %v94, 4
    %v103 = vperm.slane %v94, 5
    %v104 = vperm.slane %v94, 6
    %v105 = vperm.slane %v94, 7
    %v106 = vperm.slane %v95, 0
    %v107 = vperm.slane %v95, 1
    %v108 = vperm.slane %v95, 2
    %v109 = vperm.slane %v95, 3
    %v134 = vunpack.c.l.b16 %v82
    %v135 = vunpack.c.h.b16 %v82
    %v136 = vunpack.c.l.b16 %v83
    %v137 = vunpack.c.h.b16 %v83
    %v138 = vunpack.c.l.b16 %v84
    %v139 = vunpack.c.h.b16 %v84
    %v140 = vunpack.c.l.b16 %v85
    %v141 = vunpack.c.h.b16 %v85
    %v142 = vunpack.c.l.b16 %v86
    %v143 = vunpack.c.h.b16 %v86
    %v144 = vunpack.c.l.b16 %v87
    %v145 = vunpack.c.h.b16 %v87
    %v146 = vunpack.c.l.b16 %v88
    %v147 = vunpack.c.h.b16 %v88
    %v148 = vunpack.c.l.b16 %v89
    %v149 = vunpack.c.h.b16 %v89
    %v150 = vunpack.c.l.b16 %v90
    %v151 = vunpack.c.h.b16 %v90
    %v152 = vunpack.c.l.b16 %v91
    %v153 = vunpack.c.h.b16 %v91
    %v154 = vunpack.c.l.b16 %v92
    %v155 = vunpack.c.h.b16 %v92
    %v156 = vunpack.c.l.b16 %v93
    %v157 = vunpack.c.h.b16 %v93
    %v158 = vpack.c.b16 %v146, %v134
    %v159 = vpack.c.b16 %v147, %v135
    %v160 = vpack.c.b16 %v148, %v136
    %v161 = vpack.c.b16 %v149, %v137
    %v162 = vpack.c.b16 %v150, %v138
    %v163 = vpack.c.b16 %v151, %v139
    %v164 = vpack.c.b16 %v152, %v140
    %v165 = vpack.c.b16 %v153, %v141
    %v166 = vpack.c.b16 %v154, %v142
    %v167 = vpack.c.b16 %v155, %v143
    %v168 = vpack.c.b16 %v156, %v144
    %v169 = vpack.c.b16 %v157, %v145
    %vm170 = vcmask 80896
    %v172 = vsel %vm170, %v81, 0
    %vm174 = vcmask 1044480
    %v176 = vsel %vm174, %v158, 0
    %v179 = vsel %vm174, %v159, 0
    %v182 = vsel %vm174, %v160, 0
    %v185 = vsel %vm174, %v161, 0
    %v188 = vsel %vm174, %v162, 0
    %v191 = vsel %vm174, %v163, 0
    %v194 = vsel %vm174, %v164, 0
    %v197 = vsel %vm174, %v165, 0
    %v200 = vsel %vm174, %v166, 0
    %v203 = vsel %vm174, %v167, 0
    %v206 = vsel %vm174, %v168, 0
    %v209 = vsel %vm174, %v169, 0
    %211 = vmatpush.bf16.msra.mxu0 0
    %212 = vmatpush.bf16.msra.mxu0 0
    %213 = vmatpush.bf16.msra.mxu0 0
    %214 = vmatpush.bf16.msra.mxu0 0
    %215 = vmatpush.bf16.msra.mxu0 0
    %216 = vmatpush.bf16.msra.mxu0 0
    %217 = vmatpush.bf16.msra.mxu0 0
    %218 = vmatpush.bf16.msra.mxu0 %v176
    %219 = vmatmul.bf16.gmra.mxu0 %v172
    %v220 = vpop.f32.mrf.mxu0
    %v221 = vadd.f32 %v98, %v220
    %v222 = vpop.f32.mrf.mxu0
    %223 = vdwg.mxu0
    %224 = vmatpush.bf16.msra.mxu0 0
    %225 = vmatpush.bf16.msra.mxu0 0
    %226 = vmatpush.bf16.msra.mxu0 0
    %227 = vmatpush.bf16.msra.mxu0 0
    %228 = vmatpush.bf16.msra.mxu0 0
    %229 = vmatpush.bf16.msra.mxu0 0
    %230 = vmatpush.bf16.msra.mxu0 0
    %231 = vmatpush.bf16.msra.mxu0 %v179
    %232 = vmatmul.bf16.gmra.mxu0 %v172
    %v233 = vpop.f32.mrf.mxu0
    %v234 = vadd.f32 %v99, %v233
    %v235 = vpop.f32.mrf.mxu0
    %236 = vdwg.mxu0
    %237 = vmatpush.bf16.msra.mxu0 0
    %238 = vmatpush.bf16.msra.mxu0 0
    %239 = vmatpush.bf16.msra.mxu0 0
    %240 = vmatpush.bf16.msra.mxu0 0
    %241 = vmatpush.bf16.msra.mxu0 0
    %242 = vmatpush.bf16.msra.mxu0 0
    %243 = vmatpush.bf16.msra.mxu0 0
    %244 = vmatpush.bf16.msra.mxu0 %v182
    %245 = vmatmul.bf16.gmra.mxu0 %v172
    %v246 = vpop.f32.mrf.mxu0
    %v247 = vadd.f32 %v100, %v246
    %v248 = vpop.f32.mrf.mxu0
    %249 = vdwg.mxu0
    %250 = vmatpush.bf16.msra.mxu0 0
    %251 = vmatpush.bf16.msra.mxu0 0
    %252 = vmatpush.bf16.msra.mxu0 0
    %253 = vmatpush.bf16.msra.mxu0 0
    %254 = vmatpush.bf16.msra.mxu0 0
    %255 = vmatpush.bf16.msra.mxu0 0
    %256 = vmatpush.bf16.msra.mxu0 0
    %257 = vmatpush.bf16.msra.mxu0 %v185
    %258 = vmatmul.bf16.gmra.mxu0 %v172
    %v259 = vpop.f32.mrf.mxu0
    %v260 = vadd.f32 %v101, %v259
    %v261 = vpop.f32.mrf.mxu0
    %262 = vdwg.mxu0
    %263 = vmatpush.bf16.msra.mxu0 0
    %264 = vmatpush.bf16.msra.mxu0 0
    %265 = vmatpush.bf16.msra.mxu0 0
    %266 = vmatpush.bf16.msra.mxu0 0
    %267 = vmatpush.bf16.msra.mxu0 0
    %268 = vmatpush.bf16.msra.mxu0 0
    %269 = vmatpush.bf16.msra.mxu0 0
    %270 = vmatpush.bf16.msra.mxu0 %v188
    %271 = vmatmul.bf16.gmra.mxu0 %v172
    %v272 = vpop.f32.mrf.mxu0
    %v273 = vadd.f32 %v102, %v272
    %v274 = vpop.f32.mrf.mxu0
    %275 = vdwg.mxu0
    %276 = vmatpush.bf16.msra.mxu0 0
    %277 = vmatpush.bf16.msra.mxu0 0
    %278 = vmatpush.bf16.msra.mxu0 0
    %279 = vmatpush.bf16.msra.mxu0 0
    %280 = vmatpush.bf16.msra.mxu0 0
    %281 = vmatpush.bf16.msra.mxu0 0
    %282 = vmatpush.bf16.msra.mxu0 0
    %283 = vmatpush.bf16.msra.mxu0 %v191
    %284 = vmatmul.bf16.gmra.mxu0 %v172
    %v285 = vpop.f32.mrf.mxu0
    %v286 = vadd.f32 %v103, %v285
    %v287 = vpop.f32.mrf.mxu0
    %288 = vdwg.mxu0
    %289 = vmatpush.bf16.msra.mxu0 0
    %290 = vmatpush.bf16.msra.mxu0 0
    %291 = vmatpush.bf16.msra.mxu0 0
    %292 = vmatpush.bf16.msra.mxu0 0
    %293 = vmatpush.bf16.msra.mxu0 0
    %294 = vmatpush.bf16.msra.mxu0 0
    %295 = vmatpush.bf16.msra.mxu0 0
    %296 = vmatpush.bf16.msra.mxu0 %v194
    %297 = vmatmul.bf16.gmra.mxu0 %v172
    %v298 = vpop.f32.mrf.mxu0
    %v299 = vadd.f32 %v104, %v298
    %v300 = vpop.f32.mrf.mxu0
    %301 = vdwg.mxu0
    %302 = vmatpush.bf16.msra.mxu0 0
    %303 = vmatpush.bf16.msra.mxu0 0
    %304 = vmatpush.bf16.msra.mxu0 0
    %305 = vmatpush.bf16.msra.mxu0 0
    %306 = vmatpush.bf16.msra.mxu0 0
    %307 = vmatpush.bf16.msra.mxu0 0
    %308 = vmatpush.bf16.msra.mxu0 0
    %309 = vmatpush.bf16.msra.mxu0 %v197
    %310 = vmatmul.bf16.gmra.mxu0 %v172
    %v311 = vpop.f32.mrf.mxu0
    %v312 = vadd.f32 %v105, %v311
    %v313 = vpop.f32.mrf.mxu0
    %314 = vdwg.mxu0
    %315 = vmatpush.bf16.msra.mxu0 0
    %316 = vmatpush.bf16.msra.mxu0 0
    %317 = vmatpush.bf16.msra.mxu0 0
    %318 = vmatpush.bf16.msra.mxu0 0
    %319 = vmatpush.bf16.msra.mxu0 0
    %320 = vmatpush.bf16.msra.mxu0 0
    %321 = vmatpush.bf16.msra.mxu0 0
    %322 = vmatpush.bf16.msra.mxu0 %v200
    %323 = vmatmul.bf16.gmra.mxu0 %v172
    %v324 = vpop.f32.mrf.mxu0
    %v325 = vadd.f32 %v106, %v324
    %v326 = vpop.f32.mrf.mxu0
    %327 = vdwg.mxu0
    %328 = vmatpush.bf16.msra.mxu0 0
    %329 = vmatpush.bf16.msra.mxu0 0
    %330 = vmatpush.bf16.msra.mxu0 0
    %331 = vmatpush.bf16.msra.mxu0 0
    %332 = vmatpush.bf16.msra.mxu0 0
    %333 = vmatpush.bf16.msra.mxu0 0
    %334 = vmatpush.bf16.msra.mxu0 0
    %335 = vmatpush.bf16.msra.mxu0 %v203
    %336 = vmatmul.bf16.gmra.mxu0 %v172
    %v337 = vpop.f32.mrf.mxu0
    %v338 = vadd.f32 %v107, %v337
    %v339 = vpop.f32.mrf.mxu0
    %340 = vdwg.mxu0
    %341 = vmatpush.bf16.msra.mxu0 0
    %342 = vmatpush.bf16.msra.mxu0 0
    %343 = vmatpush.bf16.msra.mxu0 0
    %344 = vmatpush.bf16.msra.mxu0 0
    %345 = vmatpush.bf16.msra.mxu0 0
    %346 = vmatpush.bf16.msra.mxu0 0
    %347 = vmatpush.bf16.msra.mxu0 0
    %348 = vmatpush.bf16.msra.mxu0 %v206
    %349 = vmatmul.bf16.gmra.mxu0 %v172
    %v350 = vpop.f32.mrf.mxu0
    %v351 = vadd.f32 %v108, %v350
    %v352 = vpop.f32.mrf.mxu0
    %353 = vdwg.mxu0
    %354 = vmatpush.bf16.msra.mxu0 0
    %355 = vmatpush.bf16.msra.mxu0 0
    %356 = vmatpush.bf16.msra.mxu0 0
    %357 = vmatpush.bf16.msra.mxu0 0
    %358 = vmatpush.bf16.msra.mxu0 0
    %359 = vmatpush.bf16.msra.mxu0 0
    %360 = vmatpush.bf16.msra.mxu0 0
    %361 = vmatpush.bf16.msra.mxu0 %v209
    %362 = vmatmul.bf16.gmra.mxu0 %v172
    %v363 = vpop.f32.mrf.mxu0
    %v364 = vadd.f32 %v109, %v363
    %v365 = vpop.f32.mrf.mxu0
    %366 = vdwg.mxu0
    %v367 = vmax.f32 %v221, 0.0
    %v368 = vmax.f32 %v234, 0.0
    %v369 = vmax.f32 %v247, 0.0
    %v370 = vmax.f32 %v260, 0.0
    %v371 = vmax.f32 %v273, 0.0
    %v372 = vmax.f32 %v286, 0.0
    %v373 = vmax.f32 %v299, 0.0
    %v374 = vmax.f32 %v312, 0.0
    %v375 = vmax.f32 %v325, 0.0
    %v376 = vmax.f32 %v338, 0.0
    %v377 = vmax.f32 %v351, 0.0
    %v378 = vmax.f32 %v364, 0.0
    %v379 = vpack.c.bf16 %v367, %v367
    %v380 = vpack.c.bf16 %v368, %v368
    %v381 = vpack.c.bf16 %v369, %v369
    %v382 = vpack.c.bf16 %v370, %v370
    %v383 = vpack.c.bf16 %v371, %v371
    %v384 = vpack.c.bf16 %v372, %v372
    %v385 = vpack.c.bf16 %v373, %v373
    %v386 = vpack.c.bf16 %v374, %v374
    %v387 = vpack.c.bf16 %v375, %v375
    %v388 = vpack.c.bf16 %v376, %v376
    %v389 = vpack.c.bf16 %v377, %v377
    %v390 = vpack.c.bf16 %v378, %v378
    %v391 = vld [vmem:[#allocation6] sm:$0xff]
    %v392 = vld [vmem:[#allocation6 + $0x8] sm:$0xff]
    %v393 = vld [vmem:[#allocation6 + $0x10] sm:$0xff]
    %v394 = vld [vmem:[#allocation6 + $0x18] sm:$0xff]
    %v395 = vld [vmem:[#allocation6 + $0x20] sm:$0xff]
    %v396 = vld [vmem:[#allocation6 + $0x28] sm:$0xff]
    %v397 = vld [vmem:[#allocation6 + $0x30] sm:$0xff]
    %v398 = vld [vmem:[#allocation6 + $0x38] sm:$0xff]
    %v399 = vld [vmem:[#allocation6 + $0x40] sm:$0xff]
    %v400 = vld [vmem:[#allocation6 + $0x48] sm:$0xff]
    %v401 = vld [vmem:[#allocation6 + $0x50] sm:$0xff]
    %v402 = vld [vmem:[#allocation6 + $0x58] sm:$0xff]
    %v403 = vld [vmem:[#allocation6 + $0x60] sm:$0xff]
    %v404 = vld [vmem:[#allocation6 + $0x68] sm:$0xff]
    %v405 = vld [vmem:[#allocation6 + $0x70] sm:$0xff]
    %v406 = vld [vmem:[#allocation6 + $0x78] sm:$0xff]
    %v407 = vld [vmem:[#allocation6 + $0x80] sm:$0xff]
    %v408 = vld [vmem:[#allocation6 + $0x88] sm:$0xff]
    %v409 = vld [vmem:[#allocation6 + $0x90] sm:$0xff]
    %v410 = vld [vmem:[#allocation6 + $0x98] sm:$0xff]
    %v411 = vld [vmem:[#allocation6 + $0xa0] sm:$0xff]
    %v412 = vld [vmem:[#allocation6 + $0xa8] sm:$0xff]
    %v413 = vld [vmem:[#allocation6 + $0xb0] sm:$0xff]
    %v414 = vld [vmem:[#allocation6 + $0xb8] sm:$0xff]
    %v415 = vld [vmem:[#allocation6 + $0xc0] sm:$0xff]
    %v416 = vld [vmem:[#allocation6 + $0xc8] sm:$0xff]
    %v417 = vld [vmem:[#allocation6 + $0xd0] sm:$0xff]
    %v418 = vld [vmem:[#allocation6 + $0xd8] sm:$0xff]
    %v419 = vld [vmem:[#allocation6 + $0xe0] sm:$0xff]
    %v420 = vld [vmem:[#allocation6 + $0xe8] sm:$0xff]
    %v421 = vld [vmem:[#allocation6 + $0xf0] sm:$0xff]
    %v422 = vld [vmem:[#allocation6 + $0xf8] sm:$0xff]
    %v423 = vld [vmem:[#allocation6 + $0x100] sm:$0xff]
    %v424 = vld [vmem:[#allocation6 + $0x108] sm:$0xff]
    %v425 = vld [vmem:[#allocation6 + $0x110] sm:$0xff]
    %v426 = vld [vmem:[#allocation6 + $0x118] sm:$0xff]
    %v427 = vld [vmem:[#allocation6 + $0x120] sm:$0xff]
    %v428 = vld [vmem:[#allocation6 + $0x128] sm:$0xff]
    %v429 = vld [vmem:[#allocation6 + $0x130] sm:$0xff]
    %v430 = vld [vmem:[#allocation6 + $0x138] sm:$0xff]
    %v431 = vld [vmem:[#allocation6 + $0x140] sm:$0xff]
    %v432 = vld [vmem:[#allocation6 + $0x148] sm:$0xff]
    %v433 = vld [vmem:[#allocation6 + $0x150] sm:$0xff]
    %v434 = vld [vmem:[#allocation6 + $0x158] sm:$0xff]
    %v435 = vld [vmem:[#allocation6 + $0x160] sm:$0xff]
    %v436 = vld [vmem:[#allocation6 + $0x168] sm:$0xff]
    %v437 = vld [vmem:[#allocation6 + $0x170] sm:$0xff]
    %v438 = vld [vmem:[#allocation6 + $0x178] sm:$0xff]
    %v439 = vld [vmem:[#allocation6 + $0x180] sm:$0xff]
    %v440 = vld [vmem:[#allocation6 + $0x188] sm:$0xff]
    %v441 = vld [vmem:[#allocation6 + $0x190] sm:$0xff]
    %v442 = vld [vmem:[#allocation6 + $0x198] sm:$0xff]
    %v443 = vld [vmem:[#allocation6 + $0x1a0] sm:$0xff]
    %v444 = vld [vmem:[#allocation6 + $0x1a8] sm:$0xff]
    %v445 = vld [vmem:[#allocation6 + $0x1b0] sm:$0xff]
    %v446 = vld [vmem:[#allocation6 + $0x1b8] sm:$0xff]
    %v447 = vld [vmem:[#allocation6 + $0x1c0] sm:$0xff]
    %v448 = vld [vmem:[#allocation6 + $0x1c8] sm:$0xff]
    %v449 = vld [vmem:[#allocation6 + $0x1d0] sm:$0xff]
    %v450 = vld [vmem:[#allocation6 + $0x1d8] sm:$0xff]
    %v451 = vld [vmem:[#allocation6 + $0x1e0] sm:$0xff]
    %v452 = vld [vmem:[#allocation6 + $0x1e8] sm:$0xff]
    %v453 = vld [vmem:[#allocation6 + $0x1f0] sm:$0xff]
    %v454 = vld [vmem:[#allocation6 + $0x1f8] sm:$0xff]
    %v455 = vld [vmem:[#allocation6 + $0x200] sm:$0xff]
    %v456 = vld [vmem:[#allocation6 + $0x208] sm:$0xff]
    %v457 = vld [vmem:[#allocation6 + $0x210] sm:$0xff]
    %v458 = vld [vmem:[#allocation6 + $0x218] sm:$0xff]
    %v459 = vld [vmem:[#allocation6 + $0x220] sm:$0xff]
    %v460 = vld [vmem:[#allocation6 + $0x228] sm:$0xff]
    %v461 = vld [vmem:[#allocation6 + $0x230] sm:$0xff]
    %v462 = vld [vmem:[#allocation6 + $0x238] sm:$0xff]
    %v463 = vld [vmem:[#allocation6 + $0x240] sm:$0xff]
    %v464 = vld [vmem:[#allocation6 + $0x248] sm:$0xff]
    %v465 = vld [vmem:[#allocation6 + $0x250] sm:$0xff]
    %v466 = vld [vmem:[#allocation6 + $0x258] sm:$0xff]
    %v467 = vld [vmem:[#allocation6 + $0x260] sm:$0xff]
    %v468 = vld [vmem:[#allocation6 + $0x268] sm:$0xff]
    %v469 = vld [vmem:[#allocation6 + $0x270] sm:$0xff]
    %v470 = vld [vmem:[#allocation6 + $0x278] sm:$0xff]
    %v471 = vld [vmem:[#allocation6 + $0x280] sm:$0xff]
    %v472 = vld [vmem:[#allocation6 + $0x288] sm:$0xff]
    %v473 = vld [vmem:[#allocation6 + $0x290] sm:$0xff]
    %v474 = vld [vmem:[#allocation6 + $0x298] sm:$0xff]
    %v475 = vld [vmem:[#allocation6 + $0x2a0] sm:$0xff]
    %v476 = vld [vmem:[#allocation6 + $0x2a8] sm:$0xff]
    %v477 = vld [vmem:[#allocation6 + $0x2b0] sm:$0xff]
    %v478 = vld [vmem:[#allocation6 + $0x2b8] sm:$0xff]
    %v479 = vld [vmem:[#allocation6 + $0x2c0] sm:$0xff]
    %v480 = vld [vmem:[#allocation6 + $0x2c8] sm:$0xff]
    %v481 = vld [vmem:[#allocation6 + $0x2d0] sm:$0xff]
    %v482 = vld [vmem:[#allocation6 + $0x2d8] sm:$0xff]
    %v483 = vld [vmem:[#allocation6 + $0x2e0] sm:$0xff]
    %v484 = vld [vmem:[#allocation6 + $0x2e8] sm:$0xff]
    %v485 = vld [vmem:[#allocation6 + $0x2f0] sm:$0xff]
    %v486 = vld [vmem:[#allocation6 + $0x2f8] sm:$0xff]
    %v487 = vld [vmem:[#allocation6 + $0x300] sm:$0xff]
    %v488 = vld [vmem:[#allocation6 + $0x308] sm:$0xff]
    %v489 = vld [vmem:[#allocation6 + $0x310] sm:$0xff]
    %v490 = vld [vmem:[#allocation6 + $0x318] sm:$0xff]
    %v491 = vld [vmem:[#allocation6 + $0x320] sm:$0xff]
    %v492 = vld [vmem:[#allocation6 + $0x328] sm:$0xff]
    %v493 = vld [vmem:[#allocation6 + $0x330] sm:$0xff]
    %v494 = vld [vmem:[#allocation6 + $0x338] sm:$0xff]
    %v495 = vld [vmem:[#allocation6 + $0x340] sm:$0xff]
    %v496 = vld [vmem:[#allocation6 + $0x348] sm:$0xff]
    %v497 = vld [vmem:[#allocation6 + $0x350] sm:$0xff]
    %v498 = vld [vmem:[#allocation6 + $0x358] sm:$0xff]
    %v499 = vld [vmem:[#allocation6 + $0x360] sm:$0xff]
    %v500 = vld [vmem:[#allocation6 + $0x368] sm:$0xff]
    %v501 = vld [vmem:[#allocation6 + $0x370] sm:$0xff]
    %v502 = vld [vmem:[#allocation6 + $0x378] sm:$0xff]
    %v503 = vld [vmem:[#allocation6 + $0x380] sm:$0xff]
    %v504 = vld [vmem:[#allocation6 + $0x388] sm:$0xff]
    %v505 = vld [vmem:[#allocation6 + $0x390] sm:$0xff]
    %v506 = vld [vmem:[#allocation6 + $0x398] sm:$0xff]
    %v507 = vld [vmem:[#allocation6 + $0x3a0] sm:$0xff]
    %v508 = vld [vmem:[#allocation6 + $0x3a8] sm:$0xff]
    %v509 = vld [vmem:[#allocation6 + $0x3b0] sm:$0xff]
    %v510 = vld [vmem:[#allocation6 + $0x3b8] sm:$0xff]
    %v511 = vld [vmem:[#allocation6 + $0x3c0] sm:$0xff]
    %v512 = vld [vmem:[#allocation6 + $0x3c8] sm:$0xff]
    %v513 = vld [vmem:[#allocation6 + $0x3d0] sm:$0xff]
    %v514 = vld [vmem:[#allocation6 + $0x3d8] sm:$0xff]
    %v515 = vld [vmem:[#allocation6 + $0x3e0] sm:$0xff]
    %v516 = vld [vmem:[#allocation6 + $0x3e8] sm:$0xff]
    %v517 = vld [vmem:[#allocation6 + $0x3f0] sm:$0xff]
    %v518 = vld [vmem:[#allocation6 + $0x3f8] sm:$0xff]
    %v519 = vld [vmem:[#allocation6 + $0x400] sm:$0xff]
    %v520 = vld [vmem:[#allocation6 + $0x408] sm:$0xff]
    %v521 = vld [vmem:[#allocation6 + $0x410] sm:$0xff]
    %v522 = vld [vmem:[#allocation6 + $0x418] sm:$0xff]
    %v523 = vld [vmem:[#allocation6 + $0x420] sm:$0xff]
    %v524 = vld [vmem:[#allocation6 + $0x428] sm:$0xff]
    %v525 = vld [vmem:[#allocation6 + $0x430] sm:$0xff]
    %v526 = vld [vmem:[#allocation6 + $0x438] sm:$0xff]
    %v527 = vld [vmem:[#allocation6 + $0x440] sm:$0xff]
    %v528 = vld [vmem:[#allocation6 + $0x448] sm:$0xff]
    %v529 = vld [vmem:[#allocation6 + $0x450] sm:$0xff]
    %v530 = vld [vmem:[#allocation6 + $0x458] sm:$0xff]
    %v531 = vld [vmem:[#allocation6 + $0x460] sm:$0xff]
    %v532 = vld [vmem:[#allocation6 + $0x468] sm:$0xff]
    %v533 = vld [vmem:[#allocation6 + $0x470] sm:$0xff]
    %v534 = vld [vmem:[#allocation6 + $0x478] sm:$0xff]
    %v535 = vld [vmem:[#allocation6 + $0x480] sm:$0xff]
    %v536 = vld [vmem:[#allocation6 + $0x488] sm:$0xff]
    %v537 = vld [vmem:[#allocation6 + $0x490] sm:$0xff]
    %v538 = vld [vmem:[#allocation6 + $0x498] sm:$0xff]
    %v539 = vld [vmem:[#allocation6 + $0x4a0] sm:$0xff]
    %v540 = vld [vmem:[#allocation6 + $0x4a8] sm:$0xff]
    %v541 = vld [vmem:[#allocation6 + $0x4b0] sm:$0xff]
    %v542 = vld [vmem:[#allocation6 + $0x4b8] sm:$0xff]
    %v543 = vld [vmem:[#allocation6 + $0x4c0] sm:$0xff]
    %v544 = vld [vmem:[#allocation6 + $0x4c8] sm:$0xff]
    %v545 = vld [vmem:[#allocation6 + $0x4d0] sm:$0xff]
    %v546 = vld [vmem:[#allocation6 + $0x4d8] sm:$0xff]
    %v547 = vld [vmem:[#allocation6 + $0x4e0] sm:$0xff]
    %v548 = vld [vmem:[#allocation6 + $0x4e8] sm:$0xff]
    %v549 = vld [vmem:[#allocation6 + $0x4f0] sm:$0xff]
    %v550 = vld [vmem:[#allocation6 + $0x4f8] sm:$0xff]
    %v551 = vld [vmem:[#allocation6 + $0x500] sm:$0xff]
    %v552 = vld [vmem:[#allocation6 + $0x508] sm:$0xff]
    %v553 = vld [vmem:[#allocation6 + $0x510] sm:$0xff]
    %v554 = vld [vmem:[#allocation6 + $0x518] sm:$0xff]
    %v555 = vld [vmem:[#allocation6 + $0x520] sm:$0xff]
    %v556 = vld [vmem:[#allocation6 + $0x528] sm:$0xff]
    %v557 = vld [vmem:[#allocation6 + $0x530] sm:$0xff]
    %v558 = vld [vmem:[#allocation6 + $0x538] sm:$0xff]
    %v559 = vld [vmem:[#allocation6 + $0x540] sm:$0xff]
    %v560 = vld [vmem:[#allocation6 + $0x548] sm:$0xff]
    %v561 = vld [vmem:[#allocation6 + $0x550] sm:$0xff]
    %v562 = vld [vmem:[#allocation6 + $0x558] sm:$0xff]
    %v563 = vld [vmem:[#allocation6 + $0x560] sm:$0xff]
    %v564 = vld [vmem:[#allocation6 + $0x568] sm:$0xff]
    %v565 = vld [vmem:[#allocation6 + $0x570] sm:$0xff]
    %v566 = vld [vmem:[#allocation6 + $0x578] sm:$0xff]
    %v567 = vld [vmem:[#allocation6 + $0x580] sm:$0xff]
    %v568 = vld [vmem:[#allocation6 + $0x588] sm:$0xff]
    %v569 = vld [vmem:[#allocation6 + $0x590] sm:$0xff]
    %v570 = vld [vmem:[#allocation6 + $0x598] sm:$0xff]
    %v571 = vld [vmem:[#allocation6 + $0x5a0] sm:$0xff]
    %v572 = vld [vmem:[#allocation6 + $0x5a8] sm:$0xff]
    %v573 = vld [vmem:[#allocation6 + $0x5b0] sm:$0xff]
    %v574 = vld [vmem:[#allocation6 + $0x5b8] sm:$0xff]
    %v575 = vld [vmem:[#allocation6 + $0x5c0] sm:$0xff]
    %v576 = vld [vmem:[#allocation6 + $0x5c8] sm:$0xff]
    %v577 = vld [vmem:[#allocation6 + $0x5d0] sm:$0xff]
    %v578 = vld [vmem:[#allocation6 + $0x5d8] sm:$0xff]
    %v579 = vld [vmem:[#allocation6 + $0x5e0] sm:$0xff]
    %v580 = vld [vmem:[#allocation6 + $0x5e8] sm:$0xff]
    %v581 = vld [vmem:[#allocation6 + $0x5f0] sm:$0xff]
    %v582 = vld [vmem:[#allocation6 + $0x5f8] sm:$0xff]
    %v583 = vld [vmem:[#allocation6 + $0x600] sm:$0xff]
    %v584 = vld [vmem:[#allocation6 + $0x608] sm:$0xff]
    %v585 = vld [vmem:[#allocation6 + $0x610] sm:$0xff]
    %v586 = vld [vmem:[#allocation6 + $0x618] sm:$0xff]
    %v587 = vld [vmem:[#allocation6 + $0x620] sm:$0xff]
    %v588 = vld [vmem:[#allocation6 + $0x628] sm:$0xff]
    %v589 = vld [vmem:[#allocation6 + $0x630] sm:$0xff]
    %v590 = vld [vmem:[#allocation6 + $0x638] sm:$0xff]
    %v591 = vld [vmem:[#allocation6 + $0x640] sm:$0xff]
    %v592 = vld [vmem:[#allocation6 + $0x648] sm:$0xff]
    %v593 = vld [vmem:[#allocation6 + $0x650] sm:$0xff]
    %v594 = vld [vmem:[#allocation6 + $0x658] sm:$0xff]
    %v595 = vld [vmem:[#allocation6 + $0x660] sm:$0xff]
    %v596 = vld [vmem:[#allocation6 + $0x668] sm:$0xff]
    %v597 = vld [vmem:[#allocation6 + $0x670] sm:$0xff]
    %v598 = vld [vmem:[#allocation6 + $0x678] sm:$0xff]
    %v599 = vld [vmem:[#allocation6 + $0x680] sm:$0xff]
    %v600 = vld [vmem:[#allocation6 + $0x688] sm:$0xff]
    %v601 = vld [vmem:[#allocation6 + $0x690] sm:$0xff]
    %v602 = vld [vmem:[#allocation6 + $0x698] sm:$0xff]
    %v603 = vld [vmem:[#allocation6 + $0x6a0] sm:$0xff]
    %v604 = vld [vmem:[#allocation6 + $0x6a8] sm:$0xff]
    %v605 = vld [vmem:[#allocation6 + $0x6b0] sm:$0xff]
    %v606 = vld [vmem:[#allocation6 + $0x6b8] sm:$0xff]
    %v607 = vld [vmem:[#allocation6 + $0x6c0] sm:$0xff]
    %v608 = vld [vmem:[#allocation6 + $0x6c8] sm:$0xff]
    %v609 = vld [vmem:[#allocation6 + $0x6d0] sm:$0xff]
    %v610 = vld [vmem:[#allocation6 + $0x6d8] sm:$0xff]
    %v611 = vld [vmem:[#allocation6 + $0x6e0] sm:$0xff]
    %v612 = vld [vmem:[#allocation6 + $0x6e8] sm:$0xff]
    %v613 = vld [vmem:[#allocation6 + $0x6f0] sm:$0xff]
    %v614 = vld [vmem:[#allocation6 + $0x6f8] sm:$0xff]
    %v615 = vld [vmem:[#allocation6 + $0x700] sm:$0xff]
    %v616 = vld [vmem:[#allocation6 + $0x708] sm:$0xff]
    %v617 = vld [vmem:[#allocation6 + $0x710] sm:$0xff]
    %v618 = vld [vmem:[#allocation6 + $0x718] sm:$0xff]
    %v619 = vld [vmem:[#allocation6 + $0x720] sm:$0xff]
    %v620 = vld [vmem:[#allocation6 + $0x728] sm:$0xff]
    %v621 = vld [vmem:[#allocation6 + $0x730] sm:$0xff]
    %v622 = vld [vmem:[#allocation6 + $0x738] sm:$0xff]
    %v623 = vld [vmem:[#allocation6 + $0x740] sm:$0xff]
    %v624 = vld [vmem:[#allocation6 + $0x748] sm:$0xff]
    %v625 = vld [vmem:[#allocation6 + $0x750] sm:$0xff]
    %v626 = vld [vmem:[#allocation6 + $0x758] sm:$0xff]
    %v627 = vld [vmem:[#allocation6 + $0x760] sm:$0xff]
    %v628 = vld [vmem:[#allocation6 + $0x768] sm:$0xff]
    %v629 = vld [vmem:[#allocation6 + $0x770] sm:$0xff]
    %v630 = vld [vmem:[#allocation6 + $0x778] sm:$0xff]
    %v631 = vld [vmem:[#allocation6 + $0x780] sm:$0xff]
    %v632 = vld [vmem:[#allocation6 + $0x788] sm:$0xff]
    %v633 = vld [vmem:[#allocation6 + $0x790] sm:$0xff]
    %v634 = vld [vmem:[#allocation6 + $0x798] sm:$0xff]
    %v635 = vld [vmem:[#allocation6 + $0x7a0] sm:$0xff]
    %v636 = vld [vmem:[#allocation6 + $0x7a8] sm:$0xff]
    %v637 = vld [vmem:[#allocation6 + $0x7b0] sm:$0xff]
    %v638 = vld [vmem:[#allocation6 + $0x7b8] sm:$0xff]
    %v639 = vld [vmem:[#allocation6 + $0x7c0] sm:$0xff]
    %v640 = vld [vmem:[#allocation6 + $0x7c8] sm:$0xff]
    %v641 = vld [vmem:[#allocation6 + $0x7d0] sm:$0xff]
    %v642 = vld [vmem:[#allocation6 + $0x7d8] sm:$0xff]
    %v643 = vld [vmem:[#allocation6 + $0x7e0] sm:$0xff]
    %v644 = vld [vmem:[#allocation6 + $0x7e8] sm:$0xff]
    %v645 = vld [vmem:[#allocation6 + $0x7f0] sm:$0xff]
    %v646 = vld [vmem:[#allocation6 + $0x7f8] sm:$0xff]
    %v647 = vld [vmem:[#allocation6 + $0x800] sm:$0xff]
    %v648 = vld [vmem:[#allocation6 + $0x808] sm:$0xff]
    %v649 = vld [vmem:[#allocation6 + $0x810] sm:$0xff]
    %v650 = vld [vmem:[#allocation6 + $0x818] sm:$0xff]
    %v651 = vld [vmem:[#allocation6 + $0x820] sm:$0xff]
    %v652 = vld [vmem:[#allocation6 + $0x828] sm:$0xff]
    %v653 = vld [vmem:[#allocation6 + $0x830] sm:$0xff]
    %v654 = vld [vmem:[#allocation6 + $0x838] sm:$0xff]
    %v655 = vld [vmem:[#allocation6 + $0x840] sm:$0xff]
    %v656 = vld [vmem:[#allocation6 + $0x848] sm:$0xff]
    %v657 = vld [vmem:[#allocation6 + $0x850] sm:$0xff]
    %v658 = vld [vmem:[#allocation6 + $0x858] sm:$0xff]
    %v659 = vld [vmem:[#allocation6 + $0x860] sm:$0xff]
    %v660 = vld [vmem:[#allocation6 + $0x868] sm:$0xff]
    %v661 = vld [vmem:[#allocation6 + $0x870] sm:$0xff]
    %v662 = vld [vmem:[#allocation6 + $0x878] sm:$0xff]
    %v663 = vld [vmem:[#allocation6 + $0x880] sm:$0xff]
    %v664 = vld [vmem:[#allocation6 + $0x888] sm:$0xff]
    %v665 = vld [vmem:[#allocation6 + $0x890] sm:$0xff]
    %v666 = vld [vmem:[#allocation6 + $0x898] sm:$0xff]
    %v667 = vld [vmem:[#allocation6 + $0x8a0] sm:$0xff]
    %v668 = vld [vmem:[#allocation6 + $0x8a8] sm:$0xff]
    %v669 = vld [vmem:[#allocation6 + $0x8b0] sm:$0xff]
    %v670 = vld [vmem:[#allocation6 + $0x8b8] sm:$0xff]
    %v671 = vld [vmem:[#allocation6 + $0x8c0] sm:$0xff]
    %v672 = vld [vmem:[#allocation6 + $0x8c8] sm:$0xff]
    %v673 = vld [vmem:[#allocation6 + $0x8d0] sm:$0xff]
    %v674 = vld [vmem:[#allocation6 + $0x8d8] sm:$0xff]
    %v675 = vld [vmem:[#allocation6 + $0x8e0] sm:$0xff]
    %v676 = vld [vmem:[#allocation6 + $0x8e8] sm:$0xff]
    %v677 = vld [vmem:[#allocation6 + $0x8f0] sm:$0xff]
    %v678 = vld [vmem:[#allocation6 + $0x8f8] sm:$0xff]
    %v679 = vld [vmem:[#allocation6 + $0x900] sm:$0xff]
    %v680 = vld [vmem:[#allocation6 + $0x908] sm:$0xff]
    %v681 = vld [vmem:[#allocation6 + $0x910] sm:$0xff]
    %v682 = vld [vmem:[#allocation6 + $0x918] sm:$0xff]
    %v683 = vld [vmem:[#allocation6 + $0x920] sm:$0xff]
    %v684 = vld [vmem:[#allocation6 + $0x928] sm:$0xff]
    %v685 = vld [vmem:[#allocation6 + $0x930] sm:$0xff]
    %v686 = vld [vmem:[#allocation6 + $0x938] sm:$0xff]
    %v687 = vld [vmem:[#allocation6 + $0x940] sm:$0xff]
    %v688 = vld [vmem:[#allocation6 + $0x948] sm:$0xff]
    %v689 = vld [vmem:[#allocation6 + $0x950] sm:$0xff]
    %v690 = vld [vmem:[#allocation6 + $0x958] sm:$0xff]
    %v691 = vld [vmem:[#allocation6 + $0x960] sm:$0xff]
    %v692 = vld [vmem:[#allocation6 + $0x968] sm:$0xff]
    %v693 = vld [vmem:[#allocation6 + $0x970] sm:$0xff]
    %v694 = vld [vmem:[#allocation6 + $0x978] sm:$0xff]
    %v695 = vld [vmem:[#allocation6 + $0x980] sm:$0xff]
    %v696 = vld [vmem:[#allocation6 + $0x988] sm:$0xff]
    %v697 = vld [vmem:[#allocation6 + $0x990] sm:$0xff]
    %v698 = vld [vmem:[#allocation6 + $0x998] sm:$0xff]
    %v699 = vld [vmem:[#allocation6 + $0x9a0] sm:$0xff]
    %v700 = vld [vmem:[#allocation6 + $0x9a8] sm:$0xff]
    %v701 = vld [vmem:[#allocation6 + $0x9b0] sm:$0xff]
    %v702 = vld [vmem:[#allocation6 + $0x9b8] sm:$0xff]
    %v703 = vld [vmem:[#allocation6 + $0x9c0] sm:$0xff]
    %v704 = vld [vmem:[#allocation6 + $0x9c8] sm:$0xff]
    %v705 = vld [vmem:[#allocation6 + $0x9d0] sm:$0xff]
    %v706 = vld [vmem:[#allocation6 + $0x9d8] sm:$0xff]
    %v707 = vld [vmem:[#allocation6 + $0x9e0] sm:$0xff]
    %v708 = vld [vmem:[#allocation6 + $0x9e8] sm:$0xff]
    %v709 = vld [vmem:[#allocation6 + $0x9f0] sm:$0xff]
    %v710 = vld [vmem:[#allocation6 + $0x9f8] sm:$0xff]
    %v711 = vld [vmem:[#allocation6 + $0xa00] sm:$0xff]
    %v712 = vld [vmem:[#allocation6 + $0xa08] sm:$0xff]
    %v713 = vld [vmem:[#allocation6 + $0xa10] sm:$0xff]
    %v714 = vld [vmem:[#allocation6 + $0xa18] sm:$0xff]
    %v715 = vld [vmem:[#allocation6 + $0xa20] sm:$0xff]
    %v716 = vld [vmem:[#allocation6 + $0xa28] sm:$0xff]
    %v717 = vld [vmem:[#allocation6 + $0xa30] sm:$0xff]
    %v718 = vld [vmem:[#allocation6 + $0xa38] sm:$0xff]
    %v719 = vld [vmem:[#allocation6 + $0xa40] sm:$0xff]
    %v720 = vld [vmem:[#allocation6 + $0xa48] sm:$0xff]
    %v721 = vld [vmem:[#allocation6 + $0xa50] sm:$0xff]
    %v722 = vld [vmem:[#allocation6 + $0xa58] sm:$0xff]
    %v723 = vld [vmem:[#allocation6 + $0xa60] sm:$0xff]
    %v724 = vld [vmem:[#allocation6 + $0xa68] sm:$0xff]
    %v725 = vld [vmem:[#allocation6 + $0xa70] sm:$0xff]
    %v726 = vld [vmem:[#allocation6 + $0xa78] sm:$0xff]
    %v727 = vld [vmem:[#allocation6 + $0xa80] sm:$0xff]
    %v728 = vld [vmem:[#allocation6 + $0xa88] sm:$0xff]
    %v729 = vld [vmem:[#allocation6 + $0xa90] sm:$0xff]
    %v730 = vld [vmem:[#allocation6 + $0xa98] sm:$0xff]
    %v731 = vld [vmem:[#allocation6 + $0xaa0] sm:$0xff]
    %v732 = vld [vmem:[#allocation6 + $0xaa8] sm:$0xff]
    %v733 = vld [vmem:[#allocation6 + $0xab0] sm:$0xff]
    %v734 = vld [vmem:[#allocation6 + $0xab8] sm:$0xff]
    %v735 = vld [vmem:[#allocation6 + $0xac0] sm:$0xff]
    %v736 = vld [vmem:[#allocation6 + $0xac8] sm:$0xff]
    %v737 = vld [vmem:[#allocation6 + $0xad0] sm:$0xff]
    %v738 = vld [vmem:[#allocation6 + $0xad8] sm:$0xff]
    %v739 = vld [vmem:[#allocation6 + $0xae0] sm:$0xff]
    %v740 = vld [vmem:[#allocation6 + $0xae8] sm:$0xff]
    %v741 = vld [vmem:[#allocation6 + $0xaf0] sm:$0xff]
    %v742 = vld [vmem:[#allocation6 + $0xaf8] sm:$0xff]
    %v743 = vld [vmem:[#allocation6 + $0xb00] sm:$0xff]
    %v744 = vld [vmem:[#allocation6 + $0xb08] sm:$0xff]
    %v745 = vld [vmem:[#allocation6 + $0xb10] sm:$0xff]
    %v746 = vld [vmem:[#allocation6 + $0xb18] sm:$0xff]
    %v747 = vld [vmem:[#allocation6 + $0xb20] sm:$0xff]
    %v748 = vld [vmem:[#allocation6 + $0xb28] sm:$0xff]
    %v749 = vld [vmem:[#allocation6 + $0xb30] sm:$0xff]
    %v750 = vld [vmem:[#allocation6 + $0xb38] sm:$0xff]
    %v751 = vld [vmem:[#allocation6 + $0xb40] sm:$0xff]
    %v752 = vld [vmem:[#allocation6 + $0xb48] sm:$0xff]
    %v753 = vld [vmem:[#allocation6 + $0xb50] sm:$0xff]
    %v754 = vld [vmem:[#allocation6 + $0xb58] sm:$0xff]
    %v755 = vld [vmem:[#allocation6 + $0xb60] sm:$0xff]
    %v756 = vld [vmem:[#allocation6 + $0xb68] sm:$0xff]
    %v757 = vld [vmem:[#allocation6 + $0xb70] sm:$0xff]
    %v758 = vld [vmem:[#allocation6 + $0xb78] sm:$0xff]
    %v759 = vld [vmem:[#allocation6 + $0xb80] sm:$0xff]
    %v760 = vld [vmem:[#allocation6 + $0xb88] sm:$0xff]
    %v761 = vld [vmem:[#allocation6 + $0xb90] sm:$0xff]
    %v762 = vld [vmem:[#allocation6 + $0xb98] sm:$0xff]
    %v763 = vld [vmem:[#allocation6 + $0xba0] sm:$0xff]
    %v764 = vld [vmem:[#allocation6 + $0xba8] sm:$0xff]
    %v765 = vld [vmem:[#allocation6 + $0xbb0] sm:$0xff]
    %v766 = vld [vmem:[#allocation6 + $0xbb8] sm:$0xff]
    %v767 = vld [vmem:[#allocation6 + $0xbc0] sm:$0xff]
    %v768 = vld [vmem:[#allocation6 + $0xbc8] sm:$0xff]
    %v769 = vld [vmem:[#allocation6 + $0xbd0] sm:$0xff]
    %v770 = vld [vmem:[#allocation6 + $0xbd8] sm:$0xff]
    %v771 = vld [vmem:[#allocation6 + $0xbe0] sm:$0xff]
    %v772 = vld [vmem:[#allocation6 + $0xbe8] sm:$0xff]
    %v773 = vld [vmem:[#allocation6 + $0xbf0] sm:$0xff]
    %v774 = vld [vmem:[#allocation6 + $0xbf8] sm:$0xff]
    %v775 = vld [vmem:[#allocation6 + $0xc00] sm:$0xff]
    %v776 = vld [vmem:[#allocation6 + $0xc08] sm:$0xff]
    %v777 = vld [vmem:[#allocation6 + $0xc10] sm:$0xff]
    %v778 = vld [vmem:[#allocation6 + $0xc18] sm:$0xff]
    %v779 = vld [vmem:[#allocation6 + $0xc20] sm:$0xff]
    %v780 = vld [vmem:[#allocation6 + $0xc28] sm:$0xff]
    %v781 = vld [vmem:[#allocation6 + $0xc30] sm:$0xff]
    %v782 = vld [vmem:[#allocation6 + $0xc38] sm:$0xff]
    %v783 = vld [vmem:[#allocation6 + $0xc40] sm:$0xff]
    %v784 = vld [vmem:[#allocation6 + $0xc48] sm:$0xff]
    %v785 = vld [vmem:[#allocation6 + $0xc50] sm:$0xff]
    %v786 = vld [vmem:[#allocation6 + $0xc58] sm:$0xff]
    %v787 = vld [vmem:[#allocation6 + $0xc60] sm:$0xff]
    %v788 = vld [vmem:[#allocation6 + $0xc68] sm:$0xff]
    %v789 = vld [vmem:[#allocation6 + $0xc70] sm:$0xff]
    %v790 = vld [vmem:[#allocation6 + $0xc78] sm:$0xff]
    %v791 = vld [vmem:[#allocation6 + $0xc80] sm:$0xff]
    %v792 = vld [vmem:[#allocation6 + $0xc88] sm:$0xff]
    %v793 = vld [vmem:[#allocation6 + $0xc90] sm:$0xff]
    %v794 = vld [vmem:[#allocation6 + $0xc98] sm:$0xff]
    %v795 = vld [vmem:[#allocation6 + $0xca0] sm:$0xff]
    %v796 = vld [vmem:[#allocation6 + $0xca8] sm:$0xff]
    %v797 = vld [vmem:[#allocation6 + $0xcb0] sm:$0xff]
    %v798 = vld [vmem:[#allocation6 + $0xcb8] sm:$0xff]
    %v799 = vld [vmem:[#allocation6 + $0xcc0] sm:$0xff]
    %v800 = vld [vmem:[#allocation6 + $0xcc8] sm:$0xff]
    %v801 = vld [vmem:[#allocation6 + $0xcd0] sm:$0xff]
    %v802 = vld [vmem:[#allocation6 + $0xcd8] sm:$0xff]
    %v803 = vld [vmem:[#allocation6 + $0xce0] sm:$0xff]
    %v804 = vld [vmem:[#allocation6 + $0xce8] sm:$0xff]
    %v805 = vld [vmem:[#allocation6 + $0xcf0] sm:$0xff]
    %v806 = vld [vmem:[#allocation6 + $0xcf8] sm:$0xff]
    %v807 = vld [vmem:[#allocation6 + $0xd00] sm:$0xff]
    %v808 = vld [vmem:[#allocation6 + $0xd08] sm:$0xff]
    %v809 = vld [vmem:[#allocation6 + $0xd10] sm:$0xff]
    %v810 = vld [vmem:[#allocation6 + $0xd18] sm:$0xff]
    %v811 = vld [vmem:[#allocation6 + $0xd20] sm:$0xff]
    %v812 = vld [vmem:[#allocation6 + $0xd28] sm:$0xff]
    %v813 = vld [vmem:[#allocation6 + $0xd30] sm:$0xff]
    %v814 = vld [vmem:[#allocation6 + $0xd38] sm:$0xff]
    %v815 = vld [vmem:[#allocation6 + $0xd40] sm:$0xff]
    %v816 = vld [vmem:[#allocation6 + $0xd48] sm:$0xff]
    %v817 = vld [vmem:[#allocation6 + $0xd50] sm:$0xff]
    %v818 = vld [vmem:[#allocation6 + $0xd58] sm:$0xff]
    %v819 = vld [vmem:[#allocation6 + $0xd60] sm:$0xff]
    %v820 = vld [vmem:[#allocation6 + $0xd68] sm:$0xff]
    %v821 = vld [vmem:[#allocation6 + $0xd70] sm:$0xff]
    %v822 = vld [vmem:[#allocation6 + $0xd78] sm:$0xff]
    %v823 = vld [vmem:[#allocation6 + $0xd80] sm:$0xff]
    %v824 = vld [vmem:[#allocation6 + $0xd88] sm:$0xff]
    %v825 = vld [vmem:[#allocation6 + $0xd90] sm:$0xff]
    %v826 = vld [vmem:[#allocation6 + $0xd98] sm:$0xff]
    %v827 = vld [vmem:[#allocation6 + $0xda0] sm:$0xff]
    %v828 = vld [vmem:[#allocation6 + $0xda8] sm:$0xff]
    %v829 = vld [vmem:[#allocation6 + $0xdb0] sm:$0xff]
    %v830 = vld [vmem:[#allocation6 + $0xdb8] sm:$0xff]
    %v831 = vld [vmem:[#allocation6 + $0xdc0] sm:$0xff]
    %v832 = vld [vmem:[#allocation6 + $0xdc8] sm:$0xff]
    %v833 = vld [vmem:[#allocation6 + $0xdd0] sm:$0xff]
    %v834 = vld [vmem:[#allocation6 + $0xdd8] sm:$0xff]
    %v835 = vld [vmem:[#allocation6 + $0xde0] sm:$0xff]
    %v836 = vld [vmem:[#allocation6 + $0xde8] sm:$0xff]
    %v837 = vld [vmem:[#allocation6 + $0xdf0] sm:$0xff]
    %v838 = vld [vmem:[#allocation6 + $0xdf8] sm:$0xff]
    %v839 = vld [vmem:[#allocation6 + $0xe00] sm:$0xff]
    %v840 = vld [vmem:[#allocation6 + $0xe08] sm:$0xff]
    %v841 = vld [vmem:[#allocation6 + $0xe10] sm:$0xff]
    %v842 = vld [vmem:[#allocation6 + $0xe18] sm:$0xff]
    %v843 = vld [vmem:[#allocation6 + $0xe20] sm:$0xff]
    %v844 = vld [vmem:[#allocation6 + $0xe28] sm:$0xff]
    %v845 = vld [vmem:[#allocation6 + $0xe30] sm:$0xff]
    %v846 = vld [vmem:[#allocation6 + $0xe38] sm:$0xff]
    %v847 = vld [vmem:[#allocation6 + $0xe40] sm:$0xff]
    %v848 = vld [vmem:[#allocation6 + $0xe48] sm:$0xff]
    %v849 = vld [vmem:[#allocation6 + $0xe50] sm:$0xff]
    %v850 = vld [vmem:[#allocation6 + $0xe58] sm:$0xff]
    %v851 = vld [vmem:[#allocation6 + $0xe60] sm:$0xff]
    %v852 = vld [vmem:[#allocation6 + $0xe68] sm:$0xff]
    %v853 = vld [vmem:[#allocation6 + $0xe70] sm:$0xff]
    %v854 = vld [vmem:[#allocation6 + $0xe78] sm:$0xff]
    %v855 = vld [vmem:[#allocation6 + $0xe80] sm:$0xff]
    %v856 = vld [vmem:[#allocation6 + $0xe88] sm:$0xff]
    %v857 = vld [vmem:[#allocation6 + $0xe90] sm:$0xff]
    %v858 = vld [vmem:[#allocation6 + $0xe98] sm:$0xff]
    %v859 = vld [vmem:[#allocation6 + $0xea0] sm:$0xff]
    %v860 = vld [vmem:[#allocation6 + $0xea8] sm:$0xff]
    %v861 = vld [vmem:[#allocation6 + $0xeb0] sm:$0xff]
    %v862 = vld [vmem:[#allocation6 + $0xeb8] sm:$0xff]
    %v863 = vld [vmem:[#allocation6 + $0xec0] sm:$0xff]
    %v864 = vld [vmem:[#allocation6 + $0xec8] sm:$0xff]
    %v865 = vld [vmem:[#allocation6 + $0xed0] sm:$0xff]
    %v866 = vld [vmem:[#allocation6 + $0xed8] sm:$0xff]
    %v867 = vld [vmem:[#allocation6 + $0xee0] sm:$0xff]
    %v868 = vld [vmem:[#allocation6 + $0xee8] sm:$0xff]
    %v869 = vld [vmem:[#allocation6 + $0xef0] sm:$0xff]
    %v870 = vld [vmem:[#allocation6 + $0xef8] sm:$0xff]
    %v871 = vld [vmem:[#allocation6 + $0xf00] sm:$0xff]
    %v872 = vld [vmem:[#allocation6 + $0xf08] sm:$0xff]
    %v873 = vld [vmem:[#allocation6 + $0xf10] sm:$0xff]
    %v874 = vld [vmem:[#allocation6 + $0xf18] sm:$0xff]
    %v875 = vld [vmem:[#allocation6 + $0xf20] sm:$0xff]
    %v876 = vld [vmem:[#allocation6 + $0xf28] sm:$0xff]
    %v877 = vld [vmem:[#allocation6 + $0xf30] sm:$0xff]
    %v878 = vld [vmem:[#allocation6 + $0xf38] sm:$0xff]
    %v879 = vld [vmem:[#allocation6 + $0xf40] sm:$0xff]
    %v880 = vld [vmem:[#allocation6 + $0xf48] sm:$0xff]
    %v881 = vld [vmem:[#allocation6 + $0xf50] sm:$0xff]
    %v882 = vld [vmem:[#allocation6 + $0xf58] sm:$0xff]
    %v883 = vld [vmem:[#allocation6 + $0xf60] sm:$0xff]
    %v884 = vld [vmem:[#allocation6 + $0xf68] sm:$0xff]
    %v885 = vld [vmem:[#allocation6 + $0xf70] sm:$0xff]
    %v886 = vld [vmem:[#allocation6 + $0xf78] sm:$0xff]
    %v887 = vld [vmem:[#allocation6 + $0xf80] sm:$0xff]
    %v888 = vld [vmem:[#allocation6 + $0xf88] sm:$0xff]
    %v889 = vld [vmem:[#allocation6 + $0xf90] sm:$0xff]
    %v890 = vld [vmem:[#allocation6 + $0xf98] sm:$0xff]
    %v891 = vld [vmem:[#allocation6 + $0xfa0] sm:$0xff]
    %v892 = vld [vmem:[#allocation6 + $0xfa8] sm:$0xff]
    %v893 = vld [vmem:[#allocation6 + $0xfb0] sm:$0xff]
    %v894 = vld [vmem:[#allocation6 + $0xfb8] sm:$0xff]
    %v895 = vld [vmem:[#allocation6 + $0xfc0] sm:$0xff]
    %v896 = vld [vmem:[#allocation6 + $0xfc8] sm:$0xff]
    %v897 = vld [vmem:[#allocation6 + $0xfd0] sm:$0xff]
    %v898 = vld [vmem:[#allocation6 + $0xfd8] sm:$0xff]
    %v899 = vld [vmem:[#allocation6 + $0xfe0] sm:$0xff]
    %v900 = vld [vmem:[#allocation6 + $0xfe8] sm:$0xff]
    %v901 = vld [vmem:[#allocation6 + $0xff0] sm:$0xff]
    %v902 = vld [vmem:[#allocation6 + $0xff8] sm:$0xff]
    %v903 = vld [vmem:[#allocation6 + $0x1000] sm:$0xff]
    %v904 = vld [vmem:[#allocation6 + $0x1008] sm:$0xff]
    %v905 = vld [vmem:[#allocation6 + $0x1010] sm:$0xff]
    %v906 = vld [vmem:[#allocation6 + $0x1018] sm:$0xff]
    %v907 = vld [vmem:[#allocation6 + $0x1020] sm:$0xff]
    %v908 = vld [vmem:[#allocation6 + $0x1028] sm:$0xff]
    %v909 = vld [vmem:[#allocation6 + $0x1030] sm:$0xff]
    %v910 = vld [vmem:[#allocation6 + $0x1038] sm:$0xff]
    %v911 = vld [vmem:[#allocation6 + $0x1040] sm:$0xff]
    %v912 = vld [vmem:[#allocation6 + $0x1048] sm:$0xff]
    %v913 = vld [vmem:[#allocation6 + $0x1050] sm:$0xff]
    %v914 = vld [vmem:[#allocation6 + $0x1058] sm:$0xff]
    %v915 = vld [vmem:[#allocation6 + $0x1060] sm:$0xff]
    %v916 = vld [vmem:[#allocation6 + $0x1068] sm:$0xff]
    %v917 = vld [vmem:[#allocation6 + $0x1070] sm:$0xff]
    %v918 = vld [vmem:[#allocation6 + $0x1078] sm:$0xff]
    %v919 = vld [vmem:[#allocation6 + $0x1080] sm:$0xff]
    %v920 = vld [vmem:[#allocation6 + $0x1088] sm:$0xff]
    %v921 = vld [vmem:[#allocation6 + $0x1090] sm:$0xff]
    %v922 = vld [vmem:[#allocation6 + $0x1098] sm:$0xff]
    %v923 = vld [vmem:[#allocation6 + $0x10a0] sm:$0xff]
    %v924 = vld [vmem:[#allocation6 + $0x10a8] sm:$0xff]
    %v925 = vld [vmem:[#allocation6 + $0x10b0] sm:$0xff]
    %v926 = vld [vmem:[#allocation6 + $0x10b8] sm:$0xff]
    %v927 = vld [vmem:[#allocation6 + $0x10c0] sm:$0xff]
    %v928 = vld [vmem:[#allocation6 + $0x10c8] sm:$0xff]
    %v929 = vld [vmem:[#allocation6 + $0x10d0] sm:$0xff]
    %v930 = vld [vmem:[#allocation6 + $0x10d8] sm:$0xff]
    %v931 = vld [vmem:[#allocation6 + $0x10e0] sm:$0xff]
    %v932 = vld [vmem:[#allocation6 + $0x10e8] sm:$0xff]
    %v933 = vld [vmem:[#allocation6 + $0x10f0] sm:$0xff]
    %v934 = vld [vmem:[#allocation6 + $0x10f8] sm:$0xff]
    %v935 = vld [vmem:[#allocation6 + $0x1100] sm:$0xff]
    %v936 = vld [vmem:[#allocation6 + $0x1108] sm:$0xff]
    %v937 = vld [vmem:[#allocation6 + $0x1110] sm:$0xff]
    %v938 = vld [vmem:[#allocation6 + $0x1118] sm:$0xff]
    %v939 = vld [vmem:[#allocation6 + $0x1120] sm:$0xff]
    %v940 = vld [vmem:[#allocation6 + $0x1128] sm:$0xff]
    %v941 = vld [vmem:[#allocation6 + $0x1130] sm:$0xff]
    %v942 = vld [vmem:[#allocation6 + $0x1138] sm:$0xff]
    %v943 = vld [vmem:[#allocation6 + $0x1140] sm:$0xff]
    %v944 = vld [vmem:[#allocation6 + $0x1148] sm:$0xff]
    %v945 = vld [vmem:[#allocation6 + $0x1150] sm:$0xff]
    %v946 = vld [vmem:[#allocation6 + $0x1158] sm:$0xff]
    %v947 = vld [vmem:[#allocation6 + $0x1160] sm:$0xff]
    %v948 = vld [vmem:[#allocation6 + $0x1168] sm:$0xff]
    %v949 = vld [vmem:[#allocation6 + $0x1170] sm:$0xff]
    %v950 = vld [vmem:[#allocation6 + $0x1178] sm:$0xff]
    %v951 = vld [vmem:[#allocation6 + $0x1180] sm:$0xff]
    %v952 = vld [vmem:[#allocation6 + $0x1188] sm:$0xff]
    %v953 = vld [vmem:[#allocation6 + $0x1190] sm:$0xff]
    %v954 = vld [vmem:[#allocation6 + $0x1198] sm:$0xff]
    %v955 = vld [vmem:[#allocation6 + $0x11a0] sm:$0xff]
    %v956 = vld [vmem:[#allocation6 + $0x11a8] sm:$0xff]
    %v957 = vld [vmem:[#allocation6 + $0x11b0] sm:$0xff]
    %v958 = vld [vmem:[#allocation6 + $0x11b8] sm:$0xff]
    %v959 = vld [vmem:[#allocation6 + $0x11c0] sm:$0xff]
    %v960 = vld [vmem:[#allocation6 + $0x11c8] sm:$0xff]
    %v961 = vld [vmem:[#allocation6 + $0x11d0] sm:$0xff]
    %v962 = vld [vmem:[#allocation6 + $0x11d8] sm:$0xff]
    %v963 = vld [vmem:[#allocation6 + $0x11e0] sm:$0xff]
    %v964 = vld [vmem:[#allocation6 + $0x11e8] sm:$0xff]
    %v965 = vld [vmem:[#allocation6 + $0x11f0] sm:$0xff]
    %v966 = vld [vmem:[#allocation6 + $0x11f8] sm:$0xff]
    %v967 = vld [vmem:[#allocation6 + $0x1200] sm:$0xff]
    %v968 = vld [vmem:[#allocation6 + $0x1208] sm:$0xff]
    %v969 = vld [vmem:[#allocation6 + $0x1210] sm:$0xff]
    %v970 = vld [vmem:[#allocation6 + $0x1218] sm:$0xff]
    %v971 = vld [vmem:[#allocation6 + $0x1220] sm:$0xff]
    %v972 = vld [vmem:[#allocation6 + $0x1228] sm:$0xff]
    %v973 = vld [vmem:[#allocation6 + $0x1230] sm:$0xff]
    %v974 = vld [vmem:[#allocation6 + $0x1238] sm:$0xff]
    %v975 = vld [vmem:[#allocation6 + $0x1240] sm:$0xff]
    %v976 = vld [vmem:[#allocation6 + $0x1248] sm:$0xff]
    %v977 = vld [vmem:[#allocation6 + $0x1250] sm:$0xff]
    %v978 = vld [vmem:[#allocation6 + $0x1258] sm:$0xff]
    %v979 = vld [vmem:[#allocation6 + $0x1260] sm:$0xff]
    %v980 = vld [vmem:[#allocation6 + $0x1268] sm:$0xff]
    %v981 = vld [vmem:[#allocation6 + $0x1270] sm:$0xff]
    %v982 = vld [vmem:[#allocation6 + $0x1278] sm:$0xff]
    %v983 = vld [vmem:[#allocation6 + $0x1280] sm:$0xff]
    %v984 = vld [vmem:[#allocation6 + $0x1288] sm:$0xff]
    %v985 = vld [vmem:[#allocation6 + $0x1290] sm:$0xff]
    %v986 = vld [vmem:[#allocation6 + $0x1298] sm:$0xff]
    %v987 = vld [vmem:[#allocation6 + $0x12a0] sm:$0xff]
    %v988 = vld [vmem:[#allocation6 + $0x12a8] sm:$0xff]
    %v989 = vld [vmem:[#allocation6 + $0x12b0] sm:$0xff]
    %v990 = vld [vmem:[#allocation6 + $0x12b8] sm:$0xff]
    %v991 = vld [vmem:[#allocation6 + $0x12c0] sm:$0xff]
    %v992 = vld [vmem:[#allocation6 + $0x12c8] sm:$0xff]
    %v993 = vld [vmem:[#allocation6 + $0x12d0] sm:$0xff]
    %v994 = vld [vmem:[#allocation6 + $0x12d8] sm:$0xff]
    %v995 = vld [vmem:[#allocation6 + $0x12e0] sm:$0xff]
    %v996 = vld [vmem:[#allocation6 + $0x12e8] sm:$0xff]
    %v997 = vld [vmem:[#allocation6 + $0x12f0] sm:$0xff]
    %v998 = vld [vmem:[#allocation6 + $0x12f8] sm:$0xff]
    %v999 = vld [vmem:[#allocation6 + $0x1300] sm:$0xff]
    %v1000 = vld [vmem:[#allocation6 + $0x1308] sm:$0xff]
    %v1001 = vld [vmem:[#allocation6 + $0x1310] sm:$0xff]
    %v1002 = vld [vmem:[#allocation6 + $0x1318] sm:$0xff]
    %v1003 = vld [vmem:[#allocation6 + $0x1320] sm:$0xff]
    %v1004 = vld [vmem:[#allocation6 + $0x1328] sm:$0xff]
    %v1005 = vld [vmem:[#allocation6 + $0x1330] sm:$0xff]
    %v1006 = vld [vmem:[#allocation6 + $0x1338] sm:$0xff]
    %v1007 = vld [vmem:[#allocation6 + $0x1340] sm:$0xff]
    %v1008 = vld [vmem:[#allocation6 + $0x1348] sm:$0xff]
    %v1009 = vld [vmem:[#allocation6 + $0x1350] sm:$0xff]
    %v1010 = vld [vmem:[#allocation6 + $0x1358] sm:$0xff]
    %v1011 = vld [vmem:[#allocation6 + $0x1360] sm:$0xff]
    %v1012 = vld [vmem:[#allocation6 + $0x1368] sm:$0xff]
    %v1013 = vld [vmem:[#allocation6 + $0x1370] sm:$0xff]
    %v1014 = vld [vmem:[#allocation6 + $0x1378] sm:$0xff]
    %v1015 = vld [vmem:[#allocation6 + $0x1380] sm:$0xff]
    %v1016 = vld [vmem:[#allocation6 + $0x1388] sm:$0xff]
    %v1017 = vld [vmem:[#allocation6 + $0x1390] sm:$0xff]
    %v1018 = vld [vmem:[#allocation6 + $0x1398] sm:$0xff]
    %v1019 = vld [vmem:[#allocation6 + $0x13a0] sm:$0xff]
    %v1020 = vld [vmem:[#allocation6 + $0x13a8] sm:$0xff]
    %v1021 = vld [vmem:[#allocation6 + $0x13b0] sm:$0xff]
    %v1022 = vld [vmem:[#allocation6 + $0x13b8] sm:$0xff]
    %v1023 = vld [vmem:[#allocation6 + $0x13c0] sm:$0xff]
    %v1024 = vld [vmem:[#allocation6 + $0x13c8] sm:$0xff]
    %v1025 = vld [vmem:[#allocation6 + $0x13d0] sm:$0xff]
    %v1026 = vld [vmem:[#allocation6 + $0x13d8] sm:$0xff]
    %v1027 = vld [vmem:[#allocation6 + $0x13e0] sm:$0xff]
    %v1028 = vld [vmem:[#allocation6 + $0x13e8] sm:$0xff]
    %v1029 = vld [vmem:[#allocation6 + $0x13f0] sm:$0xff]
    %v1030 = vld [vmem:[#allocation6 + $0x13f8] sm:$0xff]
    %v1031 = vld [vmem:[#allocation6 + $0x1400] sm:$0xff]
    %v1032 = vld [vmem:[#allocation6 + $0x1408] sm:$0xff]
    %v1033 = vld [vmem:[#allocation6 + $0x1410] sm:$0xff]
    %v1034 = vld [vmem:[#allocation6 + $0x1418] sm:$0xff]
    %v1035 = vld [vmem:[#allocation6 + $0x1420] sm:$0xff]
    %v1036 = vld [vmem:[#allocation6 + $0x1428] sm:$0xff]
    %v1037 = vld [vmem:[#allocation6 + $0x1430] sm:$0xff]
    %v1038 = vld [vmem:[#allocation6 + $0x1438] sm:$0xff]
    %v1039 = vld [vmem:[#allocation6 + $0x1440] sm:$0xff]
    %v1040 = vld [vmem:[#allocation6 + $0x1448] sm:$0xff]
    %v1041 = vld [vmem:[#allocation6 + $0x1450] sm:$0xff]
    %v1042 = vld [vmem:[#allocation6 + $0x1458] sm:$0xff]
    %v1043 = vld [vmem:[#allocation6 + $0x1460] sm:$0xff]
    %v1044 = vld [vmem:[#allocation6 + $0x1468] sm:$0xff]
    %v1045 = vld [vmem:[#allocation6 + $0x1470] sm:$0xff]
    %v1046 = vld [vmem:[#allocation6 + $0x1478] sm:$0xff]
    %v1047 = vld [vmem:[#allocation6 + $0x1480] sm:$0xff]
    %v1048 = vld [vmem:[#allocation6 + $0x1488] sm:$0xff]
    %v1049 = vld [vmem:[#allocation6 + $0x1490] sm:$0xff]
    %v1050 = vld [vmem:[#allocation6 + $0x1498] sm:$0xff]
    %v1051 = vld [vmem:[#allocation6 + $0x14a0] sm:$0xff]
    %v1052 = vld [vmem:[#allocation6 + $0x14a8] sm:$0xff]
    %v1053 = vld [vmem:[#allocation6 + $0x14b0] sm:$0xff]
    %v1054 = vld [vmem:[#allocation6 + $0x14b8] sm:$0xff]
    %v1055 = vld [vmem:[#allocation6 + $0x14c0] sm:$0xff]
    %v1056 = vld [vmem:[#allocation6 + $0x14c8] sm:$0xff]
    %v1057 = vld [vmem:[#allocation6 + $0x14d0] sm:$0xff]
    %v1058 = vld [vmem:[#allocation6 + $0x14d8] sm:$0xff]
    %v1059 = vld [vmem:[#allocation6 + $0x14e0] sm:$0xff]
    %v1060 = vld [vmem:[#allocation6 + $0x14e8] sm:$0xff]
    %v1061 = vld [vmem:[#allocation6 + $0x14f0] sm:$0xff]
    %v1062 = vld [vmem:[#allocation6 + $0x14f8] sm:$0xff]
    %v1063 = vld [vmem:[#allocation6 + $0x1500] sm:$0xff]
    %v1064 = vld [vmem:[#allocation6 + $0x1508] sm:$0xff]
    %v1065 = vld [vmem:[#allocation6 + $0x1510] sm:$0xff]
    %v1066 = vld [vmem:[#allocation6 + $0x1518] sm:$0xff]
    %v1067 = vld [vmem:[#allocation6 + $0x1520] sm:$0xff]
    %v1068 = vld [vmem:[#allocation6 + $0x1528] sm:$0xff]
    %v1069 = vld [vmem:[#allocation6 + $0x1530] sm:$0xff]
    %v1070 = vld [vmem:[#allocation6 + $0x1538] sm:$0xff]
    %v1071 = vld [vmem:[#allocation6 + $0x1540] sm:$0xff]
    %v1072 = vld [vmem:[#allocation6 + $0x1548] sm:$0xff]
    %v1073 = vld [vmem:[#allocation6 + $0x1550] sm:$0xff]
    %v1074 = vld [vmem:[#allocation6 + $0x1558] sm:$0xff]
    %v1075 = vld [vmem:[#allocation6 + $0x1560] sm:$0xff]
    %v1076 = vld [vmem:[#allocation6 + $0x1568] sm:$0xff]
    %v1077 = vld [vmem:[#allocation6 + $0x1570] sm:$0xff]
    %v1078 = vld [vmem:[#allocation6 + $0x1578] sm:$0xff]
    %v1079 = vld [vmem:[#allocation6 + $0x1580] sm:$0xff]
    %v1080 = vld [vmem:[#allocation6 + $0x1588] sm:$0xff]
    %v1081 = vld [vmem:[#allocation6 + $0x1590] sm:$0xff]
    %v1082 = vld [vmem:[#allocation6 + $0x1598] sm:$0xff]
    %v1083 = vld [vmem:[#allocation6 + $0x15a0] sm:$0xff]
    %v1084 = vld [vmem:[#allocation6 + $0x15a8] sm:$0xff]
    %v1085 = vld [vmem:[#allocation6 + $0x15b0] sm:$0xff]
    %v1086 = vld [vmem:[#allocation6 + $0x15b8] sm:$0xff]
    %v1087 = vld [vmem:[#allocation6 + $0x15c0] sm:$0xff]
    %v1088 = vld [vmem:[#allocation6 + $0x15c8] sm:$0xff]
    %v1089 = vld [vmem:[#allocation6 + $0x15d0] sm:$0xff]
    %v1090 = vld [vmem:[#allocation6 + $0x15d8] sm:$0xff]
    %v1091 = vld [vmem:[#allocation6 + $0x15e0] sm:$0xff]
    %v1092 = vld [vmem:[#allocation6 + $0x15e8] sm:$0xff]
    %v1093 = vld [vmem:[#allocation6 + $0x15f0] sm:$0xff]
    %v1094 = vld [vmem:[#allocation6 + $0x15f8] sm:$0xff]
    %v1095 = vld [vmem:[#allocation6 + $0x1600] sm:$0xff]
    %v1096 = vld [vmem:[#allocation6 + $0x1608] sm:$0xff]
    %v1097 = vld [vmem:[#allocation6 + $0x1610] sm:$0xff]
    %v1098 = vld [vmem:[#allocation6 + $0x1618] sm:$0xff]
    %v1099 = vld [vmem:[#allocation6 + $0x1620] sm:$0xff]
    %v1100 = vld [vmem:[#allocation6 + $0x1628] sm:$0xff]
    %v1101 = vld [vmem:[#allocation6 + $0x1630] sm:$0xff]
    %v1102 = vld [vmem:[#allocation6 + $0x1638] sm:$0xff]
    %v1103 = vld [vmem:[#allocation6 + $0x1640] sm:$0xff]
    %v1104 = vld [vmem:[#allocation6 + $0x1648] sm:$0xff]
    %v1105 = vld [vmem:[#allocation6 + $0x1650] sm:$0xff]
    %v1106 = vld [vmem:[#allocation6 + $0x1658] sm:$0xff]
    %v1107 = vld [vmem:[#allocation6 + $0x1660] sm:$0xff]
    %v1108 = vld [vmem:[#allocation6 + $0x1668] sm:$0xff]
    %v1109 = vld [vmem:[#allocation6 + $0x1670] sm:$0xff]
    %v1110 = vld [vmem:[#allocation6 + $0x1678] sm:$0xff]
    %v1111 = vld [vmem:[#allocation6 + $0x1680] sm:$0xff]
    %v1112 = vld [vmem:[#allocation6 + $0x1688] sm:$0xff]
    %v1113 = vld [vmem:[#allocation6 + $0x1690] sm:$0xff]
    %v1114 = vld [vmem:[#allocation6 + $0x1698] sm:$0xff]
    %v1115 = vld [vmem:[#allocation6 + $0x16a0] sm:$0xff]
    %v1116 = vld [vmem:[#allocation6 + $0x16a8] sm:$0xff]
    %v1117 = vld [vmem:[#allocation6 + $0x16b0] sm:$0xff]
    %v1118 = vld [vmem:[#allocation6 + $0x16b8] sm:$0xff]
    %v1119 = vld [vmem:[#allocation6 + $0x16c0] sm:$0xff]
    %v1120 = vld [vmem:[#allocation6 + $0x16c8] sm:$0xff]
    %v1121 = vld [vmem:[#allocation6 + $0x16d0] sm:$0xff]
    %v1122 = vld [vmem:[#allocation6 + $0x16d8] sm:$0xff]
    %v1123 = vld [vmem:[#allocation6 + $0x16e0] sm:$0xff]
    %v1124 = vld [vmem:[#allocation6 + $0x16e8] sm:$0xff]
    %v1125 = vld [vmem:[#allocation6 + $0x16f0] sm:$0xff]
    %v1126 = vld [vmem:[#allocation6 + $0x16f8] sm:$0xff]
    %v1127 = vld [vmem:[#allocation6 + $0x1700] sm:$0xff]
    %v1128 = vld [vmem:[#allocation6 + $0x1708] sm:$0xff]
    %v1129 = vld [vmem:[#allocation6 + $0x1710] sm:$0xff]
    %v1130 = vld [vmem:[#allocation6 + $0x1718] sm:$0xff]
    %v1131 = vld [vmem:[#allocation6 + $0x1720] sm:$0xff]
    %v1132 = vld [vmem:[#allocation6 + $0x1728] sm:$0xff]
    %v1133 = vld [vmem:[#allocation6 + $0x1730] sm:$0xff]
    %v1134 = vld [vmem:[#allocation6 + $0x1738] sm:$0xff]
    %v1135 = vld [vmem:[#allocation6 + $0x1740] sm:$0xff]
    %v1136 = vld [vmem:[#allocation6 + $0x1748] sm:$0xff]
    %v1137 = vld [vmem:[#allocation6 + $0x1750] sm:$0xff]
    %v1138 = vld [vmem:[#allocation6 + $0x1758] sm:$0xff]
    %v1139 = vld [vmem:[#allocation6 + $0x1760] sm:$0xff]
    %v1140 = vld [vmem:[#allocation6 + $0x1768] sm:$0xff]
    %v1141 = vld [vmem:[#allocation6 + $0x1770] sm:$0xff]
    %v1142 = vld [vmem:[#allocation6 + $0x1778] sm:$0xff]
    %v1143 = vld [vmem:[#allocation6 + $0x1780] sm:$0xff]
    %v1144 = vld [vmem:[#allocation6 + $0x1788] sm:$0xff]
    %v1145 = vld [vmem:[#allocation6 + $0x1790] sm:$0xff]
    %v1146 = vld [vmem:[#allocation6 + $0x1798] sm:$0xff]
    %v1147 = vld [vmem:[#allocation6 + $0x17a0] sm:$0xff]
    %v1148 = vld [vmem:[#allocation6 + $0x17a8] sm:$0xff]
    %v1149 = vld [vmem:[#allocation6 + $0x17b0] sm:$0xff]
    %v1150 = vld [vmem:[#allocation6 + $0x17b8] sm:$0xff]
    %v1151 = vld [vmem:[#allocation6 + $0x17c0] sm:$0xff]
    %v1152 = vld [vmem:[#allocation6 + $0x17c8] sm:$0xff]
    %v1153 = vld [vmem:[#allocation6 + $0x17d0] sm:$0xff]
    %v1154 = vld [vmem:[#allocation6 + $0x17d8] sm:$0xff]
    %v1155 = vld [vmem:[#allocation6 + $0x17e0] sm:$0xff]
    %v1156 = vld [vmem:[#allocation6 + $0x17e8] sm:$0xff]
    %v1157 = vld [vmem:[#allocation6 + $0x17f0] sm:$0xff]
    %v1158 = vld [vmem:[#allocation6 + $0x17f8] sm:$0xff]
    %v1159 = vld [vmem:[#allocation6 + $0x1800] sm:$0xff]
    %v1160 = vld [vmem:[#allocation6 + $0x1808] sm:$0xff]
    %v1161 = vld [vmem:[#allocation6 + $0x1810] sm:$0xff]
    %v1162 = vld [vmem:[#allocation6 + $0x1818] sm:$0xff]
    %v1163 = vld [vmem:[#allocation6 + $0x1820] sm:$0xff]
    %v1164 = vld [vmem:[#allocation6 + $0x1828] sm:$0xff]
    %v1165 = vld [vmem:[#allocation6 + $0x1830] sm:$0xff]
    %v1166 = vld [vmem:[#allocation6 + $0x1838] sm:$0xff]
    %v1167 = vld [vmem:[#allocation6 + $0x1840] sm:$0xff]
    %v1168 = vld [vmem:[#allocation6 + $0x1848] sm:$0xff]
    %v1169 = vld [vmem:[#allocation6 + $0x1850] sm:$0xff]
    %v1170 = vld [vmem:[#allocation6 + $0x1858] sm:$0xff]
    %v1171 = vld [vmem:[#allocation6 + $0x1860] sm:$0xff]
    %v1172 = vld [vmem:[#allocation6 + $0x1868] sm:$0xff]
    %v1173 = vld [vmem:[#allocation6 + $0x1870] sm:$0xff]
    %v1174 = vld [vmem:[#allocation6 + $0x1878] sm:$0xff]
    %v1175 = vld [vmem:[#allocation6 + $0x1880] sm:$0xff]
    %v1176 = vld [vmem:[#allocation6 + $0x1888] sm:$0xff]
    %v1177 = vld [vmem:[#allocation6 + $0x1890] sm:$0xff]
    %v1178 = vld [vmem:[#allocation6 + $0x1898] sm:$0xff]
    %v1179 = vld [vmem:[#allocation6 + $0x18a0] sm:$0xff]
    %v1180 = vld [vmem:[#allocation6 + $0x18a8] sm:$0xff]
    %v1181 = vld [vmem:[#allocation6 + $0x18b0] sm:$0xff]
    %v1182 = vld [vmem:[#allocation6 + $0x18b8] sm:$0xff]
    %v1183 = vld [vmem:[#allocation6 + $0x18c0] sm:$0xff]
    %v1184 = vld [vmem:[#allocation6 + $0x18c8] sm:$0xff]
    %v1185 = vld [vmem:[#allocation6 + $0x18d0] sm:$0xff]
    %v1186 = vld [vmem:[#allocation6 + $0x18d8] sm:$0xff]
    %v1187 = vld [vmem:[#allocation6 + $0x18e0] sm:$0xff]
    %v1188 = vld [vmem:[#allocation6 + $0x18e8] sm:$0xff]
    %v1189 = vld [vmem:[#allocation6 + $0x18f0] sm:$0xff]
    %v1190 = vld [vmem:[#allocation6 + $0x18f8] sm:$0xff]
    %v1191 = vld [vmem:[#allocation6 + $0x1900] sm:$0xff]
    %v1192 = vld [vmem:[#allocation6 + $0x1908] sm:$0xff]
    %v1193 = vld [vmem:[#allocation6 + $0x1910] sm:$0xff]
    %v1194 = vld [vmem:[#allocation6 + $0x1918] sm:$0xff]
    %v1195 = vld [vmem:[#allocation6 + $0x1920] sm:$0xff]
    %v1196 = vld [vmem:[#allocation6 + $0x1928] sm:$0xff]
    %v1197 = vld [vmem:[#allocation6 + $0x1930] sm:$0xff]
    %v1198 = vld [vmem:[#allocation6 + $0x1938] sm:$0xff]
    %v1199 = vld [vmem:[#allocation6 + $0x1940] sm:$0xff]
    %v1200 = vld [vmem:[#allocation6 + $0x1948] sm:$0xff]
    %v1201 = vld [vmem:[#allocation6 + $0x1950] sm:$0xff]
    %v1202 = vld [vmem:[#allocation6 + $0x1958] sm:$0xff]
    %v1203 = vld [vmem:[#allocation6 + $0x1960] sm:$0xff]
    %v1204 = vld [vmem:[#allocation6 + $0x1968] sm:$0xff]
    %v1205 = vld [vmem:[#allocation6 + $0x1970] sm:$0xff]
    %v1206 = vld [vmem:[#allocation6 + $0x1978] sm:$0xff]
    %v1207 = vld [vmem:[#allocation6 + $0x1980] sm:$0xff]
    %v1208 = vld [vmem:[#allocation6 + $0x1988] sm:$0xff]
    %v1209 = vld [vmem:[#allocation6 + $0x1990] sm:$0xff]
    %v1210 = vld [vmem:[#allocation6 + $0x1998] sm:$0xff]
    %v1211 = vld [vmem:[#allocation6 + $0x19a0] sm:$0xff]
    %v1212 = vld [vmem:[#allocation6 + $0x19a8] sm:$0xff]
    %v1213 = vld [vmem:[#allocation6 + $0x19b0] sm:$0xff]
    %v1214 = vld [vmem:[#allocation6 + $0x19b8] sm:$0xff]
    %v1215 = vld [vmem:[#allocation6 + $0x19c0] sm:$0xff]
    %v1216 = vld [vmem:[#allocation6 + $0x19c8] sm:$0xff]
    %v1217 = vld [vmem:[#allocation6 + $0x19d0] sm:$0xff]
    %v1218 = vld [vmem:[#allocation6 + $0x19d8] sm:$0xff]
    %v1219 = vld [vmem:[#allocation6 + $0x19e0] sm:$0xff]
    %v1220 = vld [vmem:[#allocation6 + $0x19e8] sm:$0xff]
    %v1221 = vld [vmem:[#allocation6 + $0x19f0] sm:$0xff]
    %v1222 = vld [vmem:[#allocation6 + $0x19f8] sm:$0xff]
    %v1223 = vld [vmem:[#allocation6 + $0x1a00] sm:$0xff]
    %v1224 = vld [vmem:[#allocation6 + $0x1a08] sm:$0xff]
    %v1225 = vld [vmem:[#allocation6 + $0x1a10] sm:$0xff]
    %v1226 = vld [vmem:[#allocation6 + $0x1a18] sm:$0xff]
    %v1227 = vld [vmem:[#allocation6 + $0x1a20] sm:$0xff]
    %v1228 = vld [vmem:[#allocation6 + $0x1a28] sm:$0xff]
    %v1229 = vld [vmem:[#allocation6 + $0x1a30] sm:$0xff]
    %v1230 = vld [vmem:[#allocation6 + $0x1a38] sm:$0xff]
    %v1231 = vld [vmem:[#allocation6 + $0x1a40] sm:$0xff]
    %v1232 = vld [vmem:[#allocation6 + $0x1a48] sm:$0xff]
    %v1233 = vld [vmem:[#allocation6 + $0x1a50] sm:$0xff]
    %v1234 = vld [vmem:[#allocation6 + $0x1a58] sm:$0xff]
    %v1235 = vld [vmem:[#allocation6 + $0x1a60] sm:$0xff]
    %v1236 = vld [vmem:[#allocation6 + $0x1a68] sm:$0xff]
    %v1237 = vld [vmem:[#allocation6 + $0x1a70] sm:$0xff]
    %v1238 = vld [vmem:[#allocation6 + $0x1a78] sm:$0xff]
    %v1239 = vld [vmem:[#allocation6 + $0x1a80] sm:$0xff]
    %v1240 = vld [vmem:[#allocation6 + $0x1a88] sm:$0xff]
    %v1241 = vld [vmem:[#allocation6 + $0x1a90] sm:$0xff]
    %v1242 = vld [vmem:[#allocation6 + $0x1a98] sm:$0xff]
    %v1243 = vld [vmem:[#allocation6 + $0x1aa0] sm:$0xff]
    %v1244 = vld [vmem:[#allocation6 + $0x1aa8] sm:$0xff]
    %v1245 = vld [vmem:[#allocation6 + $0x1ab0] sm:$0xff]
    %v1246 = vld [vmem:[#allocation6 + $0x1ab8] sm:$0xff]
    %v1247 = vld [vmem:[#allocation6 + $0x1ac0] sm:$0xff]
    %v1248 = vld [vmem:[#allocation6 + $0x1ac8] sm:$0xff]
    %v1249 = vld [vmem:[#allocation6 + $0x1ad0] sm:$0xff]
    %v1250 = vld [vmem:[#allocation6 + $0x1ad8] sm:$0xff]
    %v1251 = vld [vmem:[#allocation6 + $0x1ae0] sm:$0xff]
    %v1252 = vld [vmem:[#allocation6 + $0x1ae8] sm:$0xff]
    %v1253 = vld [vmem:[#allocation6 + $0x1af0] sm:$0xff]
    %v1254 = vld [vmem:[#allocation6 + $0x1af8] sm:$0xff]
    %v1255 = vld [vmem:[#allocation6 + $0x1b00] sm:$0xff]
    %v1256 = vld [vmem:[#allocation6 + $0x1b08] sm:$0xff]
    %v1257 = vld [vmem:[#allocation6 + $0x1b10] sm:$0xff]
    %v1258 = vld [vmem:[#allocation6 + $0x1b18] sm:$0xff]
    %v1259 = vld [vmem:[#allocation6 + $0x1b20] sm:$0xff]
    %v1260 = vld [vmem:[#allocation6 + $0x1b28] sm:$0xff]
    %v1261 = vld [vmem:[#allocation6 + $0x1b30] sm:$0xff]
    %v1262 = vld [vmem:[#allocation6 + $0x1b38] sm:$0xff]
    %v1263 = vld [vmem:[#allocation6 + $0x1b40] sm:$0xff]
    %v1264 = vld [vmem:[#allocation6 + $0x1b48] sm:$0xff]
    %v1265 = vld [vmem:[#allocation6 + $0x1b50] sm:$0xff]
    %v1266 = vld [vmem:[#allocation6 + $0x1b58] sm:$0xff]
    %v1267 = vld [vmem:[#allocation6 + $0x1b60] sm:$0xff]
    %v1268 = vld [vmem:[#allocation6 + $0x1b68] sm:$0xff]
    %v1269 = vld [vmem:[#allocation6 + $0x1b70] sm:$0xff]
    %v1270 = vld [vmem:[#allocation6 + $0x1b78] sm:$0xff]
    %v1271 = vld [vmem:[#allocation6 + $0x1b80] sm:$0xff]
    %v1272 = vld [vmem:[#allocation6 + $0x1b88] sm:$0xff]
    %v1273 = vld [vmem:[#allocation6 + $0x1b90] sm:$0xff]
    %v1274 = vld [vmem:[#allocation6 + $0x1b98] sm:$0xff]
    %v1275 = vld [vmem:[#allocation6 + $0x1ba0] sm:$0xff]
    %v1276 = vld [vmem:[#allocation6 + $0x1ba8] sm:$0xff]
    %v1277 = vld [vmem:[#allocation6 + $0x1bb0] sm:$0xff]
    %v1278 = vld [vmem:[#allocation6 + $0x1bb8] sm:$0xff]
    %v1279 = vld [vmem:[#allocation6 + $0x1bc0] sm:$0xff]
    %v1280 = vld [vmem:[#allocation6 + $0x1bc8] sm:$0xff]
    %v1281 = vld [vmem:[#allocation6 + $0x1bd0] sm:$0xff]
    %v1282 = vld [vmem:[#allocation6 + $0x1bd8] sm:$0xff]
    %v1283 = vld [vmem:[#allocation6 + $0x1be0] sm:$0xff]
    %v1284 = vld [vmem:[#allocation6 + $0x1be8] sm:$0xff]
    %v1285 = vld [vmem:[#allocation6 + $0x1bf0] sm:$0xff]
    %v1286 = vld [vmem:[#allocation6 + $0x1bf8] sm:$0xff]
    %v1287 = vld [vmem:[#allocation6 + $0x1c00] sm:$0xff]
    %v1288 = vld [vmem:[#allocation6 + $0x1c08] sm:$0xff]
    %v1289 = vld [vmem:[#allocation6 + $0x1c10] sm:$0xff]
    %v1290 = vld [vmem:[#allocation6 + $0x1c18] sm:$0xff]
    %v1291 = vld [vmem:[#allocation6 + $0x1c20] sm:$0xff]
    %v1292 = vld [vmem:[#allocation6 + $0x1c28] sm:$0xff]
    %v1293 = vld [vmem:[#allocation6 + $0x1c30] sm:$0xff]
    %v1294 = vld [vmem:[#allocation6 + $0x1c38] sm:$0xff]
    %v1295 = vld [vmem:[#allocation6 + $0x1c40] sm:$0xff]
    %v1296 = vld [vmem:[#allocation6 + $0x1c48] sm:$0xff]
    %v1297 = vld [vmem:[#allocation6 + $0x1c50] sm:$0xff]
    %v1298 = vld [vmem:[#allocation6 + $0x1c58] sm:$0xff]
    %v1299 = vld [vmem:[#allocation6 + $0x1c60] sm:$0xff]
    %v1300 = vld [vmem:[#allocation6 + $0x1c68] sm:$0xff]
    %v1301 = vld [vmem:[#allocation6 + $0x1c70] sm:$0xff]
    %v1302 = vld [vmem:[#allocation6 + $0x1c78] sm:$0xff]
    %v1303 = vld [vmem:[#allocation6 + $0x1c80] sm:$0xff]
    %v1304 = vld [vmem:[#allocation6 + $0x1c88] sm:$0xff]
    %v1305 = vld [vmem:[#allocation6 + $0x1c90] sm:$0xff]
    %v1306 = vld [vmem:[#allocation6 + $0x1c98] sm:$0xff]
    %v1307 = vld [vmem:[#allocation6 + $0x1ca0] sm:$0xff]
    %v1308 = vld [vmem:[#allocation6 + $0x1ca8] sm:$0xff]
    %v1309 = vld [vmem:[#allocation6 + $0x1cb0] sm:$0xff]
    %v1310 = vld [vmem:[#allocation6 + $0x1cb8] sm:$0xff]
    %v1311 = vld [vmem:[#allocation6 + $0x1cc0] sm:$0xff]
    %v1312 = vld [vmem:[#allocation6 + $0x1cc8] sm:$0xff]
    %v1313 = vld [vmem:[#allocation6 + $0x1cd0] sm:$0xff]
    %v1314 = vld [vmem:[#allocation6 + $0x1cd8] sm:$0xff]
    %v1315 = vld [vmem:[#allocation6 + $0x1ce0] sm:$0xff]
    %v1316 = vld [vmem:[#allocation6 + $0x1ce8] sm:$0xff]
    %v1317 = vld [vmem:[#allocation6 + $0x1cf0] sm:$0xff]
    %v1318 = vld [vmem:[#allocation6 + $0x1cf8] sm:$0xff]
    %v1319 = vld [vmem:[#allocation6 + $0x1d00] sm:$0xff]
    %v1320 = vld [vmem:[#allocation6 + $0x1d08] sm:$0xff]
    %v1321 = vld [vmem:[#allocation6 + $0x1d10] sm:$0xff]
    %v1322 = vld [vmem:[#allocation6 + $0x1d18] sm:$0xff]
    %v1323 = vld [vmem:[#allocation6 + $0x1d20] sm:$0xff]
    %v1324 = vld [vmem:[#allocation6 + $0x1d28] sm:$0xff]
    %v1325 = vld [vmem:[#allocation6 + $0x1d30] sm:$0xff]
    %v1326 = vld [vmem:[#allocation6 + $0x1d38] sm:$0xff]
    %v1327 = vld [vmem:[#allocation6 + $0x1d40] sm:$0xff]
    %v1328 = vld [vmem:[#allocation6 + $0x1d48] sm:$0xff]
    %v1329 = vld [vmem:[#allocation6 + $0x1d50] sm:$0xff]
    %v1330 = vld [vmem:[#allocation6 + $0x1d58] sm:$0xff]
    %v1331 = vld [vmem:[#allocation6 + $0x1d60] sm:$0xff]
    %v1332 = vld [vmem:[#allocation6 + $0x1d68] sm:$0xff]
    %v1333 = vld [vmem:[#allocation6 + $0x1d70] sm:$0xff]
    %v1334 = vld [vmem:[#allocation6 + $0x1d78] sm:$0xff]
    %v1335 = vld [vmem:[#allocation6 + $0x1d80] sm:$0xff]
    %v1336 = vld [vmem:[#allocation6 + $0x1d88] sm:$0xff]
    %v1337 = vld [vmem:[#allocation6 + $0x1d90] sm:$0xff]
    %v1338 = vld [vmem:[#allocation6 + $0x1d98] sm:$0xff]
    %v1339 = vld [vmem:[#allocation6 + $0x1da0] sm:$0xff]
    %v1340 = vld [vmem:[#allocation6 + $0x1da8] sm:$0xff]
    %v1341 = vld [vmem:[#allocation6 + $0x1db0] sm:$0xff]
    %v1342 = vld [vmem:[#allocation6 + $0x1db8] sm:$0xff]
    %v1343 = vld [vmem:[#allocation6 + $0x1dc0] sm:$0xff]
    %v1344 = vld [vmem:[#allocation6 + $0x1dc8] sm:$0xff]
    %v1345 = vld [vmem:[#allocation6 + $0x1dd0] sm:$0xff]
    %v1346 = vld [vmem:[#allocation6 + $0x1dd8] sm:$0xff]
    %v1347 = vld [vmem:[#allocation6 + $0x1de0] sm:$0xff]
    %v1348 = vld [vmem:[#allocation6 + $0x1de8] sm:$0xff]
    %v1349 = vld [vmem:[#allocation6 + $0x1df0] sm:$0xff]
    %v1350 = vld [vmem:[#allocation6 + $0x1df8] sm:$0xff]
    %v1351 = vld [vmem:[#allocation6 + $0x1e00] sm:$0xff]
    %v1352 = vld [vmem:[#allocation6 + $0x1e08] sm:$0xff]
    %v1353 = vld [vmem:[#allocation6 + $0x1e10] sm:$0xff]
    %v1354 = vld [vmem:[#allocation6 + $0x1e18] sm:$0xff]
    %v1355 = vld [vmem:[#allocation6 + $0x1e20] sm:$0xff]
    %v1356 = vld [vmem:[#allocation6 + $0x1e28] sm:$0xff]
    %v1357 = vld [vmem:[#allocation6 + $0x1e30] sm:$0xff]
    %v1358 = vld [vmem:[#allocation6 + $0x1e38] sm:$0xff]
    %v1359 = vld [vmem:[#allocation6 + $0x1e40] sm:$0xff]
    %v1360 = vld [vmem:[#allocation6 + $0x1e48] sm:$0xff]
    %v1361 = vld [vmem:[#allocation6 + $0x1e50] sm:$0xff]
    %v1362 = vld [vmem:[#allocation6 + $0x1e58] sm:$0xff]
    %v1363 = vld [vmem:[#allocation6 + $0x1e60] sm:$0xff]
    %v1364 = vld [vmem:[#allocation6 + $0x1e68] sm:$0xff]
    %v1365 = vld [vmem:[#allocation6 + $0x1e70] sm:$0xff]
    %v1366 = vld [vmem:[#allocation6 + $0x1e78] sm:$0xff]
    %v1367 = vld [vmem:[#allocation6 + $0x1e80] sm:$0xff]
    %v1368 = vld [vmem:[#allocation6 + $0x1e88] sm:$0xff]
    %v1369 = vld [vmem:[#allocation6 + $0x1e90] sm:$0xff]
    %v1370 = vld [vmem:[#allocation6 + $0x1e98] sm:$0xff]
    %v1371 = vld [vmem:[#allocation6 + $0x1ea0] sm:$0xff]
    %v1372 = vld [vmem:[#allocation6 + $0x1ea8] sm:$0xff]
    %v1373 = vld [vmem:[#allocation6 + $0x1eb0] sm:$0xff]
    %v1374 = vld [vmem:[#allocation6 + $0x1eb8] sm:$0xff]
    %v1375 = vld [vmem:[#allocation6 + $0x1ec0] sm:$0xff]
    %v1376 = vld [vmem:[#allocation6 + $0x1ec8] sm:$0xff]
    %v1377 = vld [vmem:[#allocation6 + $0x1ed0] sm:$0xff]
    %v1378 = vld [vmem:[#allocation6 + $0x1ed8] sm:$0xff]
    %v1379 = vld [vmem:[#allocation6 + $0x1ee0] sm:$0xff]
    %v1380 = vld [vmem:[#allocation6 + $0x1ee8] sm:$0xff]
    %v1381 = vld [vmem:[#allocation6 + $0x1ef0] sm:$0xff]
    %v1382 = vld [vmem:[#allocation6 + $0x1ef8] sm:$0xff]
    %v1383 = vld [vmem:[#allocation6 + $0x1f00] sm:$0xff]
    %v1384 = vld [vmem:[#allocation6 + $0x1f08] sm:$0xff]
    %v1385 = vld [vmem:[#allocation6 + $0x1f10] sm:$0xff]
    %v1386 = vld [vmem:[#allocation6 + $0x1f18] sm:$0xff]
    %v1387 = vld [vmem:[#allocation6 + $0x1f20] sm:$0xff]
    %v1388 = vld [vmem:[#allocation6 + $0x1f28] sm:$0xff]
    %v1389 = vld [vmem:[#allocation6 + $0x1f30] sm:$0xff]
    %v1390 = vld [vmem:[#allocation6 + $0x1f38] sm:$0xff]
    %v1391 = vld [vmem:[#allocation6 + $0x1f40] sm:$0xff]
    %v1392 = vld [vmem:[#allocation6 + $0x1f48] sm:$0xff]
    %v1393 = vld [vmem:[#allocation6 + $0x1f50] sm:$0xff]
    %v1394 = vld [vmem:[#allocation6 + $0x1f58] sm:$0xff]
    %v1395 = vld [vmem:[#allocation6 + $0x1f60] sm:$0xff]
    %v1396 = vld [vmem:[#allocation6 + $0x1f68] sm:$0xff]
    %v1397 = vld [vmem:[#allocation6 + $0x1f70] sm:$0xff]
    %v1398 = vld [vmem:[#allocation6 + $0x1f78] sm:$0xff]
    %v1399 = vld [vmem:[#allocation6 + $0x1f80] sm:$0xff]
    %v1400 = vld [vmem:[#allocation6 + $0x1f88] sm:$0xff]
    %v1401 = vld [vmem:[#allocation6 + $0x1f90] sm:$0xff]
    %v1402 = vld [vmem:[#allocation6 + $0x1f98] sm:$0xff]
    %v1403 = vld [vmem:[#allocation6 + $0x1fa0] sm:$0xff]
    %v1404 = vld [vmem:[#allocation6 + $0x1fa8] sm:$0xff]
    %v1405 = vld [vmem:[#allocation6 + $0x1fb0] sm:$0xff]
    %v1406 = vld [vmem:[#allocation6 + $0x1fb8] sm:$0xff]
    %v1407 = vld [vmem:[#allocation6 + $0x1fc0] sm:$0xff]
    %v1408 = vld [vmem:[#allocation6 + $0x1fc8] sm:$0xff]
    %v1409 = vld [vmem:[#allocation6 + $0x1fd0] sm:$0xff]
    %v1410 = vld [vmem:[#allocation6 + $0x1fd8] sm:$0xff]
    %v1411 = vld [vmem:[#allocation6 + $0x1fe0] sm:$0xff]
    %v1412 = vld [vmem:[#allocation6 + $0x1fe8] sm:$0xff]
    %v1413 = vld [vmem:[#allocation6 + $0x1ff0] sm:$0xff]
    %v1414 = vld [vmem:[#allocation6 + $0x1ff8] sm:$0xff]
    %v1415 = vld [vmem:[#allocation6 + $0x2000] sm:$0xff]
    %v1416 = vld [vmem:[#allocation6 + $0x2008] sm:$0xff]
    %v1417 = vld [vmem:[#allocation6 + $0x2010] sm:$0xff]
    %v1418 = vld [vmem:[#allocation6 + $0x2018] sm:$0xff]
    %v1419 = vld [vmem:[#allocation6 + $0x2020] sm:$0xff]
    %v1420 = vld [vmem:[#allocation6 + $0x2028] sm:$0xff]
    %v1421 = vld [vmem:[#allocation6 + $0x2030] sm:$0xff]
    %v1422 = vld [vmem:[#allocation6 + $0x2038] sm:$0xff]
    %v1423 = vld [vmem:[#allocation6 + $0x2040] sm:$0xff]
    %v1424 = vld [vmem:[#allocation6 + $0x2048] sm:$0xff]
    %v1425 = vld [vmem:[#allocation6 + $0x2050] sm:$0xff]
    %v1426 = vld [vmem:[#allocation6 + $0x2058] sm:$0xff]
    %v1427 = vld [vmem:[#allocation6 + $0x2060] sm:$0xff]
    %v1428 = vld [vmem:[#allocation6 + $0x2068] sm:$0xff]
    %v1429 = vld [vmem:[#allocation6 + $0x2070] sm:$0xff]
    %v1430 = vld [vmem:[#allocation6 + $0x2078] sm:$0xff]
    %v1431 = vld [vmem:[#allocation6 + $0x2080] sm:$0xff]
    %v1432 = vld [vmem:[#allocation6 + $0x2088] sm:$0xff]
    %v1433 = vld [vmem:[#allocation6 + $0x2090] sm:$0xff]
    %v1434 = vld [vmem:[#allocation6 + $0x2098] sm:$0xff]
    %v1435 = vld [vmem:[#allocation6 + $0x20a0] sm:$0xff]
    %v1436 = vld [vmem:[#allocation6 + $0x20a8] sm:$0xff]
    %v1437 = vld [vmem:[#allocation6 + $0x20b0] sm:$0xff]
    %v1438 = vld [vmem:[#allocation6 + $0x20b8] sm:$0xff]
    %v1439 = vld [vmem:[#allocation6 + $0x20c0] sm:$0xff]
    %v1440 = vld [vmem:[#allocation6 + $0x20c8] sm:$0xff]
    %v1441 = vld [vmem:[#allocation6 + $0x20d0] sm:$0xff]
    %v1442 = vld [vmem:[#allocation6 + $0x20d8] sm:$0xff]
    %v1443 = vld [vmem:[#allocation6 + $0x20e0] sm:$0xff]
    %v1444 = vld [vmem:[#allocation6 + $0x20e8] sm:$0xff]
    %v1445 = vld [vmem:[#allocation6 + $0x20f0] sm:$0xff]
    %v1446 = vld [vmem:[#allocation6 + $0x20f8] sm:$0xff]
    %v1447 = vld [vmem:[#allocation6 + $0x2100] sm:$0xff]
    %v1448 = vld [vmem:[#allocation6 + $0x2108] sm:$0xff]
    %v1449 = vld [vmem:[#allocation6 + $0x2110] sm:$0xff]
    %v1450 = vld [vmem:[#allocation6 + $0x2118] sm:$0xff]
    %v1451 = vld [vmem:[#allocation6 + $0x2120] sm:$0xff]
    %v1452 = vld [vmem:[#allocation6 + $0x2128] sm:$0xff]
    %v1453 = vld [vmem:[#allocation6 + $0x2130] sm:$0xff]
    %v1454 = vld [vmem:[#allocation6 + $0x2138] sm:$0xff]
    %v1455 = vld [vmem:[#allocation6 + $0x2140] sm:$0xff]
    %v1456 = vld [vmem:[#allocation6 + $0x2148] sm:$0xff]
    %v1457 = vld [vmem:[#allocation6 + $0x2150] sm:$0xff]
    %v1458 = vld [vmem:[#allocation6 + $0x2158] sm:$0xff]
    %v1459 = vld [vmem:[#allocation6 + $0x2160] sm:$0xff]
    %v1460 = vld [vmem:[#allocation6 + $0x2168] sm:$0xff]
    %v1461 = vld [vmem:[#allocation6 + $0x2170] sm:$0xff]
    %v1462 = vld [vmem:[#allocation6 + $0x2178] sm:$0xff]
    %v1463 = vld [vmem:[#allocation6 + $0x2180] sm:$0xff]
    %v1464 = vld [vmem:[#allocation6 + $0x2188] sm:$0xff]
    %v1465 = vld [vmem:[#allocation6 + $0x2190] sm:$0xff]
    %v1466 = vld [vmem:[#allocation6 + $0x2198] sm:$0xff]
    %v1467 = vld [vmem:[#allocation6 + $0x21a0] sm:$0xff]
    %v1468 = vld [vmem:[#allocation6 + $0x21a8] sm:$0xff]
    %v1469 = vld [vmem:[#allocation6 + $0x21b0] sm:$0xff]
    %v1470 = vld [vmem:[#allocation6 + $0x21b8] sm:$0xff]
    %v1471 = vld [vmem:[#allocation6 + $0x21c0] sm:$0xff]
    %v1472 = vld [vmem:[#allocation6 + $0x21c8] sm:$0xff]
    %v1473 = vld [vmem:[#allocation6 + $0x21d0] sm:$0xff]
    %v1474 = vld [vmem:[#allocation6 + $0x21d8] sm:$0xff]
    %v1475 = vld [vmem:[#allocation6 + $0x21e0] sm:$0xff]
    %v1476 = vld [vmem:[#allocation6 + $0x21e8] sm:$0xff]
    %v1477 = vld [vmem:[#allocation6 + $0x21f0] sm:$0xff]
    %v1478 = vld [vmem:[#allocation6 + $0x21f8] sm:$0xff]
    %v1479 = vld [vmem:[#allocation6 + $0x2200] sm:$0xff]
    %v1480 = vld [vmem:[#allocation6 + $0x2208] sm:$0xff]
    %v1481 = vld [vmem:[#allocation6 + $0x2210] sm:$0xff]
    %v1482 = vld [vmem:[#allocation6 + $0x2218] sm:$0xff]
    %v1483 = vld [vmem:[#allocation6 + $0x2220] sm:$0xff]
    %v1484 = vld [vmem:[#allocation6 + $0x2228] sm:$0xff]
    %v1485 = vld [vmem:[#allocation6 + $0x2230] sm:$0xff]
    %v1486 = vld [vmem:[#allocation6 + $0x2238] sm:$0xff]
    %v1487 = vld [vmem:[#allocation6 + $0x2240] sm:$0xff]
    %v1488 = vld [vmem:[#allocation6 + $0x2248] sm:$0xff]
    %v1489 = vld [vmem:[#allocation6 + $0x2250] sm:$0xff]
    %v1490 = vld [vmem:[#allocation6 + $0x2258] sm:$0xff]
    %v1491 = vld [vmem:[#allocation6 + $0x2260] sm:$0xff]
    %v1492 = vld [vmem:[#allocation6 + $0x2268] sm:$0xff]
    %v1493 = vld [vmem:[#allocation6 + $0x2270] sm:$0xff]
    %v1494 = vld [vmem:[#allocation6 + $0x2278] sm:$0xff]
    %v1495 = vld [vmem:[#allocation6 + $0x2280] sm:$0xff]
    %v1496 = vld [vmem:[#allocation6 + $0x2288] sm:$0xff]
    %v1497 = vld [vmem:[#allocation6 + $0x2290] sm:$0xff]
    %v1498 = vld [vmem:[#allocation6 + $0x2298] sm:$0xff]
    %v1499 = vld [vmem:[#allocation6 + $0x22a0] sm:$0xff]
    %v1500 = vld [vmem:[#allocation6 + $0x22a8] sm:$0xff]
    %v1501 = vld [vmem:[#allocation6 + $0x22b0] sm:$0xff]
    %v1502 = vld [vmem:[#allocation6 + $0x22b8] sm:$0xff]
    %v1503 = vld [vmem:[#allocation6 + $0x22c0] sm:$0xff]
    %v1504 = vld [vmem:[#allocation6 + $0x22c8] sm:$0xff]
    %v1505 = vld [vmem:[#allocation6 + $0x22d0] sm:$0xff]
    %v1506 = vld [vmem:[#allocation6 + $0x22d8] sm:$0xff]
    %v1507 = vld [vmem:[#allocation6 + $0x22e0] sm:$0xff]
    %v1508 = vld [vmem:[#allocation6 + $0x22e8] sm:$0xff]
    %v1509 = vld [vmem:[#allocation6 + $0x22f0] sm:$0xff]
    %v1510 = vld [vmem:[#allocation6 + $0x22f8] sm:$0xff]
    %v1511 = vld [vmem:[#allocation6 + $0x2300] sm:$0xff]
    %v1512 = vld [vmem:[#allocation6 + $0x2308] sm:$0xff]
    %v1513 = vld [vmem:[#allocation6 + $0x2310] sm:$0xff]
    %v1514 = vld [vmem:[#allocation6 + $0x2318] sm:$0xff]
    %v1515 = vld [vmem:[#allocation6 + $0x2320] sm:$0xff]
    %v1516 = vld [vmem:[#allocation6 + $0x2328] sm:$0xff]
    %v1517 = vld [vmem:[#allocation6 + $0x2330] sm:$0xff]
    %v1518 = vld [vmem:[#allocation6 + $0x2338] sm:$0xff]
    %v1519 = vld [vmem:[#allocation6 + $0x2340] sm:$0xff]
    %v1520 = vld [vmem:[#allocation6 + $0x2348] sm:$0xff]
    %v1521 = vld [vmem:[#allocation6 + $0x2350] sm:$0xff]
    %v1522 = vld [vmem:[#allocation6 + $0x2358] sm:$0xff]
    %v1523 = vld [vmem:[#allocation6 + $0x2360] sm:$0xff]
    %v1524 = vld [vmem:[#allocation6 + $0x2368] sm:$0xff]
    %v1525 = vld [vmem:[#allocation6 + $0x2370] sm:$0xff]
    %v1526 = vld [vmem:[#allocation6 + $0x2378] sm:$0xff]
    %v1527 = vld [vmem:[#allocation6 + $0x2380] sm:$0xff]
    %v1528 = vld [vmem:[#allocation6 + $0x2388] sm:$0xff]
    %v1529 = vld [vmem:[#allocation6 + $0x2390] sm:$0xff]
    %v1530 = vld [vmem:[#allocation6 + $0x2398] sm:$0xff]
    %v1531 = vld [vmem:[#allocation6 + $0x23a0] sm:$0xff]
    %v1532 = vld [vmem:[#allocation6 + $0x23a8] sm:$0xff]
    %v1533 = vld [vmem:[#allocation6 + $0x23b0] sm:$0xff]
    %v1534 = vld [vmem:[#allocation6 + $0x23b8] sm:$0xff]
    %v1535 = vld [vmem:[#allocation6 + $0x23c0] sm:$0xff]
    %v1536 = vld [vmem:[#allocation6 + $0x23c8] sm:$0xff]
    %v1537 = vld [vmem:[#allocation6 + $0x23d0] sm:$0xff]
    %v1538 = vld [vmem:[#allocation6 + $0x23d8] sm:$0xff]
    %v1539 = vld [vmem:[#allocation6 + $0x23e0] sm:$0xff]
    %v1540 = vld [vmem:[#allocation6 + $0x23e8] sm:$0xff]
    %v1541 = vld [vmem:[#allocation6 + $0x23f0] sm:$0xff]
    %v1542 = vld [vmem:[#allocation6 + $0x23f8] sm:$0xff]
    %v1543 = vld [vmem:[#allocation6 + $0x2400] sm:$0xff]
    %v1544 = vld [vmem:[#allocation6 + $0x2408] sm:$0xff]
    %v1545 = vld [vmem:[#allocation6 + $0x2410] sm:$0xff]
    %v1546 = vld [vmem:[#allocation6 + $0x2418] sm:$0xff]
    %v1547 = vld [vmem:[#allocation6 + $0x2420] sm:$0xff]
    %v1548 = vld [vmem:[#allocation6 + $0x2428] sm:$0xff]
    %v1549 = vld [vmem:[#allocation6 + $0x2430] sm:$0xff]
    %v1550 = vld [vmem:[#allocation6 + $0x2438] sm:$0xff]
    %v1551 = vld [vmem:[#allocation6 + $0x2440] sm:$0xff]
    %v1552 = vld [vmem:[#allocation6 + $0x2448] sm:$0xff]
    %v1553 = vld [vmem:[#allocation6 + $0x2450] sm:$0xff]
    %v1554 = vld [vmem:[#allocation6 + $0x2458] sm:$0xff]
    %v1555 = vld [vmem:[#allocation6 + $0x2460] sm:$0xff]
    %v1556 = vld [vmem:[#allocation6 + $0x2468] sm:$0xff]
    %v1557 = vld [vmem:[#allocation6 + $0x2470] sm:$0xff]
    %v1558 = vld [vmem:[#allocation6 + $0x2478] sm:$0xff]
    %v1559 = vld [vmem:[#allocation6 + $0x2480] sm:$0xff]
    %v1560 = vld [vmem:[#allocation6 + $0x2488] sm:$0xff]
    %v1561 = vld [vmem:[#allocation6 + $0x2490] sm:$0xff]
    %v1562 = vld [vmem:[#allocation6 + $0x2498] sm:$0xff]
    %v1563 = vld [vmem:[#allocation6 + $0x24a0] sm:$0xff]
    %v1564 = vld [vmem:[#allocation6 + $0x24a8] sm:$0xff]
    %v1565 = vld [vmem:[#allocation6 + $0x24b0] sm:$0xff]
    %v1566 = vld [vmem:[#allocation6 + $0x24b8] sm:$0xff]
    %v1567 = vld [vmem:[#allocation6 + $0x24c0] sm:$0xff]
    %v1568 = vld [vmem:[#allocation6 + $0x24c8] sm:$0xff]
    %v1569 = vld [vmem:[#allocation6 + $0x24d0] sm:$0xff]
    %v1570 = vld [vmem:[#allocation6 + $0x24d8] sm:$0xff]
    %v1571 = vld [vmem:[#allocation6 + $0x24e0] sm:$0xff]
    %v1572 = vld [vmem:[#allocation6 + $0x24e8] sm:$0xff]
    %v1573 = vld [vmem:[#allocation6 + $0x24f0] sm:$0xff]
    %v1574 = vld [vmem:[#allocation6 + $0x24f8] sm:$0xff]
    %v1575 = vld [vmem:[#allocation6 + $0x2500] sm:$0xff]
    %v1576 = vld [vmem:[#allocation6 + $0x2508] sm:$0xff]
    %v1577 = vld [vmem:[#allocation6 + $0x2510] sm:$0xff]
    %v1578 = vld [vmem:[#allocation6 + $0x2518] sm:$0xff]
    %v1579 = vld [vmem:[#allocation6 + $0x2520] sm:$0xff]
    %v1580 = vld [vmem:[#allocation6 + $0x2528] sm:$0xff]
    %v1581 = vld [vmem:[#allocation6 + $0x2530] sm:$0xff]
    %v1582 = vld [vmem:[#allocation6 + $0x2538] sm:$0xff]
    %v1583 = vld [vmem:[#allocation6 + $0x2540] sm:$0xff]
    %v1584 = vld [vmem:[#allocation6 + $0x2548] sm:$0xff]
    %v1585 = vld [vmem:[#allocation6 + $0x2550] sm:$0xff]
    %v1586 = vld [vmem:[#allocation6 + $0x2558] sm:$0xff]
    %v1587 = vld [vmem:[#allocation6 + $0x2560] sm:$0xff]
    %v1588 = vld [vmem:[#allocation6 + $0x2568] sm:$0xff]
    %v1589 = vld [vmem:[#allocation6 + $0x2570] sm:$0xff]
    %v1590 = vld [vmem:[#allocation6 + $0x2578] sm:$0xff]
    %v1591 = vld [vmem:[#allocation6 + $0x2580] sm:$0xff]
    %v1592 = vld [vmem:[#allocation6 + $0x2588] sm:$0xff]
    %v1593 = vld [vmem:[#allocation6 + $0x2590] sm:$0xff]
    %v1594 = vld [vmem:[#allocation6 + $0x2598] sm:$0xff]
    %v1595 = vld [vmem:[#allocation6 + $0x25a0] sm:$0xff]
    %v1596 = vld [vmem:[#allocation6 + $0x25a8] sm:$0xff]
    %v1597 = vld [vmem:[#allocation6 + $0x25b0] sm:$0xff]
    %v1598 = vld [vmem:[#allocation6 + $0x25b8] sm:$0xff]
    %v1599 = vld [vmem:[#allocation6 + $0x25c0] sm:$0xff]
    %v1600 = vld [vmem:[#allocation6 + $0x25c8] sm:$0xff]
    %v1601 = vld [vmem:[#allocation6 + $0x25d0] sm:$0xff]
    %v1602 = vld [vmem:[#allocation6 + $0x25d8] sm:$0xff]
    %v1603 = vld [vmem:[#allocation6 + $0x25e0] sm:$0xff]
    %v1604 = vld [vmem:[#allocation6 + $0x25e8] sm:$0xff]
    %v1605 = vld [vmem:[#allocation6 + $0x25f0] sm:$0xff]
    %v1606 = vld [vmem:[#allocation6 + $0x25f8] sm:$0xff]
    %v1607 = vld [vmem:[#allocation6 + $0x2600] sm:$0xff]
    %v1608 = vld [vmem:[#allocation6 + $0x2608] sm:$0xff]
    %v1609 = vld [vmem:[#allocation6 + $0x2610] sm:$0xff]
    %v1610 = vld [vmem:[#allocation6 + $0x2618] sm:$0xff]
    %v1611 = vld [vmem:[#allocation6 + $0x2620] sm:$0xff]
    %v1612 = vld [vmem:[#allocation6 + $0x2628] sm:$0xff]
    %v1613 = vld [vmem:[#allocation6 + $0x2630] sm:$0xff]
    %v1614 = vld [vmem:[#allocation6 + $0x2638] sm:$0xff]
    %v1615 = vld [vmem:[#allocation6 + $0x2640] sm:$0xff]
    %v1616 = vld [vmem:[#allocation6 + $0x2648] sm:$0xff]
    %v1617 = vld [vmem:[#allocation6 + $0x2650] sm:$0xff]
    %v1618 = vld [vmem:[#allocation6 + $0x2658] sm:$0xff]
    %v1619 = vld [vmem:[#allocation6 + $0x2660] sm:$0xff]
    %v1620 = vld [vmem:[#allocation6 + $0x2668] sm:$0xff]
    %v1621 = vld [vmem:[#allocation6 + $0x2670] sm:$0xff]
    %v1622 = vld [vmem:[#allocation6 + $0x2678] sm:$0xff]
    %v1623 = vld [vmem:[#allocation6 + $0x2680] sm:$0xff]
    %v1624 = vld [vmem:[#allocation6 + $0x2688] sm:$0xff]
    %v1625 = vld [vmem:[#allocation6 + $0x2690] sm:$0xff]
    %v1626 = vld [vmem:[#allocation6 + $0x2698] sm:$0xff]
    %v1627 = vld [vmem:[#allocation6 + $0x26a0] sm:$0xff]
    %v1628 = vld [vmem:[#allocation6 + $0x26a8] sm:$0xff]
    %v1629 = vld [vmem:[#allocation6 + $0x26b0] sm:$0xff]
    %v1630 = vld [vmem:[#allocation6 + $0x26b8] sm:$0xff]
    %v1631 = vld [vmem:[#allocation6 + $0x26c0] sm:$0xff]
    %v1632 = vld [vmem:[#allocation6 + $0x26c8] sm:$0xff]
    %v1633 = vld [vmem:[#allocation6 + $0x26d0] sm:$0xff]
    %v1634 = vld [vmem:[#allocation6 + $0x26d8] sm:$0xff]
    %v1635 = vld [vmem:[#allocation6 + $0x26e0] sm:$0xff]
    %v1636 = vld [vmem:[#allocation6 + $0x26e8] sm:$0xff]
    %v1637 = vld [vmem:[#allocation6 + $0x26f0] sm:$0xff]
    %v1638 = vld [vmem:[#allocation6 + $0x26f8] sm:$0xff]
    %v1639 = vld [vmem:[#allocation6 + $0x2700] sm:$0xff]
    %v1640 = vld [vmem:[#allocation6 + $0x2708] sm:$0xff]
    %v1641 = vld [vmem:[#allocation6 + $0x2710] sm:$0xff]
    %v1642 = vld [vmem:[#allocation6 + $0x2718] sm:$0xff]
    %v1643 = vld [vmem:[#allocation6 + $0x2720] sm:$0xff]
    %v1644 = vld [vmem:[#allocation6 + $0x2728] sm:$0xff]
    %v1645 = vld [vmem:[#allocation6 + $0x2730] sm:$0xff]
    %v1646 = vld [vmem:[#allocation6 + $0x2738] sm:$0xff]
    %v1647 = vld [vmem:[#allocation6 + $0x2740] sm:$0xff]
    %v1648 = vld [vmem:[#allocation6 + $0x2748] sm:$0xff]
    %v1649 = vld [vmem:[#allocation6 + $0x2750] sm:$0xff]
    %v1650 = vld [vmem:[#allocation6 + $0x2758] sm:$0xff]
    %v1651 = vld [vmem:[#allocation6 + $0x2760] sm:$0xff]
    %v1652 = vld [vmem:[#allocation6 + $0x2768] sm:$0xff]
    %v1653 = vld [vmem:[#allocation6 + $0x2770] sm:$0xff]
    %v1654 = vld [vmem:[#allocation6 + $0x2778] sm:$0xff]
    %v1655 = vld [vmem:[#allocation6 + $0x2780] sm:$0xff]
    %v1656 = vld [vmem:[#allocation6 + $0x2788] sm:$0xff]
    %v1657 = vld [vmem:[#allocation6 + $0x2790] sm:$0xff]
    %v1658 = vld [vmem:[#allocation6 + $0x2798] sm:$0xff]
    %v1659 = vld [vmem:[#allocation6 + $0x27a0] sm:$0xff]
    %v1660 = vld [vmem:[#allocation6 + $0x27a8] sm:$0xff]
    %v1661 = vld [vmem:[#allocation6 + $0x27b0] sm:$0xff]
    %v1662 = vld [vmem:[#allocation6 + $0x27b8] sm:$0xff]
    %v1663 = vld [vmem:[#allocation6 + $0x27c0] sm:$0xff]
    %v1664 = vld [vmem:[#allocation6 + $0x27c8] sm:$0xff]
    %v1665 = vld [vmem:[#allocation6 + $0x27d0] sm:$0xff]
    %v1666 = vld [vmem:[#allocation6 + $0x27d8] sm:$0xff]
    %v1667 = vld [vmem:[#allocation6 + $0x27e0] sm:$0xff]
    %v1668 = vld [vmem:[#allocation6 + $0x27e8] sm:$0xff]
    %v1669 = vld [vmem:[#allocation6 + $0x27f0] sm:$0xff]
    %v1670 = vld [vmem:[#allocation6 + $0x27f8] sm:$0xff]
    %v1671 = vld [vmem:[#allocation6 + $0x2800] sm:$0xff]
    %v1672 = vld [vmem:[#allocation6 + $0x2808] sm:$0xff]
    %v1673 = vld [vmem:[#allocation6 + $0x2810] sm:$0xff]
    %v1674 = vld [vmem:[#allocation6 + $0x2818] sm:$0xff]
    %v1675 = vld [vmem:[#allocation6 + $0x2820] sm:$0xff]
    %v1676 = vld [vmem:[#allocation6 + $0x2828] sm:$0xff]
    %v1677 = vld [vmem:[#allocation6 + $0x2830] sm:$0xff]
    %v1678 = vld [vmem:[#allocation6 + $0x2838] sm:$0xff]
    %v1679 = vld [vmem:[#allocation6 + $0x2840] sm:$0xff]
    %v1680 = vld [vmem:[#allocation6 + $0x2848] sm:$0xff]
    %v1681 = vld [vmem:[#allocation6 + $0x2850] sm:$0xff]
    %v1682 = vld [vmem:[#allocation6 + $0x2858] sm:$0xff]
    %v1683 = vld [vmem:[#allocation6 + $0x2860] sm:$0xff]
    %v1684 = vld [vmem:[#allocation6 + $0x2868] sm:$0xff]
    %v1685 = vld [vmem:[#allocation6 + $0x2870] sm:$0xff]
    %v1686 = vld [vmem:[#allocation6 + $0x2878] sm:$0xff]
    %v1687 = vld [vmem:[#allocation6 + $0x2880] sm:$0xff]
    %v1688 = vld [vmem:[#allocation6 + $0x2888] sm:$0xff]
    %v1689 = vld [vmem:[#allocation6 + $0x2890] sm:$0xff]
    %v1690 = vld [vmem:[#allocation6 + $0x2898] sm:$0xff]
    %v1691 = vld [vmem:[#allocation6 + $0x28a0] sm:$0xff]
    %v1692 = vld [vmem:[#allocation6 + $0x28a8] sm:$0xff]
    %v1693 = vld [vmem:[#allocation6 + $0x28b0] sm:$0xff]
    %v1694 = vld [vmem:[#allocation6 + $0x28b8] sm:$0xff]
    %v1695 = vld [vmem:[#allocation6 + $0x28c0] sm:$0xff]
    %v1696 = vld [vmem:[#allocation6 + $0x28c8] sm:$0xff]
    %v1697 = vld [vmem:[#allocation6 + $0x28d0] sm:$0xff]
    %v1698 = vld [vmem:[#allocation6 + $0x28d8] sm:$0xff]
    %v1699 = vld [vmem:[#allocation6 + $0x28e0] sm:$0xff]
    %v1700 = vld [vmem:[#allocation6 + $0x28e8] sm:$0xff]
    %v1701 = vld [vmem:[#allocation6 + $0x28f0] sm:$0xff]
    %v1702 = vld [vmem:[#allocation6 + $0x28f8] sm:$0xff]
    %v1703 = vld [vmem:[#allocation6 + $0x2900] sm:$0xff]
    %v1704 = vld [vmem:[#allocation6 + $0x2908] sm:$0xff]
    %v1705 = vld [vmem:[#allocation6 + $0x2910] sm:$0xff]
    %v1706 = vld [vmem:[#allocation6 + $0x2918] sm:$0xff]
    %v1707 = vld [vmem:[#allocation6 + $0x2920] sm:$0xff]
    %v1708 = vld [vmem:[#allocation6 + $0x2928] sm:$0xff]
    %v1709 = vld [vmem:[#allocation6 + $0x2930] sm:$0xff]
    %v1710 = vld [vmem:[#allocation6 + $0x2938] sm:$0xff]
    %v1711 = vld [vmem:[#allocation6 + $0x2940] sm:$0xff]
    %v1712 = vld [vmem:[#allocation6 + $0x2948] sm:$0xff]
    %v1713 = vld [vmem:[#allocation6 + $0x2950] sm:$0xff]
    %v1714 = vld [vmem:[#allocation6 + $0x2958] sm:$0xff]
    %v1715 = vld [vmem:[#allocation6 + $0x2960] sm:$0xff]
    %v1716 = vld [vmem:[#allocation6 + $0x2968] sm:$0xff]
    %v1717 = vld [vmem:[#allocation6 + $0x2970] sm:$0xff]
    %v1718 = vld [vmem:[#allocation6 + $0x2978] sm:$0xff]
    %v1719 = vld [vmem:[#allocation6 + $0x2980] sm:$0xff]
    %v1720 = vld [vmem:[#allocation6 + $0x2988] sm:$0xff]
    %v1721 = vld [vmem:[#allocation6 + $0x2990] sm:$0xff]
    %v1722 = vld [vmem:[#allocation6 + $0x2998] sm:$0xff]
    %v1723 = vld [vmem:[#allocation6 + $0x29a0] sm:$0xff]
    %v1724 = vld [vmem:[#allocation6 + $0x29a8] sm:$0xff]
    %v1725 = vld [vmem:[#allocation6 + $0x29b0] sm:$0xff]
    %v1726 = vld [vmem:[#allocation6 + $0x29b8] sm:$0xff]
    %v1727 = vld [vmem:[#allocation6 + $0x29c0] sm:$0xff]
    %v1728 = vld [vmem:[#allocation6 + $0x29c8] sm:$0xff]
    %v1729 = vld [vmem:[#allocation6 + $0x29d0] sm:$0xff]
    %v1730 = vld [vmem:[#allocation6 + $0x29d8] sm:$0xff]
    %v1731 = vld [vmem:[#allocation6 + $0x29e0] sm:$0xff]
    %v1732 = vld [vmem:[#allocation6 + $0x29e8] sm:$0xff]
    %v1733 = vld [vmem:[#allocation6 + $0x29f0] sm:$0xff]
    %v1734 = vld [vmem:[#allocation6 + $0x29f8] sm:$0xff]
    %v1735 = vld [vmem:[#allocation6 + $0x2a00] sm:$0xff]
    %v1736 = vld [vmem:[#allocation6 + $0x2a08] sm:$0xff]
    %v1737 = vld [vmem:[#allocation6 + $0x2a10] sm:$0xff]
    %v1738 = vld [vmem:[#allocation6 + $0x2a18] sm:$0xff]
    %v1739 = vld [vmem:[#allocation6 + $0x2a20] sm:$0xff]
    %v1740 = vld [vmem:[#allocation6 + $0x2a28] sm:$0xff]
    %v1741 = vld [vmem:[#allocation6 + $0x2a30] sm:$0xff]
    %v1742 = vld [vmem:[#allocation6 + $0x2a38] sm:$0xff]
    %v1743 = vld [vmem:[#allocation6 + $0x2a40] sm:$0xff]
    %v1744 = vld [vmem:[#allocation6 + $0x2a48] sm:$0xff]
    %v1745 = vld [vmem:[#allocation6 + $0x2a50] sm:$0xff]
    %v1746 = vld [vmem:[#allocation6 + $0x2a58] sm:$0xff]
    %v1747 = vld [vmem:[#allocation6 + $0x2a60] sm:$0xff]
    %v1748 = vld [vmem:[#allocation6 + $0x2a68] sm:$0xff]
    %v1749 = vld [vmem:[#allocation6 + $0x2a70] sm:$0xff]
    %v1750 = vld [vmem:[#allocation6 + $0x2a78] sm:$0xff]
    %v1751 = vld [vmem:[#allocation6 + $0x2a80] sm:$0xff]
    %v1752 = vld [vmem:[#allocation6 + $0x2a88] sm:$0xff]
    %v1753 = vld [vmem:[#allocation6 + $0x2a90] sm:$0xff]
    %v1754 = vld [vmem:[#allocation6 + $0x2a98] sm:$0xff]
    %v1755 = vld [vmem:[#allocation6 + $0x2aa0] sm:$0xff]
    %v1756 = vld [vmem:[#allocation6 + $0x2aa8] sm:$0xff]
    %v1757 = vld [vmem:[#allocation6 + $0x2ab0] sm:$0xff]
    %v1758 = vld [vmem:[#allocation6 + $0x2ab8] sm:$0xff]
    %v1759 = vld [vmem:[#allocation6 + $0x2ac0] sm:$0xff]
    %v1760 = vld [vmem:[#allocation6 + $0x2ac8] sm:$0xff]
    %v1761 = vld [vmem:[#allocation6 + $0x2ad0] sm:$0xff]
    %v1762 = vld [vmem:[#allocation6 + $0x2ad8] sm:$0xff]
    %v1763 = vld [vmem:[#allocation6 + $0x2ae0] sm:$0xff]
    %v1764 = vld [vmem:[#allocation6 + $0x2ae8] sm:$0xff]
    %v1765 = vld [vmem:[#allocation6 + $0x2af0] sm:$0xff]
    %v1766 = vld [vmem:[#allocation6 + $0x2af8] sm:$0xff]
    %v1767 = vld [vmem:[#allocation6 + $0x2b00] sm:$0xff]
    %v1768 = vld [vmem:[#allocation6 + $0x2b08] sm:$0xff]
    %v1769 = vld [vmem:[#allocation6 + $0x2b10] sm:$0xff]
    %v1770 = vld [vmem:[#allocation6 + $0x2b18] sm:$0xff]
    %v1771 = vld [vmem:[#allocation6 + $0x2b20] sm:$0xff]
    %v1772 = vld [vmem:[#allocation6 + $0x2b28] sm:$0xff]
    %v1773 = vld [vmem:[#allocation6 + $0x2b30] sm:$0xff]
    %v1774 = vld [vmem:[#allocation6 + $0x2b38] sm:$0xff]
    %v1775 = vld [vmem:[#allocation6 + $0x2b40] sm:$0xff]
    %v1776 = vld [vmem:[#allocation6 + $0x2b48] sm:$0xff]
    %v1777 = vld [vmem:[#allocation6 + $0x2b50] sm:$0xff]
    %v1778 = vld [vmem:[#allocation6 + $0x2b58] sm:$0xff]
    %v1779 = vld [vmem:[#allocation6 + $0x2b60] sm:$0xff]
    %v1780 = vld [vmem:[#allocation6 + $0x2b68] sm:$0xff]
    %v1781 = vld [vmem:[#allocation6 + $0x2b70] sm:$0xff]
    %v1782 = vld [vmem:[#allocation6 + $0x2b78] sm:$0xff]
    %v1783 = vld [vmem:[#allocation6 + $0x2b80] sm:$0xff]
    %v1784 = vld [vmem:[#allocation6 + $0x2b88] sm:$0xff]
    %v1785 = vld [vmem:[#allocation6 + $0x2b90] sm:$0xff]
    %v1786 = vld [vmem:[#allocation6 + $0x2b98] sm:$0xff]
    %v1787 = vld [vmem:[#allocation6 + $0x2ba0] sm:$0xff]
    %v1788 = vld [vmem:[#allocation6 + $0x2ba8] sm:$0xff]
    %v1789 = vld [vmem:[#allocation6 + $0x2bb0] sm:$0xff]
    %v1790 = vld [vmem:[#allocation6 + $0x2bb8] sm:$0xff]
    %v1791 = vld [vmem:[#allocation6 + $0x2bc0] sm:$0xff]
    %v1792 = vld [vmem:[#allocation6 + $0x2bc8] sm:$0xff]
    %v1793 = vld [vmem:[#allocation6 + $0x2bd0] sm:$0xff]
    %v1794 = vld [vmem:[#allocation6 + $0x2bd8] sm:$0xff]
    %v1795 = vld [vmem:[#allocation6 + $0x2be0] sm:$0xff]
    %v1796 = vld [vmem:[#allocation6 + $0x2be8] sm:$0xff]
    %v1797 = vld [vmem:[#allocation6 + $0x2bf0] sm:$0xff]
    %v1798 = vld [vmem:[#allocation6 + $0x2bf8] sm:$0xff]
    %v1799 = vld [vmem:[#allocation6 + $0x2c00] sm:$0xff]
    %v1800 = vld [vmem:[#allocation6 + $0x2c08] sm:$0xff]
    %v1801 = vld [vmem:[#allocation6 + $0x2c10] sm:$0xff]
    %v1802 = vld [vmem:[#allocation6 + $0x2c18] sm:$0xff]
    %v1803 = vld [vmem:[#allocation6 + $0x2c20] sm:$0xff]
    %v1804 = vld [vmem:[#allocation6 + $0x2c28] sm:$0xff]
    %v1805 = vld [vmem:[#allocation6 + $0x2c30] sm:$0xff]
    %v1806 = vld [vmem:[#allocation6 + $0x2c38] sm:$0xff]
    %v1807 = vld [vmem:[#allocation6 + $0x2c40] sm:$0xff]
    %v1808 = vld [vmem:[#allocation6 + $0x2c48] sm:$0xff]
    %v1809 = vld [vmem:[#allocation6 + $0x2c50] sm:$0xff]
    %v1810 = vld [vmem:[#allocation6 + $0x2c58] sm:$0xff]
    %v1811 = vld [vmem:[#allocation6 + $0x2c60] sm:$0xff]
    %v1812 = vld [vmem:[#allocation6 + $0x2c68] sm:$0xff]
    %v1813 = vld [vmem:[#allocation6 + $0x2c70] sm:$0xff]
    %v1814 = vld [vmem:[#allocation6 + $0x2c78] sm:$0xff]
    %v1815 = vld [vmem:[#allocation6 + $0x2c80] sm:$0xff]
    %v1816 = vld [vmem:[#allocation6 + $0x2c88] sm:$0xff]
    %v1817 = vld [vmem:[#allocation6 + $0x2c90] sm:$0xff]
    %v1818 = vld [vmem:[#allocation6 + $0x2c98] sm:$0xff]
    %v1819 = vld [vmem:[#allocation6 + $0x2ca0] sm:$0xff]
    %v1820 = vld [vmem:[#allocation6 + $0x2ca8] sm:$0xff]
    %v1821 = vld [vmem:[#allocation6 + $0x2cb0] sm:$0xff]
    %v1822 = vld [vmem:[#allocation6 + $0x2cb8] sm:$0xff]
    %v1823 = vld [vmem:[#allocation6 + $0x2cc0] sm:$0xff]
    %v1824 = vld [vmem:[#allocation6 + $0x2cc8] sm:$0xff]
    %v1825 = vld [vmem:[#allocation6 + $0x2cd0] sm:$0xff]
    %v1826 = vld [vmem:[#allocation6 + $0x2cd8] sm:$0xff]
    %v1827 = vld [vmem:[#allocation6 + $0x2ce0] sm:$0xff]
    %v1828 = vld [vmem:[#allocation6 + $0x2ce8] sm:$0xff]
    %v1829 = vld [vmem:[#allocation6 + $0x2cf0] sm:$0xff]
    %v1830 = vld [vmem:[#allocation6 + $0x2cf8] sm:$0xff]
    %v1831 = vld [vmem:[#allocation6 + $0x2d00] sm:$0xff]
    %v1832 = vld [vmem:[#allocation6 + $0x2d08] sm:$0xff]
    %v1833 = vld [vmem:[#allocation6 + $0x2d10] sm:$0xff]
    %v1834 = vld [vmem:[#allocation6 + $0x2d18] sm:$0xff]
    %v1835 = vld [vmem:[#allocation6 + $0x2d20] sm:$0xff]
    %v1836 = vld [vmem:[#allocation6 + $0x2d28] sm:$0xff]
    %v1837 = vld [vmem:[#allocation6 + $0x2d30] sm:$0xff]
    %v1838 = vld [vmem:[#allocation6 + $0x2d38] sm:$0xff]
    %v1839 = vld [vmem:[#allocation6 + $0x2d40] sm:$0xff]
    %v1840 = vld [vmem:[#allocation6 + $0x2d48] sm:$0xff]
    %v1841 = vld [vmem:[#allocation6 + $0x2d50] sm:$0xff]
    %v1842 = vld [vmem:[#allocation6 + $0x2d58] sm:$0xff]
    %v1843 = vld [vmem:[#allocation6 + $0x2d60] sm:$0xff]
    %v1844 = vld [vmem:[#allocation6 + $0x2d68] sm:$0xff]
    %v1845 = vld [vmem:[#allocation6 + $0x2d70] sm:$0xff]
    %v1846 = vld [vmem:[#allocation6 + $0x2d78] sm:$0xff]
    %v1847 = vld [vmem:[#allocation6 + $0x2d80] sm:$0xff]
    %v1848 = vld [vmem:[#allocation6 + $0x2d88] sm:$0xff]
    %v1849 = vld [vmem:[#allocation6 + $0x2d90] sm:$0xff]
    %v1850 = vld [vmem:[#allocation6 + $0x2d98] sm:$0xff]
    %v1851 = vld [vmem:[#allocation6 + $0x2da0] sm:$0xff]
    %v1852 = vld [vmem:[#allocation6 + $0x2da8] sm:$0xff]
    %v1853 = vld [vmem:[#allocation6 + $0x2db0] sm:$0xff]
    %v1854 = vld [vmem:[#allocation6 + $0x2db8] sm:$0xff]
    %v1855 = vld [vmem:[#allocation6 + $0x2dc0] sm:$0xff]
    %v1856 = vld [vmem:[#allocation6 + $0x2dc8] sm:$0xff]
    %v1857 = vld [vmem:[#allocation6 + $0x2dd0] sm:$0xff]
    %v1858 = vld [vmem:[#allocation6 + $0x2dd8] sm:$0xff]
    %v1859 = vld [vmem:[#allocation6 + $0x2de0] sm:$0xff]
    %v1860 = vld [vmem:[#allocation6 + $0x2de8] sm:$0xff]
    %v1861 = vld [vmem:[#allocation6 + $0x2df0] sm:$0xff]
    %v1862 = vld [vmem:[#allocation6 + $0x2df8] sm:$0xff]
    %v1863 = vld [vmem:[#allocation6 + $0x2e00] sm:$0xff]
    %v1864 = vld [vmem:[#allocation6 + $0x2e08] sm:$0xff]
    %v1865 = vld [vmem:[#allocation6 + $0x2e10] sm:$0xff]
    %v1866 = vld [vmem:[#allocation6 + $0x2e18] sm:$0xff]
    %v1867 = vld [vmem:[#allocation6 + $0x2e20] sm:$0xff]
    %v1868 = vld [vmem:[#allocation6 + $0x2e28] sm:$0xff]
    %v1869 = vld [vmem:[#allocation6 + $0x2e30] sm:$0xff]
    %v1870 = vld [vmem:[#allocation6 + $0x2e38] sm:$0xff]
    %v1871 = vld [vmem:[#allocation6 + $0x2e40] sm:$0xff]
    %v1872 = vld [vmem:[#allocation6 + $0x2e48] sm:$0xff]
    %v1873 = vld [vmem:[#allocation6 + $0x2e50] sm:$0xff]
    %v1874 = vld [vmem:[#allocation6 + $0x2e58] sm:$0xff]
    %v1875 = vld [vmem:[#allocation6 + $0x2e60] sm:$0xff]
    %v1876 = vld [vmem:[#allocation6 + $0x2e68] sm:$0xff]
    %v1877 = vld [vmem:[#allocation6 + $0x2e70] sm:$0xff]
    %v1878 = vld [vmem:[#allocation6 + $0x2e78] sm:$0xff]
    %v1879 = vld [vmem:[#allocation6 + $0x2e80] sm:$0xff]
    %v1880 = vld [vmem:[#allocation6 + $0x2e88] sm:$0xff]
    %v1881 = vld [vmem:[#allocation6 + $0x2e90] sm:$0xff]
    %v1882 = vld [vmem:[#allocation6 + $0x2e98] sm:$0xff]
    %v1883 = vld [vmem:[#allocation6 + $0x2ea0] sm:$0xff]
    %v1884 = vld [vmem:[#allocation6 + $0x2ea8] sm:$0xff]
    %v1885 = vld [vmem:[#allocation6 + $0x2eb0] sm:$0xff]
    %v1886 = vld [vmem:[#allocation6 + $0x2eb8] sm:$0xff]
    %v1887 = vld [vmem:[#allocation6 + $0x2ec0] sm:$0xff]
    %v1888 = vld [vmem:[#allocation6 + $0x2ec8] sm:$0xff]
    %v1889 = vld [vmem:[#allocation6 + $0x2ed0] sm:$0xff]
    %v1890 = vld [vmem:[#allocation6 + $0x2ed8] sm:$0xff]
    %v1891 = vld [vmem:[#allocation6 + $0x2ee0] sm:$0xff]
    %v1892 = vld [vmem:[#allocation6 + $0x2ee8] sm:$0xff]
    %v1893 = vld [vmem:[#allocation6 + $0x2ef0] sm:$0xff]
    %v1894 = vld [vmem:[#allocation6 + $0x2ef8] sm:$0xff]
    %v1895 = vld [vmem:[#allocation6 + $0x2f00] sm:$0xff]
    %v1896 = vld [vmem:[#allocation6 + $0x2f08] sm:$0xff]
    %v1897 = vld [vmem:[#allocation6 + $0x2f10] sm:$0xff]
    %v1898 = vld [vmem:[#allocation6 + $0x2f18] sm:$0xff]
    %v1899 = vld [vmem:[#allocation6 + $0x2f20] sm:$0xff]
    %v1900 = vld [vmem:[#allocation6 + $0x2f28] sm:$0xff]
    %v1901 = vld [vmem:[#allocation6 + $0x2f30] sm:$0xff]
    %v1902 = vld [vmem:[#allocation6 + $0x2f38] sm:$0xff]
    %v1903 = vld [vmem:[#allocation6 + $0x2f40] sm:$0xff]
    %v1904 = vld [vmem:[#allocation6 + $0x2f48] sm:$0xff]
    %v1905 = vld [vmem:[#allocation6 + $0x2f50] sm:$0xff]
    %v1906 = vld [vmem:[#allocation6 + $0x2f58] sm:$0xff]
    %v1907 = vld [vmem:[#allocation6 + $0x2f60] sm:$0xff]
    %v1908 = vld [vmem:[#allocation6 + $0x2f68] sm:$0xff]
    %v1909 = vld [vmem:[#allocation6 + $0x2f70] sm:$0xff]
    %v1910 = vld [vmem:[#allocation6 + $0x2f78] sm:$0xff]
    %v1911 = vld [vmem:[#allocation6 + $0x2f80] sm:$0xff]
    %v1912 = vld [vmem:[#allocation6 + $0x2f88] sm:$0xff]
    %v1913 = vld [vmem:[#allocation6 + $0x2f90] sm:$0xff]
    %v1914 = vld [vmem:[#allocation6 + $0x2f98] sm:$0xff]
    %v1915 = vld [vmem:[#allocation6 + $0x2fa0] sm:$0xff]
    %v1916 = vld [vmem:[#allocation6 + $0x2fa8] sm:$0xff]
    %v1917 = vld [vmem:[#allocation6 + $0x2fb0] sm:$0xff]
    %v1918 = vld [vmem:[#allocation6 + $0x2fb8] sm:$0xff]
    %v1919 = vld [vmem:[#allocation6 + $0x2fc0] sm:$0xff]
    %v1920 = vld [vmem:[#allocation6 + $0x2fc8] sm:$0xff]
    %v1921 = vld [vmem:[#allocation6 + $0x2fd0] sm:$0xff]
    %v1922 = vld [vmem:[#allocation6 + $0x2fd8] sm:$0xff]
    %v1923 = vld [vmem:[#allocation6 + $0x2fe0] sm:$0xff]
    %v1924 = vld [vmem:[#allocation6 + $0x2fe8] sm:$0xff]
    %v1925 = vld [vmem:[#allocation6 + $0x2ff0] sm:$0xff]
    %v1926 = vld [vmem:[#allocation6 + $0x2ff8] sm:$0xff]
    %v1927 = vld [vmem:[#allocation7] sm:$0xff]
    %v1928 = vld [vmem:[#allocation7 + $0x8] sm:$0xff]
    %v1931 = vperm.slane %v1927, 0
    %v1932 = vperm.slane %v1927, 1
    %v1933 = vperm.slane %v1927, 2
    %v1934 = vperm.slane %v1927, 3
    %v1935 = vperm.slane %v1927, 4
    %v1936 = vperm.slane %v1927, 5
    %v1937 = vperm.slane %v1927, 6
    %v1938 = vperm.slane %v1927, 7
    %v1939 = vperm.slane %v1928, 0
    %v1940 = vperm.slane %v1928, 1
    %v1941 = vperm.slane %v1928, 2
    %v1942 = vperm.slane %v1928, 3
    %v1943 = vperm.slane %v1928, 4
    %v1944 = vperm.slane %v1928, 5
    %v1945 = vperm.slane %v1928, 6
    %v1946 = vperm.slane %v1928, 7
    %v3499 = vunpack.c.l.b16 %v391
    %v3500 = vunpack.c.h.b16 %v391
    %v3501 = vunpack.c.l.b16 %v392
    %v3502 = vunpack.c.h.b16 %v392
    %v3503 = vunpack.c.l.b16 %v393
    %v3504 = vunpack.c.h.b16 %v393
    %v3505 = vunpack.c.l.b16 %v394
    %v3506 = vunpack.c.h.b16 %v394
    %v3507 = vunpack.c.l.b16 %v395
    %v3508 = vunpack.c.h.b16 %v395
    %v3509 = vunpack.c.l.b16 %v396
    %v3510 = vunpack.c.h.b16 %v396
    %v3511 = vunpack.c.l.b16 %v397
    %v3512 = vunpack.c.h.b16 %v397
    %v3513 = vunpack.c.l.b16 %v398
    %v3514 = vunpack.c.h.b16 %v398
    %v3515 = vunpack.c.l.b16 %v399
    %v3516 = vunpack.c.h.b16 %v399
    %v3517 = vunpack.c.l.b16 %v400
    %v3518 = vunpack.c.h.b16 %v400
    %v3519 = vunpack.c.l.b16 %v401
    %v3520 = vunpack.c.h.b16 %v401
    %v3521 = vunpack.c.l.b16 %v402
    %v3522 = vunpack.c.h.b16 %v402
    %v3523 = vunpack.c.l.b16 %v403
    %v3524 = vunpack.c.h.b16 %v403
    %v3525 = vunpack.c.l.b16 %v404
    %v3526 = vunpack.c.h.b16 %v404
    %v3527 = vunpack.c.l.b16 %v405
    %v3528 = vunpack.c.h.b16 %v405
    %v3529 = vunpack.c.l.b16 %v406
    %v3530 = vunpack.c.h.b16 %v406
    %v3531 = vunpack.c.l.b16 %v407
    %v3532 = vunpack.c.h.b16 %v407
    %v3533 = vunpack.c.l.b16 %v408
    %v3534 = vunpack.c.h.b16 %v408
    %v3535 = vunpack.c.l.b16 %v409
    %v3536 = vunpack.c.h.b16 %v409
    %v3537 = vunpack.c.l.b16 %v410
    %v3538 = vunpack.c.h.b16 %v410
    %v3539 = vunpack.c.l.b16 %v411
    %v3540 = vunpack.c.h.b16 %v411
    %v3541 = vunpack.c.l.b16 %v412
    %v3542 = vunpack.c.h.b16 %v412
    %v3543 = vunpack.c.l.b16 %v413
    %v3544 = vunpack.c.h.b16 %v413
    %v3545 = vunpack.c.l.b16 %v414
    %v3546 = vunpack.c.h.b16 %v414
    %v3547 = vunpack.c.l.b16 %v415
    %v3548 = vunpack.c.h.b16 %v415
    %v3549 = vunpack.c.l.b16 %v416
    %v3550 = vunpack.c.h.b16 %v416
    %v3551 = vunpack.c.l.b16 %v417
    %v3552 = vunpack.c.h.b16 %v417
    %v3553 = vunpack.c.l.b16 %v418
    %v3554 = vunpack.c.h.b16 %v418
    %v3555 = vunpack.c.l.b16 %v419
    %v3556 = vunpack.c.h.b16 %v419
    %v3557 = vunpack.c.l.b16 %v420
    %v3558 = vunpack.c.h.b16 %v420
    %v3559 = vunpack.c.l.b16 %v421
    %v3560 = vunpack.c.h.b16 %v421
    %v3561 = vunpack.c.l.b16 %v422
    %v3562 = vunpack.c.h.b16 %v422
    %v3563 = vunpack.c.l.b16 %v423
    %v3564 = vunpack.c.h.b16 %v423
    %v3565 = vunpack.c.l.b16 %v424
    %v3566 = vunpack.c.h.b16 %v424
    %v3567 = vunpack.c.l.b16 %v425
    %v3568 = vunpack.c.h.b16 %v425
    %v3569 = vunpack.c.l.b16 %v426
    %v3570 = vunpack.c.h.b16 %v426
    %v3571 = vunpack.c.l.b16 %v427
    %v3572 = vunpack.c.h.b16 %v427
    %v3573 = vunpack.c.l.b16 %v428
    %v3574 = vunpack.c.h.b16 %v428
    %v3575 = vunpack.c.l.b16 %v429
    %v3576 = vunpack.c.h.b16 %v429
    %v3577 = vunpack.c.l.b16 %v430
    %v3578 = vunpack.c.h.b16 %v430
    %v3579 = vunpack.c.l.b16 %v431
    %v3580 = vunpack.c.h.b16 %v431
    %v3581 = vunpack.c.l.b16 %v432
    %v3582 = vunpack.c.h.b16 %v432
    %v3583 = vunpack.c.l.b16 %v433
    %v3584 = vunpack.c.h.b16 %v433
    %v3585 = vunpack.c.l.b16 %v434
    %v3586 = vunpack.c.h.b16 %v434
    %v3587 = vunpack.c.l.b16 %v435
    %v3588 = vunpack.c.h.b16 %v435
    %v3589 = vunpack.c.l.b16 %v436
    %v3590 = vunpack.c.h.b16 %v436
    %v3591 = vunpack.c.l.b16 %v437
    %v3592 = vunpack.c.h.b16 %v437
    %v3593 = vunpack.c.l.b16 %v438
    %v3594 = vunpack.c.h.b16 %v438
    %v3595 = vunpack.c.l.b16 %v439
    %v3596 = vunpack.c.h.b16 %v439
    %v3597 = vunpack.c.l.b16 %v440
    %v3598 = vunpack.c.h.b16 %v440
    %v3599 = vunpack.c.l.b16 %v441
    %v3600 = vunpack.c.h.b16 %v441
    %v3601 = vunpack.c.l.b16 %v442
    %v3602 = vunpack.c.h.b16 %v442
    %v3603 = vunpack.c.l.b16 %v443
    %v3604 = vunpack.c.h.b16 %v443
    %v3605 = vunpack.c.l.b16 %v444
    %v3606 = vunpack.c.h.b16 %v444
    %v3607 = vunpack.c.l.b16 %v445
    %v3608 = vunpack.c.h.b16 %v445
    %v3609 = vunpack.c.l.b16 %v446
    %v3610 = vunpack.c.h.b16 %v446
    %v3611 = vunpack.c.l.b16 %v447
    %v3612 = vunpack.c.h.b16 %v447
    %v3613 = vunpack.c.l.b16 %v448
    %v3614 = vunpack.c.h.b16 %v448
    %v3615 = vunpack.c.l.b16 %v449
    %v3616 = vunpack.c.h.b16 %v449
    %v3617 = vunpack.c.l.b16 %v450
    %v3618 = vunpack.c.h.b16 %v450
    %v3619 = vunpack.c.l.b16 %v451
    %v3620 = vunpack.c.h.b16 %v451
    %v3621 = vunpack.c.l.b16 %v452
    %v3622 = vunpack.c.h.b16 %v452
    %v3623 = vunpack.c.l.b16 %v453
    %v3624 = vunpack.c.h.b16 %v453
    %v3625 = vunpack.c.l.b16 %v454
    %v3626 = vunpack.c.h.b16 %v454
    %v3627 = vunpack.c.l.b16 %v455
    %v3628 = vunpack.c.h.b16 %v455
    %v3629 = vunpack.c.l.b16 %v456
    %v3630 = vunpack.c.h.b16 %v456
    %v3631 = vunpack.c.l.b16 %v457
    %v3632 = vunpack.c.h.b16 %v457
    %v3633 = vunpack.c.l.b16 %v458
    %v3634 = vunpack.c.h.b16 %v458
    %v3635 = vunpack.c.l.b16 %v459
    %v3636 = vunpack.c.h.b16 %v459
    %v3637 = vunpack.c.l.b16 %v460
    %v3638 = vunpack.c.h.b16 %v460
    %v3639 = vunpack.c.l.b16 %v461
    %v3640 = vunpack.c.h.b16 %v461
    %v3641 = vunpack.c.l.b16 %v462
    %v3642 = vunpack.c.h.b16 %v462
    %v3643 = vunpack.c.l.b16 %v463
    %v3644 = vunpack.c.h.b16 %v463
    %v3645 = vunpack.c.l.b16 %v464
    %v3646 = vunpack.c.h.b16 %v464
    %v3647 = vunpack.c.l.b16 %v465
    %v3648 = vunpack.c.h.b16 %v465
    %v3649 = vunpack.c.l.b16 %v466
    %v3650 = vunpack.c.h.b16 %v466
    %v3651 = vunpack.c.l.b16 %v467
    %v3652 = vunpack.c.h.b16 %v467
    %v3653 = vunpack.c.l.b16 %v468
    %v3654 = vunpack.c.h.b16 %v468
    %v3655 = vunpack.c.l.b16 %v469
    %v3656 = vunpack.c.h.b16 %v469
    %v3657 = vunpack.c.l.b16 %v470
    %v3658 = vunpack.c.h.b16 %v470
    %v3659 = vunpack.c.l.b16 %v471
    %v3660 = vunpack.c.h.b16 %v471
    %v3661 = vunpack.c.l.b16 %v472
    %v3662 = vunpack.c.h.b16 %v472
    %v3663 = vunpack.c.l.b16 %v473
    %v3664 = vunpack.c.h.b16 %v473
    %v3665 = vunpack.c.l.b16 %v474
    %v3666 = vunpack.c.h.b16 %v474
    %v3667 = vunpack.c.l.b16 %v475
    %v3668 = vunpack.c.h.b16 %v475
    %v3669 = vunpack.c.l.b16 %v476
    %v3670 = vunpack.c.h.b16 %v476
    %v3671 = vunpack.c.l.b16 %v477
    %v3672 = vunpack.c.h.b16 %v477
    %v3673 = vunpack.c.l.b16 %v478
    %v3674 = vunpack.c.h.b16 %v478
    %v3675 = vunpack.c.l.b16 %v479
    %v3676 = vunpack.c.h.b16 %v479
    %v3677 = vunpack.c.l.b16 %v480
    %v3678 = vunpack.c.h.b16 %v480
    %v3679 = vunpack.c.l.b16 %v481
    %v3680 = vunpack.c.h.b16 %v481
    %v3681 = vunpack.c.l.b16 %v482
    %v3682 = vunpack.c.h.b16 %v482
    %v3683 = vunpack.c.l.b16 %v483
    %v3684 = vunpack.c.h.b16 %v483
    %v3685 = vunpack.c.l.b16 %v484
    %v3686 = vunpack.c.h.b16 %v484
    %v3687 = vunpack.c.l.b16 %v485
    %v3688 = vunpack.c.h.b16 %v485
    %v3689 = vunpack.c.l.b16 %v486
    %v3690 = vunpack.c.h.b16 %v486
    %v3691 = vunpack.c.l.b16 %v487
    %v3692 = vunpack.c.h.b16 %v487
    %v3693 = vunpack.c.l.b16 %v488
    %v3694 = vunpack.c.h.b16 %v488
    %v3695 = vunpack.c.l.b16 %v489
    %v3696 = vunpack.c.h.b16 %v489
    %v3697 = vunpack.c.l.b16 %v490
    %v3698 = vunpack.c.h.b16 %v490
    %v3699 = vunpack.c.l.b16 %v491
    %v3700 = vunpack.c.h.b16 %v491
    %v3701 = vunpack.c.l.b16 %v492
    %v3702 = vunpack.c.h.b16 %v492
    %v3703 = vunpack.c.l.b16 %v493
    %v3704 = vunpack.c.h.b16 %v493
    %v3705 = vunpack.c.l.b16 %v494
    %v3706 = vunpack.c.h.b16 %v494
    %v3707 = vunpack.c.l.b16 %v495
    %v3708 = vunpack.c.h.b16 %v495
    %v3709 = vunpack.c.l.b16 %v496
    %v3710 = vunpack.c.h.b16 %v496
    %v3711 = vunpack.c.l.b16 %v497
    %v3712 = vunpack.c.h.b16 %v497
    %v3713 = vunpack.c.l.b16 %v498
    %v3714 = vunpack.c.h.b16 %v498
    %v3715 = vunpack.c.l.b16 %v499
    %v3716 = vunpack.c.h.b16 %v499
    %v3717 = vunpack.c.l.b16 %v500
    %v3718 = vunpack.c.h.b16 %v500
    %v3719 = vunpack.c.l.b16 %v501
    %v3720 = vunpack.c.h.b16 %v501
    %v3721 = vunpack.c.l.b16 %v502
    %v3722 = vunpack.c.h.b16 %v502
    %v3723 = vunpack.c.l.b16 %v503
    %v3724 = vunpack.c.h.b16 %v503
    %v3725 = vunpack.c.l.b16 %v504
    %v3726 = vunpack.c.h.b16 %v504
    %v3727 = vunpack.c.l.b16 %v505
    %v3728 = vunpack.c.h.b16 %v505
    %v3729 = vunpack.c.l.b16 %v506
    %v3730 = vunpack.c.h.b16 %v506
    %v3731 = vunpack.c.l.b16 %v507
    %v3732 = vunpack.c.h.b16 %v507
    %v3733 = vunpack.c.l.b16 %v508
    %v3734 = vunpack.c.h.b16 %v508
    %v3735 = vunpack.c.l.b16 %v509
    %v3736 = vunpack.c.h.b16 %v509
    %v3737 = vunpack.c.l.b16 %v510
    %v3738 = vunpack.c.h.b16 %v510
    %v3739 = vunpack.c.l.b16 %v511
    %v3740 = vunpack.c.h.b16 %v511
    %v3741 = vunpack.c.l.b16 %v512
    %v3742 = vunpack.c.h.b16 %v512
    %v3743 = vunpack.c.l.b16 %v513
    %v3744 = vunpack.c.h.b16 %v513
    %v3745 = vunpack.c.l.b16 %v514
    %v3746 = vunpack.c.h.b16 %v514
    %v3747 = vunpack.c.l.b16 %v515
    %v3748 = vunpack.c.h.b16 %v515
    %v3749 = vunpack.c.l.b16 %v516
    %v3750 = vunpack.c.h.b16 %v516
    %v3751 = vunpack.c.l.b16 %v517
    %v3752 = vunpack.c.h.b16 %v517
    %v3753 = vunpack.c.l.b16 %v518
    %v3754 = vunpack.c.h.b16 %v518
    %v3755 = vunpack.c.l.b16 %v519
    %v3756 = vunpack.c.h.b16 %v519
    %v3757 = vunpack.c.l.b16 %v520
    %v3758 = vunpack.c.h.b16 %v520
    %v3759 = vunpack.c.l.b16 %v521
    %v3760 = vunpack.c.h.b16 %v521
    %v3761 = vunpack.c.l.b16 %v522
    %v3762 = vunpack.c.h.b16 %v522
    %v3763 = vunpack.c.l.b16 %v523
    %v3764 = vunpack.c.h.b16 %v523
    %v3765 = vunpack.c.l.b16 %v524
    %v3766 = vunpack.c.h.b16 %v524
    %v3767 = vunpack.c.l.b16 %v525
    %v3768 = vunpack.c.h.b16 %v525
    %v3769 = vunpack.c.l.b16 %v526
    %v3770 = vunpack.c.h.b16 %v526
    %v3771 = vunpack.c.l.b16 %v527
    %v3772 = vunpack.c.h.b16 %v527
    %v3773 = vunpack.c.l.b16 %v528
    %v3774 = vunpack.c.h.b16 %v528
    %v3775 = vunpack.c.l.b16 %v529
    %v3776 = vunpack.c.h.b16 %v529
    %v3777 = vunpack.c.l.b16 %v530
    %v3778 = vunpack.c.h.b16 %v530
    %v3779 = vunpack.c.l.b16 %v531
    %v3780 = vunpack.c.h.b16 %v531
    %v3781 = vunpack.c.l.b16 %v532
    %v3782 = vunpack.c.h.b16 %v532
    %v3783 = vunpack.c.l.b16 %v533
    %v3784 = vunpack.c.h.b16 %v533
    %v3785 = vunpack.c.l.b16 %v534
    %v3786 = vunpack.c.h.b16 %v534
    %v3787 = vunpack.c.l.b16 %v535
    %v3788 = vunpack.c.h.b16 %v535
    %v3789 = vunpack.c.l.b16 %v536
    %v3790 = vunpack.c.h.b16 %v536
    %v3791 = vunpack.c.l.b16 %v537
    %v3792 = vunpack.c.h.b16 %v537
    %v3793 = vunpack.c.l.b16 %v538
    %v3794 = vunpack.c.h.b16 %v538
    %v3795 = vunpack.c.l.b16 %v539
    %v3796 = vunpack.c.h.b16 %v539
    %v3797 = vunpack.c.l.b16 %v540
    %v3798 = vunpack.c.h.b16 %v540
    %v3799 = vunpack.c.l.b16 %v541
    %v3800 = vunpack.c.h.b16 %v541
    %v3801 = vunpack.c.l.b16 %v542
    %v3802 = vunpack.c.h.b16 %v542
    %v3803 = vunpack.c.l.b16 %v543
    %v3804 = vunpack.c.h.b16 %v543
    %v3805 = vunpack.c.l.b16 %v544
    %v3806 = vunpack.c.h.b16 %v544
    %v3807 = vunpack.c.l.b16 %v545
    %v3808 = vunpack.c.h.b16 %v545
    %v3809 = vunpack.c.l.b16 %v546
    %v3810 = vunpack.c.h.b16 %v546
    %v3811 = vunpack.c.l.b16 %v547
    %v3812 = vunpack.c.h.b16 %v547
    %v3813 = vunpack.c.l.b16 %v548
    %v3814 = vunpack.c.h.b16 %v548
    %v3815 = vunpack.c.l.b16 %v549
    %v3816 = vunpack.c.h.b16 %v549
    %v3817 = vunpack.c.l.b16 %v550
    %v3818 = vunpack.c.h.b16 %v550
    %v3819 = vunpack.c.l.b16 %v551
    %v3820 = vunpack.c.h.b16 %v551
    %v3821 = vunpack.c.l.b16 %v552
    %v3822 = vunpack.c.h.b16 %v552
    %v3823 = vunpack.c.l.b16 %v553
    %v3824 = vunpack.c.h.b16 %v553
    %v3825 = vunpack.c.l.b16 %v554
    %v3826 = vunpack.c.h.b16 %v554
    %v3827 = vunpack.c.l.b16 %v555
    %v3828 = vunpack.c.h.b16 %v555
    %v3829 = vunpack.c.l.b16 %v556
    %v3830 = vunpack.c.h.b16 %v556
    %v3831 = vunpack.c.l.b16 %v557
    %v3832 = vunpack.c.h.b16 %v557
    %v3833 = vunpack.c.l.b16 %v558
    %v3834 = vunpack.c.h.b16 %v558
    %v3835 = vunpack.c.l.b16 %v559
    %v3836 = vunpack.c.h.b16 %v559
    %v3837 = vunpack.c.l.b16 %v560
    %v3838 = vunpack.c.h.b16 %v560
    %v3839 = vunpack.c.l.b16 %v561
    %v3840 = vunpack.c.h.b16 %v561
    %v3841 = vunpack.c.l.b16 %v562
    %v3842 = vunpack.c.h.b16 %v562
    %v3843 = vunpack.c.l.b16 %v563
    %v3844 = vunpack.c.h.b16 %v563
    %v3845 = vunpack.c.l.b16 %v564
    %v3846 = vunpack.c.h.b16 %v564
    %v3847 = vunpack.c.l.b16 %v565
    %v3848 = vunpack.c.h.b16 %v565
    %v3849 = vunpack.c.l.b16 %v566
    %v3850 = vunpack.c.h.b16 %v566
    %v3851 = vunpack.c.l.b16 %v567
    %v3852 = vunpack.c.h.b16 %v567
    %v3853 = vunpack.c.l.b16 %v568
    %v3854 = vunpack.c.h.b16 %v568
    %v3855 = vunpack.c.l.b16 %v569
    %v3856 = vunpack.c.h.b16 %v569
    %v3857 = vunpack.c.l.b16 %v570
    %v3858 = vunpack.c.h.b16 %v570
    %v3859 = vunpack.c.l.b16 %v571
    %v3860 = vunpack.c.h.b16 %v571
    %v3861 = vunpack.c.l.b16 %v572
    %v3862 = vunpack.c.h.b16 %v572
    %v3863 = vunpack.c.l.b16 %v573
    %v3864 = vunpack.c.h.b16 %v573
    %v3865 = vunpack.c.l.b16 %v574
    %v3866 = vunpack.c.h.b16 %v574
    %v3867 = vunpack.c.l.b16 %v575
    %v3868 = vunpack.c.h.b16 %v575
    %v3869 = vunpack.c.l.b16 %v576
    %v3870 = vunpack.c.h.b16 %v576
    %v3871 = vunpack.c.l.b16 %v577
    %v3872 = vunpack.c.h.b16 %v577
    %v3873 = vunpack.c.l.b16 %v578
    %v3874 = vunpack.c.h.b16 %v578
    %v3875 = vunpack.c.l.b16 %v579
    %v3876 = vunpack.c.h.b16 %v579
    %v3877 = vunpack.c.l.b16 %v580
    %v3878 = vunpack.c.h.b16 %v580
    %v3879 = vunpack.c.l.b16 %v581
    %v3880 = vunpack.c.h.b16 %v581
    %v3881 = vunpack.c.l.b16 %v582
    %v3882 = vunpack.c.h.b16 %v582
    %v3883 = vunpack.c.l.b16 %v583
    %v3884 = vunpack.c.h.b16 %v583
    %v3885 = vunpack.c.l.b16 %v584
    %v3886 = vunpack.c.h.b16 %v584
    %v3887 = vunpack.c.l.b16 %v585
    %v3888 = vunpack.c.h.b16 %v585
    %v3889 = vunpack.c.l.b16 %v586
    %v3890 = vunpack.c.h.b16 %v586
    %v3891 = vunpack.c.l.b16 %v587
    %v3892 = vunpack.c.h.b16 %v587
    %v3893 = vunpack.c.l.b16 %v588
    %v3894 = vunpack.c.h.b16 %v588
    %v3895 = vunpack.c.l.b16 %v589
    %v3896 = vunpack.c.h.b16 %v589
    %v3897 = vunpack.c.l.b16 %v590
    %v3898 = vunpack.c.h.b16 %v590
    %v3899 = vunpack.c.l.b16 %v591
    %v3900 = vunpack.c.h.b16 %v591
    %v3901 = vunpack.c.l.b16 %v592
    %v3902 = vunpack.c.h.b16 %v592
    %v3903 = vunpack.c.l.b16 %v593
    %v3904 = vunpack.c.h.b16 %v593
    %v3905 = vunpack.c.l.b16 %v594
    %v3906 = vunpack.c.h.b16 %v594
    %v3907 = vunpack.c.l.b16 %v595
    %v3908 = vunpack.c.h.b16 %v595
    %v3909 = vunpack.c.l.b16 %v596
    %v3910 = vunpack.c.h.b16 %v596
    %v3911 = vunpack.c.l.b16 %v597
    %v3912 = vunpack.c.h.b16 %v597
    %v3913 = vunpack.c.l.b16 %v598
    %v3914 = vunpack.c.h.b16 %v598
    %v3915 = vunpack.c.l.b16 %v599
    %v3916 = vunpack.c.h.b16 %v599
    %v3917 = vunpack.c.l.b16 %v600
    %v3918 = vunpack.c.h.b16 %v600
    %v3919 = vunpack.c.l.b16 %v601
    %v3920 = vunpack.c.h.b16 %v601
    %v3921 = vunpack.c.l.b16 %v602
    %v3922 = vunpack.c.h.b16 %v602
    %v3923 = vunpack.c.l.b16 %v603
    %v3924 = vunpack.c.h.b16 %v603
    %v3925 = vunpack.c.l.b16 %v604
    %v3926 = vunpack.c.h.b16 %v604
    %v3927 = vunpack.c.l.b16 %v605
    %v3928 = vunpack.c.h.b16 %v605
    %v3929 = vunpack.c.l.b16 %v606
    %v3930 = vunpack.c.h.b16 %v606
    %v3931 = vunpack.c.l.b16 %v607
    %v3932 = vunpack.c.h.b16 %v607
    %v3933 = vunpack.c.l.b16 %v608
    %v3934 = vunpack.c.h.b16 %v608
    %v3935 = vunpack.c.l.b16 %v609
    %v3936 = vunpack.c.h.b16 %v609
    %v3937 = vunpack.c.l.b16 %v610
    %v3938 = vunpack.c.h.b16 %v610
    %v3939 = vunpack.c.l.b16 %v611
    %v3940 = vunpack.c.h.b16 %v611
    %v3941 = vunpack.c.l.b16 %v612
    %v3942 = vunpack.c.h.b16 %v612
    %v3943 = vunpack.c.l.b16 %v613
    %v3944 = vunpack.c.h.b16 %v613
    %v3945 = vunpack.c.l.b16 %v614
    %v3946 = vunpack.c.h.b16 %v614
    %v3947 = vunpack.c.l.b16 %v615
    %v3948 = vunpack.c.h.b16 %v615
    %v3949 = vunpack.c.l.b16 %v616
    %v3950 = vunpack.c.h.b16 %v616
    %v3951 = vunpack.c.l.b16 %v617
    %v3952 = vunpack.c.h.b16 %v617
    %v3953 = vunpack.c.l.b16 %v618
    %v3954 = vunpack.c.h.b16 %v618
    %v3955 = vunpack.c.l.b16 %v619
    %v3956 = vunpack.c.h.b16 %v619
    %v3957 = vunpack.c.l.b16 %v620
    %v3958 = vunpack.c.h.b16 %v620
    %v3959 = vunpack.c.l.b16 %v621
    %v3960 = vunpack.c.h.b16 %v621
    %v3961 = vunpack.c.l.b16 %v622
    %v3962 = vunpack.c.h.b16 %v622
    %v3963 = vunpack.c.l.b16 %v623
    %v3964 = vunpack.c.h.b16 %v623
    %v3965 = vunpack.c.l.b16 %v624
    %v3966 = vunpack.c.h.b16 %v624
    %v3967 = vunpack.c.l.b16 %v625
    %v3968 = vunpack.c.h.b16 %v625
    %v3969 = vunpack.c.l.b16 %v626
    %v3970 = vunpack.c.h.b16 %v626
    %v3971 = vunpack.c.l.b16 %v627
    %v3972 = vunpack.c.h.b16 %v627
    %v3973 = vunpack.c.l.b16 %v628
    %v3974 = vunpack.c.h.b16 %v628
    %v3975 = vunpack.c.l.b16 %v629
    %v3976 = vunpack.c.h.b16 %v629
    %v3977 = vunpack.c.l.b16 %v630
    %v3978 = vunpack.c.h.b16 %v630
    %v3979 = vunpack.c.l.b16 %v631
    %v3980 = vunpack.c.h.b16 %v631
    %v3981 = vunpack.c.l.b16 %v632
    %v3982 = vunpack.c.h.b16 %v632
    %v3983 = vunpack.c.l.b16 %v633
    %v3984 = vunpack.c.h.b16 %v633
    %v3985 = vunpack.c.l.b16 %v634
    %v3986 = vunpack.c.h.b16 %v634
    %v3987 = vunpack.c.l.b16 %v635
    %v3988 = vunpack.c.h.b16 %v635
    %v3989 = vunpack.c.l.b16 %v636
    %v3990 = vunpack.c.h.b16 %v636
    %v3991 = vunpack.c.l.b16 %v637
    %v3992 = vunpack.c.h.b16 %v637
    %v3993 = vunpack.c.l.b16 %v638
    %v3994 = vunpack.c.h.b16 %v638
    %v3995 = vunpack.c.l.b16 %v639
    %v3996 = vunpack.c.h.b16 %v639
    %v3997 = vunpack.c.l.b16 %v640
    %v3998 = vunpack.c.h.b16 %v640
    %v3999 = vunpack.c.l.b16 %v641
    %v4000 = vunpack.c.h.b16 %v641
    %v4001 = vunpack.c.l.b16 %v642
    %v4002 = vunpack.c.h.b16 %v642
    %v4003 = vunpack.c.l.b16 %v643
    %v4004 = vunpack.c.h.b16 %v643
    %v4005 = vunpack.c.l.b16 %v644
    %v4006 = vunpack.c.h.b16 %v644
    %v4007 = vunpack.c.l.b16 %v645
    %v4008 = vunpack.c.h.b16 %v645
    %v4009 = vunpack.c.l.b16 %v646
    %v4010 = vunpack.c.h.b16 %v646
    %v4011 = vunpack.c.l.b16 %v647
    %v4012 = vunpack.c.h.b16 %v647
    %v4013 = vunpack.c.l.b16 %v648
    %v4014 = vunpack.c.h.b16 %v648
    %v4015 = vunpack.c.l.b16 %v649
    %v4016 = vunpack.c.h.b16 %v649
    %v4017 = vunpack.c.l.b16 %v650
    %v4018 = vunpack.c.h.b16 %v650
    %v4019 = vunpack.c.l.b16 %v651
    %v4020 = vunpack.c.h.b16 %v651
    %v4021 = vunpack.c.l.b16 %v652
    %v4022 = vunpack.c.h.b16 %v652
    %v4023 = vunpack.c.l.b16 %v653
    %v4024 = vunpack.c.h.b16 %v653
    %v4025 = vunpack.c.l.b16 %v654
    %v4026 = vunpack.c.h.b16 %v654
    %v4027 = vunpack.c.l.b16 %v655
    %v4028 = vunpack.c.h.b16 %v655
    %v4029 = vunpack.c.l.b16 %v656
    %v4030 = vunpack.c.h.b16 %v656
    %v4031 = vunpack.c.l.b16 %v657
    %v4032 = vunpack.c.h.b16 %v657
    %v4033 = vunpack.c.l.b16 %v658
    %v4034 = vunpack.c.h.b16 %v658
    %v4035 = vunpack.c.l.b16 %v659
    %v4036 = vunpack.c.h.b16 %v659
    %v4037 = vunpack.c.l.b16 %v660
    %v4038 = vunpack.c.h.b16 %v660
    %v4039 = vunpack.c.l.b16 %v661
    %v4040 = vunpack.c.h.b16 %v661
    %v4041 = vunpack.c.l.b16 %v662
    %v4042 = vunpack.c.h.b16 %v662
    %v4043 = vunpack.c.l.b16 %v663
    %v4044 = vunpack.c.h.b16 %v663
    %v4045 = vunpack.c.l.b16 %v664
    %v4046 = vunpack.c.h.b16 %v664
    %v4047 = vunpack.c.l.b16 %v665
    %v4048 = vunpack.c.h.b16 %v665
    %v4049 = vunpack.c.l.b16 %v666
    %v4050 = vunpack.c.h.b16 %v666
    %v4051 = vunpack.c.l.b16 %v667
    %v4052 = vunpack.c.h.b16 %v667
    %v4053 = vunpack.c.l.b16 %v668
    %v4054 = vunpack.c.h.b16 %v668
    %v4055 = vunpack.c.l.b16 %v669
    %v4056 = vunpack.c.h.b16 %v669
    %v4057 = vunpack.c.l.b16 %v670
    %v4058 = vunpack.c.h.b16 %v670
    %v4059 = vunpack.c.l.b16 %v671
    %v4060 = vunpack.c.h.b16 %v671
    %v4061 = vunpack.c.l.b16 %v672
    %v4062 = vunpack.c.h.b16 %v672
    %v4063 = vunpack.c.l.b16 %v673
    %v4064 = vunpack.c.h.b16 %v673
    %v4065 = vunpack.c.l.b16 %v674
    %v4066 = vunpack.c.h.b16 %v674
    %v4067 = vunpack.c.l.b16 %v675
    %v4068 = vunpack.c.h.b16 %v675
    %v4069 = vunpack.c.l.b16 %v676
    %v4070 = vunpack.c.h.b16 %v676
    %v4071 = vunpack.c.l.b16 %v677
    %v4072 = vunpack.c.h.b16 %v677
    %v4073 = vunpack.c.l.b16 %v678
    %v4074 = vunpack.c.h.b16 %v678
    %v4075 = vunpack.c.l.b16 %v679
    %v4076 = vunpack.c.h.b16 %v679
    %v4077 = vunpack.c.l.b16 %v680
    %v4078 = vunpack.c.h.b16 %v680
    %v4079 = vunpack.c.l.b16 %v681
    %v4080 = vunpack.c.h.b16 %v681
    %v4081 = vunpack.c.l.b16 %v682
    %v4082 = vunpack.c.h.b16 %v682
    %v4083 = vunpack.c.l.b16 %v683
    %v4084 = vunpack.c.h.b16 %v683
    %v4085 = vunpack.c.l.b16 %v684
    %v4086 = vunpack.c.h.b16 %v684
    %v4087 = vunpack.c.l.b16 %v685
    %v4088 = vunpack.c.h.b16 %v685
    %v4089 = vunpack.c.l.b16 %v686
    %v4090 = vunpack.c.h.b16 %v686
    %v4091 = vunpack.c.l.b16 %v687
    %v4092 = vunpack.c.h.b16 %v687
    %v4093 = vunpack.c.l.b16 %v688
    %v4094 = vunpack.c.h.b16 %v688
    %v4095 = vunpack.c.l.b16 %v689
    %v4096 = vunpack.c.h.b16 %v689
    %v4097 = vunpack.c.l.b16 %v690
    %v4098 = vunpack.c.h.b16 %v690
    %v4099 = vunpack.c.l.b16 %v691
    %v4100 = vunpack.c.h.b16 %v691
    %v4101 = vunpack.c.l.b16 %v692
    %v4102 = vunpack.c.h.b16 %v692
    %v4103 = vunpack.c.l.b16 %v693
    %v4104 = vunpack.c.h.b16 %v693
    %v4105 = vunpack.c.l.b16 %v694
    %v4106 = vunpack.c.h.b16 %v694
    %v4107 = vunpack.c.l.b16 %v695
    %v4108 = vunpack.c.h.b16 %v695
    %v4109 = vunpack.c.l.b16 %v696
    %v4110 = vunpack.c.h.b16 %v696
    %v4111 = vunpack.c.l.b16 %v697
    %v4112 = vunpack.c.h.b16 %v697
    %v4113 = vunpack.c.l.b16 %v698
    %v4114 = vunpack.c.h.b16 %v698
    %v4115 = vunpack.c.l.b16 %v699
    %v4116 = vunpack.c.h.b16 %v699
    %v4117 = vunpack.c.l.b16 %v700
    %v4118 = vunpack.c.h.b16 %v700
    %v4119 = vunpack.c.l.b16 %v701
    %v4120 = vunpack.c.h.b16 %v701
    %v4121 = vunpack.c.l.b16 %v702
    %v4122 = vunpack.c.h.b16 %v702
    %v4123 = vunpack.c.l.b16 %v703
    %v4124 = vunpack.c.h.b16 %v703
    %v4125 = vunpack.c.l.b16 %v704
    %v4126 = vunpack.c.h.b16 %v704
    %v4127 = vunpack.c.l.b16 %v705
    %v4128 = vunpack.c.h.b16 %v705
    %v4129 = vunpack.c.l.b16 %v706
    %v4130 = vunpack.c.h.b16 %v706
    %v4131 = vunpack.c.l.b16 %v707
    %v4132 = vunpack.c.h.b16 %v707
    %v4133 = vunpack.c.l.b16 %v708
    %v4134 = vunpack.c.h.b16 %v708
    %v4135 = vunpack.c.l.b16 %v709
    %v4136 = vunpack.c.h.b16 %v709
    %v4137 = vunpack.c.l.b16 %v710
    %v4138 = vunpack.c.h.b16 %v710
    %v4139 = vunpack.c.l.b16 %v711
    %v4140 = vunpack.c.h.b16 %v711
    %v4141 = vunpack.c.l.b16 %v712
    %v4142 = vunpack.c.h.b16 %v712
    %v4143 = vunpack.c.l.b16 %v713
    %v4144 = vunpack.c.h.b16 %v713
    %v4145 = vunpack.c.l.b16 %v714
    %v4146 = vunpack.c.h.b16 %v714
    %v4147 = vunpack.c.l.b16 %v715
    %v4148 = vunpack.c.h.b16 %v715
    %v4149 = vunpack.c.l.b16 %v716
    %v4150 = vunpack.c.h.b16 %v716
    %v4151 = vunpack.c.l.b16 %v717
    %v4152 = vunpack.c.h.b16 %v717
    %v4153 = vunpack.c.l.b16 %v718
    %v4154 = vunpack.c.h.b16 %v718
    %v4155 = vunpack.c.l.b16 %v719
    %v4156 = vunpack.c.h.b16 %v719
    %v4157 = vunpack.c.l.b16 %v720
    %v4158 = vunpack.c.h.b16 %v720
    %v4159 = vunpack.c.l.b16 %v721
    %v4160 = vunpack.c.h.b16 %v721
    %v4161 = vunpack.c.l.b16 %v722
    %v4162 = vunpack.c.h.b16 %v722
    %v4163 = vunpack.c.l.b16 %v723
    %v4164 = vunpack.c.h.b16 %v723
    %v4165 = vunpack.c.l.b16 %v724
    %v4166 = vunpack.c.h.b16 %v724
    %v4167 = vunpack.c.l.b16 %v725
    %v4168 = vunpack.c.h.b16 %v725
    %v4169 = vunpack.c.l.b16 %v726
    %v4170 = vunpack.c.h.b16 %v726
    %v4171 = vunpack.c.l.b16 %v727
    %v4172 = vunpack.c.h.b16 %v727
    %v4173 = vunpack.c.l.b16 %v728
    %v4174 = vunpack.c.h.b16 %v728
    %v4175 = vunpack.c.l.b16 %v729
    %v4176 = vunpack.c.h.b16 %v729
    %v4177 = vunpack.c.l.b16 %v730
    %v4178 = vunpack.c.h.b16 %v730
    %v4179 = vunpack.c.l.b16 %v731
    %v4180 = vunpack.c.h.b16 %v731
    %v4181 = vunpack.c.l.b16 %v732
    %v4182 = vunpack.c.h.b16 %v732
    %v4183 = vunpack.c.l.b16 %v733
    %v4184 = vunpack.c.h.b16 %v733
    %v4185 = vunpack.c.l.b16 %v734
    %v4186 = vunpack.c.h.b16 %v734
    %v4187 = vunpack.c.l.b16 %v735
    %v4188 = vunpack.c.h.b16 %v735
    %v4189 = vunpack.c.l.b16 %v736
    %v4190 = vunpack.c.h.b16 %v736
    %v4191 = vunpack.c.l.b16 %v737
    %v4192 = vunpack.c.h.b16 %v737
    %v4193 = vunpack.c.l.b16 %v738
    %v4194 = vunpack.c.h.b16 %v738
    %v4195 = vunpack.c.l.b16 %v739
    %v4196 = vunpack.c.h.b16 %v739
    %v4197 = vunpack.c.l.b16 %v740
    %v4198 = vunpack.c.h.b16 %v740
    %v4199 = vunpack.c.l.b16 %v741
    %v4200 = vunpack.c.h.b16 %v741
    %v4201 = vunpack.c.l.b16 %v742
    %v4202 = vunpack.c.h.b16 %v742
    %v4203 = vunpack.c.l.b16 %v743
    %v4204 = vunpack.c.h.b16 %v743
    %v4205 = vunpack.c.l.b16 %v744
    %v4206 = vunpack.c.h.b16 %v744
    %v4207 = vunpack.c.l.b16 %v745
    %v4208 = vunpack.c.h.b16 %v745
    %v4209 = vunpack.c.l.b16 %v746
    %v4210 = vunpack.c.h.b16 %v746
    %v4211 = vunpack.c.l.b16 %v747
    %v4212 = vunpack.c.h.b16 %v747
    %v4213 = vunpack.c.l.b16 %v748
    %v4214 = vunpack.c.h.b16 %v748
    %v4215 = vunpack.c.l.b16 %v749
    %v4216 = vunpack.c.h.b16 %v749
    %v4217 = vunpack.c.l.b16 %v750
    %v4218 = vunpack.c.h.b16 %v750
    %v4219 = vunpack.c.l.b16 %v751
    %v4220 = vunpack.c.h.b16 %v751
    %v4221 = vunpack.c.l.b16 %v752
    %v4222 = vunpack.c.h.b16 %v752
    %v4223 = vunpack.c.l.b16 %v753
    %v4224 = vunpack.c.h.b16 %v753
    %v4225 = vunpack.c.l.b16 %v754
    %v4226 = vunpack.c.h.b16 %v754
    %v4227 = vunpack.c.l.b16 %v755
    %v4228 = vunpack.c.h.b16 %v755
    %v4229 = vunpack.c.l.b16 %v756
    %v4230 = vunpack.c.h.b16 %v756
    %v4231 = vunpack.c.l.b16 %v757
    %v4232 = vunpack.c.h.b16 %v757
    %v4233 = vunpack.c.l.b16 %v758
    %v4234 = vunpack.c.h.b16 %v758
    %v4235 = vunpack.c.l.b16 %v759
    %v4236 = vunpack.c.h.b16 %v759
    %v4237 = vunpack.c.l.b16 %v760
    %v4238 = vunpack.c.h.b16 %v760
    %v4239 = vunpack.c.l.b16 %v761
    %v4240 = vunpack.c.h.b16 %v761
    %v4241 = vunpack.c.l.b16 %v762
    %v4242 = vunpack.c.h.b16 %v762
    %v4243 = vunpack.c.l.b16 %v763
    %v4244 = vunpack.c.h.b16 %v763
    %v4245 = vunpack.c.l.b16 %v764
    %v4246 = vunpack.c.h.b16 %v764
    %v4247 = vunpack.c.l.b16 %v765
    %v4248 = vunpack.c.h.b16 %v765
    %v4249 = vunpack.c.l.b16 %v766
    %v4250 = vunpack.c.h.b16 %v766
    %v4251 = vunpack.c.l.b16 %v767
    %v4252 = vunpack.c.h.b16 %v767
    %v4253 = vunpack.c.l.b16 %v768
    %v4254 = vunpack.c.h.b16 %v768
    %v4255 = vunpack.c.l.b16 %v769
    %v4256 = vunpack.c.h.b16 %v769
    %v4257 = vunpack.c.l.b16 %v770
    %v4258 = vunpack.c.h.b16 %v770
    %v4259 = vunpack.c.l.b16 %v771
    %v4260 = vunpack.c.h.b16 %v771
    %v4261 = vunpack.c.l.b16 %v772
    %v4262 = vunpack.c.h.b16 %v772
    %v4263 = vunpack.c.l.b16 %v773
    %v4264 = vunpack.c.h.b16 %v773
    %v4265 = vunpack.c.l.b16 %v774
    %v4266 = vunpack.c.h.b16 %v774
    %v4267 = vunpack.c.l.b16 %v775
    %v4268 = vunpack.c.h.b16 %v775
    %v4269 = vunpack.c.l.b16 %v776
    %v4270 = vunpack.c.h.b16 %v776
    %v4271 = vunpack.c.l.b16 %v777
    %v4272 = vunpack.c.h.b16 %v777
    %v4273 = vunpack.c.l.b16 %v778
    %v4274 = vunpack.c.h.b16 %v778
    %v4275 = vunpack.c.l.b16 %v779
    %v4276 = vunpack.c.h.b16 %v779
    %v4277 = vunpack.c.l.b16 %v780
    %v4278 = vunpack.c.h.b16 %v780
    %v4279 = vunpack.c.l.b16 %v781
    %v4280 = vunpack.c.h.b16 %v781
    %v4281 = vunpack.c.l.b16 %v782
    %v4282 = vunpack.c.h.b16 %v782
    %v4283 = vunpack.c.l.b16 %v783
    %v4284 = vunpack.c.h.b16 %v783
    %v4285 = vunpack.c.l.b16 %v784
    %v4286 = vunpack.c.h.b16 %v784
    %v4287 = vunpack.c.l.b16 %v785
    %v4288 = vunpack.c.h.b16 %v785
    %v4289 = vunpack.c.l.b16 %v786
    %v4290 = vunpack.c.h.b16 %v786
    %v4291 = vunpack.c.l.b16 %v787
    %v4292 = vunpack.c.h.b16 %v787
    %v4293 = vunpack.c.l.b16 %v788
    %v4294 = vunpack.c.h.b16 %v788
    %v4295 = vunpack.c.l.b16 %v789
    %v4296 = vunpack.c.h.b16 %v789
    %v4297 = vunpack.c.l.b16 %v790
    %v4298 = vunpack.c.h.b16 %v790
    %v4299 = vunpack.c.l.b16 %v791
    %v4300 = vunpack.c.h.b16 %v791
    %v4301 = vunpack.c.l.b16 %v792
    %v4302 = vunpack.c.h.b16 %v792
    %v4303 = vunpack.c.l.b16 %v793
    %v4304 = vunpack.c.h.b16 %v793
    %v4305 = vunpack.c.l.b16 %v794
    %v4306 = vunpack.c.h.b16 %v794
    %v4307 = vunpack.c.l.b16 %v795
    %v4308 = vunpack.c.h.b16 %v795
    %v4309 = vunpack.c.l.b16 %v796
    %v4310 = vunpack.c.h.b16 %v796
    %v4311 = vunpack.c.l.b16 %v797
    %v4312 = vunpack.c.h.b16 %v797
    %v4313 = vunpack.c.l.b16 %v798
    %v4314 = vunpack.c.h.b16 %v798
    %v4315 = vunpack.c.l.b16 %v799
    %v4316 = vunpack.c.h.b16 %v799
    %v4317 = vunpack.c.l.b16 %v800
    %v4318 = vunpack.c.h.b16 %v800
    %v4319 = vunpack.c.l.b16 %v801
    %v4320 = vunpack.c.h.b16 %v801
    %v4321 = vunpack.c.l.b16 %v802
    %v4322 = vunpack.c.h.b16 %v802
    %v4323 = vunpack.c.l.b16 %v803
    %v4324 = vunpack.c.h.b16 %v803
    %v4325 = vunpack.c.l.b16 %v804
    %v4326 = vunpack.c.h.b16 %v804
    %v4327 = vunpack.c.l.b16 %v805
    %v4328 = vunpack.c.h.b16 %v805
    %v4329 = vunpack.c.l.b16 %v806
    %v4330 = vunpack.c.h.b16 %v806
    %v4331 = vunpack.c.l.b16 %v807
    %v4332 = vunpack.c.h.b16 %v807
    %v4333 = vunpack.c.l.b16 %v808
    %v4334 = vunpack.c.h.b16 %v808
    %v4335 = vunpack.c.l.b16 %v809
    %v4336 = vunpack.c.h.b16 %v809
    %v4337 = vunpack.c.l.b16 %v810
    %v4338 = vunpack.c.h.b16 %v810
    %v4339 = vunpack.c.l.b16 %v811
    %v4340 = vunpack.c.h.b16 %v811
    %v4341 = vunpack.c.l.b16 %v812
    %v4342 = vunpack.c.h.b16 %v812
    %v4343 = vunpack.c.l.b16 %v813
    %v4344 = vunpack.c.h.b16 %v813
    %v4345 = vunpack.c.l.b16 %v814
    %v4346 = vunpack.c.h.b16 %v814
    %v4347 = vunpack.c.l.b16 %v815
    %v4348 = vunpack.c.h.b16 %v815
    %v4349 = vunpack.c.l.b16 %v816
    %v4350 = vunpack.c.h.b16 %v816
    %v4351 = vunpack.c.l.b16 %v817
    %v4352 = vunpack.c.h.b16 %v817
    %v4353 = vunpack.c.l.b16 %v818
    %v4354 = vunpack.c.h.b16 %v818
    %v4355 = vunpack.c.l.b16 %v819
    %v4356 = vunpack.c.h.b16 %v819
    %v4357 = vunpack.c.l.b16 %v820
    %v4358 = vunpack.c.h.b16 %v820
    %v4359 = vunpack.c.l.b16 %v821
    %v4360 = vunpack.c.h.b16 %v821
    %v4361 = vunpack.c.l.b16 %v822
    %v4362 = vunpack.c.h.b16 %v822
    %v4363 = vunpack.c.l.b16 %v823
    %v4364 = vunpack.c.h.b16 %v823
    %v4365 = vunpack.c.l.b16 %v824
    %v4366 = vunpack.c.h.b16 %v824
    %v4367 = vunpack.c.l.b16 %v825
    %v4368 = vunpack.c.h.b16 %v825
    %v4369 = vunpack.c.l.b16 %v826
    %v4370 = vunpack.c.h.b16 %v826
    %v4371 = vunpack.c.l.b16 %v827
    %v4372 = vunpack.c.h.b16 %v827
    %v4373 = vunpack.c.l.b16 %v828
    %v4374 = vunpack.c.h.b16 %v828
    %v4375 = vunpack.c.l.b16 %v829
    %v4376 = vunpack.c.h.b16 %v829
    %v4377 = vunpack.c.l.b16 %v830
    %v4378 = vunpack.c.h.b16 %v830
    %v4379 = vunpack.c.l.b16 %v831
    %v4380 = vunpack.c.h.b16 %v831
    %v4381 = vunpack.c.l.b16 %v832
    %v4382 = vunpack.c.h.b16 %v832
    %v4383 = vunpack.c.l.b16 %v833
    %v4384 = vunpack.c.h.b16 %v833
    %v4385 = vunpack.c.l.b16 %v834
    %v4386 = vunpack.c.h.b16 %v834
    %v4387 = vunpack.c.l.b16 %v835
    %v4388 = vunpack.c.h.b16 %v835
    %v4389 = vunpack.c.l.b16 %v836
    %v4390 = vunpack.c.h.b16 %v836
    %v4391 = vunpack.c.l.b16 %v837
    %v4392 = vunpack.c.h.b16 %v837
    %v4393 = vunpack.c.l.b16 %v838
    %v4394 = vunpack.c.h.b16 %v838
    %v4395 = vunpack.c.l.b16 %v839
    %v4396 = vunpack.c.h.b16 %v839
    %v4397 = vunpack.c.l.b16 %v840
    %v4398 = vunpack.c.h.b16 %v840
    %v4399 = vunpack.c.l.b16 %v841
    %v4400 = vunpack.c.h.b16 %v841
    %v4401 = vunpack.c.l.b16 %v842
    %v4402 = vunpack.c.h.b16 %v842
    %v4403 = vunpack.c.l.b16 %v843
    %v4404 = vunpack.c.h.b16 %v843
    %v4405 = vunpack.c.l.b16 %v844
    %v4406 = vunpack.c.h.b16 %v844
    %v4407 = vunpack.c.l.b16 %v845
    %v4408 = vunpack.c.h.b16 %v845
    %v4409 = vunpack.c.l.b16 %v846
    %v4410 = vunpack.c.h.b16 %v846
    %v4411 = vunpack.c.l.b16 %v847
    %v4412 = vunpack.c.h.b16 %v847
    %v4413 = vunpack.c.l.b16 %v848
    %v4414 = vunpack.c.h.b16 %v848
    %v4415 = vunpack.c.l.b16 %v849
    %v4416 = vunpack.c.h.b16 %v849
    %v4417 = vunpack.c.l.b16 %v850
    %v4418 = vunpack.c.h.b16 %v850
    %v4419 = vunpack.c.l.b16 %v851
    %v4420 = vunpack.c.h.b16 %v851
    %v4421 = vunpack.c.l.b16 %v852
    %v4422 = vunpack.c.h.b16 %v852
    %v4423 = vunpack.c.l.b16 %v853
    %v4424 = vunpack.c.h.b16 %v853
    %v4425 = vunpack.c.l.b16 %v854
    %v4426 = vunpack.c.h.b16 %v854
    %v4427 = vunpack.c.l.b16 %v855
    %v4428 = vunpack.c.h.b16 %v855
    %v4429 = vunpack.c.l.b16 %v856
    %v4430 = vunpack.c.h.b16 %v856
    %v4431 = vunpack.c.l.b16 %v857
    %v4432 = vunpack.c.h.b16 %v857
    %v4433 = vunpack.c.l.b16 %v858
    %v4434 = vunpack.c.h.b16 %v858
    %v4435 = vunpack.c.l.b16 %v859
    %v4436 = vunpack.c.h.b16 %v859
    %v4437 = vunpack.c.l.b16 %v860
    %v4438 = vunpack.c.h.b16 %v860
    %v4439 = vunpack.c.l.b16 %v861
    %v4440 = vunpack.c.h.b16 %v861
    %v4441 = vunpack.c.l.b16 %v862
    %v4442 = vunpack.c.h.b16 %v862
    %v4443 = vunpack.c.l.b16 %v863
    %v4444 = vunpack.c.h.b16 %v863
    %v4445 = vunpack.c.l.b16 %v864
    %v4446 = vunpack.c.h.b16 %v864
    %v4447 = vunpack.c.l.b16 %v865
    %v4448 = vunpack.c.h.b16 %v865
    %v4449 = vunpack.c.l.b16 %v866
    %v4450 = vunpack.c.h.b16 %v866
    %v4451 = vunpack.c.l.b16 %v867
    %v4452 = vunpack.c.h.b16 %v867
    %v4453 = vunpack.c.l.b16 %v868
    %v4454 = vunpack.c.h.b16 %v868
    %v4455 = vunpack.c.l.b16 %v869
    %v4456 = vunpack.c.h.b16 %v869
    %v4457 = vunpack.c.l.b16 %v870
    %v4458 = vunpack.c.h.b16 %v870
    %v4459 = vunpack.c.l.b16 %v871
    %v4460 = vunpack.c.h.b16 %v871
    %v4461 = vunpack.c.l.b16 %v872
    %v4462 = vunpack.c.h.b16 %v872
    %v4463 = vunpack.c.l.b16 %v873
    %v4464 = vunpack.c.h.b16 %v873
    %v4465 = vunpack.c.l.b16 %v874
    %v4466 = vunpack.c.h.b16 %v874
    %v4467 = vunpack.c.l.b16 %v875
    %v4468 = vunpack.c.h.b16 %v875
    %v4469 = vunpack.c.l.b16 %v876
    %v4470 = vunpack.c.h.b16 %v876
    %v4471 = vunpack.c.l.b16 %v877
    %v4472 = vunpack.c.h.b16 %v877
    %v4473 = vunpack.c.l.b16 %v878
    %v4474 = vunpack.c.h.b16 %v878
    %v4475 = vunpack.c.l.b16 %v879
    %v4476 = vunpack.c.h.b16 %v879
    %v4477 = vunpack.c.l.b16 %v880
    %v4478 = vunpack.c.h.b16 %v880
    %v4479 = vunpack.c.l.b16 %v881
    %v4480 = vunpack.c.h.b16 %v881
    %v4481 = vunpack.c.l.b16 %v882
    %v4482 = vunpack.c.h.b16 %v882
    %v4483 = vunpack.c.l.b16 %v883
    %v4484 = vunpack.c.h.b16 %v883
    %v4485 = vunpack.c.l.b16 %v884
    %v4486 = vunpack.c.h.b16 %v884
    %v4487 = vunpack.c.l.b16 %v885
    %v4488 = vunpack.c.h.b16 %v885
    %v4489 = vunpack.c.l.b16 %v886
    %v4490 = vunpack.c.h.b16 %v886
    %v4491 = vunpack.c.l.b16 %v887
    %v4492 = vunpack.c.h.b16 %v887
    %v4493 = vunpack.c.l.b16 %v888
    %v4494 = vunpack.c.h.b16 %v888
    %v4495 = vunpack.c.l.b16 %v889
    %v4496 = vunpack.c.h.b16 %v889
    %v4497 = vunpack.c.l.b16 %v890
    %v4498 = vunpack.c.h.b16 %v890
    %v4499 = vunpack.c.l.b16 %v891
    %v4500 = vunpack.c.h.b16 %v891
    %v4501 = vunpack.c.l.b16 %v892
    %v4502 = vunpack.c.h.b16 %v892
    %v4503 = vunpack.c.l.b16 %v893
    %v4504 = vunpack.c.h.b16 %v893
    %v4505 = vunpack.c.l.b16 %v894
    %v4506 = vunpack.c.h.b16 %v894
    %v4507 = vunpack.c.l.b16 %v895
    %v4508 = vunpack.c.h.b16 %v895
    %v4509 = vunpack.c.l.b16 %v896
    %v4510 = vunpack.c.h.b16 %v896
    %v4511 = vunpack.c.l.b16 %v897
    %v4512 = vunpack.c.h.b16 %v897
    %v4513 = vunpack.c.l.b16 %v898
    %v4514 = vunpack.c.h.b16 %v898
    %v4515 = vunpack.c.l.b16 %v899
    %v4516 = vunpack.c.h.b16 %v899
    %v4517 = vunpack.c.l.b16 %v900
    %v4518 = vunpack.c.h.b16 %v900
    %v4519 = vunpack.c.l.b16 %v901
    %v4520 = vunpack.c.h.b16 %v901
    %v4521 = vunpack.c.l.b16 %v902
    %v4522 = vunpack.c.h.b16 %v902
    %v4523 = vunpack.c.l.b16 %v903
    %v4524 = vunpack.c.h.b16 %v903
    %v4525 = vunpack.c.l.b16 %v904
    %v4526 = vunpack.c.h.b16 %v904
    %v4527 = vunpack.c.l.b16 %v905
    %v4528 = vunpack.c.h.b16 %v905
    %v4529 = vunpack.c.l.b16 %v906
    %v4530 = vunpack.c.h.b16 %v906
    %v4531 = vunpack.c.l.b16 %v907
    %v4532 = vunpack.c.h.b16 %v907
    %v4533 = vunpack.c.l.b16 %v908
    %v4534 = vunpack.c.h.b16 %v908
    %v4535 = vunpack.c.l.b16 %v909
    %v4536 = vunpack.c.h.b16 %v909
    %v4537 = vunpack.c.l.b16 %v910
    %v4538 = vunpack.c.h.b16 %v910
    %v4539 = vunpack.c.l.b16 %v911
    %v4540 = vunpack.c.h.b16 %v911
    %v4541 = vunpack.c.l.b16 %v912
    %v4542 = vunpack.c.h.b16 %v912
    %v4543 = vunpack.c.l.b16 %v913
    %v4544 = vunpack.c.h.b16 %v913
    %v4545 = vunpack.c.l.b16 %v914
    %v4546 = vunpack.c.h.b16 %v914
    %v4547 = vunpack.c.l.b16 %v915
    %v4548 = vunpack.c.h.b16 %v915
    %v4549 = vunpack.c.l.b16 %v916
    %v4550 = vunpack.c.h.b16 %v916
    %v4551 = vunpack.c.l.b16 %v917
    %v4552 = vunpack.c.h.b16 %v917
    %v4553 = vunpack.c.l.b16 %v918
    %v4554 = vunpack.c.h.b16 %v918
    %v4555 = vunpack.c.l.b16 %v919
    %v4556 = vunpack.c.h.b16 %v919
    %v4557 = vunpack.c.l.b16 %v920
    %v4558 = vunpack.c.h.b16 %v920
    %v4559 = vunpack.c.l.b16 %v921
    %v4560 = vunpack.c.h.b16 %v921
    %v4561 = vunpack.c.l.b16 %v922
    %v4562 = vunpack.c.h.b16 %v922
    %v4563 = vunpack.c.l.b16 %v923
    %v4564 = vunpack.c.h.b16 %v923
    %v4565 = vunpack.c.l.b16 %v924
    %v4566 = vunpack.c.h.b16 %v924
    %v4567 = vunpack.c.l.b16 %v925
    %v4568 = vunpack.c.h.b16 %v925
    %v4569 = vunpack.c.l.b16 %v926
    %v4570 = vunpack.c.h.b16 %v926
    %v4571 = vunpack.c.l.b16 %v927
    %v4572 = vunpack.c.h.b16 %v927
    %v4573 = vunpack.c.l.b16 %v928
    %v4574 = vunpack.c.h.b16 %v928
    %v4575 = vunpack.c.l.b16 %v929
    %v4576 = vunpack.c.h.b16 %v929
    %v4577 = vunpack.c.l.b16 %v930
    %v4578 = vunpack.c.h.b16 %v930
    %v4579 = vunpack.c.l.b16 %v931
    %v4580 = vunpack.c.h.b16 %v931
    %v4581 = vunpack.c.l.b16 %v932
    %v4582 = vunpack.c.h.b16 %v932
    %v4583 = vunpack.c.l.b16 %v933
    %v4584 = vunpack.c.h.b16 %v933
    %v4585 = vunpack.c.l.b16 %v934
    %v4586 = vunpack.c.h.b16 %v934
    %v4587 = vunpack.c.l.b16 %v935
    %v4588 = vunpack.c.h.b16 %v935
    %v4589 = vunpack.c.l.b16 %v936
    %v4590 = vunpack.c.h.b16 %v936
    %v4591 = vunpack.c.l.b16 %v937
    %v4592 = vunpack.c.h.b16 %v937
    %v4593 = vunpack.c.l.b16 %v938
    %v4594 = vunpack.c.h.b16 %v938
    %v4595 = vunpack.c.l.b16 %v939
    %v4596 = vunpack.c.h.b16 %v939
    %v4597 = vunpack.c.l.b16 %v940
    %v4598 = vunpack.c.h.b16 %v940
    %v4599 = vunpack.c.l.b16 %v941
    %v4600 = vunpack.c.h.b16 %v941
    %v4601 = vunpack.c.l.b16 %v942
    %v4602 = vunpack.c.h.b16 %v942
    %v4603 = vunpack.c.l.b16 %v943
    %v4604 = vunpack.c.h.b16 %v943
    %v4605 = vunpack.c.l.b16 %v944
    %v4606 = vunpack.c.h.b16 %v944
    %v4607 = vunpack.c.l.b16 %v945
    %v4608 = vunpack.c.h.b16 %v945
    %v4609 = vunpack.c.l.b16 %v946
    %v4610 = vunpack.c.h.b16 %v946
    %v4611 = vunpack.c.l.b16 %v947
    %v4612 = vunpack.c.h.b16 %v947
    %v4613 = vunpack.c.l.b16 %v948
    %v4614 = vunpack.c.h.b16 %v948
    %v4615 = vunpack.c.l.b16 %v949
    %v4616 = vunpack.c.h.b16 %v949
    %v4617 = vunpack.c.l.b16 %v950
    %v4618 = vunpack.c.h.b16 %v950
    %v4619 = vunpack.c.l.b16 %v951
    %v4620 = vunpack.c.h.b16 %v951
    %v4621 = vunpack.c.l.b16 %v952
    %v4622 = vunpack.c.h.b16 %v952
    %v4623 = vunpack.c.l.b16 %v953
    %v4624 = vunpack.c.h.b16 %v953
    %v4625 = vunpack.c.l.b16 %v954
    %v4626 = vunpack.c.h.b16 %v954
    %v4627 = vunpack.c.l.b16 %v955
    %v4628 = vunpack.c.h.b16 %v955
    %v4629 = vunpack.c.l.b16 %v956
    %v4630 = vunpack.c.h.b16 %v956
    %v4631 = vunpack.c.l.b16 %v957
    %v4632 = vunpack.c.h.b16 %v957
    %v4633 = vunpack.c.l.b16 %v958
    %v4634 = vunpack.c.h.b16 %v958
    %v4635 = vunpack.c.l.b16 %v959
    %v4636 = vunpack.c.h.b16 %v959
    %v4637 = vunpack.c.l.b16 %v960
    %v4638 = vunpack.c.h.b16 %v960
    %v4639 = vunpack.c.l.b16 %v961
    %v4640 = vunpack.c.h.b16 %v961
    %v4641 = vunpack.c.l.b16 %v962
    %v4642 = vunpack.c.h.b16 %v962
    %v4643 = vunpack.c.l.b16 %v963
    %v4644 = vunpack.c.h.b16 %v963
    %v4645 = vunpack.c.l.b16 %v964
    %v4646 = vunpack.c.h.b16 %v964
    %v4647 = vunpack.c.l.b16 %v965
    %v4648 = vunpack.c.h.b16 %v965
    %v4649 = vunpack.c.l.b16 %v966
    %v4650 = vunpack.c.h.b16 %v966
    %v4651 = vunpack.c.l.b16 %v967
    %v4652 = vunpack.c.h.b16 %v967
    %v4653 = vunpack.c.l.b16 %v968
    %v4654 = vunpack.c.h.b16 %v968
    %v4655 = vunpack.c.l.b16 %v969
    %v4656 = vunpack.c.h.b16 %v969
    %v4657 = vunpack.c.l.b16 %v970
    %v4658 = vunpack.c.h.b16 %v970
    %v4659 = vunpack.c.l.b16 %v971
    %v4660 = vunpack.c.h.b16 %v971
    %v4661 = vunpack.c.l.b16 %v972
    %v4662 = vunpack.c.h.b16 %v972
    %v4663 = vunpack.c.l.b16 %v973
    %v4664 = vunpack.c.h.b16 %v973
    %v4665 = vunpack.c.l.b16 %v974
    %v4666 = vunpack.c.h.b16 %v974
    %v4667 = vunpack.c.l.b16 %v975
    %v4668 = vunpack.c.h.b16 %v975
    %v4669 = vunpack.c.l.b16 %v976
    %v4670 = vunpack.c.h.b16 %v976
    %v4671 = vunpack.c.l.b16 %v977
    %v4672 = vunpack.c.h.b16 %v977
    %v4673 = vunpack.c.l.b16 %v978
    %v4674 = vunpack.c.h.b16 %v978
    %v4675 = vunpack.c.l.b16 %v979
    %v4676 = vunpack.c.h.b16 %v979
    %v4677 = vunpack.c.l.b16 %v980
    %v4678 = vunpack.c.h.b16 %v980
    %v4679 = vunpack.c.l.b16 %v981
    %v4680 = vunpack.c.h.b16 %v981
    %v4681 = vunpack.c.l.b16 %v982
    %v4682 = vunpack.c.h.b16 %v982
    %v4683 = vunpack.c.l.b16 %v983
    %v4684 = vunpack.c.h.b16 %v983
    %v4685 = vunpack.c.l.b16 %v984
    %v4686 = vunpack.c.h.b16 %v984
    %v4687 = vunpack.c.l.b16 %v985
    %v4688 = vunpack.c.h.b16 %v985
    %v4689 = vunpack.c.l.b16 %v986
    %v4690 = vunpack.c.h.b16 %v986
    %v4691 = vunpack.c.l.b16 %v987
    %v4692 = vunpack.c.h.b16 %v987
    %v4693 = vunpack.c.l.b16 %v988
    %v4694 = vunpack.c.h.b16 %v988
    %v4695 = vunpack.c.l.b16 %v989
    %v4696 = vunpack.c.h.b16 %v989
    %v4697 = vunpack.c.l.b16 %v990
    %v4698 = vunpack.c.h.b16 %v990
    %v4699 = vunpack.c.l.b16 %v991
    %v4700 = vunpack.c.h.b16 %v991
    %v4701 = vunpack.c.l.b16 %v992
    %v4702 = vunpack.c.h.b16 %v992
    %v4703 = vunpack.c.l.b16 %v993
    %v4704 = vunpack.c.h.b16 %v993
    %v4705 = vunpack.c.l.b16 %v994
    %v4706 = vunpack.c.h.b16 %v994
    %v4707 = vunpack.c.l.b16 %v995
    %v4708 = vunpack.c.h.b16 %v995
    %v4709 = vunpack.c.l.b16 %v996
    %v4710 = vunpack.c.h.b16 %v996
    %v4711 = vunpack.c.l.b16 %v997
    %v4712 = vunpack.c.h.b16 %v997
    %v4713 = vunpack.c.l.b16 %v998
    %v4714 = vunpack.c.h.b16 %v998
    %v4715 = vunpack.c.l.b16 %v999
    %v4716 = vunpack.c.h.b16 %v999
    %v4717 = vunpack.c.l.b16 %v1000
    %v4718 = vunpack.c.h.b16 %v1000
    %v4719 = vunpack.c.l.b16 %v1001
    %v4720 = vunpack.c.h.b16 %v1001
    %v4721 = vunpack.c.l.b16 %v1002
    %v4722 = vunpack.c.h.b16 %v1002
    %v4723 = vunpack.c.l.b16 %v1003
    %v4724 = vunpack.c.h.b16 %v1003
    %v4725 = vunpack.c.l.b16 %v1004
    %v4726 = vunpack.c.h.b16 %v1004
    %v4727 = vunpack.c.l.b16 %v1005
    %v4728 = vunpack.c.h.b16 %v1005
    %v4729 = vunpack.c.l.b16 %v1006
    %v4730 = vunpack.c.h.b16 %v1006
    %v4731 = vunpack.c.l.b16 %v1007
    %v4732 = vunpack.c.h.b16 %v1007
    %v4733 = vunpack.c.l.b16 %v1008
    %v4734 = vunpack.c.h.b16 %v1008
    %v4735 = vunpack.c.l.b16 %v1009
    %v4736 = vunpack.c.h.b16 %v1009
    %v4737 = vunpack.c.l.b16 %v1010
    %v4738 = vunpack.c.h.b16 %v1010
    %v4739 = vunpack.c.l.b16 %v1011
    %v4740 = vunpack.c.h.b16 %v1011
    %v4741 = vunpack.c.l.b16 %v1012
    %v4742 = vunpack.c.h.b16 %v1012
    %v4743 = vunpack.c.l.b16 %v1013
    %v4744 = vunpack.c.h.b16 %v1013
    %v4745 = vunpack.c.l.b16 %v1014
    %v4746 = vunpack.c.h.b16 %v1014
    %v4747 = vunpack.c.l.b16 %v1015
    %v4748 = vunpack.c.h.b16 %v1015
    %v4749 = vunpack.c.l.b16 %v1016
    %v4750 = vunpack.c.h.b16 %v1016
    %v4751 = vunpack.c.l.b16 %v1017
    %v4752 = vunpack.c.h.b16 %v1017
    %v4753 = vunpack.c.l.b16 %v1018
    %v4754 = vunpack.c.h.b16 %v1018
    %v4755 = vunpack.c.l.b16 %v1019
    %v4756 = vunpack.c.h.b16 %v1019
    %v4757 = vunpack.c.l.b16 %v1020
    %v4758 = vunpack.c.h.b16 %v1020
    %v4759 = vunpack.c.l.b16 %v1021
    %v4760 = vunpack.c.h.b16 %v1021
    %v4761 = vunpack.c.l.b16 %v1022
    %v4762 = vunpack.c.h.b16 %v1022
    %v4763 = vunpack.c.l.b16 %v1023
    %v4764 = vunpack.c.h.b16 %v1023
    %v4765 = vunpack.c.l.b16 %v1024
    %v4766 = vunpack.c.h.b16 %v1024
    %v4767 = vunpack.c.l.b16 %v1025
    %v4768 = vunpack.c.h.b16 %v1025
    %v4769 = vunpack.c.l.b16 %v1026
    %v4770 = vunpack.c.h.b16 %v1026
    %v4771 = vunpack.c.l.b16 %v1027
    %v4772 = vunpack.c.h.b16 %v1027
    %v4773 = vunpack.c.l.b16 %v1028
    %v4774 = vunpack.c.h.b16 %v1028
    %v4775 = vunpack.c.l.b16 %v1029
    %v4776 = vunpack.c.h.b16 %v1029
    %v4777 = vunpack.c.l.b16 %v1030
    %v4778 = vunpack.c.h.b16 %v1030
    %v4779 = vunpack.c.l.b16 %v1031
    %v4780 = vunpack.c.h.b16 %v1031
    %v4781 = vunpack.c.l.b16 %v1032
    %v4782 = vunpack.c.h.b16 %v1032
    %v4783 = vunpack.c.l.b16 %v1033
    %v4784 = vunpack.c.h.b16 %v1033
    %v4785 = vunpack.c.l.b16 %v1034
    %v4786 = vunpack.c.h.b16 %v1034
    %v4787 = vunpack.c.l.b16 %v1035
    %v4788 = vunpack.c.h.b16 %v1035
    %v4789 = vunpack.c.l.b16 %v1036
    %v4790 = vunpack.c.h.b16 %v1036
    %v4791 = vunpack.c.l.b16 %v1037
    %v4792 = vunpack.c.h.b16 %v1037
    %v4793 = vunpack.c.l.b16 %v1038
    %v4794 = vunpack.c.h.b16 %v1038
    %v4795 = vunpack.c.l.b16 %v1039
    %v4796 = vunpack.c.h.b16 %v1039
    %v4797 = vunpack.c.l.b16 %v1040
    %v4798 = vunpack.c.h.b16 %v1040
    %v4799 = vunpack.c.l.b16 %v1041
    %v4800 = vunpack.c.h.b16 %v1041
    %v4801 = vunpack.c.l.b16 %v1042
    %v4802 = vunpack.c.h.b16 %v1042
    %v4803 = vunpack.c.l.b16 %v1043
    %v4804 = vunpack.c.h.b16 %v1043
    %v4805 = vunpack.c.l.b16 %v1044
    %v4806 = vunpack.c.h.b16 %v1044
    %v4807 = vunpack.c.l.b16 %v1045
    %v4808 = vunpack.c.h.b16 %v1045
    %v4809 = vunpack.c.l.b16 %v1046
    %v4810 = vunpack.c.h.b16 %v1046
    %v4811 = vunpack.c.l.b16 %v1047
    %v4812 = vunpack.c.h.b16 %v1047
    %v4813 = vunpack.c.l.b16 %v1048
    %v4814 = vunpack.c.h.b16 %v1048
    %v4815 = vunpack.c.l.b16 %v1049
    %v4816 = vunpack.c.h.b16 %v1049
    %v4817 = vunpack.c.l.b16 %v1050
    %v4818 = vunpack.c.h.b16 %v1050
    %v4819 = vunpack.c.l.b16 %v1051
    %v4820 = vunpack.c.h.b16 %v1051
    %v4821 = vunpack.c.l.b16 %v1052
    %v4822 = vunpack.c.h.b16 %v1052
    %v4823 = vunpack.c.l.b16 %v1053
    %v4824 = vunpack.c.h.b16 %v1053
    %v4825 = vunpack.c.l.b16 %v1054
    %v4826 = vunpack.c.h.b16 %v1054
    %v4827 = vunpack.c.l.b16 %v1055
    %v4828 = vunpack.c.h.b16 %v1055
    %v4829 = vunpack.c.l.b16 %v1056
    %v4830 = vunpack.c.h.b16 %v1056
    %v4831 = vunpack.c.l.b16 %v1057
    %v4832 = vunpack.c.h.b16 %v1057
    %v4833 = vunpack.c.l.b16 %v1058
    %v4834 = vunpack.c.h.b16 %v1058
    %v4835 = vunpack.c.l.b16 %v1059
    %v4836 = vunpack.c.h.b16 %v1059
    %v4837 = vunpack.c.l.b16 %v1060
    %v4838 = vunpack.c.h.b16 %v1060
    %v4839 = vunpack.c.l.b16 %v1061
    %v4840 = vunpack.c.h.b16 %v1061
    %v4841 = vunpack.c.l.b16 %v1062
    %v4842 = vunpack.c.h.b16 %v1062
    %v4843 = vunpack.c.l.b16 %v1063
    %v4844 = vunpack.c.h.b16 %v1063
    %v4845 = vunpack.c.l.b16 %v1064
    %v4846 = vunpack.c.h.b16 %v1064
    %v4847 = vunpack.c.l.b16 %v1065
    %v4848 = vunpack.c.h.b16 %v1065
    %v4849 = vunpack.c.l.b16 %v1066
    %v4850 = vunpack.c.h.b16 %v1066
    %v4851 = vunpack.c.l.b16 %v1067
    %v4852 = vunpack.c.h.b16 %v1067
    %v4853 = vunpack.c.l.b16 %v1068
    %v4854 = vunpack.c.h.b16 %v1068
    %v4855 = vunpack.c.l.b16 %v1069
    %v4856 = vunpack.c.h.b16 %v1069
    %v4857 = vunpack.c.l.b16 %v1070
    %v4858 = vunpack.c.h.b16 %v1070
    %v4859 = vunpack.c.l.b16 %v1071
    %v4860 = vunpack.c.h.b16 %v1071
    %v4861 = vunpack.c.l.b16 %v1072
    %v4862 = vunpack.c.h.b16 %v1072
    %v4863 = vunpack.c.l.b16 %v1073
    %v4864 = vunpack.c.h.b16 %v1073
    %v4865 = vunpack.c.l.b16 %v1074
    %v4866 = vunpack.c.h.b16 %v1074
    %v4867 = vunpack.c.l.b16 %v1075
    %v4868 = vunpack.c.h.b16 %v1075
    %v4869 = vunpack.c.l.b16 %v1076
    %v4870 = vunpack.c.h.b16 %v1076
    %v4871 = vunpack.c.l.b16 %v1077
    %v4872 = vunpack.c.h.b16 %v1077
    %v4873 = vunpack.c.l.b16 %v1078
    %v4874 = vunpack.c.h.b16 %v1078
    %v4875 = vunpack.c.l.b16 %v1079
    %v4876 = vunpack.c.h.b16 %v1079
    %v4877 = vunpack.c.l.b16 %v1080
    %v4878 = vunpack.c.h.b16 %v1080
    %v4879 = vunpack.c.l.b16 %v1081
    %v4880 = vunpack.c.h.b16 %v1081
    %v4881 = vunpack.c.l.b16 %v1082
    %v4882 = vunpack.c.h.b16 %v1082
    %v4883 = vunpack.c.l.b16 %v1083
    %v4884 = vunpack.c.h.b16 %v1083
    %v4885 = vunpack.c.l.b16 %v1084
    %v4886 = vunpack.c.h.b16 %v1084
    %v4887 = vunpack.c.l.b16 %v1085
    %v4888 = vunpack.c.h.b16 %v1085
    %v4889 = vunpack.c.l.b16 %v1086
    %v4890 = vunpack.c.h.b16 %v1086
    %v4891 = vunpack.c.l.b16 %v1087
    %v4892 = vunpack.c.h.b16 %v1087
    %v4893 = vunpack.c.l.b16 %v1088
    %v4894 = vunpack.c.h.b16 %v1088
    %v4895 = vunpack.c.l.b16 %v1089
    %v4896 = vunpack.c.h.b16 %v1089
    %v4897 = vunpack.c.l.b16 %v1090
    %v4898 = vunpack.c.h.b16 %v1090
    %v4899 = vunpack.c.l.b16 %v1091
    %v4900 = vunpack.c.h.b16 %v1091
    %v4901 = vunpack.c.l.b16 %v1092
    %v4902 = vunpack.c.h.b16 %v1092
    %v4903 = vunpack.c.l.b16 %v1093
    %v4904 = vunpack.c.h.b16 %v1093
    %v4905 = vunpack.c.l.b16 %v1094
    %v4906 = vunpack.c.h.b16 %v1094
    %v4907 = vunpack.c.l.b16 %v1095
    %v4908 = vunpack.c.h.b16 %v1095
    %v4909 = vunpack.c.l.b16 %v1096
    %v4910 = vunpack.c.h.b16 %v1096
    %v4911 = vunpack.c.l.b16 %v1097
    %v4912 = vunpack.c.h.b16 %v1097
    %v4913 = vunpack.c.l.b16 %v1098
    %v4914 = vunpack.c.h.b16 %v1098
    %v4915 = vunpack.c.l.b16 %v1099
    %v4916 = vunpack.c.h.b16 %v1099
    %v4917 = vunpack.c.l.b16 %v1100
    %v4918 = vunpack.c.h.b16 %v1100
    %v4919 = vunpack.c.l.b16 %v1101
    %v4920 = vunpack.c.h.b16 %v1101
    %v4921 = vunpack.c.l.b16 %v1102
    %v4922 = vunpack.c.h.b16 %v1102
    %v4923 = vunpack.c.l.b16 %v1103
    %v4924 = vunpack.c.h.b16 %v1103
    %v4925 = vunpack.c.l.b16 %v1104
    %v4926 = vunpack.c.h.b16 %v1104
    %v4927 = vunpack.c.l.b16 %v1105
    %v4928 = vunpack.c.h.b16 %v1105
    %v4929 = vunpack.c.l.b16 %v1106
    %v4930 = vunpack.c.h.b16 %v1106
    %v4931 = vunpack.c.l.b16 %v1107
    %v4932 = vunpack.c.h.b16 %v1107
    %v4933 = vunpack.c.l.b16 %v1108
    %v4934 = vunpack.c.h.b16 %v1108
    %v4935 = vunpack.c.l.b16 %v1109
    %v4936 = vunpack.c.h.b16 %v1109
    %v4937 = vunpack.c.l.b16 %v1110
    %v4938 = vunpack.c.h.b16 %v1110
    %v4939 = vunpack.c.l.b16 %v1111
    %v4940 = vunpack.c.h.b16 %v1111
    %v4941 = vunpack.c.l.b16 %v1112
    %v4942 = vunpack.c.h.b16 %v1112
    %v4943 = vunpack.c.l.b16 %v1113
    %v4944 = vunpack.c.h.b16 %v1113
    %v4945 = vunpack.c.l.b16 %v1114
    %v4946 = vunpack.c.h.b16 %v1114
    %v4947 = vunpack.c.l.b16 %v1115
    %v4948 = vunpack.c.h.b16 %v1115
    %v4949 = vunpack.c.l.b16 %v1116
    %v4950 = vunpack.c.h.b16 %v1116
    %v4951 = vunpack.c.l.b16 %v1117
    %v4952 = vunpack.c.h.b16 %v1117
    %v4953 = vunpack.c.l.b16 %v1118
    %v4954 = vunpack.c.h.b16 %v1118
    %v4955 = vunpack.c.l.b16 %v1119
    %v4956 = vunpack.c.h.b16 %v1119
    %v4957 = vunpack.c.l.b16 %v1120
    %v4958 = vunpack.c.h.b16 %v1120
    %v4959 = vunpack.c.l.b16 %v1121
    %v4960 = vunpack.c.h.b16 %v1121
    %v4961 = vunpack.c.l.b16 %v1122
    %v4962 = vunpack.c.h.b16 %v1122
    %v4963 = vunpack.c.l.b16 %v1123
    %v4964 = vunpack.c.h.b16 %v1123
    %v4965 = vunpack.c.l.b16 %v1124
    %v4966 = vunpack.c.h.b16 %v1124
    %v4967 = vunpack.c.l.b16 %v1125
    %v4968 = vunpack.c.h.b16 %v1125
    %v4969 = vunpack.c.l.b16 %v1126
    %v4970 = vunpack.c.h.b16 %v1126
    %v4971 = vunpack.c.l.b16 %v1127
    %v4972 = vunpack.c.h.b16 %v1127
    %v4973 = vunpack.c.l.b16 %v1128
    %v4974 = vunpack.c.h.b16 %v1128
    %v4975 = vunpack.c.l.b16 %v1129
    %v4976 = vunpack.c.h.b16 %v1129
    %v4977 = vunpack.c.l.b16 %v1130
    %v4978 = vunpack.c.h.b16 %v1130
    %v4979 = vunpack.c.l.b16 %v1131
    %v4980 = vunpack.c.h.b16 %v1131
    %v4981 = vunpack.c.l.b16 %v1132
    %v4982 = vunpack.c.h.b16 %v1132
    %v4983 = vunpack.c.l.b16 %v1133
    %v4984 = vunpack.c.h.b16 %v1133
    %v4985 = vunpack.c.l.b16 %v1134
    %v4986 = vunpack.c.h.b16 %v1134
    %v4987 = vunpack.c.l.b16 %v1135
    %v4988 = vunpack.c.h.b16 %v1135
    %v4989 = vunpack.c.l.b16 %v1136
    %v4990 = vunpack.c.h.b16 %v1136
    %v4991 = vunpack.c.l.b16 %v1137
    %v4992 = vunpack.c.h.b16 %v1137
    %v4993 = vunpack.c.l.b16 %v1138
    %v4994 = vunpack.c.h.b16 %v1138
    %v4995 = vunpack.c.l.b16 %v1139
    %v4996 = vunpack.c.h.b16 %v1139
    %v4997 = vunpack.c.l.b16 %v1140
    %v4998 = vunpack.c.h.b16 %v1140
    %v4999 = vunpack.c.l.b16 %v1141
    %v5000 = vunpack.c.h.b16 %v1141
    %v5001 = vunpack.c.l.b16 %v1142
    %v5002 = vunpack.c.h.b16 %v1142
    %v5003 = vunpack.c.l.b16 %v1143
    %v5004 = vunpack.c.h.b16 %v1143
    %v5005 = vunpack.c.l.b16 %v1144
    %v5006 = vunpack.c.h.b16 %v1144
    %v5007 = vunpack.c.l.b16 %v1145
    %v5008 = vunpack.c.h.b16 %v1145
    %v5009 = vunpack.c.l.b16 %v1146
    %v5010 = vunpack.c.h.b16 %v1146
    %v5011 = vunpack.c.l.b16 %v1147
    %v5012 = vunpack.c.h.b16 %v1147
    %v5013 = vunpack.c.l.b16 %v1148
    %v5014 = vunpack.c.h.b16 %v1148
    %v5015 = vunpack.c.l.b16 %v1149
    %v5016 = vunpack.c.h.b16 %v1149
    %v5017 = vunpack.c.l.b16 %v1150
    %v5018 = vunpack.c.h.b16 %v1150
    %v5019 = vunpack.c.l.b16 %v1151
    %v5020 = vunpack.c.h.b16 %v1151
    %v5021 = vunpack.c.l.b16 %v1152
    %v5022 = vunpack.c.h.b16 %v1152
    %v5023 = vunpack.c.l.b16 %v1153
    %v5024 = vunpack.c.h.b16 %v1153
    %v5025 = vunpack.c.l.b16 %v1154
    %v5026 = vunpack.c.h.b16 %v1154
    %v5027 = vunpack.c.l.b16 %v1155
    %v5028 = vunpack.c.h.b16 %v1155
    %v5029 = vunpack.c.l.b16 %v1156
    %v5030 = vunpack.c.h.b16 %v1156
    %v5031 = vunpack.c.l.b16 %v1157
    %v5032 = vunpack.c.h.b16 %v1157
    %v5033 = vunpack.c.l.b16 %v1158
    %v5034 = vunpack.c.h.b16 %v1158
    %v5035 = vunpack.c.l.b16 %v1159
    %v5036 = vunpack.c.h.b16 %v1159
    %v5037 = vunpack.c.l.b16 %v1160
    %v5038 = vunpack.c.h.b16 %v1160
    %v5039 = vunpack.c.l.b16 %v1161
    %v5040 = vunpack.c.h.b16 %v1161
    %v5041 = vunpack.c.l.b16 %v1162
    %v5042 = vunpack.c.h.b16 %v1162
    %v5043 = vunpack.c.l.b16 %v1163
    %v5044 = vunpack.c.h.b16 %v1163
    %v5045 = vunpack.c.l.b16 %v1164
    %v5046 = vunpack.c.h.b16 %v1164
    %v5047 = vunpack.c.l.b16 %v1165
    %v5048 = vunpack.c.h.b16 %v1165
    %v5049 = vunpack.c.l.b16 %v1166
    %v5050 = vunpack.c.h.b16 %v1166
    %v5051 = vunpack.c.l.b16 %v1167
    %v5052 = vunpack.c.h.b16 %v1167
    %v5053 = vunpack.c.l.b16 %v1168
    %v5054 = vunpack.c.h.b16 %v1168
    %v5055 = vunpack.c.l.b16 %v1169
    %v5056 = vunpack.c.h.b16 %v1169
    %v5057 = vunpack.c.l.b16 %v1170
    %v5058 = vunpack.c.h.b16 %v1170
    %v5059 = vunpack.c.l.b16 %v1171
    %v5060 = vunpack.c.h.b16 %v1171
    %v5061 = vunpack.c.l.b16 %v1172
    %v5062 = vunpack.c.h.b16 %v1172
    %v5063 = vunpack.c.l.b16 %v1173
    %v5064 = vunpack.c.h.b16 %v1173
    %v5065 = vunpack.c.l.b16 %v1174
    %v5066 = vunpack.c.h.b16 %v1174
    %v5067 = vunpack.c.l.b16 %v1175
    %v5068 = vunpack.c.h.b16 %v1175
    %v5069 = vunpack.c.l.b16 %v1176
    %v5070 = vunpack.c.h.b16 %v1176
    %v5071 = vunpack.c.l.b16 %v1177
    %v5072 = vunpack.c.h.b16 %v1177
    %v5073 = vunpack.c.l.b16 %v1178
    %v5074 = vunpack.c.h.b16 %v1178
    %v5075 = vunpack.c.l.b16 %v1179
    %v5076 = vunpack.c.h.b16 %v1179
    %v5077 = vunpack.c.l.b16 %v1180
    %v5078 = vunpack.c.h.b16 %v1180
    %v5079 = vunpack.c.l.b16 %v1181
    %v5080 = vunpack.c.h.b16 %v1181
    %v5081 = vunpack.c.l.b16 %v1182
    %v5082 = vunpack.c.h.b16 %v1182
    %v5083 = vunpack.c.l.b16 %v1183
    %v5084 = vunpack.c.h.b16 %v1183
    %v5085 = vunpack.c.l.b16 %v1184
    %v5086 = vunpack.c.h.b16 %v1184
    %v5087 = vunpack.c.l.b16 %v1185
    %v5088 = vunpack.c.h.b16 %v1185
    %v5089 = vunpack.c.l.b16 %v1186
    %v5090 = vunpack.c.h.b16 %v1186
    %v5091 = vunpack.c.l.b16 %v1187
    %v5092 = vunpack.c.h.b16 %v1187
    %v5093 = vunpack.c.l.b16 %v1188
    %v5094 = vunpack.c.h.b16 %v1188
    %v5095 = vunpack.c.l.b16 %v1189
    %v5096 = vunpack.c.h.b16 %v1189
    %v5097 = vunpack.c.l.b16 %v1190
    %v5098 = vunpack.c.h.b16 %v1190
    %v5099 = vunpack.c.l.b16 %v1191
    %v5100 = vunpack.c.h.b16 %v1191
    %v5101 = vunpack.c.l.b16 %v1192
    %v5102 = vunpack.c.h.b16 %v1192
    %v5103 = vunpack.c.l.b16 %v1193
    %v5104 = vunpack.c.h.b16 %v1193
    %v5105 = vunpack.c.l.b16 %v1194
    %v5106 = vunpack.c.h.b16 %v1194
    %v5107 = vunpack.c.l.b16 %v1195
    %v5108 = vunpack.c.h.b16 %v1195
    %v5109 = vunpack.c.l.b16 %v1196
    %v5110 = vunpack.c.h.b16 %v1196
    %v5111 = vunpack.c.l.b16 %v1197
    %v5112 = vunpack.c.h.b16 %v1197
    %v5113 = vunpack.c.l.b16 %v1198
    %v5114 = vunpack.c.h.b16 %v1198
    %v5115 = vunpack.c.l.b16 %v1199
    %v5116 = vunpack.c.h.b16 %v1199
    %v5117 = vunpack.c.l.b16 %v1200
    %v5118 = vunpack.c.h.b16 %v1200
    %v5119 = vunpack.c.l.b16 %v1201
    %v5120 = vunpack.c.h.b16 %v1201
    %v5121 = vunpack.c.l.b16 %v1202
    %v5122 = vunpack.c.h.b16 %v1202
    %v5123 = vunpack.c.l.b16 %v1203
    %v5124 = vunpack.c.h.b16 %v1203
    %v5125 = vunpack.c.l.b16 %v1204
    %v5126 = vunpack.c.h.b16 %v1204
    %v5127 = vunpack.c.l.b16 %v1205
    %v5128 = vunpack.c.h.b16 %v1205
    %v5129 = vunpack.c.l.b16 %v1206
    %v5130 = vunpack.c.h.b16 %v1206
    %v5131 = vunpack.c.l.b16 %v1207
    %v5132 = vunpack.c.h.b16 %v1207
    %v5133 = vunpack.c.l.b16 %v1208
    %v5134 = vunpack.c.h.b16 %v1208
    %v5135 = vunpack.c.l.b16 %v1209
    %v5136 = vunpack.c.h.b16 %v1209
    %v5137 = vunpack.c.l.b16 %v1210
    %v5138 = vunpack.c.h.b16 %v1210
    %v5139 = vunpack.c.l.b16 %v1211
    %v5140 = vunpack.c.h.b16 %v1211
    %v5141 = vunpack.c.l.b16 %v1212
    %v5142 = vunpack.c.h.b16 %v1212
    %v5143 = vunpack.c.l.b16 %v1213
    %v5144 = vunpack.c.h.b16 %v1213
    %v5145 = vunpack.c.l.b16 %v1214
    %v5146 = vunpack.c.h.b16 %v1214
    %v5147 = vunpack.c.l.b16 %v1215
    %v5148 = vunpack.c.h.b16 %v1215
    %v5149 = vunpack.c.l.b16 %v1216
    %v5150 = vunpack.c.h.b16 %v1216
    %v5151 = vunpack.c.l.b16 %v1217
    %v5152 = vunpack.c.h.b16 %v1217
    %v5153 = vunpack.c.l.b16 %v1218
    %v5154 = vunpack.c.h.b16 %v1218
    %v5155 = vunpack.c.l.b16 %v1219
    %v5156 = vunpack.c.h.b16 %v1219
    %v5157 = vunpack.c.l.b16 %v1220
    %v5158 = vunpack.c.h.b16 %v1220
    %v5159 = vunpack.c.l.b16 %v1221
    %v5160 = vunpack.c.h.b16 %v1221
    %v5161 = vunpack.c.l.b16 %v1222
    %v5162 = vunpack.c.h.b16 %v1222
    %v5163 = vunpack.c.l.b16 %v1223
    %v5164 = vunpack.c.h.b16 %v1223
    %v5165 = vunpack.c.l.b16 %v1224
    %v5166 = vunpack.c.h.b16 %v1224
    %v5167 = vunpack.c.l.b16 %v1225
    %v5168 = vunpack.c.h.b16 %v1225
    %v5169 = vunpack.c.l.b16 %v1226
    %v5170 = vunpack.c.h.b16 %v1226
    %v5171 = vunpack.c.l.b16 %v1227
    %v5172 = vunpack.c.h.b16 %v1227
    %v5173 = vunpack.c.l.b16 %v1228
    %v5174 = vunpack.c.h.b16 %v1228
    %v5175 = vunpack.c.l.b16 %v1229
    %v5176 = vunpack.c.h.b16 %v1229
    %v5177 = vunpack.c.l.b16 %v1230
    %v5178 = vunpack.c.h.b16 %v1230
    %v5179 = vunpack.c.l.b16 %v1231
    %v5180 = vunpack.c.h.b16 %v1231
    %v5181 = vunpack.c.l.b16 %v1232
    %v5182 = vunpack.c.h.b16 %v1232
    %v5183 = vunpack.c.l.b16 %v1233
    %v5184 = vunpack.c.h.b16 %v1233
    %v5185 = vunpack.c.l.b16 %v1234
    %v5186 = vunpack.c.h.b16 %v1234
    %v5187 = vunpack.c.l.b16 %v1235
    %v5188 = vunpack.c.h.b16 %v1235
    %v5189 = vunpack.c.l.b16 %v1236
    %v5190 = vunpack.c.h.b16 %v1236
    %v5191 = vunpack.c.l.b16 %v1237
    %v5192 = vunpack.c.h.b16 %v1237
    %v5193 = vunpack.c.l.b16 %v1238
    %v5194 = vunpack.c.h.b16 %v1238
    %v5195 = vunpack.c.l.b16 %v1239
    %v5196 = vunpack.c.h.b16 %v1239
    %v5197 = vunpack.c.l.b16 %v1240
    %v5198 = vunpack.c.h.b16 %v1240
    %v5199 = vunpack.c.l.b16 %v1241
    %v5200 = vunpack.c.h.b16 %v1241
    %v5201 = vunpack.c.l.b16 %v1242
    %v5202 = vunpack.c.h.b16 %v1242
    %v5203 = vunpack.c.l.b16 %v1243
    %v5204 = vunpack.c.h.b16 %v1243
    %v5205 = vunpack.c.l.b16 %v1244
    %v5206 = vunpack.c.h.b16 %v1244
    %v5207 = vunpack.c.l.b16 %v1245
    %v5208 = vunpack.c.h.b16 %v1245
    %v5209 = vunpack.c.l.b16 %v1246
    %v5210 = vunpack.c.h.b16 %v1246
    %v5211 = vunpack.c.l.b16 %v1247
    %v5212 = vunpack.c.h.b16 %v1247
    %v5213 = vunpack.c.l.b16 %v1248
    %v5214 = vunpack.c.h.b16 %v1248
    %v5215 = vunpack.c.l.b16 %v1249
    %v5216 = vunpack.c.h.b16 %v1249
    %v5217 = vunpack.c.l.b16 %v1250
    %v5218 = vunpack.c.h.b16 %v1250
    %v5219 = vunpack.c.l.b16 %v1251
    %v5220 = vunpack.c.h.b16 %v1251
    %v5221 = vunpack.c.l.b16 %v1252
    %v5222 = vunpack.c.h.b16 %v1252
    %v5223 = vunpack.c.l.b16 %v1253
    %v5224 = vunpack.c.h.b16 %v1253
    %v5225 = vunpack.c.l.b16 %v1254
    %v5226 = vunpack.c.h.b16 %v1254
    %v5227 = vunpack.c.l.b16 %v1255
    %v5228 = vunpack.c.h.b16 %v1255
    %v5229 = vunpack.c.l.b16 %v1256
    %v5230 = vunpack.c.h.b16 %v1256
    %v5231 = vunpack.c.l.b16 %v1257
    %v5232 = vunpack.c.h.b16 %v1257
    %v5233 = vunpack.c.l.b16 %v1258
    %v5234 = vunpack.c.h.b16 %v1258
    %v5235 = vunpack.c.l.b16 %v1259
    %v5236 = vunpack.c.h.b16 %v1259
    %v5237 = vunpack.c.l.b16 %v1260
    %v5238 = vunpack.c.h.b16 %v1260
    %v5239 = vunpack.c.l.b16 %v1261
    %v5240 = vunpack.c.h.b16 %v1261
    %v5241 = vunpack.c.l.b16 %v1262
    %v5242 = vunpack.c.h.b16 %v1262
    %v5243 = vunpack.c.l.b16 %v1263
    %v5244 = vunpack.c.h.b16 %v1263
    %v5245 = vunpack.c.l.b16 %v1264
    %v5246 = vunpack.c.h.b16 %v1264
    %v5247 = vunpack.c.l.b16 %v1265
    %v5248 = vunpack.c.h.b16 %v1265
    %v5249 = vunpack.c.l.b16 %v1266
    %v5250 = vunpack.c.h.b16 %v1266
    %v5251 = vunpack.c.l.b16 %v1267
    %v5252 = vunpack.c.h.b16 %v1267
    %v5253 = vunpack.c.l.b16 %v1268
    %v5254 = vunpack.c.h.b16 %v1268
    %v5255 = vunpack.c.l.b16 %v1269
    %v5256 = vunpack.c.h.b16 %v1269
    %v5257 = vunpack.c.l.b16 %v1270
    %v5258 = vunpack.c.h.b16 %v1270
    %v5259 = vunpack.c.l.b16 %v1271
    %v5260 = vunpack.c.h.b16 %v1271
    %v5261 = vunpack.c.l.b16 %v1272
    %v5262 = vunpack.c.h.b16 %v1272
    %v5263 = vunpack.c.l.b16 %v1273
    %v5264 = vunpack.c.h.b16 %v1273
    %v5265 = vunpack.c.l.b16 %v1274
    %v5266 = vunpack.c.h.b16 %v1274
    %v5267 = vunpack.c.l.b16 %v1275
    %v5268 = vunpack.c.h.b16 %v1275
    %v5269 = vunpack.c.l.b16 %v1276
    %v5270 = vunpack.c.h.b16 %v1276
    %v5271 = vunpack.c.l.b16 %v1277
    %v5272 = vunpack.c.h.b16 %v1277
    %v5273 = vunpack.c.l.b16 %v1278
    %v5274 = vunpack.c.h.b16 %v1278
    %v5275 = vunpack.c.l.b16 %v1279
    %v5276 = vunpack.c.h.b16 %v1279
    %v5277 = vunpack.c.l.b16 %v1280
    %v5278 = vunpack.c.h.b16 %v1280
    %v5279 = vunpack.c.l.b16 %v1281
    %v5280 = vunpack.c.h.b16 %v1281
    %v5281 = vunpack.c.l.b16 %v1282
    %v5282 = vunpack.c.h.b16 %v1282
    %v5283 = vunpack.c.l.b16 %v1283
    %v5284 = vunpack.c.h.b16 %v1283
    %v5285 = vunpack.c.l.b16 %v1284
    %v5286 = vunpack.c.h.b16 %v1284
    %v5287 = vunpack.c.l.b16 %v1285
    %v5288 = vunpack.c.h.b16 %v1285
    %v5289 = vunpack.c.l.b16 %v1286
    %v5290 = vunpack.c.h.b16 %v1286
    %v5291 = vunpack.c.l.b16 %v1287
    %v5292 = vunpack.c.h.b16 %v1287
    %v5293 = vunpack.c.l.b16 %v1288
    %v5294 = vunpack.c.h.b16 %v1288
    %v5295 = vunpack.c.l.b16 %v1289
    %v5296 = vunpack.c.h.b16 %v1289
    %v5297 = vunpack.c.l.b16 %v1290
    %v5298 = vunpack.c.h.b16 %v1290
    %v5299 = vunpack.c.l.b16 %v1291
    %v5300 = vunpack.c.h.b16 %v1291
    %v5301 = vunpack.c.l.b16 %v1292
    %v5302 = vunpack.c.h.b16 %v1292
    %v5303 = vunpack.c.l.b16 %v1293
    %v5304 = vunpack.c.h.b16 %v1293
    %v5305 = vunpack.c.l.b16 %v1294
    %v5306 = vunpack.c.h.b16 %v1294
    %v5307 = vunpack.c.l.b16 %v1295
    %v5308 = vunpack.c.h.b16 %v1295
    %v5309 = vunpack.c.l.b16 %v1296
    %v5310 = vunpack.c.h.b16 %v1296
    %v5311 = vunpack.c.l.b16 %v1297
    %v5312 = vunpack.c.h.b16 %v1297
    %v5313 = vunpack.c.l.b16 %v1298
    %v5314 = vunpack.c.h.b16 %v1298
    %v5315 = vunpack.c.l.b16 %v1299
    %v5316 = vunpack.c.h.b16 %v1299
    %v5317 = vunpack.c.l.b16 %v1300
    %v5318 = vunpack.c.h.b16 %v1300
    %v5319 = vunpack.c.l.b16 %v1301
    %v5320 = vunpack.c.h.b16 %v1301
    %v5321 = vunpack.c.l.b16 %v1302
    %v5322 = vunpack.c.h.b16 %v1302
    %v5323 = vunpack.c.l.b16 %v1303
    %v5324 = vunpack.c.h.b16 %v1303
    %v5325 = vunpack.c.l.b16 %v1304
    %v5326 = vunpack.c.h.b16 %v1304
    %v5327 = vunpack.c.l.b16 %v1305
    %v5328 = vunpack.c.h.b16 %v1305
    %v5329 = vunpack.c.l.b16 %v1306
    %v5330 = vunpack.c.h.b16 %v1306
    %v5331 = vunpack.c.l.b16 %v1307
    %v5332 = vunpack.c.h.b16 %v1307
    %v5333 = vunpack.c.l.b16 %v1308
    %v5334 = vunpack.c.h.b16 %v1308
    %v5335 = vunpack.c.l.b16 %v1309
    %v5336 = vunpack.c.h.b16 %v1309
    %v5337 = vunpack.c.l.b16 %v1310
    %v5338 = vunpack.c.h.b16 %v1310
    %v5339 = vunpack.c.l.b16 %v1311
    %v5340 = vunpack.c.h.b16 %v1311
    %v5341 = vunpack.c.l.b16 %v1312
    %v5342 = vunpack.c.h.b16 %v1312
    %v5343 = vunpack.c.l.b16 %v1313
    %v5344 = vunpack.c.h.b16 %v1313
    %v5345 = vunpack.c.l.b16 %v1314
    %v5346 = vunpack.c.h.b16 %v1314
    %v5347 = vunpack.c.l.b16 %v1315
    %v5348 = vunpack.c.h.b16 %v1315
    %v5349 = vunpack.c.l.b16 %v1316
    %v5350 = vunpack.c.h.b16 %v1316
    %v5351 = vunpack.c.l.b16 %v1317
    %v5352 = vunpack.c.h.b16 %v1317
    %v5353 = vunpack.c.l.b16 %v1318
    %v5354 = vunpack.c.h.b16 %v1318
    %v5355 = vunpack.c.l.b16 %v1319
    %v5356 = vunpack.c.h.b16 %v1319
    %v5357 = vunpack.c.l.b16 %v1320
    %v5358 = vunpack.c.h.b16 %v1320
    %v5359 = vunpack.c.l.b16 %v1321
    %v5360 = vunpack.c.h.b16 %v1321
    %v5361 = vunpack.c.l.b16 %v1322
    %v5362 = vunpack.c.h.b16 %v1322
    %v5363 = vunpack.c.l.b16 %v1323
    %v5364 = vunpack.c.h.b16 %v1323
    %v5365 = vunpack.c.l.b16 %v1324
    %v5366 = vunpack.c.h.b16 %v1324
    %v5367 = vunpack.c.l.b16 %v1325
    %v5368 = vunpack.c.h.b16 %v1325
    %v5369 = vunpack.c.l.b16 %v1326
    %v5370 = vunpack.c.h.b16 %v1326
    %v5371 = vunpack.c.l.b16 %v1327
    %v5372 = vunpack.c.h.b16 %v1327
    %v5373 = vunpack.c.l.b16 %v1328
    %v5374 = vunpack.c.h.b16 %v1328
    %v5375 = vunpack.c.l.b16 %v1329
    %v5376 = vunpack.c.h.b16 %v1329
    %v5377 = vunpack.c.l.b16 %v1330
    %v5378 = vunpack.c.h.b16 %v1330
    %v5379 = vunpack.c.l.b16 %v1331
    %v5380 = vunpack.c.h.b16 %v1331
    %v5381 = vunpack.c.l.b16 %v1332
    %v5382 = vunpack.c.h.b16 %v1332
    %v5383 = vunpack.c.l.b16 %v1333
    %v5384 = vunpack.c.h.b16 %v1333
    %v5385 = vunpack.c.l.b16 %v1334
    %v5386 = vunpack.c.h.b16 %v1334
    %v5387 = vunpack.c.l.b16 %v1335
    %v5388 = vunpack.c.h.b16 %v1335
    %v5389 = vunpack.c.l.b16 %v1336
    %v5390 = vunpack.c.h.b16 %v1336
    %v5391 = vunpack.c.l.b16 %v1337
    %v5392 = vunpack.c.h.b16 %v1337
    %v5393 = vunpack.c.l.b16 %v1338
    %v5394 = vunpack.c.h.b16 %v1338
    %v5395 = vunpack.c.l.b16 %v1339
    %v5396 = vunpack.c.h.b16 %v1339
    %v5397 = vunpack.c.l.b16 %v1340
    %v5398 = vunpack.c.h.b16 %v1340
    %v5399 = vunpack.c.l.b16 %v1341
    %v5400 = vunpack.c.h.b16 %v1341
    %v5401 = vunpack.c.l.b16 %v1342
    %v5402 = vunpack.c.h.b16 %v1342
    %v5403 = vunpack.c.l.b16 %v1343
    %v5404 = vunpack.c.h.b16 %v1343
    %v5405 = vunpack.c.l.b16 %v1344
    %v5406 = vunpack.c.h.b16 %v1344
    %v5407 = vunpack.c.l.b16 %v1345
    %v5408 = vunpack.c.h.b16 %v1345
    %v5409 = vunpack.c.l.b16 %v1346
    %v5410 = vunpack.c.h.b16 %v1346
    %v5411 = vunpack.c.l.b16 %v1347
    %v5412 = vunpack.c.h.b16 %v1347
    %v5413 = vunpack.c.l.b16 %v1348
    %v5414 = vunpack.c.h.b16 %v1348
    %v5415 = vunpack.c.l.b16 %v1349
    %v5416 = vunpack.c.h.b16 %v1349
    %v5417 = vunpack.c.l.b16 %v1350
    %v5418 = vunpack.c.h.b16 %v1350
    %v5419 = vunpack.c.l.b16 %v1351
    %v5420 = vunpack.c.h.b16 %v1351
    %v5421 = vunpack.c.l.b16 %v1352
    %v5422 = vunpack.c.h.b16 %v1352
    %v5423 = vunpack.c.l.b16 %v1353
    %v5424 = vunpack.c.h.b16 %v1353
    %v5425 = vunpack.c.l.b16 %v1354
    %v5426 = vunpack.c.h.b16 %v1354
    %v5427 = vunpack.c.l.b16 %v1355
    %v5428 = vunpack.c.h.b16 %v1355
    %v5429 = vunpack.c.l.b16 %v1356
    %v5430 = vunpack.c.h.b16 %v1356
    %v5431 = vunpack.c.l.b16 %v1357
    %v5432 = vunpack.c.h.b16 %v1357
    %v5433 = vunpack.c.l.b16 %v1358
    %v5434 = vunpack.c.h.b16 %v1358
    %v5435 = vunpack.c.l.b16 %v1359
    %v5436 = vunpack.c.h.b16 %v1359
    %v5437 = vunpack.c.l.b16 %v1360
    %v5438 = vunpack.c.h.b16 %v1360
    %v5439 = vunpack.c.l.b16 %v1361
    %v5440 = vunpack.c.h.b16 %v1361
    %v5441 = vunpack.c.l.b16 %v1362
    %v5442 = vunpack.c.h.b16 %v1362
    %v5443 = vunpack.c.l.b16 %v1363
    %v5444 = vunpack.c.h.b16 %v1363
    %v5445 = vunpack.c.l.b16 %v1364
    %v5446 = vunpack.c.h.b16 %v1364
    %v5447 = vunpack.c.l.b16 %v1365
    %v5448 = vunpack.c.h.b16 %v1365
    %v5449 = vunpack.c.l.b16 %v1366
    %v5450 = vunpack.c.h.b16 %v1366
    %v5451 = vunpack.c.l.b16 %v1367
    %v5452 = vunpack.c.h.b16 %v1367
    %v5453 = vunpack.c.l.b16 %v1368
    %v5454 = vunpack.c.h.b16 %v1368
    %v5455 = vunpack.c.l.b16 %v1369
    %v5456 = vunpack.c.h.b16 %v1369
    %v5457 = vunpack.c.l.b16 %v1370
    %v5458 = vunpack.c.h.b16 %v1370
    %v5459 = vunpack.c.l.b16 %v1371
    %v5460 = vunpack.c.h.b16 %v1371
    %v5461 = vunpack.c.l.b16 %v1372
    %v5462 = vunpack.c.h.b16 %v1372
    %v5463 = vunpack.c.l.b16 %v1373
    %v5464 = vunpack.c.h.b16 %v1373
    %v5465 = vunpack.c.l.b16 %v1374
    %v5466 = vunpack.c.h.b16 %v1374
    %v5467 = vunpack.c.l.b16 %v1375
    %v5468 = vunpack.c.h.b16 %v1375
    %v5469 = vunpack.c.l.b16 %v1376
    %v5470 = vunpack.c.h.b16 %v1376
    %v5471 = vunpack.c.l.b16 %v1377
    %v5472 = vunpack.c.h.b16 %v1377
    %v5473 = vunpack.c.l.b16 %v1378
    %v5474 = vunpack.c.h.b16 %v1378
    %v5475 = vunpack.c.l.b16 %v1379
    %v5476 = vunpack.c.h.b16 %v1379
    %v5477 = vunpack.c.l.b16 %v1380
    %v5478 = vunpack.c.h.b16 %v1380
    %v5479 = vunpack.c.l.b16 %v1381
    %v5480 = vunpack.c.h.b16 %v1381
    %v5481 = vunpack.c.l.b16 %v1382
    %v5482 = vunpack.c.h.b16 %v1382
    %v5483 = vunpack.c.l.b16 %v1383
    %v5484 = vunpack.c.h.b16 %v1383
    %v5485 = vunpack.c.l.b16 %v1384
    %v5486 = vunpack.c.h.b16 %v1384
    %v5487 = vunpack.c.l.b16 %v1385
    %v5488 = vunpack.c.h.b16 %v1385
    %v5489 = vunpack.c.l.b16 %v1386
    %v5490 = vunpack.c.h.b16 %v1386
    %v5491 = vunpack.c.l.b16 %v1387
    %v5492 = vunpack.c.h.b16 %v1387
    %v5493 = vunpack.c.l.b16 %v1388
    %v5494 = vunpack.c.h.b16 %v1388
    %v5495 = vunpack.c.l.b16 %v1389
    %v5496 = vunpack.c.h.b16 %v1389
    %v5497 = vunpack.c.l.b16 %v1390
    %v5498 = vunpack.c.h.b16 %v1390
    %v5499 = vunpack.c.l.b16 %v1391
    %v5500 = vunpack.c.h.b16 %v1391
    %v5501 = vunpack.c.l.b16 %v1392
    %v5502 = vunpack.c.h.b16 %v1392
    %v5503 = vunpack.c.l.b16 %v1393
    %v5504 = vunpack.c.h.b16 %v1393
    %v5505 = vunpack.c.l.b16 %v1394
    %v5506 = vunpack.c.h.b16 %v1394
    %v5507 = vunpack.c.l.b16 %v1395
    %v5508 = vunpack.c.h.b16 %v1395
    %v5509 = vunpack.c.l.b16 %v1396
    %v5510 = vunpack.c.h.b16 %v1396
    %v5511 = vunpack.c.l.b16 %v1397
    %v5512 = vunpack.c.h.b16 %v1397
    %v5513 = vunpack.c.l.b16 %v1398
    %v5514 = vunpack.c.h.b16 %v1398
    %v5515 = vunpack.c.l.b16 %v1399
    %v5516 = vunpack.c.h.b16 %v1399
    %v5517 = vunpack.c.l.b16 %v1400
    %v5518 = vunpack.c.h.b16 %v1400
    %v5519 = vunpack.c.l.b16 %v1401
    %v5520 = vunpack.c.h.b16 %v1401
    %v5521 = vunpack.c.l.b16 %v1402
    %v5522 = vunpack.c.h.b16 %v1402
    %v5523 = vunpack.c.l.b16 %v1403
    %v5524 = vunpack.c.h.b16 %v1403
    %v5525 = vunpack.c.l.b16 %v1404
    %v5526 = vunpack.c.h.b16 %v1404
    %v5527 = vunpack.c.l.b16 %v1405
    %v5528 = vunpack.c.h.b16 %v1405
    %v5529 = vunpack.c.l.b16 %v1406
    %v5530 = vunpack.c.h.b16 %v1406
    %v5531 = vunpack.c.l.b16 %v1407
    %v5532 = vunpack.c.h.b16 %v1407
    %v5533 = vunpack.c.l.b16 %v1408
    %v5534 = vunpack.c.h.b16 %v1408
    %v5535 = vunpack.c.l.b16 %v1409
    %v5536 = vunpack.c.h.b16 %v1409
    %v5537 = vunpack.c.l.b16 %v1410
    %v5538 = vunpack.c.h.b16 %v1410
    %v5539 = vunpack.c.l.b16 %v1411
    %v5540 = vunpack.c.h.b16 %v1411
    %v5541 = vunpack.c.l.b16 %v1412
    %v5542 = vunpack.c.h.b16 %v1412
    %v5543 = vunpack.c.l.b16 %v1413
    %v5544 = vunpack.c.h.b16 %v1413
    %v5545 = vunpack.c.l.b16 %v1414
    %v5546 = vunpack.c.h.b16 %v1414
    %v5547 = vunpack.c.l.b16 %v1415
    %v5548 = vunpack.c.h.b16 %v1415
    %v5549 = vunpack.c.l.b16 %v1416
    %v5550 = vunpack.c.h.b16 %v1416
    %v5551 = vunpack.c.l.b16 %v1417
    %v5552 = vunpack.c.h.b16 %v1417
    %v5553 = vunpack.c.l.b16 %v1418
    %v5554 = vunpack.c.h.b16 %v1418
    %v5555 = vunpack.c.l.b16 %v1419
    %v5556 = vunpack.c.h.b16 %v1419
    %v5557 = vunpack.c.l.b16 %v1420
    %v5558 = vunpack.c.h.b16 %v1420
    %v5559 = vunpack.c.l.b16 %v1421
    %v5560 = vunpack.c.h.b16 %v1421
    %v5561 = vunpack.c.l.b16 %v1422
    %v5562 = vunpack.c.h.b16 %v1422
    %v5563 = vunpack.c.l.b16 %v1423
    %v5564 = vunpack.c.h.b16 %v1423
    %v5565 = vunpack.c.l.b16 %v1424
    %v5566 = vunpack.c.h.b16 %v1424
    %v5567 = vunpack.c.l.b16 %v1425
    %v5568 = vunpack.c.h.b16 %v1425
    %v5569 = vunpack.c.l.b16 %v1426
    %v5570 = vunpack.c.h.b16 %v1426
    %v5571 = vunpack.c.l.b16 %v1427
    %v5572 = vunpack.c.h.b16 %v1427
    %v5573 = vunpack.c.l.b16 %v1428
    %v5574 = vunpack.c.h.b16 %v1428
    %v5575 = vunpack.c.l.b16 %v1429
    %v5576 = vunpack.c.h.b16 %v1429
    %v5577 = vunpack.c.l.b16 %v1430
    %v5578 = vunpack.c.h.b16 %v1430
    %v5579 = vunpack.c.l.b16 %v1431
    %v5580 = vunpack.c.h.b16 %v1431
    %v5581 = vunpack.c.l.b16 %v1432
    %v5582 = vunpack.c.h.b16 %v1432
    %v5583 = vunpack.c.l.b16 %v1433
    %v5584 = vunpack.c.h.b16 %v1433
    %v5585 = vunpack.c.l.b16 %v1434
    %v5586 = vunpack.c.h.b16 %v1434
    %v5587 = vunpack.c.l.b16 %v1435
    %v5588 = vunpack.c.h.b16 %v1435
    %v5589 = vunpack.c.l.b16 %v1436
    %v5590 = vunpack.c.h.b16 %v1436
    %v5591 = vunpack.c.l.b16 %v1437
    %v5592 = vunpack.c.h.b16 %v1437
    %v5593 = vunpack.c.l.b16 %v1438
    %v5594 = vunpack.c.h.b16 %v1438
    %v5595 = vunpack.c.l.b16 %v1439
    %v5596 = vunpack.c.h.b16 %v1439
    %v5597 = vunpack.c.l.b16 %v1440
    %v5598 = vunpack.c.h.b16 %v1440
    %v5599 = vunpack.c.l.b16 %v1441
    %v5600 = vunpack.c.h.b16 %v1441
    %v5601 = vunpack.c.l.b16 %v1442
    %v5602 = vunpack.c.h.b16 %v1442
    %v5603 = vunpack.c.l.b16 %v1443
    %v5604 = vunpack.c.h.b16 %v1443
    %v5605 = vunpack.c.l.b16 %v1444
    %v5606 = vunpack.c.h.b16 %v1444
    %v5607 = vunpack.c.l.b16 %v1445
    %v5608 = vunpack.c.h.b16 %v1445
    %v5609 = vunpack.c.l.b16 %v1446
    %v5610 = vunpack.c.h.b16 %v1446
    %v5611 = vunpack.c.l.b16 %v1447
    %v5612 = vunpack.c.h.b16 %v1447
    %v5613 = vunpack.c.l.b16 %v1448
    %v5614 = vunpack.c.h.b16 %v1448
    %v5615 = vunpack.c.l.b16 %v1449
    %v5616 = vunpack.c.h.b16 %v1449
    %v5617 = vunpack.c.l.b16 %v1450
    %v5618 = vunpack.c.h.b16 %v1450
    %v5619 = vunpack.c.l.b16 %v1451
    %v5620 = vunpack.c.h.b16 %v1451
    %v5621 = vunpack.c.l.b16 %v1452
    %v5622 = vunpack.c.h.b16 %v1452
    %v5623 = vunpack.c.l.b16 %v1453
    %v5624 = vunpack.c.h.b16 %v1453
    %v5625 = vunpack.c.l.b16 %v1454
    %v5626 = vunpack.c.h.b16 %v1454
    %v5627 = vunpack.c.l.b16 %v1455
    %v5628 = vunpack.c.h.b16 %v1455
    %v5629 = vunpack.c.l.b16 %v1456
    %v5630 = vunpack.c.h.b16 %v1456
    %v5631 = vunpack.c.l.b16 %v1457
    %v5632 = vunpack.c.h.b16 %v1457
    %v5633 = vunpack.c.l.b16 %v1458
    %v5634 = vunpack.c.h.b16 %v1458
    %v5635 = vunpack.c.l.b16 %v1459
    %v5636 = vunpack.c.h.b16 %v1459
    %v5637 = vunpack.c.l.b16 %v1460
    %v5638 = vunpack.c.h.b16 %v1460
    %v5639 = vunpack.c.l.b16 %v1461
    %v5640 = vunpack.c.h.b16 %v1461
    %v5641 = vunpack.c.l.b16 %v1462
    %v5642 = vunpack.c.h.b16 %v1462
    %v5643 = vunpack.c.l.b16 %v1463
    %v5644 = vunpack.c.h.b16 %v1463
    %v5645 = vunpack.c.l.b16 %v1464
    %v5646 = vunpack.c.h.b16 %v1464
    %v5647 = vunpack.c.l.b16 %v1465
    %v5648 = vunpack.c.h.b16 %v1465
    %v5649 = vunpack.c.l.b16 %v1466
    %v5650 = vunpack.c.h.b16 %v1466
    %v5651 = vunpack.c.l.b16 %v1467
    %v5652 = vunpack.c.h.b16 %v1467
    %v5653 = vunpack.c.l.b16 %v1468
    %v5654 = vunpack.c.h.b16 %v1468
    %v5655 = vunpack.c.l.b16 %v1469
    %v5656 = vunpack.c.h.b16 %v1469
    %v5657 = vunpack.c.l.b16 %v1470
    %v5658 = vunpack.c.h.b16 %v1470
    %v5659 = vunpack.c.l.b16 %v1471
    %v5660 = vunpack.c.h.b16 %v1471
    %v5661 = vunpack.c.l.b16 %v1472
    %v5662 = vunpack.c.h.b16 %v1472
    %v5663 = vunpack.c.l.b16 %v1473
    %v5664 = vunpack.c.h.b16 %v1473
    %v5665 = vunpack.c.l.b16 %v1474
    %v5666 = vunpack.c.h.b16 %v1474
    %v5667 = vunpack.c.l.b16 %v1475
    %v5668 = vunpack.c.h.b16 %v1475
    %v5669 = vunpack.c.l.b16 %v1476
    %v5670 = vunpack.c.h.b16 %v1476
    %v5671 = vunpack.c.l.b16 %v1477
    %v5672 = vunpack.c.h.b16 %v1477
    %v5673 = vunpack.c.l.b16 %v1478
    %v5674 = vunpack.c.h.b16 %v1478
    %v5675 = vunpack.c.l.b16 %v1479
    %v5676 = vunpack.c.h.b16 %v1479
    %v5677 = vunpack.c.l.b16 %v1480
    %v5678 = vunpack.c.h.b16 %v1480
    %v5679 = vunpack.c.l.b16 %v1481
    %v5680 = vunpack.c.h.b16 %v1481
    %v5681 = vunpack.c.l.b16 %v1482
    %v5682 = vunpack.c.h.b16 %v1482
    %v5683 = vunpack.c.l.b16 %v1483
    %v5684 = vunpack.c.h.b16 %v1483
    %v5685 = vunpack.c.l.b16 %v1484
    %v5686 = vunpack.c.h.b16 %v1484
    %v5687 = vunpack.c.l.b16 %v1485
    %v5688 = vunpack.c.h.b16 %v1485
    %v5689 = vunpack.c.l.b16 %v1486
    %v5690 = vunpack.c.h.b16 %v1486
    %v5691 = vunpack.c.l.b16 %v1487
    %v5692 = vunpack.c.h.b16 %v1487
    %v5693 = vunpack.c.l.b16 %v1488
    %v5694 = vunpack.c.h.b16 %v1488
    %v5695 = vunpack.c.l.b16 %v1489
    %v5696 = vunpack.c.h.b16 %v1489
    %v5697 = vunpack.c.l.b16 %v1490
    %v5698 = vunpack.c.h.b16 %v1490
    %v5699 = vunpack.c.l.b16 %v1491
    %v5700 = vunpack.c.h.b16 %v1491
    %v5701 = vunpack.c.l.b16 %v1492
    %v5702 = vunpack.c.h.b16 %v1492
    %v5703 = vunpack.c.l.b16 %v1493
    %v5704 = vunpack.c.h.b16 %v1493
    %v5705 = vunpack.c.l.b16 %v1494
    %v5706 = vunpack.c.h.b16 %v1494
    %v5707 = vunpack.c.l.b16 %v1495
    %v5708 = vunpack.c.h.b16 %v1495
    %v5709 = vunpack.c.l.b16 %v1496
    %v5710 = vunpack.c.h.b16 %v1496
    %v5711 = vunpack.c.l.b16 %v1497
    %v5712 = vunpack.c.h.b16 %v1497
    %v5713 = vunpack.c.l.b16 %v1498
    %v5714 = vunpack.c.h.b16 %v1498
    %v5715 = vunpack.c.l.b16 %v1499
    %v5716 = vunpack.c.h.b16 %v1499
    %v5717 = vunpack.c.l.b16 %v1500
    %v5718 = vunpack.c.h.b16 %v1500
    %v5719 = vunpack.c.l.b16 %v1501
    %v5720 = vunpack.c.h.b16 %v1501
    %v5721 = vunpack.c.l.b16 %v1502
    %v5722 = vunpack.c.h.b16 %v1502
    %v5723 = vunpack.c.l.b16 %v1503
    %v5724 = vunpack.c.h.b16 %v1503
    %v5725 = vunpack.c.l.b16 %v1504
    %v5726 = vunpack.c.h.b16 %v1504
    %v5727 = vunpack.c.l.b16 %v1505
    %v5728 = vunpack.c.h.b16 %v1505
    %v5729 = vunpack.c.l.b16 %v1506
    %v5730 = vunpack.c.h.b16 %v1506
    %v5731 = vunpack.c.l.b16 %v1507
    %v5732 = vunpack.c.h.b16 %v1507
    %v5733 = vunpack.c.l.b16 %v1508
    %v5734 = vunpack.c.h.b16 %v1508
    %v5735 = vunpack.c.l.b16 %v1509
    %v5736 = vunpack.c.h.b16 %v1509
    %v5737 = vunpack.c.l.b16 %v1510
    %v5738 = vunpack.c.h.b16 %v1510
    %v5739 = vunpack.c.l.b16 %v1511
    %v5740 = vunpack.c.h.b16 %v1511
    %v5741 = vunpack.c.l.b16 %v1512
    %v5742 = vunpack.c.h.b16 %v1512
    %v5743 = vunpack.c.l.b16 %v1513
    %v5744 = vunpack.c.h.b16 %v1513
    %v5745 = vunpack.c.l.b16 %v1514
    %v5746 = vunpack.c.h.b16 %v1514
    %v5747 = vunpack.c.l.b16 %v1515
    %v5748 = vunpack.c.h.b16 %v1515
    %v5749 = vunpack.c.l.b16 %v1516
    %v5750 = vunpack.c.h.b16 %v1516
    %v5751 = vunpack.c.l.b16 %v1517
    %v5752 = vunpack.c.h.b16 %v1517
    %v5753 = vunpack.c.l.b16 %v1518
    %v5754 = vunpack.c.h.b16 %v1518
    %v5755 = vunpack.c.l.b16 %v1519
    %v5756 = vunpack.c.h.b16 %v1519
    %v5757 = vunpack.c.l.b16 %v1520
    %v5758 = vunpack.c.h.b16 %v1520
    %v5759 = vunpack.c.l.b16 %v1521
    %v5760 = vunpack.c.h.b16 %v1521
    %v5761 = vunpack.c.l.b16 %v1522
    %v5762 = vunpack.c.h.b16 %v1522
    %v5763 = vunpack.c.l.b16 %v1523
    %v5764 = vunpack.c.h.b16 %v1523
    %v5765 = vunpack.c.l.b16 %v1524
    %v5766 = vunpack.c.h.b16 %v1524
    %v5767 = vunpack.c.l.b16 %v1525
    %v5768 = vunpack.c.h.b16 %v1525
    %v5769 = vunpack.c.l.b16 %v1526
    %v5770 = vunpack.c.h.b16 %v1526
    %v5771 = vunpack.c.l.b16 %v1527
    %v5772 = vunpack.c.h.b16 %v1527
    %v5773 = vunpack.c.l.b16 %v1528
    %v5774 = vunpack.c.h.b16 %v1528
    %v5775 = vunpack.c.l.b16 %v1529
    %v5776 = vunpack.c.h.b16 %v1529
    %v5777 = vunpack.c.l.b16 %v1530
    %v5778 = vunpack.c.h.b16 %v1530
    %v5779 = vunpack.c.l.b16 %v1531
    %v5780 = vunpack.c.h.b16 %v1531
    %v5781 = vunpack.c.l.b16 %v1532
    %v5782 = vunpack.c.h.b16 %v1532
    %v5783 = vunpack.c.l.b16 %v1533
    %v5784 = vunpack.c.h.b16 %v1533
    %v5785 = vunpack.c.l.b16 %v1534
    %v5786 = vunpack.c.h.b16 %v1534
    %v5787 = vunpack.c.l.b16 %v1535
    %v5788 = vunpack.c.h.b16 %v1535
    %v5789 = vunpack.c.l.b16 %v1536
    %v5790 = vunpack.c.h.b16 %v1536
    %v5791 = vunpack.c.l.b16 %v1537
    %v5792 = vunpack.c.h.b16 %v1537
    %v5793 = vunpack.c.l.b16 %v1538
    %v5794 = vunpack.c.h.b16 %v1538
    %v5795 = vunpack.c.l.b16 %v1539
    %v5796 = vunpack.c.h.b16 %v1539
    %v5797 = vunpack.c.l.b16 %v1540
    %v5798 = vunpack.c.h.b16 %v1540
    %v5799 = vunpack.c.l.b16 %v1541
    %v5800 = vunpack.c.h.b16 %v1541
    %v5801 = vunpack.c.l.b16 %v1542
    %v5802 = vunpack.c.h.b16 %v1542
    %v5803 = vunpack.c.l.b16 %v1543
    %v5804 = vunpack.c.h.b16 %v1543
    %v5805 = vunpack.c.l.b16 %v1544
    %v5806 = vunpack.c.h.b16 %v1544
    %v5807 = vunpack.c.l.b16 %v1545
    %v5808 = vunpack.c.h.b16 %v1545
    %v5809 = vunpack.c.l.b16 %v1546
    %v5810 = vunpack.c.h.b16 %v1546
    %v5811 = vunpack.c.l.b16 %v1547
    %v5812 = vunpack.c.h.b16 %v1547
    %v5813 = vunpack.c.l.b16 %v1548
    %v5814 = vunpack.c.h.b16 %v1548
    %v5815 = vunpack.c.l.b16 %v1549
    %v5816 = vunpack.c.h.b16 %v1549
    %v5817 = vunpack.c.l.b16 %v1550
    %v5818 = vunpack.c.h.b16 %v1550
    %v5819 = vunpack.c.l.b16 %v1551
    %v5820 = vunpack.c.h.b16 %v1551
    %v5821 = vunpack.c.l.b16 %v1552
    %v5822 = vunpack.c.h.b16 %v1552
    %v5823 = vunpack.c.l.b16 %v1553
    %v5824 = vunpack.c.h.b16 %v1553
    %v5825 = vunpack.c.l.b16 %v1554
    %v5826 = vunpack.c.h.b16 %v1554
    %v5827 = vunpack.c.l.b16 %v1555
    %v5828 = vunpack.c.h.b16 %v1555
    %v5829 = vunpack.c.l.b16 %v1556
    %v5830 = vunpack.c.h.b16 %v1556
    %v5831 = vunpack.c.l.b16 %v1557
    %v5832 = vunpack.c.h.b16 %v1557
    %v5833 = vunpack.c.l.b16 %v1558
    %v5834 = vunpack.c.h.b16 %v1558
    %v5835 = vunpack.c.l.b16 %v1559
    %v5836 = vunpack.c.h.b16 %v1559
    %v5837 = vunpack.c.l.b16 %v1560
    %v5838 = vunpack.c.h.b16 %v1560
    %v5839 = vunpack.c.l.b16 %v1561
    %v5840 = vunpack.c.h.b16 %v1561
    %v5841 = vunpack.c.l.b16 %v1562
    %v5842 = vunpack.c.h.b16 %v1562
    %v5843 = vunpack.c.l.b16 %v1563
    %v5844 = vunpack.c.h.b16 %v1563
    %v5845 = vunpack.c.l.b16 %v1564
    %v5846 = vunpack.c.h.b16 %v1564
    %v5847 = vunpack.c.l.b16 %v1565
    %v5848 = vunpack.c.h.b16 %v1565
    %v5849 = vunpack.c.l.b16 %v1566
    %v5850 = vunpack.c.h.b16 %v1566
    %v5851 = vunpack.c.l.b16 %v1567
    %v5852 = vunpack.c.h.b16 %v1567
    %v5853 = vunpack.c.l.b16 %v1568
    %v5854 = vunpack.c.h.b16 %v1568
    %v5855 = vunpack.c.l.b16 %v1569
    %v5856 = vunpack.c.h.b16 %v1569
    %v5857 = vunpack.c.l.b16 %v1570
    %v5858 = vunpack.c.h.b16 %v1570
    %v5859 = vunpack.c.l.b16 %v1571
    %v5860 = vunpack.c.h.b16 %v1571
    %v5861 = vunpack.c.l.b16 %v1572
    %v5862 = vunpack.c.h.b16 %v1572
    %v5863 = vunpack.c.l.b16 %v1573
    %v5864 = vunpack.c.h.b16 %v1573
    %v5865 = vunpack.c.l.b16 %v1574
    %v5866 = vunpack.c.h.b16 %v1574
    %v5867 = vunpack.c.l.b16 %v1575
    %v5868 = vunpack.c.h.b16 %v1575
    %v5869 = vunpack.c.l.b16 %v1576
    %v5870 = vunpack.c.h.b16 %v1576
    %v5871 = vunpack.c.l.b16 %v1577
    %v5872 = vunpack.c.h.b16 %v1577
    %v5873 = vunpack.c.l.b16 %v1578
    %v5874 = vunpack.c.h.b16 %v1578
    %v5875 = vunpack.c.l.b16 %v1579
    %v5876 = vunpack.c.h.b16 %v1579
    %v5877 = vunpack.c.l.b16 %v1580
    %v5878 = vunpack.c.h.b16 %v1580
    %v5879 = vunpack.c.l.b16 %v1581
    %v5880 = vunpack.c.h.b16 %v1581
    %v5881 = vunpack.c.l.b16 %v1582
    %v5882 = vunpack.c.h.b16 %v1582
    %v5883 = vunpack.c.l.b16 %v1583
    %v5884 = vunpack.c.h.b16 %v1583
    %v5885 = vunpack.c.l.b16 %v1584
    %v5886 = vunpack.c.h.b16 %v1584
    %v5887 = vunpack.c.l.b16 %v1585
    %v5888 = vunpack.c.h.b16 %v1585
    %v5889 = vunpack.c.l.b16 %v1586
    %v5890 = vunpack.c.h.b16 %v1586
    %v5891 = vunpack.c.l.b16 %v1587
    %v5892 = vunpack.c.h.b16 %v1587
    %v5893 = vunpack.c.l.b16 %v1588
    %v5894 = vunpack.c.h.b16 %v1588
    %v5895 = vunpack.c.l.b16 %v1589
    %v5896 = vunpack.c.h.b16 %v1589
    %v5897 = vunpack.c.l.b16 %v1590
    %v5898 = vunpack.c.h.b16 %v1590
    %v5899 = vunpack.c.l.b16 %v1591
    %v5900 = vunpack.c.h.b16 %v1591
    %v5901 = vunpack.c.l.b16 %v1592
    %v5902 = vunpack.c.h.b16 %v1592
    %v5903 = vunpack.c.l.b16 %v1593
    %v5904 = vunpack.c.h.b16 %v1593
    %v5905 = vunpack.c.l.b16 %v1594
    %v5906 = vunpack.c.h.b16 %v1594
    %v5907 = vunpack.c.l.b16 %v1595
    %v5908 = vunpack.c.h.b16 %v1595
    %v5909 = vunpack.c.l.b16 %v1596
    %v5910 = vunpack.c.h.b16 %v1596
    %v5911 = vunpack.c.l.b16 %v1597
    %v5912 = vunpack.c.h.b16 %v1597
    %v5913 = vunpack.c.l.b16 %v1598
    %v5914 = vunpack.c.h.b16 %v1598
    %v5915 = vunpack.c.l.b16 %v1599
    %v5916 = vunpack.c.h.b16 %v1599
    %v5917 = vunpack.c.l.b16 %v1600
    %v5918 = vunpack.c.h.b16 %v1600
    %v5919 = vunpack.c.l.b16 %v1601
    %v5920 = vunpack.c.h.b16 %v1601
    %v5921 = vunpack.c.l.b16 %v1602
    %v5922 = vunpack.c.h.b16 %v1602
    %v5923 = vunpack.c.l.b16 %v1603
    %v5924 = vunpack.c.h.b16 %v1603
    %v5925 = vunpack.c.l.b16 %v1604
    %v5926 = vunpack.c.h.b16 %v1604
    %v5927 = vunpack.c.l.b16 %v1605
    %v5928 = vunpack.c.h.b16 %v1605
    %v5929 = vunpack.c.l.b16 %v1606
    %v5930 = vunpack.c.h.b16 %v1606
    %v5931 = vunpack.c.l.b16 %v1607
    %v5932 = vunpack.c.h.b16 %v1607
    %v5933 = vunpack.c.l.b16 %v1608
    %v5934 = vunpack.c.h.b16 %v1608
    %v5935 = vunpack.c.l.b16 %v1609
    %v5936 = vunpack.c.h.b16 %v1609
    %v5937 = vunpack.c.l.b16 %v1610
    %v5938 = vunpack.c.h.b16 %v1610
    %v5939 = vunpack.c.l.b16 %v1611
    %v5940 = vunpack.c.h.b16 %v1611
    %v5941 = vunpack.c.l.b16 %v1612
    %v5942 = vunpack.c.h.b16 %v1612
    %v5943 = vunpack.c.l.b16 %v1613
    %v5944 = vunpack.c.h.b16 %v1613
    %v5945 = vunpack.c.l.b16 %v1614
    %v5946 = vunpack.c.h.b16 %v1614
    %v5947 = vunpack.c.l.b16 %v1615
    %v5948 = vunpack.c.h.b16 %v1615
    %v5949 = vunpack.c.l.b16 %v1616
    %v5950 = vunpack.c.h.b16 %v1616
    %v5951 = vunpack.c.l.b16 %v1617
    %v5952 = vunpack.c.h.b16 %v1617
    %v5953 = vunpack.c.l.b16 %v1618
    %v5954 = vunpack.c.h.b16 %v1618
    %v5955 = vunpack.c.l.b16 %v1619
    %v5956 = vunpack.c.h.b16 %v1619
    %v5957 = vunpack.c.l.b16 %v1620
    %v5958 = vunpack.c.h.b16 %v1620
    %v5959 = vunpack.c.l.b16 %v1621
    %v5960 = vunpack.c.h.b16 %v1621
    %v5961 = vunpack.c.l.b16 %v1622
    %v5962 = vunpack.c.h.b16 %v1622
    %v5963 = vunpack.c.l.b16 %v1623
    %v5964 = vunpack.c.h.b16 %v1623
    %v5965 = vunpack.c.l.b16 %v1624
    %v5966 = vunpack.c.h.b16 %v1624
    %v5967 = vunpack.c.l.b16 %v1625
    %v5968 = vunpack.c.h.b16 %v1625
    %v5969 = vunpack.c.l.b16 %v1626
    %v5970 = vunpack.c.h.b16 %v1626
    %v5971 = vunpack.c.l.b16 %v1627
    %v5972 = vunpack.c.h.b16 %v1627
    %v5973 = vunpack.c.l.b16 %v1628
    %v5974 = vunpack.c.h.b16 %v1628
    %v5975 = vunpack.c.l.b16 %v1629
    %v5976 = vunpack.c.h.b16 %v1629
    %v5977 = vunpack.c.l.b16 %v1630
    %v5978 = vunpack.c.h.b16 %v1630
    %v5979 = vunpack.c.l.b16 %v1631
    %v5980 = vunpack.c.h.b16 %v1631
    %v5981 = vunpack.c.l.b16 %v1632
    %v5982 = vunpack.c.h.b16 %v1632
    %v5983 = vunpack.c.l.b16 %v1633
    %v5984 = vunpack.c.h.b16 %v1633
    %v5985 = vunpack.c.l.b16 %v1634
    %v5986 = vunpack.c.h.b16 %v1634
    %v5987 = vunpack.c.l.b16 %v1635
    %v5988 = vunpack.c.h.b16 %v1635
    %v5989 = vunpack.c.l.b16 %v1636
    %v5990 = vunpack.c.h.b16 %v1636
    %v5991 = vunpack.c.l.b16 %v1637
    %v5992 = vunpack.c.h.b16 %v1637
    %v5993 = vunpack.c.l.b16 %v1638
    %v5994 = vunpack.c.h.b16 %v1638
    %v5995 = vunpack.c.l.b16 %v1639
    %v5996 = vunpack.c.h.b16 %v1639
    %v5997 = vunpack.c.l.b16 %v1640
    %v5998 = vunpack.c.h.b16 %v1640
    %v5999 = vunpack.c.l.b16 %v1641
    %v6000 = vunpack.c.h.b16 %v1641
    %v6001 = vunpack.c.l.b16 %v1642
    %v6002 = vunpack.c.h.b16 %v1642
    %v6003 = vunpack.c.l.b16 %v1643
    %v6004 = vunpack.c.h.b16 %v1643
    %v6005 = vunpack.c.l.b16 %v1644
    %v6006 = vunpack.c.h.b16 %v1644
    %v6007 = vunpack.c.l.b16 %v1645
    %v6008 = vunpack.c.h.b16 %v1645
    %v6009 = vunpack.c.l.b16 %v1646
    %v6010 = vunpack.c.h.b16 %v1646
    %v6011 = vunpack.c.l.b16 %v1647
    %v6012 = vunpack.c.h.b16 %v1647
    %v6013 = vunpack.c.l.b16 %v1648
    %v6014 = vunpack.c.h.b16 %v1648
    %v6015 = vunpack.c.l.b16 %v1649
    %v6016 = vunpack.c.h.b16 %v1649
    %v6017 = vunpack.c.l.b16 %v1650
    %v6018 = vunpack.c.h.b16 %v1650
    %v6019 = vunpack.c.l.b16 %v1651
    %v6020 = vunpack.c.h.b16 %v1651
    %v6021 = vunpack.c.l.b16 %v1652
    %v6022 = vunpack.c.h.b16 %v1652
    %v6023 = vunpack.c.l.b16 %v1653
    %v6024 = vunpack.c.h.b16 %v1653
    %v6025 = vunpack.c.l.b16 %v1654
    %v6026 = vunpack.c.h.b16 %v1654
    %v6027 = vunpack.c.l.b16 %v1655
    %v6028 = vunpack.c.h.b16 %v1655
    %v6029 = vunpack.c.l.b16 %v1656
    %v6030 = vunpack.c.h.b16 %v1656
    %v6031 = vunpack.c.l.b16 %v1657
    %v6032 = vunpack.c.h.b16 %v1657
    %v6033 = vunpack.c.l.b16 %v1658
    %v6034 = vunpack.c.h.b16 %v1658
    %v6035 = vunpack.c.l.b16 %v1659
    %v6036 = vunpack.c.h.b16 %v1659
    %v6037 = vunpack.c.l.b16 %v1660
    %v6038 = vunpack.c.h.b16 %v1660
    %v6039 = vunpack.c.l.b16 %v1661
    %v6040 = vunpack.c.h.b16 %v1661
    %v6041 = vunpack.c.l.b16 %v1662
    %v6042 = vunpack.c.h.b16 %v1662
    %v6043 = vunpack.c.l.b16 %v1663
    %v6044 = vunpack.c.h.b16 %v1663
    %v6045 = vunpack.c.l.b16 %v1664
    %v6046 = vunpack.c.h.b16 %v1664
    %v6047 = vunpack.c.l.b16 %v1665
    %v6048 = vunpack.c.h.b16 %v1665
    %v6049 = vunpack.c.l.b16 %v1666
    %v6050 = vunpack.c.h.b16 %v1666
    %v6051 = vunpack.c.l.b16 %v1667
    %v6052 = vunpack.c.h.b16 %v1667
    %v6053 = vunpack.c.l.b16 %v1668
    %v6054 = vunpack.c.h.b16 %v1668
    %v6055 = vunpack.c.l.b16 %v1669
    %v6056 = vunpack.c.h.b16 %v1669
    %v6057 = vunpack.c.l.b16 %v1670
    %v6058 = vunpack.c.h.b16 %v1670
    %v6059 = vunpack.c.l.b16 %v1671
    %v6060 = vunpack.c.h.b16 %v1671
    %v6061 = vunpack.c.l.b16 %v1672
    %v6062 = vunpack.c.h.b16 %v1672
    %v6063 = vunpack.c.l.b16 %v1673
    %v6064 = vunpack.c.h.b16 %v1673
    %v6065 = vunpack.c.l.b16 %v1674
    %v6066 = vunpack.c.h.b16 %v1674
    %v6067 = vunpack.c.l.b16 %v1675
    %v6068 = vunpack.c.h.b16 %v1675
    %v6069 = vunpack.c.l.b16 %v1676
    %v6070 = vunpack.c.h.b16 %v1676
    %v6071 = vunpack.c.l.b16 %v1677
    %v6072 = vunpack.c.h.b16 %v1677
    %v6073 = vunpack.c.l.b16 %v1678
    %v6074 = vunpack.c.h.b16 %v1678
    %v6075 = vunpack.c.l.b16 %v1679
    %v6076 = vunpack.c.h.b16 %v1679
    %v6077 = vunpack.c.l.b16 %v1680
    %v6078 = vunpack.c.h.b16 %v1680
    %v6079 = vunpack.c.l.b16 %v1681
    %v6080 = vunpack.c.h.b16 %v1681
    %v6081 = vunpack.c.l.b16 %v1682
    %v6082 = vunpack.c.h.b16 %v1682
    %v6083 = vunpack.c.l.b16 %v1683
    %v6084 = vunpack.c.h.b16 %v1683
    %v6085 = vunpack.c.l.b16 %v1684
    %v6086 = vunpack.c.h.b16 %v1684
    %v6087 = vunpack.c.l.b16 %v1685
    %v6088 = vunpack.c.h.b16 %v1685
    %v6089 = vunpack.c.l.b16 %v1686
    %v6090 = vunpack.c.h.b16 %v1686
    %v6091 = vunpack.c.l.b16 %v1687
    %v6092 = vunpack.c.h.b16 %v1687
    %v6093 = vunpack.c.l.b16 %v1688
    %v6094 = vunpack.c.h.b16 %v1688
    %v6095 = vunpack.c.l.b16 %v1689
    %v6096 = vunpack.c.h.b16 %v1689
    %v6097 = vunpack.c.l.b16 %v1690
    %v6098 = vunpack.c.h.b16 %v1690
    %v6099 = vunpack.c.l.b16 %v1691
    %v6100 = vunpack.c.h.b16 %v1691
    %v6101 = vunpack.c.l.b16 %v1692
    %v6102 = vunpack.c.h.b16 %v1692
    %v6103 = vunpack.c.l.b16 %v1693
    %v6104 = vunpack.c.h.b16 %v1693
    %v6105 = vunpack.c.l.b16 %v1694
    %v6106 = vunpack.c.h.b16 %v1694
    %v6107 = vunpack.c.l.b16 %v1695
    %v6108 = vunpack.c.h.b16 %v1695
    %v6109 = vunpack.c.l.b16 %v1696
    %v6110 = vunpack.c.h.b16 %v1696
    %v6111 = vunpack.c.l.b16 %v1697
    %v6112 = vunpack.c.h.b16 %v1697
    %v6113 = vunpack.c.l.b16 %v1698
    %v6114 = vunpack.c.h.b16 %v1698
    %v6115 = vunpack.c.l.b16 %v1699
    %v6116 = vunpack.c.h.b16 %v1699
    %v6117 = vunpack.c.l.b16 %v1700
    %v6118 = vunpack.c.h.b16 %v1700
    %v6119 = vunpack.c.l.b16 %v1701
    %v6120 = vunpack.c.h.b16 %v1701
    %v6121 = vunpack.c.l.b16 %v1702
    %v6122 = vunpack.c.h.b16 %v1702
    %v6123 = vunpack.c.l.b16 %v1703
    %v6124 = vunpack.c.h.b16 %v1703
    %v6125 = vunpack.c.l.b16 %v1704
    %v6126 = vunpack.c.h.b16 %v1704
    %v6127 = vunpack.c.l.b16 %v1705
    %v6128 = vunpack.c.h.b16 %v1705
    %v6129 = vunpack.c.l.b16 %v1706
    %v6130 = vunpack.c.h.b16 %v1706
    %v6131 = vunpack.c.l.b16 %v1707
    %v6132 = vunpack.c.h.b16 %v1707
    %v6133 = vunpack.c.l.b16 %v1708
    %v6134 = vunpack.c.h.b16 %v1708
    %v6135 = vunpack.c.l.b16 %v1709
    %v6136 = vunpack.c.h.b16 %v1709
    %v6137 = vunpack.c.l.b16 %v1710
    %v6138 = vunpack.c.h.b16 %v1710
    %v6139 = vunpack.c.l.b16 %v1711
    %v6140 = vunpack.c.h.b16 %v1711
    %v6141 = vunpack.c.l.b16 %v1712
    %v6142 = vunpack.c.h.b16 %v1712
    %v6143 = vunpack.c.l.b16 %v1713
    %v6144 = vunpack.c.h.b16 %v1713
    %v6145 = vunpack.c.l.b16 %v1714
    %v6146 = vunpack.c.h.b16 %v1714
    %v6147 = vunpack.c.l.b16 %v1715
    %v6148 = vunpack.c.h.b16 %v1715
    %v6149 = vunpack.c.l.b16 %v1716
    %v6150 = vunpack.c.h.b16 %v1716
    %v6151 = vunpack.c.l.b16 %v1717
    %v6152 = vunpack.c.h.b16 %v1717
    %v6153 = vunpack.c.l.b16 %v1718
    %v6154 = vunpack.c.h.b16 %v1718
    %v6155 = vunpack.c.l.b16 %v1719
    %v6156 = vunpack.c.h.b16 %v1719
    %v6157 = vunpack.c.l.b16 %v1720
    %v6158 = vunpack.c.h.b16 %v1720
    %v6159 = vunpack.c.l.b16 %v1721
    %v6160 = vunpack.c.h.b16 %v1721
    %v6161 = vunpack.c.l.b16 %v1722
    %v6162 = vunpack.c.h.b16 %v1722
    %v6163 = vunpack.c.l.b16 %v1723
    %v6164 = vunpack.c.h.b16 %v1723
    %v6165 = vunpack.c.l.b16 %v1724
    %v6166 = vunpack.c.h.b16 %v1724
    %v6167 = vunpack.c.l.b16 %v1725
    %v6168 = vunpack.c.h.b16 %v1725
    %v6169 = vunpack.c.l.b16 %v1726
    %v6170 = vunpack.c.h.b16 %v1726
    %v6171 = vunpack.c.l.b16 %v1727
    %v6172 = vunpack.c.h.b16 %v1727
    %v6173 = vunpack.c.l.b16 %v1728
    %v6174 = vunpack.c.h.b16 %v1728
    %v6175 = vunpack.c.l.b16 %v1729
    %v6176 = vunpack.c.h.b16 %v1729
    %v6177 = vunpack.c.l.b16 %v1730
    %v6178 = vunpack.c.h.b16 %v1730
    %v6179 = vunpack.c.l.b16 %v1731
    %v6180 = vunpack.c.h.b16 %v1731
    %v6181 = vunpack.c.l.b16 %v1732
    %v6182 = vunpack.c.h.b16 %v1732
    %v6183 = vunpack.c.l.b16 %v1733
    %v6184 = vunpack.c.h.b16 %v1733
    %v6185 = vunpack.c.l.b16 %v1734
    %v6186 = vunpack.c.h.b16 %v1734
    %v6187 = vunpack.c.l.b16 %v1735
    %v6188 = vunpack.c.h.b16 %v1735
    %v6189 = vunpack.c.l.b16 %v1736
    %v6190 = vunpack.c.h.b16 %v1736
    %v6191 = vunpack.c.l.b16 %v1737
    %v6192 = vunpack.c.h.b16 %v1737
    %v6193 = vunpack.c.l.b16 %v1738
    %v6194 = vunpack.c.h.b16 %v1738
    %v6195 = vunpack.c.l.b16 %v1739
    %v6196 = vunpack.c.h.b16 %v1739
    %v6197 = vunpack.c.l.b16 %v1740
    %v6198 = vunpack.c.h.b16 %v1740
    %v6199 = vunpack.c.l.b16 %v1741
    %v6200 = vunpack.c.h.b16 %v1741
    %v6201 = vunpack.c.l.b16 %v1742
    %v6202 = vunpack.c.h.b16 %v1742
    %v6203 = vunpack.c.l.b16 %v1743
    %v6204 = vunpack.c.h.b16 %v1743
    %v6205 = vunpack.c.l.b16 %v1744
    %v6206 = vunpack.c.h.b16 %v1744
    %v6207 = vunpack.c.l.b16 %v1745
    %v6208 = vunpack.c.h.b16 %v1745
    %v6209 = vunpack.c.l.b16 %v1746
    %v6210 = vunpack.c.h.b16 %v1746
    %v6211 = vunpack.c.l.b16 %v1747
    %v6212 = vunpack.c.h.b16 %v1747
    %v6213 = vunpack.c.l.b16 %v1748
    %v6214 = vunpack.c.h.b16 %v1748
    %v6215 = vunpack.c.l.b16 %v1749
    %v6216 = vunpack.c.h.b16 %v1749
    %v6217 = vunpack.c.l.b16 %v1750
    %v6218 = vunpack.c.h.b16 %v1750
    %v6219 = vunpack.c.l.b16 %v1751
    %v6220 = vunpack.c.h.b16 %v1751
    %v6221 = vunpack.c.l.b16 %v1752
    %v6222 = vunpack.c.h.b16 %v1752
    %v6223 = vunpack.c.l.b16 %v1753
    %v6224 = vunpack.c.h.b16 %v1753
    %v6225 = vunpack.c.l.b16 %v1754
    %v6226 = vunpack.c.h.b16 %v1754
    %v6227 = vunpack.c.l.b16 %v1755
    %v6228 = vunpack.c.h.b16 %v1755
    %v6229 = vunpack.c.l.b16 %v1756
    %v6230 = vunpack.c.h.b16 %v1756
    %v6231 = vunpack.c.l.b16 %v1757
    %v6232 = vunpack.c.h.b16 %v1757
    %v6233 = vunpack.c.l.b16 %v1758
    %v6234 = vunpack.c.h.b16 %v1758
    %v6235 = vunpack.c.l.b16 %v1759
    %v6236 = vunpack.c.h.b16 %v1759
    %v6237 = vunpack.c.l.b16 %v1760
    %v6238 = vunpack.c.h.b16 %v1760
    %v6239 = vunpack.c.l.b16 %v1761
    %v6240 = vunpack.c.h.b16 %v1761
    %v6241 = vunpack.c.l.b16 %v1762
    %v6242 = vunpack.c.h.b16 %v1762
    %v6243 = vunpack.c.l.b16 %v1763
    %v6244 = vunpack.c.h.b16 %v1763
    %v6245 = vunpack.c.l.b16 %v1764
    %v6246 = vunpack.c.h.b16 %v1764
    %v6247 = vunpack.c.l.b16 %v1765
    %v6248 = vunpack.c.h.b16 %v1765
    %v6249 = vunpack.c.l.b16 %v1766
    %v6250 = vunpack.c.h.b16 %v1766
    %v6251 = vunpack.c.l.b16 %v1767
    %v6252 = vunpack.c.h.b16 %v1767
    %v6253 = vunpack.c.l.b16 %v1768
    %v6254 = vunpack.c.h.b16 %v1768
    %v6255 = vunpack.c.l.b16 %v1769
    %v6256 = vunpack.c.h.b16 %v1769
    %v6257 = vunpack.c.l.b16 %v1770
    %v6258 = vunpack.c.h.b16 %v1770
    %v6259 = vunpack.c.l.b16 %v1771
    %v6260 = vunpack.c.h.b16 %v1771
    %v6261 = vunpack.c.l.b16 %v1772
    %v6262 = vunpack.c.h.b16 %v1772
    %v6263 = vunpack.c.l.b16 %v1773
    %v6264 = vunpack.c.h.b16 %v1773
    %v6265 = vunpack.c.l.b16 %v1774
    %v6266 = vunpack.c.h.b16 %v1774
    %v6267 = vunpack.c.l.b16 %v1775
    %v6268 = vunpack.c.h.b16 %v1775
    %v6269 = vunpack.c.l.b16 %v1776
    %v6270 = vunpack.c.h.b16 %v1776
    %v6271 = vunpack.c.l.b16 %v1777
    %v6272 = vunpack.c.h.b16 %v1777
    %v6273 = vunpack.c.l.b16 %v1778
    %v6274 = vunpack.c.h.b16 %v1778
    %v6275 = vunpack.c.l.b16 %v1779
    %v6276 = vunpack.c.h.b16 %v1779
    %v6277 = vunpack.c.l.b16 %v1780
    %v6278 = vunpack.c.h.b16 %v1780
    %v6279 = vunpack.c.l.b16 %v1781
    %v6280 = vunpack.c.h.b16 %v1781
    %v6281 = vunpack.c.l.b16 %v1782
    %v6282 = vunpack.c.h.b16 %v1782
    %v6283 = vunpack.c.l.b16 %v1783
    %v6284 = vunpack.c.h.b16 %v1783
    %v6285 = vunpack.c.l.b16 %v1784
    %v6286 = vunpack.c.h.b16 %v1784
    %v6287 = vunpack.c.l.b16 %v1785
    %v6288 = vunpack.c.h.b16 %v1785
    %v6289 = vunpack.c.l.b16 %v1786
    %v6290 = vunpack.c.h.b16 %v1786
    %v6291 = vunpack.c.l.b16 %v1787
    %v6292 = vunpack.c.h.b16 %v1787
    %v6293 = vunpack.c.l.b16 %v1788
    %v6294 = vunpack.c.h.b16 %v1788
    %v6295 = vunpack.c.l.b16 %v1789
    %v6296 = vunpack.c.h.b16 %v1789
    %v6297 = vunpack.c.l.b16 %v1790
    %v6298 = vunpack.c.h.b16 %v1790
    %v6299 = vunpack.c.l.b16 %v1791
    %v6300 = vunpack.c.h.b16 %v1791
    %v6301 = vunpack.c.l.b16 %v1792
    %v6302 = vunpack.c.h.b16 %v1792
    %v6303 = vunpack.c.l.b16 %v1793
    %v6304 = vunpack.c.h.b16 %v1793
    %v6305 = vunpack.c.l.b16 %v1794
    %v6306 = vunpack.c.h.b16 %v1794
    %v6307 = vunpack.c.l.b16 %v1795
    %v6308 = vunpack.c.h.b16 %v1795
    %v6309 = vunpack.c.l.b16 %v1796
    %v6310 = vunpack.c.h.b16 %v1796
    %v6311 = vunpack.c.l.b16 %v1797
    %v6312 = vunpack.c.h.b16 %v1797
    %v6313 = vunpack.c.l.b16 %v1798
    %v6314 = vunpack.c.h.b16 %v1798
    %v6315 = vunpack.c.l.b16 %v1799
    %v6316 = vunpack.c.h.b16 %v1799
    %v6317 = vunpack.c.l.b16 %v1800
    %v6318 = vunpack.c.h.b16 %v1800
    %v6319 = vunpack.c.l.b16 %v1801
    %v6320 = vunpack.c.h.b16 %v1801
    %v6321 = vunpack.c.l.b16 %v1802
    %v6322 = vunpack.c.h.b16 %v1802
    %v6323 = vunpack.c.l.b16 %v1803
    %v6324 = vunpack.c.h.b16 %v1803
    %v6325 = vunpack.c.l.b16 %v1804
    %v6326 = vunpack.c.h.b16 %v1804
    %v6327 = vunpack.c.l.b16 %v1805
    %v6328 = vunpack.c.h.b16 %v1805
    %v6329 = vunpack.c.l.b16 %v1806
    %v6330 = vunpack.c.h.b16 %v1806
    %v6331 = vunpack.c.l.b16 %v1807
    %v6332 = vunpack.c.h.b16 %v1807
    %v6333 = vunpack.c.l.b16 %v1808
    %v6334 = vunpack.c.h.b16 %v1808
    %v6335 = vunpack.c.l.b16 %v1809
    %v6336 = vunpack.c.h.b16 %v1809
    %v6337 = vunpack.c.l.b16 %v1810
    %v6338 = vunpack.c.h.b16 %v1810
    %v6339 = vunpack.c.l.b16 %v1811
    %v6340 = vunpack.c.h.b16 %v1811
    %v6341 = vunpack.c.l.b16 %v1812
    %v6342 = vunpack.c.h.b16 %v1812
    %v6343 = vunpack.c.l.b16 %v1813
    %v6344 = vunpack.c.h.b16 %v1813
    %v6345 = vunpack.c.l.b16 %v1814
    %v6346 = vunpack.c.h.b16 %v1814
    %v6347 = vunpack.c.l.b16 %v1815
    %v6348 = vunpack.c.h.b16 %v1815
    %v6349 = vunpack.c.l.b16 %v1816
    %v6350 = vunpack.c.h.b16 %v1816
    %v6351 = vunpack.c.l.b16 %v1817
    %v6352 = vunpack.c.h.b16 %v1817
    %v6353 = vunpack.c.l.b16 %v1818
    %v6354 = vunpack.c.h.b16 %v1818
    %v6355 = vunpack.c.l.b16 %v1819
    %v6356 = vunpack.c.h.b16 %v1819
    %v6357 = vunpack.c.l.b16 %v1820
    %v6358 = vunpack.c.h.b16 %v1820
    %v6359 = vunpack.c.l.b16 %v1821
    %v6360 = vunpack.c.h.b16 %v1821
    %v6361 = vunpack.c.l.b16 %v1822
    %v6362 = vunpack.c.h.b16 %v1822
    %v6363 = vunpack.c.l.b16 %v1823
    %v6364 = vunpack.c.h.b16 %v1823
    %v6365 = vunpack.c.l.b16 %v1824
    %v6366 = vunpack.c.h.b16 %v1824
    %v6367 = vunpack.c.l.b16 %v1825
    %v6368 = vunpack.c.h.b16 %v1825
    %v6369 = vunpack.c.l.b16 %v1826
    %v6370 = vunpack.c.h.b16 %v1826
    %v6371 = vunpack.c.l.b16 %v1827
    %v6372 = vunpack.c.h.b16 %v1827
    %v6373 = vunpack.c.l.b16 %v1828
    %v6374 = vunpack.c.h.b16 %v1828
    %v6375 = vunpack.c.l.b16 %v1829
    %v6376 = vunpack.c.h.b16 %v1829
    %v6377 = vunpack.c.l.b16 %v1830
    %v6378 = vunpack.c.h.b16 %v1830
    %v6379 = vunpack.c.l.b16 %v1831
    %v6380 = vunpack.c.h.b16 %v1831
    %v6381 = vunpack.c.l.b16 %v1832
    %v6382 = vunpack.c.h.b16 %v1832
    %v6383 = vunpack.c.l.b16 %v1833
    %v6384 = vunpack.c.h.b16 %v1833
    %v6385 = vunpack.c.l.b16 %v1834
    %v6386 = vunpack.c.h.b16 %v1834
    %v6387 = vunpack.c.l.b16 %v1835
    %v6388 = vunpack.c.h.b16 %v1835
    %v6389 = vunpack.c.l.b16 %v1836
    %v6390 = vunpack.c.h.b16 %v1836
    %v6391 = vunpack.c.l.b16 %v1837
    %v6392 = vunpack.c.h.b16 %v1837
    %v6393 = vunpack.c.l.b16 %v1838
    %v6394 = vunpack.c.h.b16 %v1838
    %v6395 = vunpack.c.l.b16 %v1839
    %v6396 = vunpack.c.h.b16 %v1839
    %v6397 = vunpack.c.l.b16 %v1840
    %v6398 = vunpack.c.h.b16 %v1840
    %v6399 = vunpack.c.l.b16 %v1841
    %v6400 = vunpack.c.h.b16 %v1841
    %v6401 = vunpack.c.l.b16 %v1842
    %v6402 = vunpack.c.h.b16 %v1842
    %v6403 = vunpack.c.l.b16 %v1843
    %v6404 = vunpack.c.h.b16 %v1843
    %v6405 = vunpack.c.l.b16 %v1844
    %v6406 = vunpack.c.h.b16 %v1844
    %v6407 = vunpack.c.l.b16 %v1845
    %v6408 = vunpack.c.h.b16 %v1845
    %v6409 = vunpack.c.l.b16 %v1846
    %v6410 = vunpack.c.h.b16 %v1846
    %v6411 = vunpack.c.l.b16 %v1847
    %v6412 = vunpack.c.h.b16 %v1847
    %v6413 = vunpack.c.l.b16 %v1848
    %v6414 = vunpack.c.h.b16 %v1848
    %v6415 = vunpack.c.l.b16 %v1849
    %v6416 = vunpack.c.h.b16 %v1849
    %v6417 = vunpack.c.l.b16 %v1850
    %v6418 = vunpack.c.h.b16 %v1850
    %v6419 = vunpack.c.l.b16 %v1851
    %v6420 = vunpack.c.h.b16 %v1851
    %v6421 = vunpack.c.l.b16 %v1852
    %v6422 = vunpack.c.h.b16 %v1852
    %v6423 = vunpack.c.l.b16 %v1853
    %v6424 = vunpack.c.h.b16 %v1853
    %v6425 = vunpack.c.l.b16 %v1854
    %v6426 = vunpack.c.h.b16 %v1854
    %v6427 = vunpack.c.l.b16 %v1855
    %v6428 = vunpack.c.h.b16 %v1855
    %v6429 = vunpack.c.l.b16 %v1856
    %v6430 = vunpack.c.h.b16 %v1856
    %v6431 = vunpack.c.l.b16 %v1857
    %v6432 = vunpack.c.h.b16 %v1857
    %v6433 = vunpack.c.l.b16 %v1858
    %v6434 = vunpack.c.h.b16 %v1858
    %v6435 = vunpack.c.l.b16 %v1859
    %v6436 = vunpack.c.h.b16 %v1859
    %v6437 = vunpack.c.l.b16 %v1860
    %v6438 = vunpack.c.h.b16 %v1860
    %v6439 = vunpack.c.l.b16 %v1861
    %v6440 = vunpack.c.h.b16 %v1861
    %v6441 = vunpack.c.l.b16 %v1862
    %v6442 = vunpack.c.h.b16 %v1862
    %v6443 = vunpack.c.l.b16 %v1863
    %v6444 = vunpack.c.h.b16 %v1863
    %v6445 = vunpack.c.l.b16 %v1864
    %v6446 = vunpack.c.h.b16 %v1864
    %v6447 = vunpack.c.l.b16 %v1865
    %v6448 = vunpack.c.h.b16 %v1865
    %v6449 = vunpack.c.l.b16 %v1866
    %v6450 = vunpack.c.h.b16 %v1866
    %v6451 = vunpack.c.l.b16 %v1867
    %v6452 = vunpack.c.h.b16 %v1867
    %v6453 = vunpack.c.l.b16 %v1868
    %v6454 = vunpack.c.h.b16 %v1868
    %v6455 = vunpack.c.l.b16 %v1869
    %v6456 = vunpack.c.h.b16 %v1869
    %v6457 = vunpack.c.l.b16 %v1870
    %v6458 = vunpack.c.h.b16 %v1870
    %v6459 = vunpack.c.l.b16 %v1871
    %v6460 = vunpack.c.h.b16 %v1871
    %v6461 = vunpack.c.l.b16 %v1872
    %v6462 = vunpack.c.h.b16 %v1872
    %v6463 = vunpack.c.l.b16 %v1873
    %v6464 = vunpack.c.h.b16 %v1873
    %v6465 = vunpack.c.l.b16 %v1874
    %v6466 = vunpack.c.h.b16 %v1874
    %v6467 = vunpack.c.l.b16 %v1875
    %v6468 = vunpack.c.h.b16 %v1875
    %v6469 = vunpack.c.l.b16 %v1876
    %v6470 = vunpack.c.h.b16 %v1876
    %v6471 = vunpack.c.l.b16 %v1877
    %v6472 = vunpack.c.h.b16 %v1877
    %v6473 = vunpack.c.l.b16 %v1878
    %v6474 = vunpack.c.h.b16 %v1878
    %v6475 = vunpack.c.l.b16 %v1879
    %v6476 = vunpack.c.h.b16 %v1879
    %v6477 = vunpack.c.l.b16 %v1880
    %v6478 = vunpack.c.h.b16 %v1880
    %v6479 = vunpack.c.l.b16 %v1881
    %v6480 = vunpack.c.h.b16 %v1881
    %v6481 = vunpack.c.l.b16 %v1882
    %v6482 = vunpack.c.h.b16 %v1882
    %v6483 = vunpack.c.l.b16 %v1883
    %v6484 = vunpack.c.h.b16 %v1883
    %v6485 = vunpack.c.l.b16 %v1884
    %v6486 = vunpack.c.h.b16 %v1884
    %v6487 = vunpack.c.l.b16 %v1885
    %v6488 = vunpack.c.h.b16 %v1885
    %v6489 = vunpack.c.l.b16 %v1886
    %v6490 = vunpack.c.h.b16 %v1886
    %v6491 = vunpack.c.l.b16 %v1887
    %v6492 = vunpack.c.h.b16 %v1887
    %v6493 = vunpack.c.l.b16 %v1888
    %v6494 = vunpack.c.h.b16 %v1888
    %v6495 = vunpack.c.l.b16 %v1889
    %v6496 = vunpack.c.h.b16 %v1889
    %v6497 = vunpack.c.l.b16 %v1890
    %v6498 = vunpack.c.h.b16 %v1890
    %v6499 = vunpack.c.l.b16 %v1891
    %v6500 = vunpack.c.h.b16 %v1891
    %v6501 = vunpack.c.l.b16 %v1892
    %v6502 = vunpack.c.h.b16 %v1892
    %v6503 = vunpack.c.l.b16 %v1893
    %v6504 = vunpack.c.h.b16 %v1893
    %v6505 = vunpack.c.l.b16 %v1894
    %v6506 = vunpack.c.h.b16 %v1894
    %v6507 = vunpack.c.l.b16 %v1895
    %v6508 = vunpack.c.h.b16 %v1895
    %v6509 = vunpack.c.l.b16 %v1896
    %v6510 = vunpack.c.h.b16 %v1896
    %v6511 = vunpack.c.l.b16 %v1897
    %v6512 = vunpack.c.h.b16 %v1897
    %v6513 = vunpack.c.l.b16 %v1898
    %v6514 = vunpack.c.h.b16 %v1898
    %v6515 = vunpack.c.l.b16 %v1899
    %v6516 = vunpack.c.h.b16 %v1899
    %v6517 = vunpack.c.l.b16 %v1900
    %v6518 = vunpack.c.h.b16 %v1900
    %v6519 = vunpack.c.l.b16 %v1901
    %v6520 = vunpack.c.h.b16 %v1901
    %v6521 = vunpack.c.l.b16 %v1902
    %v6522 = vunpack.c.h.b16 %v1902
    %v6523 = vunpack.c.l.b16 %v1903
    %v6524 = vunpack.c.h.b16 %v1903
    %v6525 = vunpack.c.l.b16 %v1904
    %v6526 = vunpack.c.h.b16 %v1904
    %v6527 = vunpack.c.l.b16 %v1905
    %v6528 = vunpack.c.h.b16 %v1905
    %v6529 = vunpack.c.l.b16 %v1906
    %v6530 = vunpack.c.h.b16 %v1906
    %v6531 = vunpack.c.l.b16 %v1907
    %v6532 = vunpack.c.h.b16 %v1907
    %v6533 = vunpack.c.l.b16 %v1908
    %v6534 = vunpack.c.h.b16 %v1908
    %v6535 = vunpack.c.l.b16 %v1909
    %v6536 = vunpack.c.h.b16 %v1909
    %v6537 = vunpack.c.l.b16 %v1910
    %v6538 = vunpack.c.h.b16 %v1910
    %v6539 = vunpack.c.l.b16 %v1911
    %v6540 = vunpack.c.h.b16 %v1911
    %v6541 = vunpack.c.l.b16 %v1912
    %v6542 = vunpack.c.h.b16 %v1912
    %v6543 = vunpack.c.l.b16 %v1913
    %v6544 = vunpack.c.h.b16 %v1913
    %v6545 = vunpack.c.l.b16 %v1914
    %v6546 = vunpack.c.h.b16 %v1914
    %v6547 = vunpack.c.l.b16 %v1915
    %v6548 = vunpack.c.h.b16 %v1915
    %v6549 = vunpack.c.l.b16 %v1916
    %v6550 = vunpack.c.h.b16 %v1916
    %v6551 = vunpack.c.l.b16 %v1917
    %v6552 = vunpack.c.h.b16 %v1917
    %v6553 = vunpack.c.l.b16 %v1918
    %v6554 = vunpack.c.h.b16 %v1918
    %v6555 = vunpack.c.l.b16 %v1919
    %v6556 = vunpack.c.h.b16 %v1919
    %v6557 = vunpack.c.l.b16 %v1920
    %v6558 = vunpack.c.h.b16 %v1920
    %v6559 = vunpack.c.l.b16 %v1921
    %v6560 = vunpack.c.h.b16 %v1921
    %v6561 = vunpack.c.l.b16 %v1922
    %v6562 = vunpack.c.h.b16 %v1922
    %v6563 = vunpack.c.l.b16 %v1923
    %v6564 = vunpack.c.h.b16 %v1923
    %v6565 = vunpack.c.l.b16 %v1924
    %v6566 = vunpack.c.h.b16 %v1924
    %v6567 = vunpack.c.l.b16 %v1925
    %v6568 = vunpack.c.h.b16 %v1925
    %v6569 = vunpack.c.l.b16 %v1926
    %v6570 = vunpack.c.h.b16 %v1926
    %v6571 = vpack.c.b16 %v3515, %v3499
    %v6572 = vpack.c.b16 %v3516, %v3500
    %v6573 = vpack.c.b16 %v3517, %v3501
    %v6574 = vpack.c.b16 %v3518, %v3502
    %v6575 = vpack.c.b16 %v3519, %v3503
    %v6576 = vpack.c.b16 %v3520, %v3504
    %v6577 = vpack.c.b16 %v3521, %v3505
    %v6578 = vpack.c.b16 %v3522, %v3506
    %v6579 = vpack.c.b16 %v3523, %v3507
    %v6580 = vpack.c.b16 %v3524, %v3508
    %v6581 = vpack.c.b16 %v3525, %v3509
    %v6582 = vpack.c.b16 %v3526, %v3510
    %v6583 = vpack.c.b16 %v3527, %v3511
    %v6584 = vpack.c.b16 %v3528, %v3512
    %v6585 = vpack.c.b16 %v3529, %v3513
    %v6586 = vpack.c.b16 %v3530, %v3514
    %v6587 = vpack.c.b16 %v3547, %v3531
    %v6588 = vpack.c.b16 %v3548, %v3532
    %v6589 = vpack.c.b16 %v3549, %v3533
    %v6590 = vpack.c.b16 %v3550, %v3534
    %v6591 = vpack.c.b16 %v3551, %v3535
    %v6592 = vpack.c.b16 %v3552, %v3536
    %v6593 = vpack.c.b16 %v3553, %v3537
    %v6594 = vpack.c.b16 %v3554, %v3538
    %v6595 = vpack.c.b16 %v3555, %v3539
    %v6596 = vpack.c.b16 %v3556, %v3540
    %v6597 = vpack.c.b16 %v3557, %v3541
    %v6598 = vpack.c.b16 %v3558, %v3542
    %v6599 = vpack.c.b16 %v3559, %v3543
    %v6600 = vpack.c.b16 %v3560, %v3544
    %v6601 = vpack.c.b16 %v3561, %v3545
    %v6602 = vpack.c.b16 %v3562, %v3546
    %v6603 = vpack.c.b16 %v3579, %v3563
    %v6604 = vpack.c.b16 %v3580, %v3564
    %v6605 = vpack.c.b16 %v3581, %v3565
    %v6606 = vpack.c.b16 %v3582, %v3566
    %v6607 = vpack.c.b16 %v3583, %v3567
    %v6608 = vpack.c.b16 %v3584, %v3568
    %v6609 = vpack.c.b16 %v3585, %v3569
    %v6610 = vpack.c.b16 %v3586, %v3570
    %v6611 = vpack.c.b16 %v3587, %v3571
    %v6612 = vpack.c.b16 %v3588, %v3572
    %v6613 = vpack.c.b16 %v3589, %v3573
    %v6614 = vpack.c.b16 %v3590, %v3574
    %v6615 = vpack.c.b16 %v3591, %v3575
    %v6616 = vpack.c.b16 %v3592, %v3576
    %v6617 = vpack.c.b16 %v3593, %v3577
    %v6618 = vpack.c.b16 %v3594, %v3578
    %v6619 = vpack.c.b16 %v3611, %v3595
    %v6620 = vpack.c.b16 %v3612, %v3596
    %v6621 = vpack.c.b16 %v3613, %v3597
    %v6622 = vpack.c.b16 %v3614, %v3598
    %v6623 = vpack.c.b16 %v3615, %v3599
    %v6624 = vpack.c.b16 %v3616, %v3600
    %v6625 = vpack.c.b16 %v3617, %v3601
    %v6626 = vpack.c.b16 %v3618, %v3602
    %v6627 = vpack.c.b16 %v3619, %v3603
    %v6628 = vpack.c.b16 %v3620, %v3604
    %v6629 = vpack.c.b16 %v3621, %v3605
    %v6630 = vpack.c.b16 %v3622, %v3606
    %v6631 = vpack.c.b16 %v3623, %v3607
    %v6632 = vpack.c.b16 %v3624, %v3608
    %v6633 = vpack.c.b16 %v3625, %v3609
    %v6634 = vpack.c.b16 %v3626, %v3610
    %v6635 = vpack.c.b16 %v3643, %v3627
    %v6636 = vpack.c.b16 %v3644, %v3628
    %v6637 = vpack.c.b16 %v3645, %v3629
    %v6638 = vpack.c.b16 %v3646, %v3630
    %v6639 = vpack.c.b16 %v3647, %v3631
    %v6640 = vpack.c.b16 %v3648, %v3632
    %v6641 = vpack.c.b16 %v3649, %v3633
    %v6642 = vpack.c.b16 %v3650, %v3634
    %v6643 = vpack.c.b16 %v3651, %v3635
    %v6644 = vpack.c.b16 %v3652, %v3636
    %v6645 = vpack.c.b16 %v3653, %v3637
    %v6646 = vpack.c.b16 %v3654, %v3638
    %v6647 = vpack.c.b16 %v3655, %v3639
    %v6648 = vpack.c.b16 %v3656, %v3640
    %v6649 = vpack.c.b16 %v3657, %v3641
    %v6650 = vpack.c.b16 %v3658, %v3642
    %v6651 = vpack.c.b16 %v3675, %v3659
    %v6652 = vpack.c.b16 %v3676, %v3660
    %v6653 = vpack.c.b16 %v3677, %v3661
    %v6654 = vpack.c.b16 %v3678, %v3662
    %v6655 = vpack.c.b16 %v3679, %v3663
    %v6656 = vpack.c.b16 %v3680, %v3664
    %v6657 = vpack.c.b16 %v3681, %v3665
    %v6658 = vpack.c.b16 %v3682, %v3666
    %v6659 = vpack.c.b16 %v3683, %v3667
    %v6660 = vpack.c.b16 %v3684, %v3668
    %v6661 = vpack.c.b16 %v3685, %v3669
    %v6662 = vpack.c.b16 %v3686, %v3670
    %v6663 = vpack.c.b16 %v3687, %v3671
    %v6664 = vpack.c.b16 %v3688, %v3672
    %v6665 = vpack.c.b16 %v3689, %v3673
    %v6666 = vpack.c.b16 %v3690, %v3674
    %v6667 = vpack.c.b16 %v3707, %v3691
    %v6668 = vpack.c.b16 %v3708, %v3692
    %v6669 = vpack.c.b16 %v3709, %v3693
    %v6670 = vpack.c.b16 %v3710, %v3694
    %v6671 = vpack.c.b16 %v3711, %v3695
    %v6672 = vpack.c.b16 %v3712, %v3696
    %v6673 = vpack.c.b16 %v3713, %v3697
    %v6674 = vpack.c.b16 %v3714, %v3698
    %v6675 = vpack.c.b16 %v3715, %v3699
    %v6676 = vpack.c.b16 %v3716, %v3700
    %v6677 = vpack.c.b16 %v3717, %v3701
    %v6678 = vpack.c.b16 %v3718, %v3702
    %v6679 = vpack.c.b16 %v3719, %v3703
    %v6680 = vpack.c.b16 %v3720, %v3704
    %v6681 = vpack.c.b16 %v3721, %v3705
    %v6682 = vpack.c.b16 %v3722, %v3706
    %v6683 = vpack.c.b16 %v3739, %v3723
    %v6684 = vpack.c.b16 %v3740, %v3724
    %v6685 = vpack.c.b16 %v3741, %v3725
    %v6686 = vpack.c.b16 %v3742, %v3726
    %v6687 = vpack.c.b16 %v3743, %v3727
    %v6688 = vpack.c.b16 %v3744, %v3728
    %v6689 = vpack.c.b16 %v3745, %v3729
    %v6690 = vpack.c.b16 %v3746, %v3730
    %v6691 = vpack.c.b16 %v3747, %v3731
    %v6692 = vpack.c.b16 %v3748, %v3732
    %v6693 = vpack.c.b16 %v3749, %v3733
    %v6694 = vpack.c.b16 %v3750, %v3734
    %v6695 = vpack.c.b16 %v3751, %v3735
    %v6696 = vpack.c.b16 %v3752, %v3736
    %v6697 = vpack.c.b16 %v3753, %v3737
    %v6698 = vpack.c.b16 %v3754, %v3738
    %v6699 = vpack.c.b16 %v3771, %v3755
    %v6700 = vpack.c.b16 %v3772, %v3756
    %v6701 = vpack.c.b16 %v3773, %v3757
    %v6702 = vpack.c.b16 %v3774, %v3758
    %v6703 = vpack.c.b16 %v3775, %v3759
    %v6704 = vpack.c.b16 %v3776, %v3760
    %v6705 = vpack.c.b16 %v3777, %v3761
    %v6706 = vpack.c.b16 %v3778, %v3762
    %v6707 = vpack.c.b16 %v3779, %v3763
    %v6708 = vpack.c.b16 %v3780, %v3764
    %v6709 = vpack.c.b16 %v3781, %v3765
    %v6710 = vpack.c.b16 %v3782, %v3766
    %v6711 = vpack.c.b16 %v3783, %v3767
    %v6712 = vpack.c.b16 %v3784, %v3768
    %v6713 = vpack.c.b16 %v3785, %v3769
    %v6714 = vpack.c.b16 %v3786, %v3770
    %v6715 = vpack.c.b16 %v3803, %v3787
    %v6716 = vpack.c.b16 %v3804, %v3788
    %v6717 = vpack.c.b16 %v3805, %v3789
    %v6718 = vpack.c.b16 %v3806, %v3790
    %v6719 = vpack.c.b16 %v3807, %v3791
    %v6720 = vpack.c.b16 %v3808, %v3792
    %v6721 = vpack.c.b16 %v3809, %v3793
    %v6722 = vpack.c.b16 %v3810, %v3794
    %v6723 = vpack.c.b16 %v3811, %v3795
    %v6724 = vpack.c.b16 %v3812, %v3796
    %v6725 = vpack.c.b16 %v3813, %v3797
    %v6726 = vpack.c.b16 %v3814, %v3798
    %v6727 = vpack.c.b16 %v3815, %v3799
    %v6728 = vpack.c.b16 %v3816, %v3800
    %v6729 = vpack.c.b16 %v3817, %v3801
    %v6730 = vpack.c.b16 %v3818, %v3802
    %v6731 = vpack.c.b16 %v3835, %v3819
    %v6732 = vpack.c.b16 %v3836, %v3820
    %v6733 = vpack.c.b16 %v3837, %v3821
    %v6734 = vpack.c.b16 %v3838, %v3822
    %v6735 = vpack.c.b16 %v3839, %v3823
    %v6736 = vpack.c.b16 %v3840, %v3824
    %v6737 = vpack.c.b16 %v3841, %v3825
    %v6738 = vpack.c.b16 %v3842, %v3826
    %v6739 = vpack.c.b16 %v3843, %v3827
    %v6740 = vpack.c.b16 %v3844, %v3828
    %v6741 = vpack.c.b16 %v3845, %v3829
    %v6742 = vpack.c.b16 %v3846, %v3830
    %v6743 = vpack.c.b16 %v3847, %v3831
    %v6744 = vpack.c.b16 %v3848, %v3832
    %v6745 = vpack.c.b16 %v3849, %v3833
    %v6746 = vpack.c.b16 %v3850, %v3834
    %v6747 = vpack.c.b16 %v3867, %v3851
    %v6748 = vpack.c.b16 %v3868, %v3852
    %v6749 = vpack.c.b16 %v3869, %v3853
    %v6750 = vpack.c.b16 %v3870, %v3854
    %v6751 = vpack.c.b16 %v3871, %v3855
    %v6752 = vpack.c.b16 %v3872, %v3856
    %v6753 = vpack.c.b16 %v3873, %v3857
    %v6754 = vpack.c.b16 %v3874, %v3858
    %v6755 = vpack.c.b16 %v3875, %v3859
    %v6756 = vpack.c.b16 %v3876, %v3860
    %v6757 = vpack.c.b16 %v3877, %v3861
    %v6758 = vpack.c.b16 %v3878, %v3862
    %v6759 = vpack.c.b16 %v3879, %v3863
    %v6760 = vpack.c.b16 %v3880, %v3864
    %v6761 = vpack.c.b16 %v3881, %v3865
    %v6762 = vpack.c.b16 %v3882, %v3866
    %v6763 = vpack.c.b16 %v3899, %v3883
    %v6764 = vpack.c.b16 %v3900, %v3884
    %v6765 = vpack.c.b16 %v3901, %v3885
    %v6766 = vpack.c.b16 %v3902, %v3886
    %v6767 = vpack.c.b16 %v3903, %v3887
    %v6768 = vpack.c.b16 %v3904, %v3888
    %v6769 = vpack.c.b16 %v3905, %v3889
    %v6770 = vpack.c.b16 %v3906, %v3890
    %v6771 = vpack.c.b16 %v3907, %v3891
    %v6772 = vpack.c.b16 %v3908, %v3892
    %v6773 = vpack.c.b16 %v3909, %v3893
    %v6774 = vpack.c.b16 %v3910, %v3894
    %v6775 = vpack.c.b16 %v3911, %v3895
    %v6776 = vpack.c.b16 %v3912, %v3896
    %v6777 = vpack.c.b16 %v3913, %v3897
    %v6778 = vpack.c.b16 %v3914, %v3898
    %v6779 = vpack.c.b16 %v3931, %v3915
    %v6780 = vpack.c.b16 %v3932, %v3916
    %v6781 = vpack.c.b16 %v3933, %v3917
    %v6782 = vpack.c.b16 %v3934, %v3918
    %v6783 = vpack.c.b16 %v3935, %v3919
    %v6784 = vpack.c.b16 %v3936, %v3920
    %v6785 = vpack.c.b16 %v3937, %v3921
    %v6786 = vpack.c.b16 %v3938, %v3922
    %v6787 = vpack.c.b16 %v3939, %v3923
    %v6788 = vpack.c.b16 %v3940, %v3924
    %v6789 = vpack.c.b16 %v3941, %v3925
    %v6790 = vpack.c.b16 %v3942, %v3926
    %v6791 = vpack.c.b16 %v3943, %v3927
    %v6792 = vpack.c.b16 %v3944, %v3928
    %v6793 = vpack.c.b16 %v3945, %v3929
    %v6794 = vpack.c.b16 %v3946, %v3930
    %v6795 = vpack.c.b16 %v3963, %v3947
    %v6796 = vpack.c.b16 %v3964, %v3948
    %v6797 = vpack.c.b16 %v3965, %v3949
    %v6798 = vpack.c.b16 %v3966, %v3950
    %v6799 = vpack.c.b16 %v3967, %v3951
    %v6800 = vpack.c.b16 %v3968, %v3952
    %v6801 = vpack.c.b16 %v3969, %v3953
    %v6802 = vpack.c.b16 %v3970, %v3954
    %v6803 = vpack.c.b16 %v3971, %v3955
    %v6804 = vpack.c.b16 %v3972, %v3956
    %v6805 = vpack.c.b16 %v3973, %v3957
    %v6806 = vpack.c.b16 %v3974, %v3958
    %v6807 = vpack.c.b16 %v3975, %v3959
    %v6808 = vpack.c.b16 %v3976, %v3960
    %v6809 = vpack.c.b16 %v3977, %v3961
    %v6810 = vpack.c.b16 %v3978, %v3962
    %v6811 = vpack.c.b16 %v3995, %v3979
    %v6812 = vpack.c.b16 %v3996, %v3980
    %v6813 = vpack.c.b16 %v3997, %v3981
    %v6814 = vpack.c.b16 %v3998, %v3982
    %v6815 = vpack.c.b16 %v3999, %v3983
    %v6816 = vpack.c.b16 %v4000, %v3984
    %v6817 = vpack.c.b16 %v4001, %v3985
    %v6818 = vpack.c.b16 %v4002, %v3986
    %v6819 = vpack.c.b16 %v4003, %v3987
    %v6820 = vpack.c.b16 %v4004, %v3988
    %v6821 = vpack.c.b16 %v4005, %v3989
    %v6822 = vpack.c.b16 %v4006, %v3990
    %v6823 = vpack.c.b16 %v4007, %v3991
    %v6824 = vpack.c.b16 %v4008, %v3992
    %v6825 = vpack.c.b16 %v4009, %v3993
    %v6826 = vpack.c.b16 %v4010, %v3994
    %v6827 = vpack.c.b16 %v4027, %v4011
    %v6828 = vpack.c.b16 %v4028, %v4012
    %v6829 = vpack.c.b16 %v4029, %v4013
    %v6830 = vpack.c.b16 %v4030, %v4014
    %v6831 = vpack.c.b16 %v4031, %v4015
    %v6832 = vpack.c.b16 %v4032, %v4016
    %v6833 = vpack.c.b16 %v4033, %v4017
    %v6834 = vpack.c.b16 %v4034, %v4018
    %v6835 = vpack.c.b16 %v4035, %v4019
    %v6836 = vpack.c.b16 %v4036, %v4020
    %v6837 = vpack.c.b16 %v4037, %v4021
    %v6838 = vpack.c.b16 %v4038, %v4022
    %v6839 = vpack.c.b16 %v4039, %v4023
    %v6840 = vpack.c.b16 %v4040, %v4024
    %v6841 = vpack.c.b16 %v4041, %v4025
    %v6842 = vpack.c.b16 %v4042, %v4026
    %v6843 = vpack.c.b16 %v4059, %v4043
    %v6844 = vpack.c.b16 %v4060, %v4044
    %v6845 = vpack.c.b16 %v4061, %v4045
    %v6846 = vpack.c.b16 %v4062, %v4046
    %v6847 = vpack.c.b16 %v4063, %v4047
    %v6848 = vpack.c.b16 %v4064, %v4048
    %v6849 = vpack.c.b16 %v4065, %v4049
    %v6850 = vpack.c.b16 %v4066, %v4050
    %v6851 = vpack.c.b16 %v4067, %v4051
    %v6852 = vpack.c.b16 %v4068, %v4052
    %v6853 = vpack.c.b16 %v4069, %v4053
    %v6854 = vpack.c.b16 %v4070, %v4054
    %v6855 = vpack.c.b16 %v4071, %v4055
    %v6856 = vpack.c.b16 %v4072, %v4056
    %v6857 = vpack.c.b16 %v4073, %v4057
    %v6858 = vpack.c.b16 %v4074, %v4058
    %v6859 = vpack.c.b16 %v4091, %v4075
    %v6860 = vpack.c.b16 %v4092, %v4076
    %v6861 = vpack.c.b16 %v4093, %v4077
    %v6862 = vpack.c.b16 %v4094, %v4078
    %v6863 = vpack.c.b16 %v4095, %v4079
    %v6864 = vpack.c.b16 %v4096, %v4080
    %v6865 = vpack.c.b16 %v4097, %v4081
    %v6866 = vpack.c.b16 %v4098, %v4082
    %v6867 = vpack.c.b16 %v4099, %v4083
    %v6868 = vpack.c.b16 %v4100, %v4084
    %v6869 = vpack.c.b16 %v4101, %v4085
    %v6870 = vpack.c.b16 %v4102, %v4086
    %v6871 = vpack.c.b16 %v4103, %v4087
    %v6872 = vpack.c.b16 %v4104, %v4088
    %v6873 = vpack.c.b16 %v4105, %v4089
    %v6874 = vpack.c.b16 %v4106, %v4090
    %v6875 = vpack.c.b16 %v4123, %v4107
    %v6876 = vpack.c.b16 %v4124, %v4108
    %v6877 = vpack.c.b16 %v4125, %v4109
    %v6878 = vpack.c.b16 %v4126, %v4110
    %v6879 = vpack.c.b16 %v4127, %v4111
    %v6880 = vpack.c.b16 %v4128, %v4112
    %v6881 = vpack.c.b16 %v4129, %v4113
    %v6882 = vpack.c.b16 %v4130, %v4114
    %v6883 = vpack.c.b16 %v4131, %v4115
    %v6884 = vpack.c.b16 %v4132, %v4116
    %v6885 = vpack.c.b16 %v4133, %v4117
    %v6886 = vpack.c.b16 %v4134, %v4118
    %v6887 = vpack.c.b16 %v4135, %v4119
    %v6888 = vpack.c.b16 %v4136, %v4120
    %v6889 = vpack.c.b16 %v4137, %v4121
    %v6890 = vpack.c.b16 %v4138, %v4122
    %v6891 = vpack.c.b16 %v4155, %v4139
    %v6892 = vpack.c.b16 %v4156, %v4140
    %v6893 = vpack.c.b16 %v4157, %v4141
    %v6894 = vpack.c.b16 %v4158, %v4142
    %v6895 = vpack.c.b16 %v4159, %v4143
    %v6896 = vpack.c.b16 %v4160, %v4144
    %v6897 = vpack.c.b16 %v4161, %v4145
    %v6898 = vpack.c.b16 %v4162, %v4146
    %v6899 = vpack.c.b16 %v4163, %v4147
    %v6900 = vpack.c.b16 %v4164, %v4148
    %v6901 = vpack.c.b16 %v4165, %v4149
    %v6902 = vpack.c.b16 %v4166, %v4150
    %v6903 = vpack.c.b16 %v4167, %v4151
    %v6904 = vpack.c.b16 %v4168, %v4152
    %v6905 = vpack.c.b16 %v4169, %v4153
    %v6906 = vpack.c.b16 %v4170, %v4154
    %v6907 = vpack.c.b16 %v4187, %v4171
    %v6908 = vpack.c.b16 %v4188, %v4172
    %v6909 = vpack.c.b16 %v4189, %v4173
    %v6910 = vpack.c.b16 %v4190, %v4174
    %v6911 = vpack.c.b16 %v4191, %v4175
    %v6912 = vpack.c.b16 %v4192, %v4176
    %v6913 = vpack.c.b16 %v4193, %v4177
    %v6914 = vpack.c.b16 %v4194, %v4178
    %v6915 = vpack.c.b16 %v4195, %v4179
    %v6916 = vpack.c.b16 %v4196, %v4180
    %v6917 = vpack.c.b16 %v4197, %v4181
    %v6918 = vpack.c.b16 %v4198, %v4182
    %v6919 = vpack.c.b16 %v4199, %v4183
    %v6920 = vpack.c.b16 %v4200, %v4184
    %v6921 = vpack.c.b16 %v4201, %v4185
    %v6922 = vpack.c.b16 %v4202, %v4186
    %v6923 = vpack.c.b16 %v4219, %v4203
    %v6924 = vpack.c.b16 %v4220, %v4204
    %v6925 = vpack.c.b16 %v4221, %v4205
    %v6926 = vpack.c.b16 %v4222, %v4206
    %v6927 = vpack.c.b16 %v4223, %v4207
    %v6928 = vpack.c.b16 %v4224, %v4208
    %v6929 = vpack.c.b16 %v4225, %v4209
    %v6930 = vpack.c.b16 %v4226, %v4210
    %v6931 = vpack.c.b16 %v4227, %v4211
    %v6932 = vpack.c.b16 %v4228, %v4212
    %v6933 = vpack.c.b16 %v4229, %v4213
    %v6934 = vpack.c.b16 %v4230, %v4214
    %v6935 = vpack.c.b16 %v4231, %v4215
    %v6936 = vpack.c.b16 %v4232, %v4216
    %v6937 = vpack.c.b16 %v4233, %v4217
    %v6938 = vpack.c.b16 %v4234, %v4218
    %v6939 = vpack.c.b16 %v4251, %v4235
    %v6940 = vpack.c.b16 %v4252, %v4236
    %v6941 = vpack.c.b16 %v4253, %v4237
    %v6942 = vpack.c.b16 %v4254, %v4238
    %v6943 = vpack.c.b16 %v4255, %v4239
    %v6944 = vpack.c.b16 %v4256, %v4240
    %v6945 = vpack.c.b16 %v4257, %v4241
    %v6946 = vpack.c.b16 %v4258, %v4242
    %v6947 = vpack.c.b16 %v4259, %v4243
    %v6948 = vpack.c.b16 %v4260, %v4244
    %v6949 = vpack.c.b16 %v4261, %v4245
    %v6950 = vpack.c.b16 %v4262, %v4246
    %v6951 = vpack.c.b16 %v4263, %v4247
    %v6952 = vpack.c.b16 %v4264, %v4248
    %v6953 = vpack.c.b16 %v4265, %v4249
    %v6954 = vpack.c.b16 %v4266, %v4250
    %v6955 = vpack.c.b16 %v4283, %v4267
    %v6956 = vpack.c.b16 %v4284, %v4268
    %v6957 = vpack.c.b16 %v4285, %v4269
    %v6958 = vpack.c.b16 %v4286, %v4270
    %v6959 = vpack.c.b16 %v4287, %v4271
    %v6960 = vpack.c.b16 %v4288, %v4272
    %v6961 = vpack.c.b16 %v4289, %v4273
    %v6962 = vpack.c.b16 %v4290, %v4274
    %v6963 = vpack.c.b16 %v4291, %v4275
    %v6964 = vpack.c.b16 %v4292, %v4276
    %v6965 = vpack.c.b16 %v4293, %v4277
    %v6966 = vpack.c.b16 %v4294, %v4278
    %v6967 = vpack.c.b16 %v4295, %v4279
    %v6968 = vpack.c.b16 %v4296, %v4280
    %v6969 = vpack.c.b16 %v4297, %v4281
    %v6970 = vpack.c.b16 %v4298, %v4282
    %v6971 = vpack.c.b16 %v4315, %v4299
    %v6972 = vpack.c.b16 %v4316, %v4300
    %v6973 = vpack.c.b16 %v4317, %v4301
    %v6974 = vpack.c.b16 %v4318, %v4302
    %v6975 = vpack.c.b16 %v4319, %v4303
    %v6976 = vpack.c.b16 %v4320, %v4304
    %v6977 = vpack.c.b16 %v4321, %v4305
    %v6978 = vpack.c.b16 %v4322, %v4306
    %v6979 = vpack.c.b16 %v4323, %v4307
    %v6980 = vpack.c.b16 %v4324, %v4308
    %v6981 = vpack.c.b16 %v4325, %v4309
    %v6982 = vpack.c.b16 %v4326, %v4310
    %v6983 = vpack.c.b16 %v4327, %v4311
    %v6984 = vpack.c.b16 %v4328, %v4312
    %v6985 = vpack.c.b16 %v4329, %v4313
    %v6986 = vpack.c.b16 %v4330, %v4314
    %v6987 = vpack.c.b16 %v4347, %v4331
    %v6988 = vpack.c.b16 %v4348, %v4332
    %v6989 = vpack.c.b16 %v4349, %v4333
    %v6990 = vpack.c.b16 %v4350, %v4334
    %v6991 = vpack.c.b16 %v4351, %v4335
    %v6992 = vpack.c.b16 %v4352, %v4336
    %v6993 = vpack.c.b16 %v4353, %v4337
    %v6994 = vpack.c.b16 %v4354, %v4338
    %v6995 = vpack.c.b16 %v4355, %v4339
    %v6996 = vpack.c.b16 %v4356, %v4340
    %v6997 = vpack.c.b16 %v4357, %v4341
    %v6998 = vpack.c.b16 %v4358, %v4342
    %v6999 = vpack.c.b16 %v4359, %v4343
    %v7000 = vpack.c.b16 %v4360, %v4344
    %v7001 = vpack.c.b16 %v4361, %v4345
    %v7002 = vpack.c.b16 %v4362, %v4346
    %v7003 = vpack.c.b16 %v4379, %v4363
    %v7004 = vpack.c.b16 %v4380, %v4364
    %v7005 = vpack.c.b16 %v4381, %v4365
    %v7006 = vpack.c.b16 %v4382, %v4366
    %v7007 = vpack.c.b16 %v4383, %v4367
    %v7008 = vpack.c.b16 %v4384, %v4368
    %v7009 = vpack.c.b16 %v4385, %v4369
    %v7010 = vpack.c.b16 %v4386, %v4370
    %v7011 = vpack.c.b16 %v4387, %v4371
    %v7012 = vpack.c.b16 %v4388, %v4372
    %v7013 = vpack.c.b16 %v4389, %v4373
    %v7014 = vpack.c.b16 %v4390, %v4374
    %v7015 = vpack.c.b16 %v4391, %v4375
    %v7016 = vpack.c.b16 %v4392, %v4376
    %v7017 = vpack.c.b16 %v4393, %v4377
    %v7018 = vpack.c.b16 %v4394, %v4378
    %v7019 = vpack.c.b16 %v4411, %v4395
    %v7020 = vpack.c.b16 %v4412, %v4396
    %v7021 = vpack.c.b16 %v4413, %v4397
    %v7022 = vpack.c.b16 %v4414, %v4398
    %v7023 = vpack.c.b16 %v4415, %v4399
    %v7024 = vpack.c.b16 %v4416, %v4400
    %v7025 = vpack.c.b16 %v4417, %v4401
    %v7026 = vpack.c.b16 %v4418, %v4402
    %v7027 = vpack.c.b16 %v4419, %v4403
    %v7028 = vpack.c.b16 %v4420, %v4404
    %v7029 = vpack.c.b16 %v4421, %v4405
    %v7030 = vpack.c.b16 %v4422, %v4406
    %v7031 = vpack.c.b16 %v4423, %v4407
    %v7032 = vpack.c.b16 %v4424, %v4408
    %v7033 = vpack.c.b16 %v4425, %v4409
    %v7034 = vpack.c.b16 %v4426, %v4410
    %v7035 = vpack.c.b16 %v4443, %v4427
    %v7036 = vpack.c.b16 %v4444, %v4428
    %v7037 = vpack.c.b16 %v4445, %v4429
    %v7038 = vpack.c.b16 %v4446, %v4430
    %v7039 = vpack.c.b16 %v4447, %v4431
    %v7040 = vpack.c.b16 %v4448, %v4432
    %v7041 = vpack.c.b16 %v4449, %v4433
    %v7042 = vpack.c.b16 %v4450, %v4434
    %v7043 = vpack.c.b16 %v4451, %v4435
    %v7044 = vpack.c.b16 %v4452, %v4436
    %v7045 = vpack.c.b16 %v4453, %v4437
    %v7046 = vpack.c.b16 %v4454, %v4438
    %v7047 = vpack.c.b16 %v4455, %v4439
    %v7048 = vpack.c.b16 %v4456, %v4440
    %v7049 = vpack.c.b16 %v4457, %v4441
    %v7050 = vpack.c.b16 %v4458, %v4442
    %v7051 = vpack.c.b16 %v4475, %v4459
    %v7052 = vpack.c.b16 %v4476, %v4460
    %v7053 = vpack.c.b16 %v4477, %v4461
    %v7054 = vpack.c.b16 %v4478, %v4462
    %v7055 = vpack.c.b16 %v4479, %v4463
    %v7056 = vpack.c.b16 %v4480, %v4464
    %v7057 = vpack.c.b16 %v4481, %v4465
    %v7058 = vpack.c.b16 %v4482, %v4466
    %v7059 = vpack.c.b16 %v4483, %v4467
    %v7060 = vpack.c.b16 %v4484, %v4468
    %v7061 = vpack.c.b16 %v4485, %v4469
    %v7062 = vpack.c.b16 %v4486, %v4470
    %v7063 = vpack.c.b16 %v4487, %v4471
    %v7064 = vpack.c.b16 %v4488, %v4472
    %v7065 = vpack.c.b16 %v4489, %v4473
    %v7066 = vpack.c.b16 %v4490, %v4474
    %v7067 = vpack.c.b16 %v4507, %v4491
    %v7068 = vpack.c.b16 %v4508, %v4492
    %v7069 = vpack.c.b16 %v4509, %v4493
    %v7070 = vpack.c.b16 %v4510, %v4494
    %v7071 = vpack.c.b16 %v4511, %v4495
    %v7072 = vpack.c.b16 %v4512, %v4496
    %v7073 = vpack.c.b16 %v4513, %v4497
    %v7074 = vpack.c.b16 %v4514, %v4498
    %v7075 = vpack.c.b16 %v4515, %v4499
    %v7076 = vpack.c.b16 %v4516, %v4500
    %v7077 = vpack.c.b16 %v4517, %v4501
    %v7078 = vpack.c.b16 %v4518, %v4502
    %v7079 = vpack.c.b16 %v4519, %v4503
    %v7080 = vpack.c.b16 %v4520, %v4504
    %v7081 = vpack.c.b16 %v4521, %v4505
    %v7082 = vpack.c.b16 %v4522, %v4506
    %v7083 = vpack.c.b16 %v4539, %v4523
    %v7084 = vpack.c.b16 %v4540, %v4524
    %v7085 = vpack.c.b16 %v4541, %v4525
    %v7086 = vpack.c.b16 %v4542, %v4526
    %v7087 = vpack.c.b16 %v4543, %v4527
    %v7088 = vpack.c.b16 %v4544, %v4528
    %v7089 = vpack.c.b16 %v4545, %v4529
    %v7090 = vpack.c.b16 %v4546, %v4530
    %v7091 = vpack.c.b16 %v4547, %v4531
    %v7092 = vpack.c.b16 %v4548, %v4532
    %v7093 = vpack.c.b16 %v4549, %v4533
    %v7094 = vpack.c.b16 %v4550, %v4534
    %v7095 = vpack.c.b16 %v4551, %v4535
    %v7096 = vpack.c.b16 %v4552, %v4536
    %v7097 = vpack.c.b16 %v4553, %v4537
    %v7098 = vpack.c.b16 %v4554, %v4538
    %v7099 = vpack.c.b16 %v4571, %v4555
    %v7100 = vpack.c.b16 %v4572, %v4556
    %v7101 = vpack.c.b16 %v4573, %v4557
    %v7102 = vpack.c.b16 %v4574, %v4558
    %v7103 = vpack.c.b16 %v4575, %v4559
    %v7104 = vpack.c.b16 %v4576, %v4560
    %v7105 = vpack.c.b16 %v4577, %v4561
    %v7106 = vpack.c.b16 %v4578, %v4562
    %v7107 = vpack.c.b16 %v4579, %v4563
    %v7108 = vpack.c.b16 %v4580, %v4564
    %v7109 = vpack.c.b16 %v4581, %v4565
    %v7110 = vpack.c.b16 %v4582, %v4566
    %v7111 = vpack.c.b16 %v4583, %v4567
    %v7112 = vpack.c.b16 %v4584, %v4568
    %v7113 = vpack.c.b16 %v4585, %v4569
    %v7114 = vpack.c.b16 %v4586, %v4570
    %v7115 = vpack.c.b16 %v4603, %v4587
    %v7116 = vpack.c.b16 %v4604, %v4588
    %v7117 = vpack.c.b16 %v4605, %v4589
    %v7118 = vpack.c.b16 %v4606, %v4590
    %v7119 = vpack.c.b16 %v4607, %v4591
    %v7120 = vpack.c.b16 %v4608, %v4592
    %v7121 = vpack.c.b16 %v4609, %v4593
    %v7122 = vpack.c.b16 %v4610, %v4594
    %v7123 = vpack.c.b16 %v4611, %v4595
    %v7124 = vpack.c.b16 %v4612, %v4596
    %v7125 = vpack.c.b16 %v4613, %v4597
    %v7126 = vpack.c.b16 %v4614, %v4598
    %v7127 = vpack.c.b16 %v4615, %v4599
    %v7128 = vpack.c.b16 %v4616, %v4600
    %v7129 = vpack.c.b16 %v4617, %v4601
    %v7130 = vpack.c.b16 %v4618, %v4602
    %v7131 = vpack.c.b16 %v4635, %v4619
    %v7132 = vpack.c.b16 %v4636, %v4620
    %v7133 = vpack.c.b16 %v4637, %v4621
    %v7134 = vpack.c.b16 %v4638, %v4622
    %v7135 = vpack.c.b16 %v4639, %v4623
    %v7136 = vpack.c.b16 %v4640, %v4624
    %v7137 = vpack.c.b16 %v4641, %v4625
    %v7138 = vpack.c.b16 %v4642, %v4626
    %v7139 = vpack.c.b16 %v4643, %v4627
    %v7140 = vpack.c.b16 %v4644, %v4628
    %v7141 = vpack.c.b16 %v4645, %v4629
    %v7142 = vpack.c.b16 %v4646, %v4630
    %v7143 = vpack.c.b16 %v4647, %v4631
    %v7144 = vpack.c.b16 %v4648, %v4632
    %v7145 = vpack.c.b16 %v4649, %v4633
    %v7146 = vpack.c.b16 %v4650, %v4634
    %v7147 = vpack.c.b16 %v4667, %v4651
    %v7148 = vpack.c.b16 %v4668, %v4652
    %v7149 = vpack.c.b16 %v4669, %v4653
    %v7150 = vpack.c.b16 %v4670, %v4654
    %v7151 = vpack.c.b16 %v4671, %v4655
    %v7152 = vpack.c.b16 %v4672, %v4656
    %v7153 = vpack.c.b16 %v4673, %v4657
    %v7154 = vpack.c.b16 %v4674, %v4658
    %v7155 = vpack.c.b16 %v4675, %v4659
    %v7156 = vpack.c.b16 %v4676, %v4660
    %v7157 = vpack.c.b16 %v4677, %v4661
    %v7158 = vpack.c.b16 %v4678, %v4662
    %v7159 = vpack.c.b16 %v4679, %v4663
    %v7160 = vpack.c.b16 %v4680, %v4664
    %v7161 = vpack.c.b16 %v4681, %v4665
    %v7162 = vpack.c.b16 %v4682, %v4666
    %v7163 = vpack.c.b16 %v4699, %v4683
    %v7164 = vpack.c.b16 %v4700, %v4684
    %v7165 = vpack.c.b16 %v4701, %v4685
    %v7166 = vpack.c.b16 %v4702, %v4686
    %v7167 = vpack.c.b16 %v4703, %v4687
    %v7168 = vpack.c.b16 %v4704, %v4688
    %v7169 = vpack.c.b16 %v4705, %v4689
    %v7170 = vpack.c.b16 %v4706, %v4690
    %v7171 = vpack.c.b16 %v4707, %v4691
    %v7172 = vpack.c.b16 %v4708, %v4692
    %v7173 = vpack.c.b16 %v4709, %v4693
    %v7174 = vpack.c.b16 %v4710, %v4694
    %v7175 = vpack.c.b16 %v4711, %v4695
    %v7176 = vpack.c.b16 %v4712, %v4696
    %v7177 = vpack.c.b16 %v4713, %v4697
    %v7178 = vpack.c.b16 %v4714, %v4698
    %v7179 = vpack.c.b16 %v4731, %v4715
    %v7180 = vpack.c.b16 %v4732, %v4716
    %v7181 = vpack.c.b16 %v4733, %v4717
    %v7182 = vpack.c.b16 %v4734, %v4718
    %v7183 = vpack.c.b16 %v4735, %v4719
    %v7184 = vpack.c.b16 %v4736, %v4720
    %v7185 = vpack.c.b16 %v4737, %v4721
    %v7186 = vpack.c.b16 %v4738, %v4722
    %v7187 = vpack.c.b16 %v4739, %v4723
    %v7188 = vpack.c.b16 %v4740, %v4724
    %v7189 = vpack.c.b16 %v4741, %v4725
    %v7190 = vpack.c.b16 %v4742, %v4726
    %v7191 = vpack.c.b16 %v4743, %v4727
    %v7192 = vpack.c.b16 %v4744, %v4728
    %v7193 = vpack.c.b16 %v4745, %v4729
    %v7194 = vpack.c.b16 %v4746, %v4730
    %v7195 = vpack.c.b16 %v4763, %v4747
    %v7196 = vpack.c.b16 %v4764, %v4748
    %v7197 = vpack.c.b16 %v4765, %v4749
    %v7198 = vpack.c.b16 %v4766, %v4750
    %v7199 = vpack.c.b16 %v4767, %v4751
    %v7200 = vpack.c.b16 %v4768, %v4752
    %v7201 = vpack.c.b16 %v4769, %v4753
    %v7202 = vpack.c.b16 %v4770, %v4754
    %v7203 = vpack.c.b16 %v4771, %v4755
    %v7204 = vpack.c.b16 %v4772, %v4756
    %v7205 = vpack.c.b16 %v4773, %v4757
    %v7206 = vpack.c.b16 %v4774, %v4758
    %v7207 = vpack.c.b16 %v4775, %v4759
    %v7208 = vpack.c.b16 %v4776, %v4760
    %v7209 = vpack.c.b16 %v4777, %v4761
    %v7210 = vpack.c.b16 %v4778, %v4762
    %v7211 = vpack.c.b16 %v4795, %v4779
    %v7212 = vpack.c.b16 %v4796, %v4780
    %v7213 = vpack.c.b16 %v4797, %v4781
    %v7214 = vpack.c.b16 %v4798, %v4782
    %v7215 = vpack.c.b16 %v4799, %v4783
    %v7216 = vpack.c.b16 %v4800, %v4784
    %v7217 = vpack.c.b16 %v4801, %v4785
    %v7218 = vpack.c.b16 %v4802, %v4786
    %v7219 = vpack.c.b16 %v4803, %v4787
    %v7220 = vpack.c.b16 %v4804, %v4788
    %v7221 = vpack.c.b16 %v4805, %v4789
    %v7222 = vpack.c.b16 %v4806, %v4790
    %v7223 = vpack.c.b16 %v4807, %v4791
    %v7224 = vpack.c.b16 %v4808, %v4792
    %v7225 = vpack.c.b16 %v4809, %v4793
    %v7226 = vpack.c.b16 %v4810, %v4794
    %v7227 = vpack.c.b16 %v4827, %v4811
    %v7228 = vpack.c.b16 %v4828, %v4812
    %v7229 = vpack.c.b16 %v4829, %v4813
    %v7230 = vpack.c.b16 %v4830, %v4814
    %v7231 = vpack.c.b16 %v4831, %v4815
    %v7232 = vpack.c.b16 %v4832, %v4816
    %v7233 = vpack.c.b16 %v4833, %v4817
    %v7234 = vpack.c.b16 %v4834, %v4818
    %v7235 = vpack.c.b16 %v4835, %v4819
    %v7236 = vpack.c.b16 %v4836, %v4820
    %v7237 = vpack.c.b16 %v4837, %v4821
    %v7238 = vpack.c.b16 %v4838, %v4822
    %v7239 = vpack.c.b16 %v4839, %v4823
    %v7240 = vpack.c.b16 %v4840, %v4824
    %v7241 = vpack.c.b16 %v4841, %v4825
    %v7242 = vpack.c.b16 %v4842, %v4826
    %v7243 = vpack.c.b16 %v4859, %v4843
    %v7244 = vpack.c.b16 %v4860, %v4844
    %v7245 = vpack.c.b16 %v4861, %v4845
    %v7246 = vpack.c.b16 %v4862, %v4846
    %v7247 = vpack.c.b16 %v4863, %v4847
    %v7248 = vpack.c.b16 %v4864, %v4848
    %v7249 = vpack.c.b16 %v4865, %v4849
    %v7250 = vpack.c.b16 %v4866, %v4850
    %v7251 = vpack.c.b16 %v4867, %v4851
    %v7252 = vpack.c.b16 %v4868, %v4852
    %v7253 = vpack.c.b16 %v4869, %v4853
    %v7254 = vpack.c.b16 %v4870, %v4854
    %v7255 = vpack.c.b16 %v4871, %v4855
    %v7256 = vpack.c.b16 %v4872, %v4856
    %v7257 = vpack.c.b16 %v4873, %v4857
    %v7258 = vpack.c.b16 %v4874, %v4858
    %v7259 = vpack.c.b16 %v4891, %v4875
    %v7260 = vpack.c.b16 %v4892, %v4876
    %v7261 = vpack.c.b16 %v4893, %v4877
    %v7262 = vpack.c.b16 %v4894, %v4878
    %v7263 = vpack.c.b16 %v4895, %v4879
    %v7264 = vpack.c.b16 %v4896, %v4880
    %v7265 = vpack.c.b16 %v4897, %v4881
    %v7266 = vpack.c.b16 %v4898, %v4882
    %v7267 = vpack.c.b16 %v4899, %v4883
    %v7268 = vpack.c.b16 %v4900, %v4884
    %v7269 = vpack.c.b16 %v4901, %v4885
    %v7270 = vpack.c.b16 %v4902, %v4886
    %v7271 = vpack.c.b16 %v4903, %v4887
    %v7272 = vpack.c.b16 %v4904, %v4888
    %v7273 = vpack.c.b16 %v4905, %v4889
    %v7274 = vpack.c.b16 %v4906, %v4890
    %v7275 = vpack.c.b16 %v4923, %v4907
    %v7276 = vpack.c.b16 %v4924, %v4908
    %v7277 = vpack.c.b16 %v4925, %v4909
    %v7278 = vpack.c.b16 %v4926, %v4910
    %v7279 = vpack.c.b16 %v4927, %v4911
    %v7280 = vpack.c.b16 %v4928, %v4912
    %v7281 = vpack.c.b16 %v4929, %v4913
    %v7282 = vpack.c.b16 %v4930, %v4914
    %v7283 = vpack.c.b16 %v4931, %v4915
    %v7284 = vpack.c.b16 %v4932, %v4916
    %v7285 = vpack.c.b16 %v4933, %v4917
    %v7286 = vpack.c.b16 %v4934, %v4918
    %v7287 = vpack.c.b16 %v4935, %v4919
    %v7288 = vpack.c.b16 %v4936, %v4920
    %v7289 = vpack.c.b16 %v4937, %v4921
    %v7290 = vpack.c.b16 %v4938, %v4922
    %v7291 = vpack.c.b16 %v4955, %v4939
    %v7292 = vpack.c.b16 %v4956, %v4940
    %v7293 = vpack.c.b16 %v4957, %v4941
    %v7294 = vpack.c.b16 %v4958, %v4942
    %v7295 = vpack.c.b16 %v4959, %v4943
    %v7296 = vpack.c.b16 %v4960, %v4944
    %v7297 = vpack.c.b16 %v4961, %v4945
    %v7298 = vpack.c.b16 %v4962, %v4946
    %v7299 = vpack.c.b16 %v4963, %v4947
    %v7300 = vpack.c.b16 %v4964, %v4948
    %v7301 = vpack.c.b16 %v4965, %v4949
    %v7302 = vpack.c.b16 %v4966, %v4950
    %v7303 = vpack.c.b16 %v4967, %v4951
    %v7304 = vpack.c.b16 %v4968, %v4952
    %v7305 = vpack.c.b16 %v4969, %v4953
    %v7306 = vpack.c.b16 %v4970, %v4954
    %v7307 = vpack.c.b16 %v4987, %v4971
    %v7308 = vpack.c.b16 %v4988, %v4972
    %v7309 = vpack.c.b16 %v4989, %v4973
    %v7310 = vpack.c.b16 %v4990, %v4974
    %v7311 = vpack.c.b16 %v4991, %v4975
    %v7312 = vpack.c.b16 %v4992, %v4976
    %v7313 = vpack.c.b16 %v4993, %v4977
    %v7314 = vpack.c.b16 %v4994, %v4978
    %v7315 = vpack.c.b16 %v4995, %v4979
    %v7316 = vpack.c.b16 %v4996, %v4980
    %v7317 = vpack.c.b16 %v4997, %v4981
    %v7318 = vpack.c.b16 %v4998, %v4982
    %v7319 = vpack.c.b16 %v4999, %v4983
    %v7320 = vpack.c.b16 %v5000, %v4984
    %v7321 = vpack.c.b16 %v5001, %v4985
    %v7322 = vpack.c.b16 %v5002, %v4986
    %v7323 = vpack.c.b16 %v5019, %v5003
    %v7324 = vpack.c.b16 %v5020, %v5004
    %v7325 = vpack.c.b16 %v5021, %v5005
    %v7326 = vpack.c.b16 %v5022, %v5006
    %v7327 = vpack.c.b16 %v5023, %v5007
    %v7328 = vpack.c.b16 %v5024, %v5008
    %v7329 = vpack.c.b16 %v5025, %v5009
    %v7330 = vpack.c.b16 %v5026, %v5010
    %v7331 = vpack.c.b16 %v5027, %v5011
    %v7332 = vpack.c.b16 %v5028, %v5012
    %v7333 = vpack.c.b16 %v5029, %v5013
    %v7334 = vpack.c.b16 %v5030, %v5014
    %v7335 = vpack.c.b16 %v5031, %v5015
    %v7336 = vpack.c.b16 %v5032, %v5016
    %v7337 = vpack.c.b16 %v5033, %v5017
    %v7338 = vpack.c.b16 %v5034, %v5018
    %v7339 = vpack.c.b16 %v5051, %v5035
    %v7340 = vpack.c.b16 %v5052, %v5036
    %v7341 = vpack.c.b16 %v5053, %v5037
    %v7342 = vpack.c.b16 %v5054, %v5038
    %v7343 = vpack.c.b16 %v5055, %v5039
    %v7344 = vpack.c.b16 %v5056, %v5040
    %v7345 = vpack.c.b16 %v5057, %v5041
    %v7346 = vpack.c.b16 %v5058, %v5042
    %v7347 = vpack.c.b16 %v5059, %v5043
    %v7348 = vpack.c.b16 %v5060, %v5044
    %v7349 = vpack.c.b16 %v5061, %v5045
    %v7350 = vpack.c.b16 %v5062, %v5046
    %v7351 = vpack.c.b16 %v5063, %v5047
    %v7352 = vpack.c.b16 %v5064, %v5048
    %v7353 = vpack.c.b16 %v5065, %v5049
    %v7354 = vpack.c.b16 %v5066, %v5050
    %v7355 = vpack.c.b16 %v5083, %v5067
    %v7356 = vpack.c.b16 %v5084, %v5068
    %v7357 = vpack.c.b16 %v5085, %v5069
    %v7358 = vpack.c.b16 %v5086, %v5070
    %v7359 = vpack.c.b16 %v5087, %v5071
    %v7360 = vpack.c.b16 %v5088, %v5072
    %v7361 = vpack.c.b16 %v5089, %v5073
    %v7362 = vpack.c.b16 %v5090, %v5074
    %v7363 = vpack.c.b16 %v5091, %v5075
    %v7364 = vpack.c.b16 %v5092, %v5076
    %v7365 = vpack.c.b16 %v5093, %v5077
    %v7366 = vpack.c.b16 %v5094, %v5078
    %v7367 = vpack.c.b16 %v5095, %v5079
    %v7368 = vpack.c.b16 %v5096, %v5080
    %v7369 = vpack.c.b16 %v5097, %v5081
    %v7370 = vpack.c.b16 %v5098, %v5082
    %v7371 = vpack.c.b16 %v5115, %v5099
    %v7372 = vpack.c.b16 %v5116, %v5100
    %v7373 = vpack.c.b16 %v5117, %v5101
    %v7374 = vpack.c.b16 %v5118, %v5102
    %v7375 = vpack.c.b16 %v5119, %v5103
    %v7376 = vpack.c.b16 %v5120, %v5104
    %v7377 = vpack.c.b16 %v5121, %v5105
    %v7378 = vpack.c.b16 %v5122, %v5106
    %v7379 = vpack.c.b16 %v5123, %v5107
    %v7380 = vpack.c.b16 %v5124, %v5108
    %v7381 = vpack.c.b16 %v5125, %v5109
    %v7382 = vpack.c.b16 %v5126, %v5110
    %v7383 = vpack.c.b16 %v5127, %v5111
    %v7384 = vpack.c.b16 %v5128, %v5112
    %v7385 = vpack.c.b16 %v5129, %v5113
    %v7386 = vpack.c.b16 %v5130, %v5114
    %v7387 = vpack.c.b16 %v5147, %v5131
    %v7388 = vpack.c.b16 %v5148, %v5132
    %v7389 = vpack.c.b16 %v5149, %v5133
    %v7390 = vpack.c.b16 %v5150, %v5134
    %v7391 = vpack.c.b16 %v5151, %v5135
    %v7392 = vpack.c.b16 %v5152, %v5136
    %v7393 = vpack.c.b16 %v5153, %v5137
    %v7394 = vpack.c.b16 %v5154, %v5138
    %v7395 = vpack.c.b16 %v5155, %v5139
    %v7396 = vpack.c.b16 %v5156, %v5140
    %v7397 = vpack.c.b16 %v5157, %v5141
    %v7398 = vpack.c.b16 %v5158, %v5142
    %v7399 = vpack.c.b16 %v5159, %v5143
    %v7400 = vpack.c.b16 %v5160, %v5144
    %v7401 = vpack.c.b16 %v5161, %v5145
    %v7402 = vpack.c.b16 %v5162, %v5146
    %v7403 = vpack.c.b16 %v5179, %v5163
    %v7404 = vpack.c.b16 %v5180, %v5164
    %v7405 = vpack.c.b16 %v5181, %v5165
    %v7406 = vpack.c.b16 %v5182, %v5166
    %v7407 = vpack.c.b16 %v5183, %v5167
    %v7408 = vpack.c.b16 %v5184, %v5168
    %v7409 = vpack.c.b16 %v5185, %v5169
    %v7410 = vpack.c.b16 %v5186, %v5170
    %v7411 = vpack.c.b16 %v5187, %v5171
    %v7412 = vpack.c.b16 %v5188, %v5172
    %v7413 = vpack.c.b16 %v5189, %v5173
    %v7414 = vpack.c.b16 %v5190, %v5174
    %v7415 = vpack.c.b16 %v5191, %v5175
    %v7416 = vpack.c.b16 %v5192, %v5176
    %v7417 = vpack.c.b16 %v5193, %v5177
    %v7418 = vpack.c.b16 %v5194, %v5178
    %v7419 = vpack.c.b16 %v5211, %v5195
    %v7420 = vpack.c.b16 %v5212, %v5196
    %v7421 = vpack.c.b16 %v5213, %v5197
    %v7422 = vpack.c.b16 %v5214, %v5198
    %v7423 = vpack.c.b16 %v5215, %v5199
    %v7424 = vpack.c.b16 %v5216, %v5200
    %v7425 = vpack.c.b16 %v5217, %v5201
    %v7426 = vpack.c.b16 %v5218, %v5202
    %v7427 = vpack.c.b16 %v5219, %v5203
    %v7428 = vpack.c.b16 %v5220, %v5204
    %v7429 = vpack.c.b16 %v5221, %v5205
    %v7430 = vpack.c.b16 %v5222, %v5206
    %v7431 = vpack.c.b16 %v5223, %v5207
    %v7432 = vpack.c.b16 %v5224, %v5208
    %v7433 = vpack.c.b16 %v5225, %v5209
    %v7434 = vpack.c.b16 %v5226, %v5210
    %v7435 = vpack.c.b16 %v5243, %v5227
    %v7436 = vpack.c.b16 %v5244, %v5228
    %v7437 = vpack.c.b16 %v5245, %v5229
    %v7438 = vpack.c.b16 %v5246, %v5230
    %v7439 = vpack.c.b16 %v5247, %v5231
    %v7440 = vpack.c.b16 %v5248, %v5232
    %v7441 = vpack.c.b16 %v5249, %v5233
    %v7442 = vpack.c.b16 %v5250, %v5234
    %v7443 = vpack.c.b16 %v5251, %v5235
    %v7444 = vpack.c.b16 %v5252, %v5236
    %v7445 = vpack.c.b16 %v5253, %v5237
    %v7446 = vpack.c.b16 %v5254, %v5238
    %v7447 = vpack.c.b16 %v5255, %v5239
    %v7448 = vpack.c.b16 %v5256, %v5240
    %v7449 = vpack.c.b16 %v5257, %v5241
    %v7450 = vpack.c.b16 %v5258, %v5242
    %v7451 = vpack.c.b16 %v5275, %v5259
    %v7452 = vpack.c.b16 %v5276, %v5260
    %v7453 = vpack.c.b16 %v5277, %v5261
    %v7454 = vpack.c.b16 %v5278, %v5262
    %v7455 = vpack.c.b16 %v5279, %v5263
    %v7456 = vpack.c.b16 %v5280, %v5264
    %v7457 = vpack.c.b16 %v5281, %v5265
    %v7458 = vpack.c.b16 %v5282, %v5266
    %v7459 = vpack.c.b16 %v5283, %v5267
    %v7460 = vpack.c.b16 %v5284, %v5268
    %v7461 = vpack.c.b16 %v5285, %v5269
    %v7462 = vpack.c.b16 %v5286, %v5270
    %v7463 = vpack.c.b16 %v5287, %v5271
    %v7464 = vpack.c.b16 %v5288, %v5272
    %v7465 = vpack.c.b16 %v5289, %v5273
    %v7466 = vpack.c.b16 %v5290, %v5274
    %v7467 = vpack.c.b16 %v5307, %v5291
    %v7468 = vpack.c.b16 %v5308, %v5292
    %v7469 = vpack.c.b16 %v5309, %v5293
    %v7470 = vpack.c.b16 %v5310, %v5294
    %v7471 = vpack.c.b16 %v5311, %v5295
    %v7472 = vpack.c.b16 %v5312, %v5296
    %v7473 = vpack.c.b16 %v5313, %v5297
    %v7474 = vpack.c.b16 %v5314, %v5298
    %v7475 = vpack.c.b16 %v5315, %v5299
    %v7476 = vpack.c.b16 %v5316, %v5300
    %v7477 = vpack.c.b16 %v5317, %v5301
    %v7478 = vpack.c.b16 %v5318, %v5302
    %v7479 = vpack.c.b16 %v5319, %v5303
    %v7480 = vpack.c.b16 %v5320, %v5304
    %v7481 = vpack.c.b16 %v5321, %v5305
    %v7482 = vpack.c.b16 %v5322, %v5306
    %v7483 = vpack.c.b16 %v5339, %v5323
    %v7484 = vpack.c.b16 %v5340, %v5324
    %v7485 = vpack.c.b16 %v5341, %v5325
    %v7486 = vpack.c.b16 %v5342, %v5326
    %v7487 = vpack.c.b16 %v5343, %v5327
    %v7488 = vpack.c.b16 %v5344, %v5328
    %v7489 = vpack.c.b16 %v5345, %v5329
    %v7490 = vpack.c.b16 %v5346, %v5330
    %v7491 = vpack.c.b16 %v5347, %v5331
    %v7492 = vpack.c.b16 %v5348, %v5332
    %v7493 = vpack.c.b16 %v5349, %v5333
    %v7494 = vpack.c.b16 %v5350, %v5334
    %v7495 = vpack.c.b16 %v5351, %v5335
    %v7496 = vpack.c.b16 %v5352, %v5336
    %v7497 = vpack.c.b16 %v5353, %v5337
    %v7498 = vpack.c.b16 %v5354, %v5338
    %v7499 = vpack.c.b16 %v5371, %v5355
    %v7500 = vpack.c.b16 %v5372, %v5356
    %v7501 = vpack.c.b16 %v5373, %v5357
    %v7502 = vpack.c.b16 %v5374, %v5358
    %v7503 = vpack.c.b16 %v5375, %v5359
    %v7504 = vpack.c.b16 %v5376, %v5360
    %v7505 = vpack.c.b16 %v5377, %v5361
    %v7506 = vpack.c.b16 %v5378, %v5362
    %v7507 = vpack.c.b16 %v5379, %v5363
    %v7508 = vpack.c.b16 %v5380, %v5364
    %v7509 = vpack.c.b16 %v5381, %v5365
    %v7510 = vpack.c.b16 %v5382, %v5366
    %v7511 = vpack.c.b16 %v5383, %v5367
    %v7512 = vpack.c.b16 %v5384, %v5368
    %v7513 = vpack.c.b16 %v5385, %v5369
    %v7514 = vpack.c.b16 %v5386, %v5370
    %v7515 = vpack.c.b16 %v5403, %v5387
    %v7516 = vpack.c.b16 %v5404, %v5388
    %v7517 = vpack.c.b16 %v5405, %v5389
    %v7518 = vpack.c.b16 %v5406, %v5390
    %v7519 = vpack.c.b16 %v5407, %v5391
    %v7520 = vpack.c.b16 %v5408, %v5392
    %v7521 = vpack.c.b16 %v5409, %v5393
    %v7522 = vpack.c.b16 %v5410, %v5394
    %v7523 = vpack.c.b16 %v5411, %v5395
    %v7524 = vpack.c.b16 %v5412, %v5396
    %v7525 = vpack.c.b16 %v5413, %v5397
    %v7526 = vpack.c.b16 %v5414, %v5398
    %v7527 = vpack.c.b16 %v5415, %v5399
    %v7528 = vpack.c.b16 %v5416, %v5400
    %v7529 = vpack.c.b16 %v5417, %v5401
    %v7530 = vpack.c.b16 %v5418, %v5402
    %v7531 = vpack.c.b16 %v5435, %v5419
    %v7532 = vpack.c.b16 %v5436, %v5420
    %v7533 = vpack.c.b16 %v5437, %v5421
    %v7534 = vpack.c.b16 %v5438, %v5422
    %v7535 = vpack.c.b16 %v5439, %v5423
    %v7536 = vpack.c.b16 %v5440, %v5424
    %v7537 = vpack.c.b16 %v5441, %v5425
    %v7538 = vpack.c.b16 %v5442, %v5426
    %v7539 = vpack.c.b16 %v5443, %v5427
    %v7540 = vpack.c.b16 %v5444, %v5428
    %v7541 = vpack.c.b16 %v5445, %v5429
    %v7542 = vpack.c.b16 %v5446, %v5430
    %v7543 = vpack.c.b16 %v5447, %v5431
    %v7544 = vpack.c.b16 %v5448, %v5432
    %v7545 = vpack.c.b16 %v5449, %v5433
    %v7546 = vpack.c.b16 %v5450, %v5434
    %v7547 = vpack.c.b16 %v5467, %v5451
    %v7548 = vpack.c.b16 %v5468, %v5452
    %v7549 = vpack.c.b16 %v5469, %v5453
    %v7550 = vpack.c.b16 %v5470, %v5454
    %v7551 = vpack.c.b16 %v5471, %v5455
    %v7552 = vpack.c.b16 %v5472, %v5456
    %v7553 = vpack.c.b16 %v5473, %v5457
    %v7554 = vpack.c.b16 %v5474, %v5458
    %v7555 = vpack.c.b16 %v5475, %v5459
    %v7556 = vpack.c.b16 %v5476, %v5460
    %v7557 = vpack.c.b16 %v5477, %v5461
    %v7558 = vpack.c.b16 %v5478, %v5462
    %v7559 = vpack.c.b16 %v5479, %v5463
    %v7560 = vpack.c.b16 %v5480, %v5464
    %v7561 = vpack.c.b16 %v5481, %v5465
    %v7562 = vpack.c.b16 %v5482, %v5466
    %v7563 = vpack.c.b16 %v5499, %v5483
    %v7564 = vpack.c.b16 %v5500, %v5484
    %v7565 = vpack.c.b16 %v5501, %v5485
    %v7566 = vpack.c.b16 %v5502, %v5486
    %v7567 = vpack.c.b16 %v5503, %v5487
    %v7568 = vpack.c.b16 %v5504, %v5488
    %v7569 = vpack.c.b16 %v5505, %v5489
    %v7570 = vpack.c.b16 %v5506, %v5490
    %v7571 = vpack.c.b16 %v5507, %v5491
    %v7572 = vpack.c.b16 %v5508, %v5492
    %v7573 = vpack.c.b16 %v5509, %v5493
    %v7574 = vpack.c.b16 %v5510, %v5494
    %v7575 = vpack.c.b16 %v5511, %v5495
    %v7576 = vpack.c.b16 %v5512, %v5496
    %v7577 = vpack.c.b16 %v5513, %v5497
    %v7578 = vpack.c.b16 %v5514, %v5498
    %v7579 = vpack.c.b16 %v5531, %v5515
    %v7580 = vpack.c.b16 %v5532, %v5516
    %v7581 = vpack.c.b16 %v5533, %v5517
    %v7582 = vpack.c.b16 %v5534, %v5518
    %v7583 = vpack.c.b16 %v5535, %v5519
    %v7584 = vpack.c.b16 %v5536, %v5520
    %v7585 = vpack.c.b16 %v5537, %v5521
    %v7586 = vpack.c.b16 %v5538, %v5522
    %v7587 = vpack.c.b16 %v5539, %v5523
    %v7588 = vpack.c.b16 %v5540, %v5524
    %v7589 = vpack.c.b16 %v5541, %v5525
    %v7590 = vpack.c.b16 %v5542, %v5526
    %v7591 = vpack.c.b16 %v5543, %v5527
    %v7592 = vpack.c.b16 %v5544, %v5528
    %v7593 = vpack.c.b16 %v5545, %v5529
    %v7594 = vpack.c.b16 %v5546, %v5530
    %v7595 = vpack.c.b16 %v5563, %v5547
    %v7596 = vpack.c.b16 %v5564, %v5548
    %v7597 = vpack.c.b16 %v5565, %v5549
    %v7598 = vpack.c.b16 %v5566, %v5550
    %v7599 = vpack.c.b16 %v5567, %v5551
    %v7600 = vpack.c.b16 %v5568, %v5552
    %v7601 = vpack.c.b16 %v5569, %v5553
    %v7602 = vpack.c.b16 %v5570, %v5554
    %v7603 = vpack.c.b16 %v5571, %v5555
    %v7604 = vpack.c.b16 %v5572, %v5556
    %v7605 = vpack.c.b16 %v5573, %v5557
    %v7606 = vpack.c.b16 %v5574, %v5558
    %v7607 = vpack.c.b16 %v5575, %v5559
    %v7608 = vpack.c.b16 %v5576, %v5560
    %v7609 = vpack.c.b16 %v5577, %v5561
    %v7610 = vpack.c.b16 %v5578, %v5562
    %v7611 = vpack.c.b16 %v5595, %v5579
    %v7612 = vpack.c.b16 %v5596, %v5580
    %v7613 = vpack.c.b16 %v5597, %v5581
    %v7614 = vpack.c.b16 %v5598, %v5582
    %v7615 = vpack.c.b16 %v5599, %v5583
    %v7616 = vpack.c.b16 %v5600, %v5584
    %v7617 = vpack.c.b16 %v5601, %v5585
    %v7618 = vpack.c.b16 %v5602, %v5586
    %v7619 = vpack.c.b16 %v5603, %v5587
    %v7620 = vpack.c.b16 %v5604, %v5588
    %v7621 = vpack.c.b16 %v5605, %v5589
    %v7622 = vpack.c.b16 %v5606, %v5590
    %v7623 = vpack.c.b16 %v5607, %v5591
    %v7624 = vpack.c.b16 %v5608, %v5592
    %v7625 = vpack.c.b16 %v5609, %v5593
    %v7626 = vpack.c.b16 %v5610, %v5594
    %v7627 = vpack.c.b16 %v5627, %v5611
    %v7628 = vpack.c.b16 %v5628, %v5612
    %v7629 = vpack.c.b16 %v5629, %v5613
    %v7630 = vpack.c.b16 %v5630, %v5614
    %v7631 = vpack.c.b16 %v5631, %v5615
    %v7632 = vpack.c.b16 %v5632, %v5616
    %v7633 = vpack.c.b16 %v5633, %v5617
    %v7634 = vpack.c.b16 %v5634, %v5618
    %v7635 = vpack.c.b16 %v5635, %v5619
    %v7636 = vpack.c.b16 %v5636, %v5620
    %v7637 = vpack.c.b16 %v5637, %v5621
    %v7638 = vpack.c.b16 %v5638, %v5622
    %v7639 = vpack.c.b16 %v5639, %v5623
    %v7640 = vpack.c.b16 %v5640, %v5624
    %v7641 = vpack.c.b16 %v5641, %v5625
    %v7642 = vpack.c.b16 %v5642, %v5626
    %v7643 = vpack.c.b16 %v5659, %v5643
    %v7644 = vpack.c.b16 %v5660, %v5644
    %v7645 = vpack.c.b16 %v5661, %v5645
    %v7646 = vpack.c.b16 %v5662, %v5646
    %v7647 = vpack.c.b16 %v5663, %v5647
    %v7648 = vpack.c.b16 %v5664, %v5648
    %v7649 = vpack.c.b16 %v5665, %v5649
    %v7650 = vpack.c.b16 %v5666, %v5650
    %v7651 = vpack.c.b16 %v5667, %v5651
    %v7652 = vpack.c.b16 %v5668, %v5652
    %v7653 = vpack.c.b16 %v5669, %v5653
    %v7654 = vpack.c.b16 %v5670, %v5654
    %v7655 = vpack.c.b16 %v5671, %v5655
    %v7656 = vpack.c.b16 %v5672, %v5656
    %v7657 = vpack.c.b16 %v5673, %v5657
    %v7658 = vpack.c.b16 %v5674, %v5658
    %v7659 = vpack.c.b16 %v5691, %v5675
    %v7660 = vpack.c.b16 %v5692, %v5676
    %v7661 = vpack.c.b16 %v5693, %v5677
    %v7662 = vpack.c.b16 %v5694, %v5678
    %v7663 = vpack.c.b16 %v5695, %v5679
    %v7664 = vpack.c.b16 %v5696, %v5680
    %v7665 = vpack.c.b16 %v5697, %v5681
    %v7666 = vpack.c.b16 %v5698, %v5682
    %v7667 = vpack.c.b16 %v5699, %v5683
    %v7668 = vpack.c.b16 %v5700, %v5684
    %v7669 = vpack.c.b16 %v5701, %v5685
    %v7670 = vpack.c.b16 %v5702, %v5686
    %v7671 = vpack.c.b16 %v5703, %v5687
    %v7672 = vpack.c.b16 %v5704, %v5688
    %v7673 = vpack.c.b16 %v5705, %v5689
    %v7674 = vpack.c.b16 %v5706, %v5690
    %v7675 = vpack.c.b16 %v5723, %v5707
    %v7676 = vpack.c.b16 %v5724, %v5708
    %v7677 = vpack.c.b16 %v5725, %v5709
    %v7678 = vpack.c.b16 %v5726, %v5710
    %v7679 = vpack.c.b16 %v5727, %v5711
    %v7680 = vpack.c.b16 %v5728, %v5712
    %v7681 = vpack.c.b16 %v5729, %v5713
    %v7682 = vpack.c.b16 %v5730, %v5714
    %v7683 = vpack.c.b16 %v5731, %v5715
    %v7684 = vpack.c.b16 %v5732, %v5716
    %v7685 = vpack.c.b16 %v5733, %v5717
    %v7686 = vpack.c.b16 %v5734, %v5718
    %v7687 = vpack.c.b16 %v5735, %v5719
    %v7688 = vpack.c.b16 %v5736, %v5720
    %v7689 = vpack.c.b16 %v5737, %v5721
    %v7690 = vpack.c.b16 %v5738, %v5722
    %v7691 = vpack.c.b16 %v5755, %v5739
    %v7692 = vpack.c.b16 %v5756, %v5740
    %v7693 = vpack.c.b16 %v5757, %v5741
    %v7694 = vpack.c.b16 %v5758, %v5742
    %v7695 = vpack.c.b16 %v5759, %v5743
    %v7696 = vpack.c.b16 %v5760, %v5744
    %v7697 = vpack.c.b16 %v5761, %v5745
    %v7698 = vpack.c.b16 %v5762, %v5746
    %v7699 = vpack.c.b16 %v5763, %v5747
    %v7700 = vpack.c.b16 %v5764, %v5748
    %v7701 = vpack.c.b16 %v5765, %v5749
    %v7702 = vpack.c.b16 %v5766, %v5750
    %v7703 = vpack.c.b16 %v5767, %v5751
    %v7704 = vpack.c.b16 %v5768, %v5752
    %v7705 = vpack.c.b16 %v5769, %v5753
    %v7706 = vpack.c.b16 %v5770, %v5754
    %v7707 = vpack.c.b16 %v5787, %v5771
    %v7708 = vpack.c.b16 %v5788, %v5772
    %v7709 = vpack.c.b16 %v5789, %v5773
    %v7710 = vpack.c.b16 %v5790, %v5774
    %v7711 = vpack.c.b16 %v5791, %v5775
    %v7712 = vpack.c.b16 %v5792, %v5776
    %v7713 = vpack.c.b16 %v5793, %v5777
    %v7714 = vpack.c.b16 %v5794, %v5778
    %v7715 = vpack.c.b16 %v5795, %v5779
    %v7716 = vpack.c.b16 %v5796, %v5780
    %v7717 = vpack.c.b16 %v5797, %v5781
    %v7718 = vpack.c.b16 %v5798, %v5782
    %v7719 = vpack.c.b16 %v5799, %v5783
    %v7720 = vpack.c.b16 %v5800, %v5784
    %v7721 = vpack.c.b16 %v5801, %v5785
    %v7722 = vpack.c.b16 %v5802, %v5786
    %v7723 = vpack.c.b16 %v5819, %v5803
    %v7724 = vpack.c.b16 %v5820, %v5804
    %v7725 = vpack.c.b16 %v5821, %v5805
    %v7726 = vpack.c.b16 %v5822, %v5806
    %v7727 = vpack.c.b16 %v5823, %v5807
    %v7728 = vpack.c.b16 %v5824, %v5808
    %v7729 = vpack.c.b16 %v5825, %v5809
    %v7730 = vpack.c.b16 %v5826, %v5810
    %v7731 = vpack.c.b16 %v5827, %v5811
    %v7732 = vpack.c.b16 %v5828, %v5812
    %v7733 = vpack.c.b16 %v5829, %v5813
    %v7734 = vpack.c.b16 %v5830, %v5814
    %v7735 = vpack.c.b16 %v5831, %v5815
    %v7736 = vpack.c.b16 %v5832, %v5816
    %v7737 = vpack.c.b16 %v5833, %v5817
    %v7738 = vpack.c.b16 %v5834, %v5818
    %v7739 = vpack.c.b16 %v5851, %v5835
    %v7740 = vpack.c.b16 %v5852, %v5836
    %v7741 = vpack.c.b16 %v5853, %v5837
    %v7742 = vpack.c.b16 %v5854, %v5838
    %v7743 = vpack.c.b16 %v5855, %v5839
    %v7744 = vpack.c.b16 %v5856, %v5840
    %v7745 = vpack.c.b16 %v5857, %v5841
    %v7746 = vpack.c.b16 %v5858, %v5842
    %v7747 = vpack.c.b16 %v5859, %v5843
    %v7748 = vpack.c.b16 %v5860, %v5844
    %v7749 = vpack.c.b16 %v5861, %v5845
    %v7750 = vpack.c.b16 %v5862, %v5846
    %v7751 = vpack.c.b16 %v5863, %v5847
    %v7752 = vpack.c.b16 %v5864, %v5848
    %v7753 = vpack.c.b16 %v5865, %v5849
    %v7754 = vpack.c.b16 %v5866, %v5850
    %v7755 = vpack.c.b16 %v5883, %v5867
    %v7756 = vpack.c.b16 %v5884, %v5868
    %v7757 = vpack.c.b16 %v5885, %v5869
    %v7758 = vpack.c.b16 %v5886, %v5870
    %v7759 = vpack.c.b16 %v5887, %v5871
    %v7760 = vpack.c.b16 %v5888, %v5872
    %v7761 = vpack.c.b16 %v5889, %v5873
    %v7762 = vpack.c.b16 %v5890, %v5874
    %v7763 = vpack.c.b16 %v5891, %v5875
    %v7764 = vpack.c.b16 %v5892, %v5876
    %v7765 = vpack.c.b16 %v5893, %v5877
    %v7766 = vpack.c.b16 %v5894, %v5878
    %v7767 = vpack.c.b16 %v5895, %v5879
    %v7768 = vpack.c.b16 %v5896, %v5880
    %v7769 = vpack.c.b16 %v5897, %v5881
    %v7770 = vpack.c.b16 %v5898, %v5882
    %v7771 = vpack.c.b16 %v5915, %v5899
    %v7772 = vpack.c.b16 %v5916, %v5900
    %v7773 = vpack.c.b16 %v5917, %v5901
    %v7774 = vpack.c.b16 %v5918, %v5902
    %v7775 = vpack.c.b16 %v5919, %v5903
    %v7776 = vpack.c.b16 %v5920, %v5904
    %v7777 = vpack.c.b16 %v5921, %v5905
    %v7778 = vpack.c.b16 %v5922, %v5906
    %v7779 = vpack.c.b16 %v5923, %v5907
    %v7780 = vpack.c.b16 %v5924, %v5908
    %v7781 = vpack.c.b16 %v5925, %v5909
    %v7782 = vpack.c.b16 %v5926, %v5910
    %v7783 = vpack.c.b16 %v5927, %v5911
    %v7784 = vpack.c.b16 %v5928, %v5912
    %v7785 = vpack.c.b16 %v5929, %v5913
    %v7786 = vpack.c.b16 %v5930, %v5914
    %v7787 = vpack.c.b16 %v5947, %v5931
    %v7788 = vpack.c.b16 %v5948, %v5932
    %v7789 = vpack.c.b16 %v5949, %v5933
    %v7790 = vpack.c.b16 %v5950, %v5934
    %v7791 = vpack.c.b16 %v5951, %v5935
    %v7792 = vpack.c.b16 %v5952, %v5936
    %v7793 = vpack.c.b16 %v5953, %v5937
    %v7794 = vpack.c.b16 %v5954, %v5938
    %v7795 = vpack.c.b16 %v5955, %v5939
    %v7796 = vpack.c.b16 %v5956, %v5940
    %v7797 = vpack.c.b16 %v5957, %v5941
    %v7798 = vpack.c.b16 %v5958, %v5942
    %v7799 = vpack.c.b16 %v5959, %v5943
    %v7800 = vpack.c.b16 %v5960, %v5944
    %v7801 = vpack.c.b16 %v5961, %v5945
    %v7802 = vpack.c.b16 %v5962, %v5946
    %v7803 = vpack.c.b16 %v5979, %v5963
    %v7804 = vpack.c.b16 %v5980, %v5964
    %v7805 = vpack.c.b16 %v5981, %v5965
    %v7806 = vpack.c.b16 %v5982, %v5966
    %v7807 = vpack.c.b16 %v5983, %v5967
    %v7808 = vpack.c.b16 %v5984, %v5968
    %v7809 = vpack.c.b16 %v5985, %v5969
    %v7810 = vpack.c.b16 %v5986, %v5970
    %v7811 = vpack.c.b16 %v5987, %v5971
    %v7812 = vpack.c.b16 %v5988, %v5972
    %v7813 = vpack.c.b16 %v5989, %v5973
    %v7814 = vpack.c.b16 %v5990, %v5974
    %v7815 = vpack.c.b16 %v5991, %v5975
    %v7816 = vpack.c.b16 %v5992, %v5976
    %v7817 = vpack.c.b16 %v5993, %v5977
    %v7818 = vpack.c.b16 %v5994, %v5978
    %v7819 = vpack.c.b16 %v6011, %v5995
    %v7820 = vpack.c.b16 %v6012, %v5996
    %v7821 = vpack.c.b16 %v6013, %v5997
    %v7822 = vpack.c.b16 %v6014, %v5998
    %v7823 = vpack.c.b16 %v6015, %v5999
    %v7824 = vpack.c.b16 %v6016, %v6000
    %v7825 = vpack.c.b16 %v6017, %v6001
    %v7826 = vpack.c.b16 %v6018, %v6002
    %v7827 = vpack.c.b16 %v6019, %v6003
    %v7828 = vpack.c.b16 %v6020, %v6004
    %v7829 = vpack.c.b16 %v6021, %v6005
    %v7830 = vpack.c.b16 %v6022, %v6006
    %v7831 = vpack.c.b16 %v6023, %v6007
    %v7832 = vpack.c.b16 %v6024, %v6008
    %v7833 = vpack.c.b16 %v6025, %v6009
    %v7834 = vpack.c.b16 %v6026, %v6010
    %v7835 = vpack.c.b16 %v6043, %v6027
    %v7836 = vpack.c.b16 %v6044, %v6028
    %v7837 = vpack.c.b16 %v6045, %v6029
    %v7838 = vpack.c.b16 %v6046, %v6030
    %v7839 = vpack.c.b16 %v6047, %v6031
    %v7840 = vpack.c.b16 %v6048, %v6032
    %v7841 = vpack.c.b16 %v6049, %v6033
    %v7842 = vpack.c.b16 %v6050, %v6034
    %v7843 = vpack.c.b16 %v6051, %v6035
    %v7844 = vpack.c.b16 %v6052, %v6036
    %v7845 = vpack.c.b16 %v6053, %v6037
    %v7846 = vpack.c.b16 %v6054, %v6038
    %v7847 = vpack.c.b16 %v6055, %v6039
    %v7848 = vpack.c.b16 %v6056, %v6040
    %v7849 = vpack.c.b16 %v6057, %v6041
    %v7850 = vpack.c.b16 %v6058, %v6042
    %v7851 = vpack.c.b16 %v6075, %v6059
    %v7852 = vpack.c.b16 %v6076, %v6060
    %v7853 = vpack.c.b16 %v6077, %v6061
    %v7854 = vpack.c.b16 %v6078, %v6062
    %v7855 = vpack.c.b16 %v6079, %v6063
    %v7856 = vpack.c.b16 %v6080, %v6064
    %v7857 = vpack.c.b16 %v6081, %v6065
    %v7858 = vpack.c.b16 %v6082, %v6066
    %v7859 = vpack.c.b16 %v6083, %v6067
    %v7860 = vpack.c.b16 %v6084, %v6068
    %v7861 = vpack.c.b16 %v6085, %v6069
    %v7862 = vpack.c.b16 %v6086, %v6070
    %v7863 = vpack.c.b16 %v6087, %v6071
    %v7864 = vpack.c.b16 %v6088, %v6072
    %v7865 = vpack.c.b16 %v6089, %v6073
    %v7866 = vpack.c.b16 %v6090, %v6074
    %v7867 = vpack.c.b16 %v6107, %v6091
    %v7868 = vpack.c.b16 %v6108, %v6092
    %v7869 = vpack.c.b16 %v6109, %v6093
    %v7870 = vpack.c.b16 %v6110, %v6094
    %v7871 = vpack.c.b16 %v6111, %v6095
    %v7872 = vpack.c.b16 %v6112, %v6096
    %v7873 = vpack.c.b16 %v6113, %v6097
    %v7874 = vpack.c.b16 %v6114, %v6098
    %v7875 = vpack.c.b16 %v6115, %v6099
    %v7876 = vpack.c.b16 %v6116, %v6100
    %v7877 = vpack.c.b16 %v6117, %v6101
    %v7878 = vpack.c.b16 %v6118, %v6102
    %v7879 = vpack.c.b16 %v6119, %v6103
    %v7880 = vpack.c.b16 %v6120, %v6104
    %v7881 = vpack.c.b16 %v6121, %v6105
    %v7882 = vpack.c.b16 %v6122, %v6106
    %v7883 = vpack.c.b16 %v6139, %v6123
    %v7884 = vpack.c.b16 %v6140, %v6124
    %v7885 = vpack.c.b16 %v6141, %v6125
    %v7886 = vpack.c.b16 %v6142, %v6126
    %v7887 = vpack.c.b16 %v6143, %v6127
    %v7888 = vpack.c.b16 %v6144, %v6128
    %v7889 = vpack.c.b16 %v6145, %v6129
    %v7890 = vpack.c.b16 %v6146, %v6130
    %v7891 = vpack.c.b16 %v6147, %v6131
    %v7892 = vpack.c.b16 %v6148, %v6132
    %v7893 = vpack.c.b16 %v6149, %v6133
    %v7894 = vpack.c.b16 %v6150, %v6134
    %v7895 = vpack.c.b16 %v6151, %v6135
    %v7896 = vpack.c.b16 %v6152, %v6136
    %v7897 = vpack.c.b16 %v6153, %v6137
    %v7898 = vpack.c.b16 %v6154, %v6138
    %v7899 = vpack.c.b16 %v6171, %v6155
    %v7900 = vpack.c.b16 %v6172, %v6156
    %v7901 = vpack.c.b16 %v6173, %v6157
    %v7902 = vpack.c.b16 %v6174, %v6158
    %v7903 = vpack.c.b16 %v6175, %v6159
    %v7904 = vpack.c.b16 %v6176, %v6160
    %v7905 = vpack.c.b16 %v6177, %v6161
    %v7906 = vpack.c.b16 %v6178, %v6162
    %v7907 = vpack.c.b16 %v6179, %v6163
    %v7908 = vpack.c.b16 %v6180, %v6164
    %v7909 = vpack.c.b16 %v6181, %v6165
    %v7910 = vpack.c.b16 %v6182, %v6166
    %v7911 = vpack.c.b16 %v6183, %v6167
    %v7912 = vpack.c.b16 %v6184, %v6168
    %v7913 = vpack.c.b16 %v6185, %v6169
    %v7914 = vpack.c.b16 %v6186, %v6170
    %v7915 = vpack.c.b16 %v6203, %v6187
    %v7916 = vpack.c.b16 %v6204, %v6188
    %v7917 = vpack.c.b16 %v6205, %v6189
    %v7918 = vpack.c.b16 %v6206, %v6190
    %v7919 = vpack.c.b16 %v6207, %v6191
    %v7920 = vpack.c.b16 %v6208, %v6192
    %v7921 = vpack.c.b16 %v6209, %v6193
    %v7922 = vpack.c.b16 %v6210, %v6194
    %v7923 = vpack.c.b16 %v6211, %v6195
    %v7924 = vpack.c.b16 %v6212, %v6196
    %v7925 = vpack.c.b16 %v6213, %v6197
    %v7926 = vpack.c.b16 %v6214, %v6198
    %v7927 = vpack.c.b16 %v6215, %v6199
    %v7928 = vpack.c.b16 %v6216, %v6200
    %v7929 = vpack.c.b16 %v6217, %v6201
    %v7930 = vpack.c.b16 %v6218, %v6202
    %v7931 = vpack.c.b16 %v6235, %v6219
    %v7932 = vpack.c.b16 %v6236, %v6220
    %v7933 = vpack.c.b16 %v6237, %v6221
    %v7934 = vpack.c.b16 %v6238, %v6222
    %v7935 = vpack.c.b16 %v6239, %v6223
    %v7936 = vpack.c.b16 %v6240, %v6224
    %v7937 = vpack.c.b16 %v6241, %v6225
    %v7938 = vpack.c.b16 %v6242, %v6226
    %v7939 = vpack.c.b16 %v6243, %v6227
    %v7940 = vpack.c.b16 %v6244, %v6228
    %v7941 = vpack.c.b16 %v6245, %v6229
    %v7942 = vpack.c.b16 %v6246, %v6230
    %v7943 = vpack.c.b16 %v6247, %v6231
    %v7944 = vpack.c.b16 %v6248, %v6232
    %v7945 = vpack.c.b16 %v6249, %v6233
    %v7946 = vpack.c.b16 %v6250, %v6234
    %v7947 = vpack.c.b16 %v6267, %v6251
    %v7948 = vpack.c.b16 %v6268, %v6252
    %v7949 = vpack.c.b16 %v6269, %v6253
    %v7950 = vpack.c.b16 %v6270, %v6254
    %v7951 = vpack.c.b16 %v6271, %v6255
    %v7952 = vpack.c.b16 %v6272, %v6256
    %v7953 = vpack.c.b16 %v6273, %v6257
    %v7954 = vpack.c.b16 %v6274, %v6258
    %v7955 = vpack.c.b16 %v6275, %v6259
    %v7956 = vpack.c.b16 %v6276, %v6260
    %v7957 = vpack.c.b16 %v6277, %v6261
    %v7958 = vpack.c.b16 %v6278, %v6262
    %v7959 = vpack.c.b16 %v6279, %v6263
    %v7960 = vpack.c.b16 %v6280, %v6264
    %v7961 = vpack.c.b16 %v6281, %v6265
    %v7962 = vpack.c.b16 %v6282, %v6266
    %v7963 = vpack.c.b16 %v6299, %v6283
    %v7964 = vpack.c.b16 %v6300, %v6284
    %v7965 = vpack.c.b16 %v6301, %v6285
    %v7966 = vpack.c.b16 %v6302, %v6286
    %v7967 = vpack.c.b16 %v6303, %v6287
    %v7968 = vpack.c.b16 %v6304, %v6288
    %v7969 = vpack.c.b16 %v6305, %v6289
    %v7970 = vpack.c.b16 %v6306, %v6290
    %v7971 = vpack.c.b16 %v6307, %v6291
    %v7972 = vpack.c.b16 %v6308, %v6292
    %v7973 = vpack.c.b16 %v6309, %v6293
    %v7974 = vpack.c.b16 %v6310, %v6294
    %v7975 = vpack.c.b16 %v6311, %v6295
    %v7976 = vpack.c.b16 %v6312, %v6296
    %v7977 = vpack.c.b16 %v6313, %v6297
    %v7978 = vpack.c.b16 %v6314, %v6298
    %v7979 = vpack.c.b16 %v6331, %v6315
    %v7980 = vpack.c.b16 %v6332, %v6316
    %v7981 = vpack.c.b16 %v6333, %v6317
    %v7982 = vpack.c.b16 %v6334, %v6318
    %v7983 = vpack.c.b16 %v6335, %v6319
    %v7984 = vpack.c.b16 %v6336, %v6320
    %v7985 = vpack.c.b16 %v6337, %v6321
    %v7986 = vpack.c.b16 %v6338, %v6322
    %v7987 = vpack.c.b16 %v6339, %v6323
    %v7988 = vpack.c.b16 %v6340, %v6324
    %v7989 = vpack.c.b16 %v6341, %v6325
    %v7990 = vpack.c.b16 %v6342, %v6326
    %v7991 = vpack.c.b16 %v6343, %v6327
    %v7992 = vpack.c.b16 %v6344, %v6328
    %v7993 = vpack.c.b16 %v6345, %v6329
    %v7994 = vpack.c.b16 %v6346, %v6330
    %v7995 = vpack.c.b16 %v6363, %v6347
    %v7996 = vpack.c.b16 %v6364, %v6348
    %v7997 = vpack.c.b16 %v6365, %v6349
    %v7998 = vpack.c.b16 %v6366, %v6350
    %v7999 = vpack.c.b16 %v6367, %v6351
    %v8000 = vpack.c.b16 %v6368, %v6352
    %v8001 = vpack.c.b16 %v6369, %v6353
    %v8002 = vpack.c.b16 %v6370, %v6354
    %v8003 = vpack.c.b16 %v6371, %v6355
    %v8004 = vpack.c.b16 %v6372, %v6356
    %v8005 = vpack.c.b16 %v6373, %v6357
    %v8006 = vpack.c.b16 %v6374, %v6358
    %v8007 = vpack.c.b16 %v6375, %v6359
    %v8008 = vpack.c.b16 %v6376, %v6360
    %v8009 = vpack.c.b16 %v6377, %v6361
    %v8010 = vpack.c.b16 %v6378, %v6362
    %v8011 = vpack.c.b16 %v6395, %v6379
    %v8012 = vpack.c.b16 %v6396, %v6380
    %v8013 = vpack.c.b16 %v6397, %v6381
    %v8014 = vpack.c.b16 %v6398, %v6382
    %v8015 = vpack.c.b16 %v6399, %v6383
    %v8016 = vpack.c.b16 %v6400, %v6384
    %v8017 = vpack.c.b16 %v6401, %v6385
    %v8018 = vpack.c.b16 %v6402, %v6386
    %v8019 = vpack.c.b16 %v6403, %v6387
    %v8020 = vpack.c.b16 %v6404, %v6388
    %v8021 = vpack.c.b16 %v6405, %v6389
    %v8022 = vpack.c.b16 %v6406, %v6390
    %v8023 = vpack.c.b16 %v6407, %v6391
    %v8024 = vpack.c.b16 %v6408, %v6392
    %v8025 = vpack.c.b16 %v6409, %v6393
    %v8026 = vpack.c.b16 %v6410, %v6394
    %v8027 = vpack.c.b16 %v6427, %v6411
    %v8028 = vpack.c.b16 %v6428, %v6412
    %v8029 = vpack.c.b16 %v6429, %v6413
    %v8030 = vpack.c.b16 %v6430, %v6414
    %v8031 = vpack.c.b16 %v6431, %v6415
    %v8032 = vpack.c.b16 %v6432, %v6416
    %v8033 = vpack.c.b16 %v6433, %v6417
    %v8034 = vpack.c.b16 %v6434, %v6418
    %v8035 = vpack.c.b16 %v6435, %v6419
    %v8036 = vpack.c.b16 %v6436, %v6420
    %v8037 = vpack.c.b16 %v6437, %v6421
    %v8038 = vpack.c.b16 %v6438, %v6422
    %v8039 = vpack.c.b16 %v6439, %v6423
    %v8040 = vpack.c.b16 %v6440, %v6424
    %v8041 = vpack.c.b16 %v6441, %v6425
    %v8042 = vpack.c.b16 %v6442, %v6426
    %v8043 = vpack.c.b16 %v6459, %v6443
    %v8044 = vpack.c.b16 %v6460, %v6444
    %v8045 = vpack.c.b16 %v6461, %v6445
    %v8046 = vpack.c.b16 %v6462, %v6446
    %v8047 = vpack.c.b16 %v6463, %v6447
    %v8048 = vpack.c.b16 %v6464, %v6448
    %v8049 = vpack.c.b16 %v6465, %v6449
    %v8050 = vpack.c.b16 %v6466, %v6450
    %v8051 = vpack.c.b16 %v6467, %v6451
    %v8052 = vpack.c.b16 %v6468, %v6452
    %v8053 = vpack.c.b16 %v6469, %v6453
    %v8054 = vpack.c.b16 %v6470, %v6454
    %v8055 = vpack.c.b16 %v6471, %v6455
    %v8056 = vpack.c.b16 %v6472, %v6456
    %v8057 = vpack.c.b16 %v6473, %v6457
    %v8058 = vpack.c.b16 %v6474, %v6458
    %v8059 = vpack.c.b16 %v6491, %v6475
    %v8060 = vpack.c.b16 %v6492, %v6476
    %v8061 = vpack.c.b16 %v6493, %v6477
    %v8062 = vpack.c.b16 %v6494, %v6478
    %v8063 = vpack.c.b16 %v6495, %v6479
    %v8064 = vpack.c.b16 %v6496, %v6480
    %v8065 = vpack.c.b16 %v6497, %v6481
    %v8066 = vpack.c.b16 %v6498, %v6482
    %v8067 = vpack.c.b16 %v6499, %v6483
    %v8068 = vpack.c.b16 %v6500, %v6484
    %v8069 = vpack.c.b16 %v6501, %v6485
    %v8070 = vpack.c.b16 %v6502, %v6486
    %v8071 = vpack.c.b16 %v6503, %v6487
    %v8072 = vpack.c.b16 %v6504, %v6488
    %v8073 = vpack.c.b16 %v6505, %v6489
    %v8074 = vpack.c.b16 %v6506, %v6490
    %v8075 = vpack.c.b16 %v6523, %v6507
    %v8076 = vpack.c.b16 %v6524, %v6508
    %v8077 = vpack.c.b16 %v6525, %v6509
    %v8078 = vpack.c.b16 %v6526, %v6510
    %v8079 = vpack.c.b16 %v6527, %v6511
    %v8080 = vpack.c.b16 %v6528, %v6512
    %v8081 = vpack.c.b16 %v6529, %v6513
    %v8082 = vpack.c.b16 %v6530, %v6514
    %v8083 = vpack.c.b16 %v6531, %v6515
    %v8084 = vpack.c.b16 %v6532, %v6516
    %v8085 = vpack.c.b16 %v6533, %v6517
    %v8086 = vpack.c.b16 %v6534, %v6518
    %v8087 = vpack.c.b16 %v6535, %v6519
    %v8088 = vpack.c.b16 %v6536, %v6520
    %v8089 = vpack.c.b16 %v6537, %v6521
    %v8090 = vpack.c.b16 %v6538, %v6522
    %v8091 = vpack.c.b16 %v6555, %v6539
    %v8092 = vpack.c.b16 %v6556, %v6540
    %v8093 = vpack.c.b16 %v6557, %v6541
    %v8094 = vpack.c.b16 %v6558, %v6542
    %v8095 = vpack.c.b16 %v6559, %v6543
    %v8096 = vpack.c.b16 %v6560, %v6544
    %v8097 = vpack.c.b16 %v6561, %v6545
    %v8098 = vpack.c.b16 %v6562, %v6546
    %v8099 = vpack.c.b16 %v6563, %v6547
    %v8100 = vpack.c.b16 %v6564, %v6548
    %v8101 = vpack.c.b16 %v6565, %v6549
    %v8102 = vpack.c.b16 %v6566, %v6550
    %v8103 = vpack.c.b16 %v6567, %v6551
    %v8104 = vpack.c.b16 %v6568, %v6552
    %v8105 = vpack.c.b16 %v6569, %v6553
    %v8106 = vpack.c.b16 %v6570, %v6554
    %9643 = vmatpush.bf16.msra.mxu0 %v6683
    %9644 = vmatpush.bf16.msra.mxu0 %v6667
    %9645 = vmatpush.bf16.msra.mxu0 %v6651
    %9646 = vmatpush.bf16.msra.mxu0 %v6635
    %9647 = vmatpush.bf16.msra.mxu0 %v6619
    %9648 = vmatpush.bf16.msra.mxu0 %v6603
    %9649 = vmatpush.bf16.msra.mxu0 %v6587
    %9650 = vmatpush.bf16.msra.mxu0 %v6571
    %9651 = vmatmul.bf16.gmra.mxu0 %v379
    %v9652 = vpop.f32.mrf.mxu0
    %v9653 = vadd.f32 %v1931, %v9652
    %v9654 = vpop.f32.mrf.mxu0
    %9655 = vdwg.mxu0
    %9656 = vmatpush.bf16.msra.mxu0 %v6811
    %9657 = vmatpush.bf16.msra.mxu0 %v6795
    %9658 = vmatpush.bf16.msra.mxu0 %v6779
    %9659 = vmatpush.bf16.msra.mxu0 %v6763
    %9660 = vmatpush.bf16.msra.mxu0 %v6747
    %9661 = vmatpush.bf16.msra.mxu0 %v6731
    %9662 = vmatpush.bf16.msra.mxu0 %v6715
    %9663 = vmatpush.bf16.msra.mxu0 %v6699
    %9664 = vmatmul.bf16.gmra.mxu0 %v380
    %v9665 = vpop.f32.mrf.mxu0
    %v9666 = vadd.f32 %v9653, %v9665
    %v9667 = vpop.f32.mrf.mxu0
    %9668 = vdwg.mxu0
    %9669 = vmatpush.bf16.msra.mxu0 %v6939
    %9670 = vmatpush.bf16.msra.mxu0 %v6923
    %9671 = vmatpush.bf16.msra.mxu0 %v6907
    %9672 = vmatpush.bf16.msra.mxu0 %v6891
    %9673 = vmatpush.bf16.msra.mxu0 %v6875
    %9674 = vmatpush.bf16.msra.mxu0 %v6859
    %9675 = vmatpush.bf16.msra.mxu0 %v6843
    %9676 = vmatpush.bf16.msra.mxu0 %v6827
    %9677 = vmatmul.bf16.gmra.mxu0 %v381
    %v9678 = vpop.f32.mrf.mxu0
    %v9679 = vadd.f32 %v9666, %v9678
    %v9680 = vpop.f32.mrf.mxu0
    %9681 = vdwg.mxu0
    %9682 = vmatpush.bf16.msra.mxu0 %v7067
    %9683 = vmatpush.bf16.msra.mxu0 %v7051
    %9684 = vmatpush.bf16.msra.mxu0 %v7035
    %9685 = vmatpush.bf16.msra.mxu0 %v7019
    %9686 = vmatpush.bf16.msra.mxu0 %v7003
    %9687 = vmatpush.bf16.msra.mxu0 %v6987
    %9688 = vmatpush.bf16.msra.mxu0 %v6971
    %9689 = vmatpush.bf16.msra.mxu0 %v6955
    %9690 = vmatmul.bf16.gmra.mxu0 %v382
    %v9691 = vpop.f32.mrf.mxu0
    %v9692 = vadd.f32 %v9679, %v9691
    %v9693 = vpop.f32.mrf.mxu0
    %9694 = vdwg.mxu0
    %9695 = vmatpush.bf16.msra.mxu0 %v7195
    %9696 = vmatpush.bf16.msra.mxu0 %v7179
    %9697 = vmatpush.bf16.msra.mxu0 %v7163
    %9698 = vmatpush.bf16.msra.mxu0 %v7147
    %9699 = vmatpush.bf16.msra.mxu0 %v7131
    %9700 = vmatpush.bf16.msra.mxu0 %v7115
    %9701 = vmatpush.bf16.msra.mxu0 %v7099
    %9702 = vmatpush.bf16.msra.mxu0 %v7083
    %9703 = vmatmul.bf16.gmra.mxu0 %v383
    %v9704 = vpop.f32.mrf.mxu0
    %v9705 = vadd.f32 %v9692, %v9704
    %v9706 = vpop.f32.mrf.mxu0
    %9707 = vdwg.mxu0
    %9708 = vmatpush.bf16.msra.mxu0 %v7323
    %9709 = vmatpush.bf16.msra.mxu0 %v7307
    %9710 = vmatpush.bf16.msra.mxu0 %v7291
    %9711 = vmatpush.bf16.msra.mxu0 %v7275
    %9712 = vmatpush.bf16.msra.mxu0 %v7259
    %9713 = vmatpush.bf16.msra.mxu0 %v7243
    %9714 = vmatpush.bf16.msra.mxu0 %v7227
    %9715 = vmatpush.bf16.msra.mxu0 %v7211
    %9716 = vmatmul.bf16.gmra.mxu0 %v384
    %v9717 = vpop.f32.mrf.mxu0
    %v9718 = vadd.f32 %v9705, %v9717
    %v9719 = vpop.f32.mrf.mxu0
    %9720 = vdwg.mxu0
    %9721 = vmatpush.bf16.msra.mxu0 %v7451
    %9722 = vmatpush.bf16.msra.mxu0 %v7435
    %9723 = vmatpush.bf16.msra.mxu0 %v7419
    %9724 = vmatpush.bf16.msra.mxu0 %v7403
    %9725 = vmatpush.bf16.msra.mxu0 %v7387
    %9726 = vmatpush.bf16.msra.mxu0 %v7371
    %9727 = vmatpush.bf16.msra.mxu0 %v7355
    %9728 = vmatpush.bf16.msra.mxu0 %v7339
    %9729 = vmatmul.bf16.gmra.mxu0 %v385
    %v9730 = vpop.f32.mrf.mxu0
    %v9731 = vadd.f32 %v9718, %v9730
    %v9732 = vpop.f32.mrf.mxu0
    %9733 = vdwg.mxu0
    %9734 = vmatpush.bf16.msra.mxu0 %v7579
    %9735 = vmatpush.bf16.msra.mxu0 %v7563
    %9736 = vmatpush.bf16.msra.mxu0 %v7547
    %9737 = vmatpush.bf16.msra.mxu0 %v7531
    %9738 = vmatpush.bf16.msra.mxu0 %v7515
    %9739 = vmatpush.bf16.msra.mxu0 %v7499
    %9740 = vmatpush.bf16.msra.mxu0 %v7483
    %9741 = vmatpush.bf16.msra.mxu0 %v7467
    %9742 = vmatmul.bf16.gmra.mxu0 %v386
    %v9743 = vpop.f32.mrf.mxu0
    %v9744 = vadd.f32 %v9731, %v9743
    %v9745 = vpop.f32.mrf.mxu0
    %9746 = vdwg.mxu0
    %9747 = vmatpush.bf16.msra.mxu0 %v7707
    %9748 = vmatpush.bf16.msra.mxu0 %v7691
    %9749 = vmatpush.bf16.msra.mxu0 %v7675
    %9750 = vmatpush.bf16.msra.mxu0 %v7659
    %9751 = vmatpush.bf16.msra.mxu0 %v7643
    %9752 = vmatpush.bf16.msra.mxu0 %v7627
    %9753 = vmatpush.bf16.msra.mxu0 %v7611
    %9754 = vmatpush.bf16.msra.mxu0 %v7595
    %9755 = vmatmul.bf16.gmra.mxu0 %v387
    %v9756 = vpop.f32.mrf.mxu0
    %v9757 = vadd.f32 %v9744, %v9756
    %v9758 = vpop.f32.mrf.mxu0
    %9759 = vdwg.mxu0
    %9760 = vmatpush.bf16.msra.mxu0 %v7835
    %9761 = vmatpush.bf16.msra.mxu0 %v7819
    %9762 = vmatpush.bf16.msra.mxu0 %v7803
    %9763 = vmatpush.bf16.msra.mxu0 %v7787
    %9764 = vmatpush.bf16.msra.mxu0 %v7771
    %9765 = vmatpush.bf16.msra.mxu0 %v7755
    %9766 = vmatpush.bf16.msra.mxu0 %v7739
    %9767 = vmatpush.bf16.msra.mxu0 %v7723
    %9768 = vmatmul.bf16.gmra.mxu0 %v388
    %v9769 = vpop.f32.mrf.mxu0
    %v9770 = vadd.f32 %v9757, %v9769
    %v9771 = vpop.f32.mrf.mxu0
    %9772 = vdwg.mxu0
    %9773 = vmatpush.bf16.msra.mxu0 %v7963
    %9774 = vmatpush.bf16.msra.mxu0 %v7947
    %9775 = vmatpush.bf16.msra.mxu0 %v7931
    %9776 = vmatpush.bf16.msra.mxu0 %v7915
    %9777 = vmatpush.bf16.msra.mxu0 %v7899
    %9778 = vmatpush.bf16.msra.mxu0 %v7883
    %9779 = vmatpush.bf16.msra.mxu0 %v7867
    %9780 = vmatpush.bf16.msra.mxu0 %v7851
    %9781 = vmatmul.bf16.gmra.mxu0 %v389
    %v9782 = vpop.f32.mrf.mxu0
    %v9783 = vadd.f32 %v9770, %v9782
    %v9784 = vpop.f32.mrf.mxu0
    %9785 = vdwg.mxu0
    %9786 = vmatpush.bf16.msra.mxu0 %v8091
    %9787 = vmatpush.bf16.msra.mxu0 %v8075
    %9788 = vmatpush.bf16.msra.mxu0 %v8059
    %9789 = vmatpush.bf16.msra.mxu0 %v8043
    %9790 = vmatpush.bf16.msra.mxu0 %v8027
    %9791 = vmatpush.bf16.msra.mxu0 %v8011
    %9792 = vmatpush.bf16.msra.mxu0 %v7995
    %9793 = vmatpush.bf16.msra.mxu0 %v7979
    %9794 = vmatmul.bf16.gmra.mxu0 %v390
    %v9795 = vpop.f32.mrf.mxu0
    %v9796 = vadd.f32 %v9783, %v9795
    %v9797 = vpop.f32.mrf.mxu0
    %9798 = vdwg.mxu0
    %9799 = vmatpush.bf16.msra.mxu0 %v6684
    %9800 = vmatpush.bf16.msra.mxu0 %v6668
    %9801 = vmatpush.bf16.msra.mxu0 %v6652
    %9802 = vmatpush.bf16.msra.mxu0 %v6636
    %9803 = vmatpush.bf16.msra.mxu0 %v6620
    %9804 = vmatpush.bf16.msra.mxu0 %v6604
    %9805 = vmatpush.bf16.msra.mxu0 %v6588
    %9806 = vmatpush.bf16.msra.mxu0 %v6572
    %9807 = vmatmul.bf16.gmra.mxu0 %v379
    %v9808 = vpop.f32.mrf.mxu0
    %v9809 = vadd.f32 %v1932, %v9808
    %v9810 = vpop.f32.mrf.mxu0
    %9811 = vdwg.mxu0
    %9812 = vmatpush.bf16.msra.mxu0 %v6812
    %9813 = vmatpush.bf16.msra.mxu0 %v6796
    %9814 = vmatpush.bf16.msra.mxu0 %v6780
    %9815 = vmatpush.bf16.msra.mxu0 %v6764
    %9816 = vmatpush.bf16.msra.mxu0 %v6748
    %9817 = vmatpush.bf16.msra.mxu0 %v6732
    %9818 = vmatpush.bf16.msra.mxu0 %v6716
    %9819 = vmatpush.bf16.msra.mxu0 %v6700
    %9820 = vmatmul.bf16.gmra.mxu0 %v380
    %v9821 = vpop.f32.mrf.mxu0
    %v9822 = vadd.f32 %v9809, %v9821
    %v9823 = vpop.f32.mrf.mxu0
    %9824 = vdwg.mxu0
    %9825 = vmatpush.bf16.msra.mxu0 %v6940
    %9826 = vmatpush.bf16.msra.mxu0 %v6924
    %9827 = vmatpush.bf16.msra.mxu0 %v6908
    %9828 = vmatpush.bf16.msra.mxu0 %v6892
    %9829 = vmatpush.bf16.msra.mxu0 %v6876
    %9830 = vmatpush.bf16.msra.mxu0 %v6860
    %9831 = vmatpush.bf16.msra.mxu0 %v6844
    %9832 = vmatpush.bf16.msra.mxu0 %v6828
    %9833 = vmatmul.bf16.gmra.mxu0 %v381
    %v9834 = vpop.f32.mrf.mxu0
    %v9835 = vadd.f32 %v9822, %v9834
    %v9836 = vpop.f32.mrf.mxu0
    %9837 = vdwg.mxu0
    %9838 = vmatpush.bf16.msra.mxu0 %v7068
    %9839 = vmatpush.bf16.msra.mxu0 %v7052
    %9840 = vmatpush.bf16.msra.mxu0 %v7036
    %9841 = vmatpush.bf16.msra.mxu0 %v7020
    %9842 = vmatpush.bf16.msra.mxu0 %v7004
    %9843 = vmatpush.bf16.msra.mxu0 %v6988
    %9844 = vmatpush.bf16.msra.mxu0 %v6972
    %9845 = vmatpush.bf16.msra.mxu0 %v6956
    %9846 = vmatmul.bf16.gmra.mxu0 %v382
    %v9847 = vpop.f32.mrf.mxu0
    %v9848 = vadd.f32 %v9835, %v9847
    %v9849 = vpop.f32.mrf.mxu0
    %9850 = vdwg.mxu0
    %9851 = vmatpush.bf16.msra.mxu0 %v7196
    %9852 = vmatpush.bf16.msra.mxu0 %v7180
    %9853 = vmatpush.bf16.msra.mxu0 %v7164
    %9854 = vmatpush.bf16.msra.mxu0 %v7148
    %9855 = vmatpush.bf16.msra.mxu0 %v7132
    %9856 = vmatpush.bf16.msra.mxu0 %v7116
    %9857 = vmatpush.bf16.msra.mxu0 %v7100
    %9858 = vmatpush.bf16.msra.mxu0 %v7084
    %9859 = vmatmul.bf16.gmra.mxu0 %v383
    %v9860 = vpop.f32.mrf.mxu0
    %v9861 = vadd.f32 %v9848, %v9860
    %v9862 = vpop.f32.mrf.mxu0
    %9863 = vdwg.mxu0
    %9864 = vmatpush.bf16.msra.mxu0 %v7324
    %9865 = vmatpush.bf16.msra.mxu0 %v7308
    %9866 = vmatpush.bf16.msra.mxu0 %v7292
    %9867 = vmatpush.bf16.msra.mxu0 %v7276
    %9868 = vmatpush.bf16.msra.mxu0 %v7260
    %9869 = vmatpush.bf16.msra.mxu0 %v7244
    %9870 = vmatpush.bf16.msra.mxu0 %v7228
    %9871 = vmatpush.bf16.msra.mxu0 %v7212
    %9872 = vmatmul.bf16.gmra.mxu0 %v384
    %v9873 = vpop.f32.mrf.mxu0
    %v9874 = vadd.f32 %v9861, %v9873
    %v9875 = vpop.f32.mrf.mxu0
    %9876 = vdwg.mxu0
    %9877 = vmatpush.bf16.msra.mxu0 %v7452
    %9878 = vmatpush.bf16.msra.mxu0 %v7436
    %9879 = vmatpush.bf16.msra.mxu0 %v7420
    %9880 = vmatpush.bf16.msra.mxu0 %v7404
    %9881 = vmatpush.bf16.msra.mxu0 %v7388
    %9882 = vmatpush.bf16.msra.mxu0 %v7372
    %9883 = vmatpush.bf16.msra.mxu0 %v7356
    %9884 = vmatpush.bf16.msra.mxu0 %v7340
    %9885 = vmatmul.bf16.gmra.mxu0 %v385
    %v9886 = vpop.f32.mrf.mxu0
    %v9887 = vadd.f32 %v9874, %v9886
    %v9888 = vpop.f32.mrf.mxu0
    %9889 = vdwg.mxu0
    %9890 = vmatpush.bf16.msra.mxu0 %v7580
    %9891 = vmatpush.bf16.msra.mxu0 %v7564
    %9892 = vmatpush.bf16.msra.mxu0 %v7548
    %9893 = vmatpush.bf16.msra.mxu0 %v7532
    %9894 = vmatpush.bf16.msra.mxu0 %v7516
    %9895 = vmatpush.bf16.msra.mxu0 %v7500
    %9896 = vmatpush.bf16.msra.mxu0 %v7484
    %9897 = vmatpush.bf16.msra.mxu0 %v7468
    %9898 = vmatmul.bf16.gmra.mxu0 %v386
    %v9899 = vpop.f32.mrf.mxu0
    %v9900 = vadd.f32 %v9887, %v9899
    %v9901 = vpop.f32.mrf.mxu0
    %9902 = vdwg.mxu0
    %9903 = vmatpush.bf16.msra.mxu0 %v7708
    %9904 = vmatpush.bf16.msra.mxu0 %v7692
    %9905 = vmatpush.bf16.msra.mxu0 %v7676
    %9906 = vmatpush.bf16.msra.mxu0 %v7660
    %9907 = vmatpush.bf16.msra.mxu0 %v7644
    %9908 = vmatpush.bf16.msra.mxu0 %v7628
    %9909 = vmatpush.bf16.msra.mxu0 %v7612
    %9910 = vmatpush.bf16.msra.mxu0 %v7596
    %9911 = vmatmul.bf16.gmra.mxu0 %v387
    %v9912 = vpop.f32.mrf.mxu0
    %v9913 = vadd.f32 %v9900, %v9912
    %v9914 = vpop.f32.mrf.mxu0
    %9915 = vdwg.mxu0
    %9916 = vmatpush.bf16.msra.mxu0 %v7836
    %9917 = vmatpush.bf16.msra.mxu0 %v7820
    %9918 = vmatpush.bf16.msra.mxu0 %v7804
    %9919 = vmatpush.bf16.msra.mxu0 %v7788
    %9920 = vmatpush.bf16.msra.mxu0 %v7772
    %9921 = vmatpush.bf16.msra.mxu0 %v7756
    %9922 = vmatpush.bf16.msra.mxu0 %v7740
    %9923 = vmatpush.bf16.msra.mxu0 %v7724
    %9924 = vmatmul.bf16.gmra.mxu0 %v388
    %v9925 = vpop.f32.mrf.mxu0
    %v9926 = vadd.f32 %v9913, %v9925
    %v9927 = vpop.f32.mrf.mxu0
    %9928 = vdwg.mxu0
    %9929 = vmatpush.bf16.msra.mxu0 %v7964
    %9930 = vmatpush.bf16.msra.mxu0 %v7948
    %9931 = vmatpush.bf16.msra.mxu0 %v7932
    %9932 = vmatpush.bf16.msra.mxu0 %v7916
    %9933 = vmatpush.bf16.msra.mxu0 %v7900
    %9934 = vmatpush.bf16.msra.mxu0 %v7884
    %9935 = vmatpush.bf16.msra.mxu0 %v7868
    %9936 = vmatpush.bf16.msra.mxu0 %v7852
    %9937 = vmatmul.bf16.gmra.mxu0 %v389
    %v9938 = vpop.f32.mrf.mxu0
    %v9939 = vadd.f32 %v9926, %v9938
    %v9940 = vpop.f32.mrf.mxu0
    %9941 = vdwg.mxu0
    %9942 = vmatpush.bf16.msra.mxu0 %v8092
    %9943 = vmatpush.bf16.msra.mxu0 %v8076
    %9944 = vmatpush.bf16.msra.mxu0 %v8060
    %9945 = vmatpush.bf16.msra.mxu0 %v8044
    %9946 = vmatpush.bf16.msra.mxu0 %v8028
    %9947 = vmatpush.bf16.msra.mxu0 %v8012
    %9948 = vmatpush.bf16.msra.mxu0 %v7996
    %9949 = vmatpush.bf16.msra.mxu0 %v7980
    %9950 = vmatmul.bf16.gmra.mxu0 %v390
    %v9951 = vpop.f32.mrf.mxu0
    %v9952 = vadd.f32 %v9939, %v9951
    %v9953 = vpop.f32.mrf.mxu0
    %9954 = vdwg.mxu0
    %9955 = vmatpush.bf16.msra.mxu0 %v6685
    %9956 = vmatpush.bf16.msra.mxu0 %v6669
    %9957 = vmatpush.bf16.msra.mxu0 %v6653
    %9958 = vmatpush.bf16.msra.mxu0 %v6637
    %9959 = vmatpush.bf16.msra.mxu0 %v6621
    %9960 = vmatpush.bf16.msra.mxu0 %v6605
    %9961 = vmatpush.bf16.msra.mxu0 %v6589
    %9962 = vmatpush.bf16.msra.mxu0 %v6573
    %9963 = vmatmul.bf16.gmra.mxu0 %v379
    %v9964 = vpop.f32.mrf.mxu0
    %v9965 = vadd.f32 %v1933, %v9964
    %v9966 = vpop.f32.mrf.mxu0
    %9967 = vdwg.mxu0
    %9968 = vmatpush.bf16.msra.mxu0 %v6813
    %9969 = vmatpush.bf16.msra.mxu0 %v6797
    %9970 = vmatpush.bf16.msra.mxu0 %v6781
    %9971 = vmatpush.bf16.msra.mxu0 %v6765
    %9972 = vmatpush.bf16.msra.mxu0 %v6749
    %9973 = vmatpush.bf16.msra.mxu0 %v6733
    %9974 = vmatpush.bf16.msra.mxu0 %v6717
    %9975 = vmatpush.bf16.msra.mxu0 %v6701
    %9976 = vmatmul.bf16.gmra.mxu0 %v380
    %v9977 = vpop.f32.mrf.mxu0
    %v9978 = vadd.f32 %v9965, %v9977
    %v9979 = vpop.f32.mrf.mxu0
    %9980 = vdwg.mxu0
    %9981 = vmatpush.bf16.msra.mxu0 %v6941
    %9982 = vmatpush.bf16.msra.mxu0 %v6925
    %9983 = vmatpush.bf16.msra.mxu0 %v6909
    %9984 = vmatpush.bf16.msra.mxu0 %v6893
    %9985 = vmatpush.bf16.msra.mxu0 %v6877
    %9986 = vmatpush.bf16.msra.mxu0 %v6861
    %9987 = vmatpush.bf16.msra.mxu0 %v6845
    %9988 = vmatpush.bf16.msra.mxu0 %v6829
    %9989 = vmatmul.bf16.gmra.mxu0 %v381
    %v9990 = vpop.f32.mrf.mxu0
    %v9991 = vadd.f32 %v9978, %v9990
    %v9992 = vpop.f32.mrf.mxu0
    %9993 = vdwg.mxu0
    %9994 = vmatpush.bf16.msra.mxu0 %v7069
    %9995 = vmatpush.bf16.msra.mxu0 %v7053
    %9996 = vmatpush.bf16.msra.mxu0 %v7037
    %9997 = vmatpush.bf16.msra.mxu0 %v7021
    %9998 = vmatpush.bf16.msra.mxu0 %v7005
    %9999 = vmatpush.bf16.msra.mxu0 %v6989
    %10000 = vmatpush.bf16.msra.mxu0 %v6973
    %10001 = vmatpush.bf16.msra.mxu0 %v6957
    %10002 = vmatmul.bf16.gmra.mxu0 %v382
    %v10003 = vpop.f32.mrf.mxu0
    %v10004 = vadd.f32 %v9991, %v10003
    %v10005 = vpop.f32.mrf.mxu0
    %10006 = vdwg.mxu0
    %10007 = vmatpush.bf16.msra.mxu0 %v7197
    %10008 = vmatpush.bf16.msra.mxu0 %v7181
    %10009 = vmatpush.bf16.msra.mxu0 %v7165
    %10010 = vmatpush.bf16.msra.mxu0 %v7149
    %10011 = vmatpush.bf16.msra.mxu0 %v7133
    %10012 = vmatpush.bf16.msra.mxu0 %v7117
    %10013 = vmatpush.bf16.msra.mxu0 %v7101
    %10014 = vmatpush.bf16.msra.mxu0 %v7085
    %10015 = vmatmul.bf16.gmra.mxu0 %v383
    %v10016 = vpop.f32.mrf.mxu0
    %v10017 = vadd.f32 %v10004, %v10016
    %v10018 = vpop.f32.mrf.mxu0
    %10019 = vdwg.mxu0
    %10020 = vmatpush.bf16.msra.mxu0 %v7325
    %10021 = vmatpush.bf16.msra.mxu0 %v7309
    %10022 = vmatpush.bf16.msra.mxu0 %v7293
    %10023 = vmatpush.bf16.msra.mxu0 %v7277
    %10024 = vmatpush.bf16.msra.mxu0 %v7261
    %10025 = vmatpush.bf16.msra.mxu0 %v7245
    %10026 = vmatpush.bf16.msra.mxu0 %v7229
    %10027 = vmatpush.bf16.msra.mxu0 %v7213
    %10028 = vmatmul.bf16.gmra.mxu0 %v384
    %v10029 = vpop.f32.mrf.mxu0
    %v10030 = vadd.f32 %v10017, %v10029
    %v10031 = vpop.f32.mrf.mxu0
    %10032 = vdwg.mxu0
    %10033 = vmatpush.bf16.msra.mxu0 %v7453
    %10034 = vmatpush.bf16.msra.mxu0 %v7437
    %10035 = vmatpush.bf16.msra.mxu0 %v7421
    %10036 = vmatpush.bf16.msra.mxu0 %v7405
    %10037 = vmatpush.bf16.msra.mxu0 %v7389
    %10038 = vmatpush.bf16.msra.mxu0 %v7373
    %10039 = vmatpush.bf16.msra.mxu0 %v7357
    %10040 = vmatpush.bf16.msra.mxu0 %v7341
    %10041 = vmatmul.bf16.gmra.mxu0 %v385
    %v10042 = vpop.f32.mrf.mxu0
    %v10043 = vadd.f32 %v10030, %v10042
    %v10044 = vpop.f32.mrf.mxu0
    %10045 = vdwg.mxu0
    %10046 = vmatpush.bf16.msra.mxu0 %v7581
    %10047 = vmatpush.bf16.msra.mxu0 %v7565
    %10048 = vmatpush.bf16.msra.mxu0 %v7549
    %10049 = vmatpush.bf16.msra.mxu0 %v7533
    %10050 = vmatpush.bf16.msra.mxu0 %v7517
    %10051 = vmatpush.bf16.msra.mxu0 %v7501
    %10052 = vmatpush.bf16.msra.mxu0 %v7485
    %10053 = vmatpush.bf16.msra.mxu0 %v7469
    %10054 = vmatmul.bf16.gmra.mxu0 %v386
    %v10055 = vpop.f32.mrf.mxu0
    %v10056 = vadd.f32 %v10043, %v10055
    %v10057 = vpop.f32.mrf.mxu0
    %10058 = vdwg.mxu0
    %10059 = vmatpush.bf16.msra.mxu0 %v7709
    %10060 = vmatpush.bf16.msra.mxu0 %v7693
    %10061 = vmatpush.bf16.msra.mxu0 %v7677
    %10062 = vmatpush.bf16.msra.mxu0 %v7661
    %10063 = vmatpush.bf16.msra.mxu0 %v7645
    %10064 = vmatpush.bf16.msra.mxu0 %v7629
    %10065 = vmatpush.bf16.msra.mxu0 %v7613
    %10066 = vmatpush.bf16.msra.mxu0 %v7597
    %10067 = vmatmul.bf16.gmra.mxu0 %v387
    %v10068 = vpop.f32.mrf.mxu0
    %v10069 = vadd.f32 %v10056, %v10068
    %v10070 = vpop.f32.mrf.mxu0
    %10071 = vdwg.mxu0
    %10072 = vmatpush.bf16.msra.mxu0 %v7837
    %10073 = vmatpush.bf16.msra.mxu0 %v7821
    %10074 = vmatpush.bf16.msra.mxu0 %v7805
    %10075 = vmatpush.bf16.msra.mxu0 %v7789
    %10076 = vmatpush.bf16.msra.mxu0 %v7773
    %10077 = vmatpush.bf16.msra.mxu0 %v7757
    %10078 = vmatpush.bf16.msra.mxu0 %v7741
    %10079 = vmatpush.bf16.msra.mxu0 %v7725
    %10080 = vmatmul.bf16.gmra.mxu0 %v388
    %v10081 = vpop.f32.mrf.mxu0
    %v10082 = vadd.f32 %v10069, %v10081
    %v10083 = vpop.f32.mrf.mxu0
    %10084 = vdwg.mxu0
    %10085 = vmatpush.bf16.msra.mxu0 %v7965
    %10086 = vmatpush.bf16.msra.mxu0 %v7949
    %10087 = vmatpush.bf16.msra.mxu0 %v7933
    %10088 = vmatpush.bf16.msra.mxu0 %v7917
    %10089 = vmatpush.bf16.msra.mxu0 %v7901
    %10090 = vmatpush.bf16.msra.mxu0 %v7885
    %10091 = vmatpush.bf16.msra.mxu0 %v7869
    %10092 = vmatpush.bf16.msra.mxu0 %v7853
    %10093 = vmatmul.bf16.gmra.mxu0 %v389
    %v10094 = vpop.f32.mrf.mxu0
    %v10095 = vadd.f32 %v10082, %v10094
    %v10096 = vpop.f32.mrf.mxu0
    %10097 = vdwg.mxu0
    %10098 = vmatpush.bf16.msra.mxu0 %v8093
    %10099 = vmatpush.bf16.msra.mxu0 %v8077
    %10100 = vmatpush.bf16.msra.mxu0 %v8061
    %10101 = vmatpush.bf16.msra.mxu0 %v8045
    %10102 = vmatpush.bf16.msra.mxu0 %v8029
    %10103 = vmatpush.bf16.msra.mxu0 %v8013
    %10104 = vmatpush.bf16.msra.mxu0 %v7997
    %10105 = vmatpush.bf16.msra.mxu0 %v7981
    %10106 = vmatmul.bf16.gmra.mxu0 %v390
    %v10107 = vpop.f32.mrf.mxu0
    %v10108 = vadd.f32 %v10095, %v10107
    %v10109 = vpop.f32.mrf.mxu0
    %10110 = vdwg.mxu0
    %10111 = vmatpush.bf16.msra.mxu0 %v6686
    %10112 = vmatpush.bf16.msra.mxu0 %v6670
    %10113 = vmatpush.bf16.msra.mxu0 %v6654
    %10114 = vmatpush.bf16.msra.mxu0 %v6638
    %10115 = vmatpush.bf16.msra.mxu0 %v6622
    %10116 = vmatpush.bf16.msra.mxu0 %v6606
    %10117 = vmatpush.bf16.msra.mxu0 %v6590
    %10118 = vmatpush.bf16.msra.mxu0 %v6574
    %10119 = vmatmul.bf16.gmra.mxu0 %v379
    %v10120 = vpop.f32.mrf.mxu0
    %v10121 = vadd.f32 %v1934, %v10120
    %v10122 = vpop.f32.mrf.mxu0
    %10123 = vdwg.mxu0
    %10124 = vmatpush.bf16.msra.mxu0 %v6814
    %10125 = vmatpush.bf16.msra.mxu0 %v6798
    %10126 = vmatpush.bf16.msra.mxu0 %v6782
    %10127 = vmatpush.bf16.msra.mxu0 %v6766
    %10128 = vmatpush.bf16.msra.mxu0 %v6750
    %10129 = vmatpush.bf16.msra.mxu0 %v6734
    %10130 = vmatpush.bf16.msra.mxu0 %v6718
    %10131 = vmatpush.bf16.msra.mxu0 %v6702
    %10132 = vmatmul.bf16.gmra.mxu0 %v380
    %v10133 = vpop.f32.mrf.mxu0
    %v10134 = vadd.f32 %v10121, %v10133
    %v10135 = vpop.f32.mrf.mxu0
    %10136 = vdwg.mxu0
    %10137 = vmatpush.bf16.msra.mxu0 %v6942
    %10138 = vmatpush.bf16.msra.mxu0 %v6926
    %10139 = vmatpush.bf16.msra.mxu0 %v6910
    %10140 = vmatpush.bf16.msra.mxu0 %v6894
    %10141 = vmatpush.bf16.msra.mxu0 %v6878
    %10142 = vmatpush.bf16.msra.mxu0 %v6862
    %10143 = vmatpush.bf16.msra.mxu0 %v6846
    %10144 = vmatpush.bf16.msra.mxu0 %v6830
    %10145 = vmatmul.bf16.gmra.mxu0 %v381
    %v10146 = vpop.f32.mrf.mxu0
    %v10147 = vadd.f32 %v10134, %v10146
    %v10148 = vpop.f32.mrf.mxu0
    %10149 = vdwg.mxu0
    %10150 = vmatpush.bf16.msra.mxu0 %v7070
    %10151 = vmatpush.bf16.msra.mxu0 %v7054
    %10152 = vmatpush.bf16.msra.mxu0 %v7038
    %10153 = vmatpush.bf16.msra.mxu0 %v7022
    %10154 = vmatpush.bf16.msra.mxu0 %v7006
    %10155 = vmatpush.bf16.msra.mxu0 %v6990
    %10156 = vmatpush.bf16.msra.mxu0 %v6974
    %10157 = vmatpush.bf16.msra.mxu0 %v6958
    %10158 = vmatmul.bf16.gmra.mxu0 %v382
    %v10159 = vpop.f32.mrf.mxu0
    %v10160 = vadd.f32 %v10147, %v10159
    %v10161 = vpop.f32.mrf.mxu0
    %10162 = vdwg.mxu0
    %10163 = vmatpush.bf16.msra.mxu0 %v7198
    %10164 = vmatpush.bf16.msra.mxu0 %v7182
    %10165 = vmatpush.bf16.msra.mxu0 %v7166
    %10166 = vmatpush.bf16.msra.mxu0 %v7150
    %10167 = vmatpush.bf16.msra.mxu0 %v7134
    %10168 = vmatpush.bf16.msra.mxu0 %v7118
    %10169 = vmatpush.bf16.msra.mxu0 %v7102
    %10170 = vmatpush.bf16.msra.mxu0 %v7086
    %10171 = vmatmul.bf16.gmra.mxu0 %v383
    %v10172 = vpop.f32.mrf.mxu0
    %v10173 = vadd.f32 %v10160, %v10172
    %v10174 = vpop.f32.mrf.mxu0
    %10175 = vdwg.mxu0
    %10176 = vmatpush.bf16.msra.mxu0 %v7326
    %10177 = vmatpush.bf16.msra.mxu0 %v7310
    %10178 = vmatpush.bf16.msra.mxu0 %v7294
    %10179 = vmatpush.bf16.msra.mxu0 %v7278
    %10180 = vmatpush.bf16.msra.mxu0 %v7262
    %10181 = vmatpush.bf16.msra.mxu0 %v7246
    %10182 = vmatpush.bf16.msra.mxu0 %v7230
    %10183 = vmatpush.bf16.msra.mxu0 %v7214
    %10184 = vmatmul.bf16.gmra.mxu0 %v384
    %v10185 = vpop.f32.mrf.mxu0
    %v10186 = vadd.f32 %v10173, %v10185
    %v10187 = vpop.f32.mrf.mxu0
    %10188 = vdwg.mxu0
    %10189 = vmatpush.bf16.msra.mxu0 %v7454
    %10190 = vmatpush.bf16.msra.mxu0 %v7438
    %10191 = vmatpush.bf16.msra.mxu0 %v7422
    %10192 = vmatpush.bf16.msra.mxu0 %v7406
    %10193 = vmatpush.bf16.msra.mxu0 %v7390
    %10194 = vmatpush.bf16.msra.mxu0 %v7374
    %10195 = vmatpush.bf16.msra.mxu0 %v7358
    %10196 = vmatpush.bf16.msra.mxu0 %v7342
    %10197 = vmatmul.bf16.gmra.mxu0 %v385
    %v10198 = vpop.f32.mrf.mxu0
    %v10199 = vadd.f32 %v10186, %v10198
    %v10200 = vpop.f32.mrf.mxu0
    %10201 = vdwg.mxu0
    %10202 = vmatpush.bf16.msra.mxu0 %v7582
    %10203 = vmatpush.bf16.msra.mxu0 %v7566
    %10204 = vmatpush.bf16.msra.mxu0 %v7550
    %10205 = vmatpush.bf16.msra.mxu0 %v7534
    %10206 = vmatpush.bf16.msra.mxu0 %v7518
    %10207 = vmatpush.bf16.msra.mxu0 %v7502
    %10208 = vmatpush.bf16.msra.mxu0 %v7486
    %10209 = vmatpush.bf16.msra.mxu0 %v7470
    %10210 = vmatmul.bf16.gmra.mxu0 %v386
    %v10211 = vpop.f32.mrf.mxu0
    %v10212 = vadd.f32 %v10199, %v10211
    %v10213 = vpop.f32.mrf.mxu0
    %10214 = vdwg.mxu0
    %10215 = vmatpush.bf16.msra.mxu0 %v7710
    %10216 = vmatpush.bf16.msra.mxu0 %v7694
    %10217 = vmatpush.bf16.msra.mxu0 %v7678
    %10218 = vmatpush.bf16.msra.mxu0 %v7662
    %10219 = vmatpush.bf16.msra.mxu0 %v7646
    %10220 = vmatpush.bf16.msra.mxu0 %v7630
    %10221 = vmatpush.bf16.msra.mxu0 %v7614
    %10222 = vmatpush.bf16.msra.mxu0 %v7598
    %10223 = vmatmul.bf16.gmra.mxu0 %v387
    %v10224 = vpop.f32.mrf.mxu0
    %v10225 = vadd.f32 %v10212, %v10224
    %v10226 = vpop.f32.mrf.mxu0
    %10227 = vdwg.mxu0
    %10228 = vmatpush.bf16.msra.mxu0 %v7838
    %10229 = vmatpush.bf16.msra.mxu0 %v7822
    %10230 = vmatpush.bf16.msra.mxu0 %v7806
    %10231 = vmatpush.bf16.msra.mxu0 %v7790
    %10232 = vmatpush.bf16.msra.mxu0 %v7774
    %10233 = vmatpush.bf16.msra.mxu0 %v7758
    %10234 = vmatpush.bf16.msra.mxu0 %v7742
    %10235 = vmatpush.bf16.msra.mxu0 %v7726
    %10236 = vmatmul.bf16.gmra.mxu0 %v388
    %v10237 = vpop.f32.mrf.mxu0
    %v10238 = vadd.f32 %v10225, %v10237
    %v10239 = vpop.f32.mrf.mxu0
    %10240 = vdwg.mxu0
    %10241 = vmatpush.bf16.msra.mxu0 %v7966
    %10242 = vmatpush.bf16.msra.mxu0 %v7950
    %10243 = vmatpush.bf16.msra.mxu0 %v7934
    %10244 = vmatpush.bf16.msra.mxu0 %v7918
    %10245 = vmatpush.bf16.msra.mxu0 %v7902
    %10246 = vmatpush.bf16.msra.mxu0 %v7886
    %10247 = vmatpush.bf16.msra.mxu0 %v7870
    %10248 = vmatpush.bf16.msra.mxu0 %v7854
    %10249 = vmatmul.bf16.gmra.mxu0 %v389
    %v10250 = vpop.f32.mrf.mxu0
    %v10251 = vadd.f32 %v10238, %v10250
    %v10252 = vpop.f32.mrf.mxu0
    %10253 = vdwg.mxu0
    %10254 = vmatpush.bf16.msra.mxu0 %v8094
    %10255 = vmatpush.bf16.msra.mxu0 %v8078
    %10256 = vmatpush.bf16.msra.mxu0 %v8062
    %10257 = vmatpush.bf16.msra.mxu0 %v8046
    %10258 = vmatpush.bf16.msra.mxu0 %v8030
    %10259 = vmatpush.bf16.msra.mxu0 %v8014
    %10260 = vmatpush.bf16.msra.mxu0 %v7998
    %10261 = vmatpush.bf16.msra.mxu0 %v7982
    %10262 = vmatmul.bf16.gmra.mxu0 %v390
    %v10263 = vpop.f32.mrf.mxu0
    %v10264 = vadd.f32 %v10251, %v10263
    %v10265 = vpop.f32.mrf.mxu0
    %10266 = vdwg.mxu0
    %10267 = vmatpush.bf16.msra.mxu0 %v6687
    %10268 = vmatpush.bf16.msra.mxu0 %v6671
    %10269 = vmatpush.bf16.msra.mxu0 %v6655
    %10270 = vmatpush.bf16.msra.mxu0 %v6639
    %10271 = vmatpush.bf16.msra.mxu0 %v6623
    %10272 = vmatpush.bf16.msra.mxu0 %v6607
    %10273 = vmatpush.bf16.msra.mxu0 %v6591
    %10274 = vmatpush.bf16.msra.mxu0 %v6575
    %10275 = vmatmul.bf16.gmra.mxu0 %v379
    %v10276 = vpop.f32.mrf.mxu0
    %v10277 = vadd.f32 %v1935, %v10276
    %v10278 = vpop.f32.mrf.mxu0
    %10279 = vdwg.mxu0
    %10280 = vmatpush.bf16.msra.mxu0 %v6815
    %10281 = vmatpush.bf16.msra.mxu0 %v6799
    %10282 = vmatpush.bf16.msra.mxu0 %v6783
    %10283 = vmatpush.bf16.msra.mxu0 %v6767
    %10284 = vmatpush.bf16.msra.mxu0 %v6751
    %10285 = vmatpush.bf16.msra.mxu0 %v6735
    %10286 = vmatpush.bf16.msra.mxu0 %v6719
    %10287 = vmatpush.bf16.msra.mxu0 %v6703
    %10288 = vmatmul.bf16.gmra.mxu0 %v380
    %v10289 = vpop.f32.mrf.mxu0
    %v10290 = vadd.f32 %v10277, %v10289
    %v10291 = vpop.f32.mrf.mxu0
    %10292 = vdwg.mxu0
    %10293 = vmatpush.bf16.msra.mxu0 %v6943
    %10294 = vmatpush.bf16.msra.mxu0 %v6927
    %10295 = vmatpush.bf16.msra.mxu0 %v6911
    %10296 = vmatpush.bf16.msra.mxu0 %v6895
    %10297 = vmatpush.bf16.msra.mxu0 %v6879
    %10298 = vmatpush.bf16.msra.mxu0 %v6863
    %10299 = vmatpush.bf16.msra.mxu0 %v6847
    %10300 = vmatpush.bf16.msra.mxu0 %v6831
    %10301 = vmatmul.bf16.gmra.mxu0 %v381
    %v10302 = vpop.f32.mrf.mxu0
    %v10303 = vadd.f32 %v10290, %v10302
    %v10304 = vpop.f32.mrf.mxu0
    %10305 = vdwg.mxu0
    %10306 = vmatpush.bf16.msra.mxu0 %v7071
    %10307 = vmatpush.bf16.msra.mxu0 %v7055
    %10308 = vmatpush.bf16.msra.mxu0 %v7039
    %10309 = vmatpush.bf16.msra.mxu0 %v7023
    %10310 = vmatpush.bf16.msra.mxu0 %v7007
    %10311 = vmatpush.bf16.msra.mxu0 %v6991
    %10312 = vmatpush.bf16.msra.mxu0 %v6975
    %10313 = vmatpush.bf16.msra.mxu0 %v6959
    %10314 = vmatmul.bf16.gmra.mxu0 %v382
    %v10315 = vpop.f32.mrf.mxu0
    %v10316 = vadd.f32 %v10303, %v10315
    %v10317 = vpop.f32.mrf.mxu0
    %10318 = vdwg.mxu0
    %10319 = vmatpush.bf16.msra.mxu0 %v7199
    %10320 = vmatpush.bf16.msra.mxu0 %v7183
    %10321 = vmatpush.bf16.msra.mxu0 %v7167
    %10322 = vmatpush.bf16.msra.mxu0 %v7151
    %10323 = vmatpush.bf16.msra.mxu0 %v7135
    %10324 = vmatpush.bf16.msra.mxu0 %v7119
    %10325 = vmatpush.bf16.msra.mxu0 %v7103
    %10326 = vmatpush.bf16.msra.mxu0 %v7087
    %10327 = vmatmul.bf16.gmra.mxu0 %v383
    %v10328 = vpop.f32.mrf.mxu0
    %v10329 = vadd.f32 %v10316, %v10328
    %v10330 = vpop.f32.mrf.mxu0
    %10331 = vdwg.mxu0
    %10332 = vmatpush.bf16.msra.mxu0 %v7327
    %10333 = vmatpush.bf16.msra.mxu0 %v7311
    %10334 = vmatpush.bf16.msra.mxu0 %v7295
    %10335 = vmatpush.bf16.msra.mxu0 %v7279
    %10336 = vmatpush.bf16.msra.mxu0 %v7263
    %10337 = vmatpush.bf16.msra.mxu0 %v7247
    %10338 = vmatpush.bf16.msra.mxu0 %v7231
    %10339 = vmatpush.bf16.msra.mxu0 %v7215
    %10340 = vmatmul.bf16.gmra.mxu0 %v384
    %v10341 = vpop.f32.mrf.mxu0
    %v10342 = vadd.f32 %v10329, %v10341
    %v10343 = vpop.f32.mrf.mxu0
    %10344 = vdwg.mxu0
    %10345 = vmatpush.bf16.msra.mxu0 %v7455
    %10346 = vmatpush.bf16.msra.mxu0 %v7439
    %10347 = vmatpush.bf16.msra.mxu0 %v7423
    %10348 = vmatpush.bf16.msra.mxu0 %v7407
    %10349 = vmatpush.bf16.msra.mxu0 %v7391
    %10350 = vmatpush.bf16.msra.mxu0 %v7375
    %10351 = vmatpush.bf16.msra.mxu0 %v7359
    %10352 = vmatpush.bf16.msra.mxu0 %v7343
    %10353 = vmatmul.bf16.gmra.mxu0 %v385
    %v10354 = vpop.f32.mrf.mxu0
    %v10355 = vadd.f32 %v10342, %v10354
    %v10356 = vpop.f32.mrf.mxu0
    %10357 = vdwg.mxu0
    %10358 = vmatpush.bf16.msra.mxu0 %v7583
    %10359 = vmatpush.bf16.msra.mxu0 %v7567
    %10360 = vmatpush.bf16.msra.mxu0 %v7551
    %10361 = vmatpush.bf16.msra.mxu0 %v7535
    %10362 = vmatpush.bf16.msra.mxu0 %v7519
    %10363 = vmatpush.bf16.msra.mxu0 %v7503
    %10364 = vmatpush.bf16.msra.mxu0 %v7487
    %10365 = vmatpush.bf16.msra.mxu0 %v7471
    %10366 = vmatmul.bf16.gmra.mxu0 %v386
    %v10367 = vpop.f32.mrf.mxu0
    %v10368 = vadd.f32 %v10355, %v10367
    %v10369 = vpop.f32.mrf.mxu0
    %10370 = vdwg.mxu0
    %10371 = vmatpush.bf16.msra.mxu0 %v7711
    %10372 = vmatpush.bf16.msra.mxu0 %v7695
    %10373 = vmatpush.bf16.msra.mxu0 %v7679
    %10374 = vmatpush.bf16.msra.mxu0 %v7663
    %10375 = vmatpush.bf16.msra.mxu0 %v7647
    %10376 = vmatpush.bf16.msra.mxu0 %v7631
    %10377 = vmatpush.bf16.msra.mxu0 %v7615
    %10378 = vmatpush.bf16.msra.mxu0 %v7599
    %10379 = vmatmul.bf16.gmra.mxu0 %v387
    %v10380 = vpop.f32.mrf.mxu0
    %v10381 = vadd.f32 %v10368, %v10380
    %v10382 = vpop.f32.mrf.mxu0
    %10383 = vdwg.mxu0
    %10384 = vmatpush.bf16.msra.mxu0 %v7839
    %10385 = vmatpush.bf16.msra.mxu0 %v7823
    %10386 = vmatpush.bf16.msra.mxu0 %v7807
    %10387 = vmatpush.bf16.msra.mxu0 %v7791
    %10388 = vmatpush.bf16.msra.mxu0 %v7775
    %10389 = vmatpush.bf16.msra.mxu0 %v7759
    %10390 = vmatpush.bf16.msra.mxu0 %v7743
    %10391 = vmatpush.bf16.msra.mxu0 %v7727
    %10392 = vmatmul.bf16.gmra.mxu0 %v388
    %v10393 = vpop.f32.mrf.mxu0
    %v10394 = vadd.f32 %v10381, %v10393
    %v10395 = vpop.f32.mrf.mxu0
    %10396 = vdwg.mxu0
    %10397 = vmatpush.bf16.msra.mxu0 %v7967
    %10398 = vmatpush.bf16.msra.mxu0 %v7951
    %10399 = vmatpush.bf16.msra.mxu0 %v7935
    %10400 = vmatpush.bf16.msra.mxu0 %v7919
    %10401 = vmatpush.bf16.msra.mxu0 %v7903
    %10402 = vmatpush.bf16.msra.mxu0 %v7887
    %10403 = vmatpush.bf16.msra.mxu0 %v7871
    %10404 = vmatpush.bf16.msra.mxu0 %v7855
    %10405 = vmatmul.bf16.gmra.mxu0 %v389
    %v10406 = vpop.f32.mrf.mxu0
    %v10407 = vadd.f32 %v10394, %v10406
    %v10408 = vpop.f32.mrf.mxu0
    %10409 = vdwg.mxu0
    %10410 = vmatpush.bf16.msra.mxu0 %v8095
    %10411 = vmatpush.bf16.msra.mxu0 %v8079
    %10412 = vmatpush.bf16.msra.mxu0 %v8063
    %10413 = vmatpush.bf16.msra.mxu0 %v8047
    %10414 = vmatpush.bf16.msra.mxu0 %v8031
    %10415 = vmatpush.bf16.msra.mxu0 %v8015
    %10416 = vmatpush.bf16.msra.mxu0 %v7999
    %10417 = vmatpush.bf16.msra.mxu0 %v7983
    %10418 = vmatmul.bf16.gmra.mxu0 %v390
    %v10419 = vpop.f32.mrf.mxu0
    %v10420 = vadd.f32 %v10407, %v10419
    %v10421 = vpop.f32.mrf.mxu0
    %10422 = vdwg.mxu0
    %10423 = vmatpush.bf16.msra.mxu0 %v6688
    %10424 = vmatpush.bf16.msra.mxu0 %v6672
    %10425 = vmatpush.bf16.msra.mxu0 %v6656
    %10426 = vmatpush.bf16.msra.mxu0 %v6640
    %10427 = vmatpush.bf16.msra.mxu0 %v6624
    %10428 = vmatpush.bf16.msra.mxu0 %v6608
    %10429 = vmatpush.bf16.msra.mxu0 %v6592
    %10430 = vmatpush.bf16.msra.mxu0 %v6576
    %10431 = vmatmul.bf16.gmra.mxu0 %v379
    %v10432 = vpop.f32.mrf.mxu0
    %v10433 = vadd.f32 %v1936, %v10432
    %v10434 = vpop.f32.mrf.mxu0
    %10435 = vdwg.mxu0
    %10436 = vmatpush.bf16.msra.mxu0 %v6816
    %10437 = vmatpush.bf16.msra.mxu0 %v6800
    %10438 = vmatpush.bf16.msra.mxu0 %v6784
    %10439 = vmatpush.bf16.msra.mxu0 %v6768
    %10440 = vmatpush.bf16.msra.mxu0 %v6752
    %10441 = vmatpush.bf16.msra.mxu0 %v6736
    %10442 = vmatpush.bf16.msra.mxu0 %v6720
    %10443 = vmatpush.bf16.msra.mxu0 %v6704
    %10444 = vmatmul.bf16.gmra.mxu0 %v380
    %v10445 = vpop.f32.mrf.mxu0
    %v10446 = vadd.f32 %v10433, %v10445
    %v10447 = vpop.f32.mrf.mxu0
    %10448 = vdwg.mxu0
    %10449 = vmatpush.bf16.msra.mxu0 %v6944
    %10450 = vmatpush.bf16.msra.mxu0 %v6928
    %10451 = vmatpush.bf16.msra.mxu0 %v6912
    %10452 = vmatpush.bf16.msra.mxu0 %v6896
    %10453 = vmatpush.bf16.msra.mxu0 %v6880
    %10454 = vmatpush.bf16.msra.mxu0 %v6864
    %10455 = vmatpush.bf16.msra.mxu0 %v6848
    %10456 = vmatpush.bf16.msra.mxu0 %v6832
    %10457 = vmatmul.bf16.gmra.mxu0 %v381
    %v10458 = vpop.f32.mrf.mxu0
    %v10459 = vadd.f32 %v10446, %v10458
    %v10460 = vpop.f32.mrf.mxu0
    %10461 = vdwg.mxu0
    %10462 = vmatpush.bf16.msra.mxu0 %v7072
    %10463 = vmatpush.bf16.msra.mxu0 %v7056
    %10464 = vmatpush.bf16.msra.mxu0 %v7040
    %10465 = vmatpush.bf16.msra.mxu0 %v7024
    %10466 = vmatpush.bf16.msra.mxu0 %v7008
    %10467 = vmatpush.bf16.msra.mxu0 %v6992
    %10468 = vmatpush.bf16.msra.mxu0 %v6976
    %10469 = vmatpush.bf16.msra.mxu0 %v6960
    %10470 = vmatmul.bf16.gmra.mxu0 %v382
    %v10471 = vpop.f32.mrf.mxu0
    %v10472 = vadd.f32 %v10459, %v10471
    %v10473 = vpop.f32.mrf.mxu0
    %10474 = vdwg.mxu0
    %10475 = vmatpush.bf16.msra.mxu0 %v7200
    %10476 = vmatpush.bf16.msra.mxu0 %v7184
    %10477 = vmatpush.bf16.msra.mxu0 %v7168
    %10478 = vmatpush.bf16.msra.mxu0 %v7152
    %10479 = vmatpush.bf16.msra.mxu0 %v7136
    %10480 = vmatpush.bf16.msra.mxu0 %v7120
    %10481 = vmatpush.bf16.msra.mxu0 %v7104
    %10482 = vmatpush.bf16.msra.mxu0 %v7088
    %10483 = vmatmul.bf16.gmra.mxu0 %v383
    %v10484 = vpop.f32.mrf.mxu0
    %v10485 = vadd.f32 %v10472, %v10484
    %v10486 = vpop.f32.mrf.mxu0
    %10487 = vdwg.mxu0
    %10488 = vmatpush.bf16.msra.mxu0 %v7328
    %10489 = vmatpush.bf16.msra.mxu0 %v7312
    %10490 = vmatpush.bf16.msra.mxu0 %v7296
    %10491 = vmatpush.bf16.msra.mxu0 %v7280
    %10492 = vmatpush.bf16.msra.mxu0 %v7264
    %10493 = vmatpush.bf16.msra.mxu0 %v7248
    %10494 = vmatpush.bf16.msra.mxu0 %v7232
    %10495 = vmatpush.bf16.msra.mxu0 %v7216
    %10496 = vmatmul.bf16.gmra.mxu0 %v384
    %v10497 = vpop.f32.mrf.mxu0
    %v10498 = vadd.f32 %v10485, %v10497
    %v10499 = vpop.f32.mrf.mxu0
    %10500 = vdwg.mxu0
    %10501 = vmatpush.bf16.msra.mxu0 %v7456
    %10502 = vmatpush.bf16.msra.mxu0 %v7440
    %10503 = vmatpush.bf16.msra.mxu0 %v7424
    %10504 = vmatpush.bf16.msra.mxu0 %v7408
    %10505 = vmatpush.bf16.msra.mxu0 %v7392
    %10506 = vmatpush.bf16.msra.mxu0 %v7376
    %10507 = vmatpush.bf16.msra.mxu0 %v7360
    %10508 = vmatpush.bf16.msra.mxu0 %v7344
    %10509 = vmatmul.bf16.gmra.mxu0 %v385
    %v10510 = vpop.f32.mrf.mxu0
    %v10511 = vadd.f32 %v10498, %v10510
    %v10512 = vpop.f32.mrf.mxu0
    %10513 = vdwg.mxu0
    %10514 = vmatpush.bf16.msra.mxu0 %v7584
    %10515 = vmatpush.bf16.msra.mxu0 %v7568
    %10516 = vmatpush.bf16.msra.mxu0 %v7552
    %10517 = vmatpush.bf16.msra.mxu0 %v7536
    %10518 = vmatpush.bf16.msra.mxu0 %v7520
    %10519 = vmatpush.bf16.msra.mxu0 %v7504
    %10520 = vmatpush.bf16.msra.mxu0 %v7488
    %10521 = vmatpush.bf16.msra.mxu0 %v7472
    %10522 = vmatmul.bf16.gmra.mxu0 %v386
    %v10523 = vpop.f32.mrf.mxu0
    %v10524 = vadd.f32 %v10511, %v10523
    %v10525 = vpop.f32.mrf.mxu0
    %10526 = vdwg.mxu0
    %10527 = vmatpush.bf16.msra.mxu0 %v7712
    %10528 = vmatpush.bf16.msra.mxu0 %v7696
    %10529 = vmatpush.bf16.msra.mxu0 %v7680
    %10530 = vmatpush.bf16.msra.mxu0 %v7664
    %10531 = vmatpush.bf16.msra.mxu0 %v7648
    %10532 = vmatpush.bf16.msra.mxu0 %v7632
    %10533 = vmatpush.bf16.msra.mxu0 %v7616
    %10534 = vmatpush.bf16.msra.mxu0 %v7600
    %10535 = vmatmul.bf16.gmra.mxu0 %v387
    %v10536 = vpop.f32.mrf.mxu0
    %v10537 = vadd.f32 %v10524, %v10536
    %v10538 = vpop.f32.mrf.mxu0
    %10539 = vdwg.mxu0
    %10540 = vmatpush.bf16.msra.mxu0 %v7840
    %10541 = vmatpush.bf16.msra.mxu0 %v7824
    %10542 = vmatpush.bf16.msra.mxu0 %v7808
    %10543 = vmatpush.bf16.msra.mxu0 %v7792
    %10544 = vmatpush.bf16.msra.mxu0 %v7776
    %10545 = vmatpush.bf16.msra.mxu0 %v7760
    %10546 = vmatpush.bf16.msra.mxu0 %v7744
    %10547 = vmatpush.bf16.msra.mxu0 %v7728
    %10548 = vmatmul.bf16.gmra.mxu0 %v388
    %v10549 = vpop.f32.mrf.mxu0
    %v10550 = vadd.f32 %v10537, %v10549
    %v10551 = vpop.f32.mrf.mxu0
    %10552 = vdwg.mxu0
    %10553 = vmatpush.bf16.msra.mxu0 %v7968
    %10554 = vmatpush.bf16.msra.mxu0 %v7952
    %10555 = vmatpush.bf16.msra.mxu0 %v7936
    %10556 = vmatpush.bf16.msra.mxu0 %v7920
    %10557 = vmatpush.bf16.msra.mxu0 %v7904
    %10558 = vmatpush.bf16.msra.mxu0 %v7888
    %10559 = vmatpush.bf16.msra.mxu0 %v7872
    %10560 = vmatpush.bf16.msra.mxu0 %v7856
    %10561 = vmatmul.bf16.gmra.mxu0 %v389
    %v10562 = vpop.f32.mrf.mxu0
    %v10563 = vadd.f32 %v10550, %v10562
    %v10564 = vpop.f32.mrf.mxu0
    %10565 = vdwg.mxu0
    %10566 = vmatpush.bf16.msra.mxu0 %v8096
    %10567 = vmatpush.bf16.msra.mxu0 %v8080
    %10568 = vmatpush.bf16.msra.mxu0 %v8064
    %10569 = vmatpush.bf16.msra.mxu0 %v8048
    %10570 = vmatpush.bf16.msra.mxu0 %v8032
    %10571 = vmatpush.bf16.msra.mxu0 %v8016
    %10572 = vmatpush.bf16.msra.mxu0 %v8000
    %10573 = vmatpush.bf16.msra.mxu0 %v7984
    %10574 = vmatmul.bf16.gmra.mxu0 %v390
    %v10575 = vpop.f32.mrf.mxu0
    %v10576 = vadd.f32 %v10563, %v10575
    %v10577 = vpop.f32.mrf.mxu0
    %10578 = vdwg.mxu0
    %10579 = vmatpush.bf16.msra.mxu0 %v6689
    %10580 = vmatpush.bf16.msra.mxu0 %v6673
    %10581 = vmatpush.bf16.msra.mxu0 %v6657
    %10582 = vmatpush.bf16.msra.mxu0 %v6641
    %10583 = vmatpush.bf16.msra.mxu0 %v6625
    %10584 = vmatpush.bf16.msra.mxu0 %v6609
    %10585 = vmatpush.bf16.msra.mxu0 %v6593
    %10586 = vmatpush.bf16.msra.mxu0 %v6577
    %10587 = vmatmul.bf16.gmra.mxu0 %v379
    %v10588 = vpop.f32.mrf.mxu0
    %v10589 = vadd.f32 %v1937, %v10588
    %v10590 = vpop.f32.mrf.mxu0
    %10591 = vdwg.mxu0
    %10592 = vmatpush.bf16.msra.mxu0 %v6817
    %10593 = vmatpush.bf16.msra.mxu0 %v6801
    %10594 = vmatpush.bf16.msra.mxu0 %v6785
    %10595 = vmatpush.bf16.msra.mxu0 %v6769
    %10596 = vmatpush.bf16.msra.mxu0 %v6753
    %10597 = vmatpush.bf16.msra.mxu0 %v6737
    %10598 = vmatpush.bf16.msra.mxu0 %v6721
    %10599 = vmatpush.bf16.msra.mxu0 %v6705
    %10600 = vmatmul.bf16.gmra.mxu0 %v380
    %v10601 = vpop.f32.mrf.mxu0
    %v10602 = vadd.f32 %v10589, %v10601
    %v10603 = vpop.f32.mrf.mxu0
    %10604 = vdwg.mxu0
    %10605 = vmatpush.bf16.msra.mxu0 %v6945
    %10606 = vmatpush.bf16.msra.mxu0 %v6929
    %10607 = vmatpush.bf16.msra.mxu0 %v6913
    %10608 = vmatpush.bf16.msra.mxu0 %v6897
    %10609 = vmatpush.bf16.msra.mxu0 %v6881
    %10610 = vmatpush.bf16.msra.mxu0 %v6865
    %10611 = vmatpush.bf16.msra.mxu0 %v6849
    %10612 = vmatpush.bf16.msra.mxu0 %v6833
    %10613 = vmatmul.bf16.gmra.mxu0 %v381
    %v10614 = vpop.f32.mrf.mxu0
    %v10615 = vadd.f32 %v10602, %v10614
    %v10616 = vpop.f32.mrf.mxu0
    %10617 = vdwg.mxu0
    %10618 = vmatpush.bf16.msra.mxu0 %v7073
    %10619 = vmatpush.bf16.msra.mxu0 %v7057
    %10620 = vmatpush.bf16.msra.mxu0 %v7041
    %10621 = vmatpush.bf16.msra.mxu0 %v7025
    %10622 = vmatpush.bf16.msra.mxu0 %v7009
    %10623 = vmatpush.bf16.msra.mxu0 %v6993
    %10624 = vmatpush.bf16.msra.mxu0 %v6977
    %10625 = vmatpush.bf16.msra.mxu0 %v6961
    %10626 = vmatmul.bf16.gmra.mxu0 %v382
    %v10627 = vpop.f32.mrf.mxu0
    %v10628 = vadd.f32 %v10615, %v10627
    %v10629 = vpop.f32.mrf.mxu0
    %10630 = vdwg.mxu0
    %10631 = vmatpush.bf16.msra.mxu0 %v7201
    %10632 = vmatpush.bf16.msra.mxu0 %v7185
    %10633 = vmatpush.bf16.msra.mxu0 %v7169
    %10634 = vmatpush.bf16.msra.mxu0 %v7153
    %10635 = vmatpush.bf16.msra.mxu0 %v7137
    %10636 = vmatpush.bf16.msra.mxu0 %v7121
    %10637 = vmatpush.bf16.msra.mxu0 %v7105
    %10638 = vmatpush.bf16.msra.mxu0 %v7089
    %10639 = vmatmul.bf16.gmra.mxu0 %v383
    %v10640 = vpop.f32.mrf.mxu0
    %v10641 = vadd.f32 %v10628, %v10640
    %v10642 = vpop.f32.mrf.mxu0
    %10643 = vdwg.mxu0
    %10644 = vmatpush.bf16.msra.mxu0 %v7329
    %10645 = vmatpush.bf16.msra.mxu0 %v7313
    %10646 = vmatpush.bf16.msra.mxu0 %v7297
    %10647 = vmatpush.bf16.msra.mxu0 %v7281
    %10648 = vmatpush.bf16.msra.mxu0 %v7265
    %10649 = vmatpush.bf16.msra.mxu0 %v7249
    %10650 = vmatpush.bf16.msra.mxu0 %v7233
    %10651 = vmatpush.bf16.msra.mxu0 %v7217
    %10652 = vmatmul.bf16.gmra.mxu0 %v384
    %v10653 = vpop.f32.mrf.mxu0
    %v10654 = vadd.f32 %v10641, %v10653
    %v10655 = vpop.f32.mrf.mxu0
    %10656 = vdwg.mxu0
    %10657 = vmatpush.bf16.msra.mxu0 %v7457
    %10658 = vmatpush.bf16.msra.mxu0 %v7441
    %10659 = vmatpush.bf16.msra.mxu0 %v7425
    %10660 = vmatpush.bf16.msra.mxu0 %v7409
    %10661 = vmatpush.bf16.msra.mxu0 %v7393
    %10662 = vmatpush.bf16.msra.mxu0 %v7377
    %10663 = vmatpush.bf16.msra.mxu0 %v7361
    %10664 = vmatpush.bf16.msra.mxu0 %v7345
    %10665 = vmatmul.bf16.gmra.mxu0 %v385
    %v10666 = vpop.f32.mrf.mxu0
    %v10667 = vadd.f32 %v10654, %v10666
    %v10668 = vpop.f32.mrf.mxu0
    %10669 = vdwg.mxu0
    %10670 = vmatpush.bf16.msra.mxu0 %v7585
    %10671 = vmatpush.bf16.msra.mxu0 %v7569
    %10672 = vmatpush.bf16.msra.mxu0 %v7553
    %10673 = vmatpush.bf16.msra.mxu0 %v7537
    %10674 = vmatpush.bf16.msra.mxu0 %v7521
    %10675 = vmatpush.bf16.msra.mxu0 %v7505
    %10676 = vmatpush.bf16.msra.mxu0 %v7489
    %10677 = vmatpush.bf16.msra.mxu0 %v7473
    %10678 = vmatmul.bf16.gmra.mxu0 %v386
    %v10679 = vpop.f32.mrf.mxu0
    %v10680 = vadd.f32 %v10667, %v10679
    %v10681 = vpop.f32.mrf.mxu0
    %10682 = vdwg.mxu0
    %10683 = vmatpush.bf16.msra.mxu0 %v7713
    %10684 = vmatpush.bf16.msra.mxu0 %v7697
    %10685 = vmatpush.bf16.msra.mxu0 %v7681
    %10686 = vmatpush.bf16.msra.mxu0 %v7665
    %10687 = vmatpush.bf16.msra.mxu0 %v7649
    %10688 = vmatpush.bf16.msra.mxu0 %v7633
    %10689 = vmatpush.bf16.msra.mxu0 %v7617
    %10690 = vmatpush.bf16.msra.mxu0 %v7601
    %10691 = vmatmul.bf16.gmra.mxu0 %v387
    %v10692 = vpop.f32.mrf.mxu0
    %v10693 = vadd.f32 %v10680, %v10692
    %v10694 = vpop.f32.mrf.mxu0
    %10695 = vdwg.mxu0
    %10696 = vmatpush.bf16.msra.mxu0 %v7841
    %10697 = vmatpush.bf16.msra.mxu0 %v7825
    %10698 = vmatpush.bf16.msra.mxu0 %v7809
    %10699 = vmatpush.bf16.msra.mxu0 %v7793
    %10700 = vmatpush.bf16.msra.mxu0 %v7777
    %10701 = vmatpush.bf16.msra.mxu0 %v7761
    %10702 = vmatpush.bf16.msra.mxu0 %v7745
    %10703 = vmatpush.bf16.msra.mxu0 %v7729
    %10704 = vmatmul.bf16.gmra.mxu0 %v388
    %v10705 = vpop.f32.mrf.mxu0
    %v10706 = vadd.f32 %v10693, %v10705
    %v10707 = vpop.f32.mrf.mxu0
    %10708 = vdwg.mxu0
    %10709 = vmatpush.bf16.msra.mxu0 %v7969
    %10710 = vmatpush.bf16.msra.mxu0 %v7953
    %10711 = vmatpush.bf16.msra.mxu0 %v7937
    %10712 = vmatpush.bf16.msra.mxu0 %v7921
    %10713 = vmatpush.bf16.msra.mxu0 %v7905
    %10714 = vmatpush.bf16.msra.mxu0 %v7889
    %10715 = vmatpush.bf16.msra.mxu0 %v7873
    %10716 = vmatpush.bf16.msra.mxu0 %v7857
    %10717 = vmatmul.bf16.gmra.mxu0 %v389
    %v10718 = vpop.f32.mrf.mxu0
    %v10719 = vadd.f32 %v10706, %v10718
    %v10720 = vpop.f32.mrf.mxu0
    %10721 = vdwg.mxu0
    %10722 = vmatpush.bf16.msra.mxu0 %v8097
    %10723 = vmatpush.bf16.msra.mxu0 %v8081
    %10724 = vmatpush.bf16.msra.mxu0 %v8065
    %10725 = vmatpush.bf16.msra.mxu0 %v8049
    %10726 = vmatpush.bf16.msra.mxu0 %v8033
    %10727 = vmatpush.bf16.msra.mxu0 %v8017
    %10728 = vmatpush.bf16.msra.mxu0 %v8001
    %10729 = vmatpush.bf16.msra.mxu0 %v7985
    %10730 = vmatmul.bf16.gmra.mxu0 %v390
    %v10731 = vpop.f32.mrf.mxu0
    %v10732 = vadd.f32 %v10719, %v10731
    %v10733 = vpop.f32.mrf.mxu0
    %10734 = vdwg.mxu0
    %10735 = vmatpush.bf16.msra.mxu0 %v6690
    %10736 = vmatpush.bf16.msra.mxu0 %v6674
    %10737 = vmatpush.bf16.msra.mxu0 %v6658
    %10738 = vmatpush.bf16.msra.mxu0 %v6642
    %10739 = vmatpush.bf16.msra.mxu0 %v6626
    %10740 = vmatpush.bf16.msra.mxu0 %v6610
    %10741 = vmatpush.bf16.msra.mxu0 %v6594
    %10742 = vmatpush.bf16.msra.mxu0 %v6578
    %10743 = vmatmul.bf16.gmra.mxu0 %v379
    %v10744 = vpop.f32.mrf.mxu0
    %v10745 = vadd.f32 %v1938, %v10744
    %v10746 = vpop.f32.mrf.mxu0
    %10747 = vdwg.mxu0
    %10748 = vmatpush.bf16.msra.mxu0 %v6818
    %10749 = vmatpush.bf16.msra.mxu0 %v6802
    %10750 = vmatpush.bf16.msra.mxu0 %v6786
    %10751 = vmatpush.bf16.msra.mxu0 %v6770
    %10752 = vmatpush.bf16.msra.mxu0 %v6754
    %10753 = vmatpush.bf16.msra.mxu0 %v6738
    %10754 = vmatpush.bf16.msra.mxu0 %v6722
    %10755 = vmatpush.bf16.msra.mxu0 %v6706
    %10756 = vmatmul.bf16.gmra.mxu0 %v380
    %v10757 = vpop.f32.mrf.mxu0
    %v10758 = vadd.f32 %v10745, %v10757
    %v10759 = vpop.f32.mrf.mxu0
    %10760 = vdwg.mxu0
    %10761 = vmatpush.bf16.msra.mxu0 %v6946
    %10762 = vmatpush.bf16.msra.mxu0 %v6930
    %10763 = vmatpush.bf16.msra.mxu0 %v6914
    %10764 = vmatpush.bf16.msra.mxu0 %v6898
    %10765 = vmatpush.bf16.msra.mxu0 %v6882
    %10766 = vmatpush.bf16.msra.mxu0 %v6866
    %10767 = vmatpush.bf16.msra.mxu0 %v6850
    %10768 = vmatpush.bf16.msra.mxu0 %v6834
    %10769 = vmatmul.bf16.gmra.mxu0 %v381
    %v10770 = vpop.f32.mrf.mxu0
    %v10771 = vadd.f32 %v10758, %v10770
    %v10772 = vpop.f32.mrf.mxu0
    %10773 = vdwg.mxu0
    %10774 = vmatpush.bf16.msra.mxu0 %v7074
    %10775 = vmatpush.bf16.msra.mxu0 %v7058
    %10776 = vmatpush.bf16.msra.mxu0 %v7042
    %10777 = vmatpush.bf16.msra.mxu0 %v7026
    %10778 = vmatpush.bf16.msra.mxu0 %v7010
    %10779 = vmatpush.bf16.msra.mxu0 %v6994
    %10780 = vmatpush.bf16.msra.mxu0 %v6978
    %10781 = vmatpush.bf16.msra.mxu0 %v6962
    %10782 = vmatmul.bf16.gmra.mxu0 %v382
    %v10783 = vpop.f32.mrf.mxu0
    %v10784 = vadd.f32 %v10771, %v10783
    %v10785 = vpop.f32.mrf.mxu0
    %10786 = vdwg.mxu0
    %10787 = vmatpush.bf16.msra.mxu0 %v7202
    %10788 = vmatpush.bf16.msra.mxu0 %v7186
    %10789 = vmatpush.bf16.msra.mxu0 %v7170
    %10790 = vmatpush.bf16.msra.mxu0 %v7154
    %10791 = vmatpush.bf16.msra.mxu0 %v7138
    %10792 = vmatpush.bf16.msra.mxu0 %v7122
    %10793 = vmatpush.bf16.msra.mxu0 %v7106
    %10794 = vmatpush.bf16.msra.mxu0 %v7090
    %10795 = vmatmul.bf16.gmra.mxu0 %v383
    %v10796 = vpop.f32.mrf.mxu0
    %v10797 = vadd.f32 %v10784, %v10796
    %v10798 = vpop.f32.mrf.mxu0
    %10799 = vdwg.mxu0
    %10800 = vmatpush.bf16.msra.mxu0 %v7330
    %10801 = vmatpush.bf16.msra.mxu0 %v7314
    %10802 = vmatpush.bf16.msra.mxu0 %v7298
    %10803 = vmatpush.bf16.msra.mxu0 %v7282
    %10804 = vmatpush.bf16.msra.mxu0 %v7266
    %10805 = vmatpush.bf16.msra.mxu0 %v7250
    %10806 = vmatpush.bf16.msra.mxu0 %v7234
    %10807 = vmatpush.bf16.msra.mxu0 %v7218
    %10808 = vmatmul.bf16.gmra.mxu0 %v384
    %v10809 = vpop.f32.mrf.mxu0
    %v10810 = vadd.f32 %v10797, %v10809
    %v10811 = vpop.f32.mrf.mxu0
    %10812 = vdwg.mxu0
    %10813 = vmatpush.bf16.msra.mxu0 %v7458
    %10814 = vmatpush.bf16.msra.mxu0 %v7442
    %10815 = vmatpush.bf16.msra.mxu0 %v7426
    %10816 = vmatpush.bf16.msra.mxu0 %v7410
    %10817 = vmatpush.bf16.msra.mxu0 %v7394
    %10818 = vmatpush.bf16.msra.mxu0 %v7378
    %10819 = vmatpush.bf16.msra.mxu0 %v7362
    %10820 = vmatpush.bf16.msra.mxu0 %v7346
    %10821 = vmatmul.bf16.gmra.mxu0 %v385
    %v10822 = vpop.f32.mrf.mxu0
    %v10823 = vadd.f32 %v10810, %v10822
    %v10824 = vpop.f32.mrf.mxu0
    %10825 = vdwg.mxu0
    %10826 = vmatpush.bf16.msra.mxu0 %v7586
    %10827 = vmatpush.bf16.msra.mxu0 %v7570
    %10828 = vmatpush.bf16.msra.mxu0 %v7554
    %10829 = vmatpush.bf16.msra.mxu0 %v7538
    %10830 = vmatpush.bf16.msra.mxu0 %v7522
    %10831 = vmatpush.bf16.msra.mxu0 %v7506
    %10832 = vmatpush.bf16.msra.mxu0 %v7490
    %10833 = vmatpush.bf16.msra.mxu0 %v7474
    %10834 = vmatmul.bf16.gmra.mxu0 %v386
    %v10835 = vpop.f32.mrf.mxu0
    %v10836 = vadd.f32 %v10823, %v10835
    %v10837 = vpop.f32.mrf.mxu0
    %10838 = vdwg.mxu0
    %10839 = vmatpush.bf16.msra.mxu0 %v7714
    %10840 = vmatpush.bf16.msra.mxu0 %v7698
    %10841 = vmatpush.bf16.msra.mxu0 %v7682
    %10842 = vmatpush.bf16.msra.mxu0 %v7666
    %10843 = vmatpush.bf16.msra.mxu0 %v7650
    %10844 = vmatpush.bf16.msra.mxu0 %v7634
    %10845 = vmatpush.bf16.msra.mxu0 %v7618
    %10846 = vmatpush.bf16.msra.mxu0 %v7602
    %10847 = vmatmul.bf16.gmra.mxu0 %v387
    %v10848 = vpop.f32.mrf.mxu0
    %v10849 = vadd.f32 %v10836, %v10848
    %v10850 = vpop.f32.mrf.mxu0
    %10851 = vdwg.mxu0
    %10852 = vmatpush.bf16.msra.mxu0 %v7842
    %10853 = vmatpush.bf16.msra.mxu0 %v7826
    %10854 = vmatpush.bf16.msra.mxu0 %v7810
    %10855 = vmatpush.bf16.msra.mxu0 %v7794
    %10856 = vmatpush.bf16.msra.mxu0 %v7778
    %10857 = vmatpush.bf16.msra.mxu0 %v7762
    %10858 = vmatpush.bf16.msra.mxu0 %v7746
    %10859 = vmatpush.bf16.msra.mxu0 %v7730
    %10860 = vmatmul.bf16.gmra.mxu0 %v388
    %v10861 = vpop.f32.mrf.mxu0
    %v10862 = vadd.f32 %v10849, %v10861
    %v10863 = vpop.f32.mrf.mxu0
    %10864 = vdwg.mxu0
    %10865 = vmatpush.bf16.msra.mxu0 %v7970
    %10866 = vmatpush.bf16.msra.mxu0 %v7954
    %10867 = vmatpush.bf16.msra.mxu0 %v7938
    %10868 = vmatpush.bf16.msra.mxu0 %v7922
    %10869 = vmatpush.bf16.msra.mxu0 %v7906
    %10870 = vmatpush.bf16.msra.mxu0 %v7890
    %10871 = vmatpush.bf16.msra.mxu0 %v7874
    %10872 = vmatpush.bf16.msra.mxu0 %v7858
    %10873 = vmatmul.bf16.gmra.mxu0 %v389
    %v10874 = vpop.f32.mrf.mxu0
    %v10875 = vadd.f32 %v10862, %v10874
    %v10876 = vpop.f32.mrf.mxu0
    %10877 = vdwg.mxu0
    %10878 = vmatpush.bf16.msra.mxu0 %v8098
    %10879 = vmatpush.bf16.msra.mxu0 %v8082
    %10880 = vmatpush.bf16.msra.mxu0 %v8066
    %10881 = vmatpush.bf16.msra.mxu0 %v8050
    %10882 = vmatpush.bf16.msra.mxu0 %v8034
    %10883 = vmatpush.bf16.msra.mxu0 %v8018
    %10884 = vmatpush.bf16.msra.mxu0 %v8002
    %10885 = vmatpush.bf16.msra.mxu0 %v7986
    %10886 = vmatmul.bf16.gmra.mxu0 %v390
    %v10887 = vpop.f32.mrf.mxu0
    %v10888 = vadd.f32 %v10875, %v10887
    %v10889 = vpop.f32.mrf.mxu0
    %10890 = vdwg.mxu0
    %10891 = vmatpush.bf16.msra.mxu0 %v6691
    %10892 = vmatpush.bf16.msra.mxu0 %v6675
    %10893 = vmatpush.bf16.msra.mxu0 %v6659
    %10894 = vmatpush.bf16.msra.mxu0 %v6643
    %10895 = vmatpush.bf16.msra.mxu0 %v6627
    %10896 = vmatpush.bf16.msra.mxu0 %v6611
    %10897 = vmatpush.bf16.msra.mxu0 %v6595
    %10898 = vmatpush.bf16.msra.mxu0 %v6579
    %10899 = vmatmul.bf16.gmra.mxu0 %v379
    %v10900 = vpop.f32.mrf.mxu0
    %v10901 = vadd.f32 %v1939, %v10900
    %v10902 = vpop.f32.mrf.mxu0
    %10903 = vdwg.mxu0
    %10904 = vmatpush.bf16.msra.mxu0 %v6819
    %10905 = vmatpush.bf16.msra.mxu0 %v6803
    %10906 = vmatpush.bf16.msra.mxu0 %v6787
    %10907 = vmatpush.bf16.msra.mxu0 %v6771
    %10908 = vmatpush.bf16.msra.mxu0 %v6755
    %10909 = vmatpush.bf16.msra.mxu0 %v6739
    %10910 = vmatpush.bf16.msra.mxu0 %v6723
    %10911 = vmatpush.bf16.msra.mxu0 %v6707
    %10912 = vmatmul.bf16.gmra.mxu0 %v380
    %v10913 = vpop.f32.mrf.mxu0
    %v10914 = vadd.f32 %v10901, %v10913
    %v10915 = vpop.f32.mrf.mxu0
    %10916 = vdwg.mxu0
    %10917 = vmatpush.bf16.msra.mxu0 %v6947
    %10918 = vmatpush.bf16.msra.mxu0 %v6931
    %10919 = vmatpush.bf16.msra.mxu0 %v6915
    %10920 = vmatpush.bf16.msra.mxu0 %v6899
    %10921 = vmatpush.bf16.msra.mxu0 %v6883
    %10922 = vmatpush.bf16.msra.mxu0 %v6867
    %10923 = vmatpush.bf16.msra.mxu0 %v6851
    %10924 = vmatpush.bf16.msra.mxu0 %v6835
    %10925 = vmatmul.bf16.gmra.mxu0 %v381
    %v10926 = vpop.f32.mrf.mxu0
    %v10927 = vadd.f32 %v10914, %v10926
    %v10928 = vpop.f32.mrf.mxu0
    %10929 = vdwg.mxu0
    %10930 = vmatpush.bf16.msra.mxu0 %v7075
    %10931 = vmatpush.bf16.msra.mxu0 %v7059
    %10932 = vmatpush.bf16.msra.mxu0 %v7043
    %10933 = vmatpush.bf16.msra.mxu0 %v7027
    %10934 = vmatpush.bf16.msra.mxu0 %v7011
    %10935 = vmatpush.bf16.msra.mxu0 %v6995
    %10936 = vmatpush.bf16.msra.mxu0 %v6979
    %10937 = vmatpush.bf16.msra.mxu0 %v6963
    %10938 = vmatmul.bf16.gmra.mxu0 %v382
    %v10939 = vpop.f32.mrf.mxu0
    %v10940 = vadd.f32 %v10927, %v10939
    %v10941 = vpop.f32.mrf.mxu0
    %10942 = vdwg.mxu0
    %10943 = vmatpush.bf16.msra.mxu0 %v7203
    %10944 = vmatpush.bf16.msra.mxu0 %v7187
    %10945 = vmatpush.bf16.msra.mxu0 %v7171
    %10946 = vmatpush.bf16.msra.mxu0 %v7155
    %10947 = vmatpush.bf16.msra.mxu0 %v7139
    %10948 = vmatpush.bf16.msra.mxu0 %v7123
    %10949 = vmatpush.bf16.msra.mxu0 %v7107
    %10950 = vmatpush.bf16.msra.mxu0 %v7091
    %10951 = vmatmul.bf16.gmra.mxu0 %v383
    %v10952 = vpop.f32.mrf.mxu0
    %v10953 = vadd.f32 %v10940, %v10952
    %v10954 = vpop.f32.mrf.mxu0
    %10955 = vdwg.mxu0
    %10956 = vmatpush.bf16.msra.mxu0 %v7331
    %10957 = vmatpush.bf16.msra.mxu0 %v7315
    %10958 = vmatpush.bf16.msra.mxu0 %v7299
    %10959 = vmatpush.bf16.msra.mxu0 %v7283
    %10960 = vmatpush.bf16.msra.mxu0 %v7267
    %10961 = vmatpush.bf16.msra.mxu0 %v7251
    %10962 = vmatpush.bf16.msra.mxu0 %v7235
    %10963 = vmatpush.bf16.msra.mxu0 %v7219
    %10964 = vmatmul.bf16.gmra.mxu0 %v384
    %v10965 = vpop.f32.mrf.mxu0
    %v10966 = vadd.f32 %v10953, %v10965
    %v10967 = vpop.f32.mrf.mxu0
    %10968 = vdwg.mxu0
    %10969 = vmatpush.bf16.msra.mxu0 %v7459
    %10970 = vmatpush.bf16.msra.mxu0 %v7443
    %10971 = vmatpush.bf16.msra.mxu0 %v7427
    %10972 = vmatpush.bf16.msra.mxu0 %v7411
    %10973 = vmatpush.bf16.msra.mxu0 %v7395
    %10974 = vmatpush.bf16.msra.mxu0 %v7379
    %10975 = vmatpush.bf16.msra.mxu0 %v7363
    %10976 = vmatpush.bf16.msra.mxu0 %v7347
    %10977 = vmatmul.bf16.gmra.mxu0 %v385
    %v10978 = vpop.f32.mrf.mxu0
    %v10979 = vadd.f32 %v10966, %v10978
    %v10980 = vpop.f32.mrf.mxu0
    %10981 = vdwg.mxu0
    %10982 = vmatpush.bf16.msra.mxu0 %v7587
    %10983 = vmatpush.bf16.msra.mxu0 %v7571
    %10984 = vmatpush.bf16.msra.mxu0 %v7555
    %10985 = vmatpush.bf16.msra.mxu0 %v7539
    %10986 = vmatpush.bf16.msra.mxu0 %v7523
    %10987 = vmatpush.bf16.msra.mxu0 %v7507
    %10988 = vmatpush.bf16.msra.mxu0 %v7491
    %10989 = vmatpush.bf16.msra.mxu0 %v7475
    %10990 = vmatmul.bf16.gmra.mxu0 %v386
    %v10991 = vpop.f32.mrf.mxu0
    %v10992 = vadd.f32 %v10979, %v10991
    %v10993 = vpop.f32.mrf.mxu0
    %10994 = vdwg.mxu0
    %10995 = vmatpush.bf16.msra.mxu0 %v7715
    %10996 = vmatpush.bf16.msra.mxu0 %v7699
    %10997 = vmatpush.bf16.msra.mxu0 %v7683
    %10998 = vmatpush.bf16.msra.mxu0 %v7667
    %10999 = vmatpush.bf16.msra.mxu0 %v7651
    %11000 = vmatpush.bf16.msra.mxu0 %v7635
    %11001 = vmatpush.bf16.msra.mxu0 %v7619
    %11002 = vmatpush.bf16.msra.mxu0 %v7603
    %11003 = vmatmul.bf16.gmra.mxu0 %v387
    %v11004 = vpop.f32.mrf.mxu0
    %v11005 = vadd.f32 %v10992, %v11004
    %v11006 = vpop.f32.mrf.mxu0
    %11007 = vdwg.mxu0
    %11008 = vmatpush.bf16.msra.mxu0 %v7843
    %11009 = vmatpush.bf16.msra.mxu0 %v7827
    %11010 = vmatpush.bf16.msra.mxu0 %v7811
    %11011 = vmatpush.bf16.msra.mxu0 %v7795
    %11012 = vmatpush.bf16.msra.mxu0 %v7779
    %11013 = vmatpush.bf16.msra.mxu0 %v7763
    %11014 = vmatpush.bf16.msra.mxu0 %v7747
    %11015 = vmatpush.bf16.msra.mxu0 %v7731
    %11016 = vmatmul.bf16.gmra.mxu0 %v388
    %v11017 = vpop.f32.mrf.mxu0
    %v11018 = vadd.f32 %v11005, %v11017
    %v11019 = vpop.f32.mrf.mxu0
    %11020 = vdwg.mxu0
    %11021 = vmatpush.bf16.msra.mxu0 %v7971
    %11022 = vmatpush.bf16.msra.mxu0 %v7955
    %11023 = vmatpush.bf16.msra.mxu0 %v7939
    %11024 = vmatpush.bf16.msra.mxu0 %v7923
    %11025 = vmatpush.bf16.msra.mxu0 %v7907
    %11026 = vmatpush.bf16.msra.mxu0 %v7891
    %11027 = vmatpush.bf16.msra.mxu0 %v7875
    %11028 = vmatpush.bf16.msra.mxu0 %v7859
    %11029 = vmatmul.bf16.gmra.mxu0 %v389
    %v11030 = vpop.f32.mrf.mxu0
    %v11031 = vadd.f32 %v11018, %v11030
    %v11032 = vpop.f32.mrf.mxu0
    %11033 = vdwg.mxu0
    %11034 = vmatpush.bf16.msra.mxu0 %v8099
    %11035 = vmatpush.bf16.msra.mxu0 %v8083
    %11036 = vmatpush.bf16.msra.mxu0 %v8067
    %11037 = vmatpush.bf16.msra.mxu0 %v8051
    %11038 = vmatpush.bf16.msra.mxu0 %v8035
    %11039 = vmatpush.bf16.msra.mxu0 %v8019
    %11040 = vmatpush.bf16.msra.mxu0 %v8003
    %11041 = vmatpush.bf16.msra.mxu0 %v7987
    %11042 = vmatmul.bf16.gmra.mxu0 %v390
    %v11043 = vpop.f32.mrf.mxu0
    %v11044 = vadd.f32 %v11031, %v11043
    %v11045 = vpop.f32.mrf.mxu0
    %11046 = vdwg.mxu0
    %11047 = vmatpush.bf16.msra.mxu0 %v6692
    %11048 = vmatpush.bf16.msra.mxu0 %v6676
    %11049 = vmatpush.bf16.msra.mxu0 %v6660
    %11050 = vmatpush.bf16.msra.mxu0 %v6644
    %11051 = vmatpush.bf16.msra.mxu0 %v6628
    %11052 = vmatpush.bf16.msra.mxu0 %v6612
    %11053 = vmatpush.bf16.msra.mxu0 %v6596
    %11054 = vmatpush.bf16.msra.mxu0 %v6580
    %11055 = vmatmul.bf16.gmra.mxu0 %v379
    %v11056 = vpop.f32.mrf.mxu0
    %v11057 = vadd.f32 %v1940, %v11056
    %v11058 = vpop.f32.mrf.mxu0
    %11059 = vdwg.mxu0
    %11060 = vmatpush.bf16.msra.mxu0 %v6820
    %11061 = vmatpush.bf16.msra.mxu0 %v6804
    %11062 = vmatpush.bf16.msra.mxu0 %v6788
    %11063 = vmatpush.bf16.msra.mxu0 %v6772
    %11064 = vmatpush.bf16.msra.mxu0 %v6756
    %11065 = vmatpush.bf16.msra.mxu0 %v6740
    %11066 = vmatpush.bf16.msra.mxu0 %v6724
    %11067 = vmatpush.bf16.msra.mxu0 %v6708
    %11068 = vmatmul.bf16.gmra.mxu0 %v380
    %v11069 = vpop.f32.mrf.mxu0
    %v11070 = vadd.f32 %v11057, %v11069
    %v11071 = vpop.f32.mrf.mxu0
    %11072 = vdwg.mxu0
    %11073 = vmatpush.bf16.msra.mxu0 %v6948
    %11074 = vmatpush.bf16.msra.mxu0 %v6932
    %11075 = vmatpush.bf16.msra.mxu0 %v6916
    %11076 = vmatpush.bf16.msra.mxu0 %v6900
    %11077 = vmatpush.bf16.msra.mxu0 %v6884
    %11078 = vmatpush.bf16.msra.mxu0 %v6868
    %11079 = vmatpush.bf16.msra.mxu0 %v6852
    %11080 = vmatpush.bf16.msra.mxu0 %v6836
    %11081 = vmatmul.bf16.gmra.mxu0 %v381
    %v11082 = vpop.f32.mrf.mxu0
    %v11083 = vadd.f32 %v11070, %v11082
    %v11084 = vpop.f32.mrf.mxu0
    %11085 = vdwg.mxu0
    %11086 = vmatpush.bf16.msra.mxu0 %v7076
    %11087 = vmatpush.bf16.msra.mxu0 %v7060
    %11088 = vmatpush.bf16.msra.mxu0 %v7044
    %11089 = vmatpush.bf16.msra.mxu0 %v7028
    %11090 = vmatpush.bf16.msra.mxu0 %v7012
    %11091 = vmatpush.bf16.msra.mxu0 %v6996
    %11092 = vmatpush.bf16.msra.mxu0 %v6980
    %11093 = vmatpush.bf16.msra.mxu0 %v6964
    %11094 = vmatmul.bf16.gmra.mxu0 %v382
    %v11095 = vpop.f32.mrf.mxu0
    %v11096 = vadd.f32 %v11083, %v11095
    %v11097 = vpop.f32.mrf.mxu0
    %11098 = vdwg.mxu0
    %11099 = vmatpush.bf16.msra.mxu0 %v7204
    %11100 = vmatpush.bf16.msra.mxu0 %v7188
    %11101 = vmatpush.bf16.msra.mxu0 %v7172
    %11102 = vmatpush.bf16.msra.mxu0 %v7156
    %11103 = vmatpush.bf16.msra.mxu0 %v7140
    %11104 = vmatpush.bf16.msra.mxu0 %v7124
    %11105 = vmatpush.bf16.msra.mxu0 %v7108
    %11106 = vmatpush.bf16.msra.mxu0 %v7092
    %11107 = vmatmul.bf16.gmra.mxu0 %v383
    %v11108 = vpop.f32.mrf.mxu0
    %v11109 = vadd.f32 %v11096, %v11108
    %v11110 = vpop.f32.mrf.mxu0
    %11111 = vdwg.mxu0
    %11112 = vmatpush.bf16.msra.mxu0 %v7332
    %11113 = vmatpush.bf16.msra.mxu0 %v7316
    %11114 = vmatpush.bf16.msra.mxu0 %v7300
    %11115 = vmatpush.bf16.msra.mxu0 %v7284
    %11116 = vmatpush.bf16.msra.mxu0 %v7268
    %11117 = vmatpush.bf16.msra.mxu0 %v7252
    %11118 = vmatpush.bf16.msra.mxu0 %v7236
    %11119 = vmatpush.bf16.msra.mxu0 %v7220
    %11120 = vmatmul.bf16.gmra.mxu0 %v384
    %v11121 = vpop.f32.mrf.mxu0
    %v11122 = vadd.f32 %v11109, %v11121
    %v11123 = vpop.f32.mrf.mxu0
    %11124 = vdwg.mxu0
    %11125 = vmatpush.bf16.msra.mxu0 %v7460
    %11126 = vmatpush.bf16.msra.mxu0 %v7444
    %11127 = vmatpush.bf16.msra.mxu0 %v7428
    %11128 = vmatpush.bf16.msra.mxu0 %v7412
    %11129 = vmatpush.bf16.msra.mxu0 %v7396
    %11130 = vmatpush.bf16.msra.mxu0 %v7380
    %11131 = vmatpush.bf16.msra.mxu0 %v7364
    %11132 = vmatpush.bf16.msra.mxu0 %v7348
    %11133 = vmatmul.bf16.gmra.mxu0 %v385
    %v11134 = vpop.f32.mrf.mxu0
    %v11135 = vadd.f32 %v11122, %v11134
    %v11136 = vpop.f32.mrf.mxu0
    %11137 = vdwg.mxu0
    %11138 = vmatpush.bf16.msra.mxu0 %v7588
    %11139 = vmatpush.bf16.msra.mxu0 %v7572
    %11140 = vmatpush.bf16.msra.mxu0 %v7556
    %11141 = vmatpush.bf16.msra.mxu0 %v7540
    %11142 = vmatpush.bf16.msra.mxu0 %v7524
    %11143 = vmatpush.bf16.msra.mxu0 %v7508
    %11144 = vmatpush.bf16.msra.mxu0 %v7492
    %11145 = vmatpush.bf16.msra.mxu0 %v7476
    %11146 = vmatmul.bf16.gmra.mxu0 %v386
    %v11147 = vpop.f32.mrf.mxu0
    %v11148 = vadd.f32 %v11135, %v11147
    %v11149 = vpop.f32.mrf.mxu0
    %11150 = vdwg.mxu0
    %11151 = vmatpush.bf16.msra.mxu0 %v7716
    %11152 = vmatpush.bf16.msra.mxu0 %v7700
    %11153 = vmatpush.bf16.msra.mxu0 %v7684
    %11154 = vmatpush.bf16.msra.mxu0 %v7668
    %11155 = vmatpush.bf16.msra.mxu0 %v7652
    %11156 = vmatpush.bf16.msra.mxu0 %v7636
    %11157 = vmatpush.bf16.msra.mxu0 %v7620
    %11158 = vmatpush.bf16.msra.mxu0 %v7604
    %11159 = vmatmul.bf16.gmra.mxu0 %v387
    %v11160 = vpop.f32.mrf.mxu0
    %v11161 = vadd.f32 %v11148, %v11160
    %v11162 = vpop.f32.mrf.mxu0
    %11163 = vdwg.mxu0
    %11164 = vmatpush.bf16.msra.mxu0 %v7844
    %11165 = vmatpush.bf16.msra.mxu0 %v7828
    %11166 = vmatpush.bf16.msra.mxu0 %v7812
    %11167 = vmatpush.bf16.msra.mxu0 %v7796
    %11168 = vmatpush.bf16.msra.mxu0 %v7780
    %11169 = vmatpush.bf16.msra.mxu0 %v7764
    %11170 = vmatpush.bf16.msra.mxu0 %v7748
    %11171 = vmatpush.bf16.msra.mxu0 %v7732
    %11172 = vmatmul.bf16.gmra.mxu0 %v388
    %v11173 = vpop.f32.mrf.mxu0
    %v11174 = vadd.f32 %v11161, %v11173
    %v11175 = vpop.f32.mrf.mxu0
    %11176 = vdwg.mxu0
    %11177 = vmatpush.bf16.msra.mxu0 %v7972
    %11178 = vmatpush.bf16.msra.mxu0 %v7956
    %11179 = vmatpush.bf16.msra.mxu0 %v7940
    %11180 = vmatpush.bf16.msra.mxu0 %v7924
    %11181 = vmatpush.bf16.msra.mxu0 %v7908
    %11182 = vmatpush.bf16.msra.mxu0 %v7892
    %11183 = vmatpush.bf16.msra.mxu0 %v7876
    %11184 = vmatpush.bf16.msra.mxu0 %v7860
    %11185 = vmatmul.bf16.gmra.mxu0 %v389
    %v11186 = vpop.f32.mrf.mxu0
    %v11187 = vadd.f32 %v11174, %v11186
    %v11188 = vpop.f32.mrf.mxu0
    %11189 = vdwg.mxu0
    %11190 = vmatpush.bf16.msra.mxu0 %v8100
    %11191 = vmatpush.bf16.msra.mxu0 %v8084
    %11192 = vmatpush.bf16.msra.mxu0 %v8068
    %11193 = vmatpush.bf16.msra.mxu0 %v8052
    %11194 = vmatpush.bf16.msra.mxu0 %v8036
    %11195 = vmatpush.bf16.msra.mxu0 %v8020
    %11196 = vmatpush.bf16.msra.mxu0 %v8004
    %11197 = vmatpush.bf16.msra.mxu0 %v7988
    %11198 = vmatmul.bf16.gmra.mxu0 %v390
    %v11199 = vpop.f32.mrf.mxu0
    %v11200 = vadd.f32 %v11187, %v11199
    %v11201 = vpop.f32.mrf.mxu0
    %11202 = vdwg.mxu0
    %11203 = vmatpush.bf16.msra.mxu0 %v6693
    %11204 = vmatpush.bf16.msra.mxu0 %v6677
    %11205 = vmatpush.bf16.msra.mxu0 %v6661
    %11206 = vmatpush.bf16.msra.mxu0 %v6645
    %11207 = vmatpush.bf16.msra.mxu0 %v6629
    %11208 = vmatpush.bf16.msra.mxu0 %v6613
    %11209 = vmatpush.bf16.msra.mxu0 %v6597
    %11210 = vmatpush.bf16.msra.mxu0 %v6581
    %11211 = vmatmul.bf16.gmra.mxu0 %v379
    %v11212 = vpop.f32.mrf.mxu0
    %v11213 = vadd.f32 %v1941, %v11212
    %v11214 = vpop.f32.mrf.mxu0
    %11215 = vdwg.mxu0
    %11216 = vmatpush.bf16.msra.mxu0 %v6821
    %11217 = vmatpush.bf16.msra.mxu0 %v6805
    %11218 = vmatpush.bf16.msra.mxu0 %v6789
    %11219 = vmatpush.bf16.msra.mxu0 %v6773
    %11220 = vmatpush.bf16.msra.mxu0 %v6757
    %11221 = vmatpush.bf16.msra.mxu0 %v6741
    %11222 = vmatpush.bf16.msra.mxu0 %v6725
    %11223 = vmatpush.bf16.msra.mxu0 %v6709
    %11224 = vmatmul.bf16.gmra.mxu0 %v380
    %v11225 = vpop.f32.mrf.mxu0
    %v11226 = vadd.f32 %v11213, %v11225
    %v11227 = vpop.f32.mrf.mxu0
    %11228 = vdwg.mxu0
    %11229 = vmatpush.bf16.msra.mxu0 %v6949
    %11230 = vmatpush.bf16.msra.mxu0 %v6933
    %11231 = vmatpush.bf16.msra.mxu0 %v6917
    %11232 = vmatpush.bf16.msra.mxu0 %v6901
    %11233 = vmatpush.bf16.msra.mxu0 %v6885
    %11234 = vmatpush.bf16.msra.mxu0 %v6869
    %11235 = vmatpush.bf16.msra.mxu0 %v6853
    %11236 = vmatpush.bf16.msra.mxu0 %v6837
    %11237 = vmatmul.bf16.gmra.mxu0 %v381
    %v11238 = vpop.f32.mrf.mxu0
    %v11239 = vadd.f32 %v11226, %v11238
    %v11240 = vpop.f32.mrf.mxu0
    %11241 = vdwg.mxu0
    %11242 = vmatpush.bf16.msra.mxu0 %v7077
    %11243 = vmatpush.bf16.msra.mxu0 %v7061
    %11244 = vmatpush.bf16.msra.mxu0 %v7045
    %11245 = vmatpush.bf16.msra.mxu0 %v7029
    %11246 = vmatpush.bf16.msra.mxu0 %v7013
    %11247 = vmatpush.bf16.msra.mxu0 %v6997
    %11248 = vmatpush.bf16.msra.mxu0 %v6981
    %11249 = vmatpush.bf16.msra.mxu0 %v6965
    %11250 = vmatmul.bf16.gmra.mxu0 %v382
    %v11251 = vpop.f32.mrf.mxu0
    %v11252 = vadd.f32 %v11239, %v11251
    %v11253 = vpop.f32.mrf.mxu0
    %11254 = vdwg.mxu0
    %11255 = vmatpush.bf16.msra.mxu0 %v7205
    %11256 = vmatpush.bf16.msra.mxu0 %v7189
    %11257 = vmatpush.bf16.msra.mxu0 %v7173
    %11258 = vmatpush.bf16.msra.mxu0 %v7157
    %11259 = vmatpush.bf16.msra.mxu0 %v7141
    %11260 = vmatpush.bf16.msra.mxu0 %v7125
    %11261 = vmatpush.bf16.msra.mxu0 %v7109
    %11262 = vmatpush.bf16.msra.mxu0 %v7093
    %11263 = vmatmul.bf16.gmra.mxu0 %v383
    %v11264 = vpop.f32.mrf.mxu0
    %v11265 = vadd.f32 %v11252, %v11264
    %v11266 = vpop.f32.mrf.mxu0
    %11267 = vdwg.mxu0
    %11268 = vmatpush.bf16.msra.mxu0 %v7333
    %11269 = vmatpush.bf16.msra.mxu0 %v7317
    %11270 = vmatpush.bf16.msra.mxu0 %v7301
    %11271 = vmatpush.bf16.msra.mxu0 %v7285
    %11272 = vmatpush.bf16.msra.mxu0 %v7269
    %11273 = vmatpush.bf16.msra.mxu0 %v7253
    %11274 = vmatpush.bf16.msra.mxu0 %v7237
    %11275 = vmatpush.bf16.msra.mxu0 %v7221
    %11276 = vmatmul.bf16.gmra.mxu0 %v384
    %v11277 = vpop.f32.mrf.mxu0
    %v11278 = vadd.f32 %v11265, %v11277
    %v11279 = vpop.f32.mrf.mxu0
    %11280 = vdwg.mxu0
    %11281 = vmatpush.bf16.msra.mxu0 %v7461
    %11282 = vmatpush.bf16.msra.mxu0 %v7445
    %11283 = vmatpush.bf16.msra.mxu0 %v7429
    %11284 = vmatpush.bf16.msra.mxu0 %v7413
    %11285 = vmatpush.bf16.msra.mxu0 %v7397
    %11286 = vmatpush.bf16.msra.mxu0 %v7381
    %11287 = vmatpush.bf16.msra.mxu0 %v7365
    %11288 = vmatpush.bf16.msra.mxu0 %v7349
    %11289 = vmatmul.bf16.gmra.mxu0 %v385
    %v11290 = vpop.f32.mrf.mxu0
    %v11291 = vadd.f32 %v11278, %v11290
    %v11292 = vpop.f32.mrf.mxu0
    %11293 = vdwg.mxu0
    %11294 = vmatpush.bf16.msra.mxu0 %v7589
    %11295 = vmatpush.bf16.msra.mxu0 %v7573
    %11296 = vmatpush.bf16.msra.mxu0 %v7557
    %11297 = vmatpush.bf16.msra.mxu0 %v7541
    %11298 = vmatpush.bf16.msra.mxu0 %v7525
    %11299 = vmatpush.bf16.msra.mxu0 %v7509
    %11300 = vmatpush.bf16.msra.mxu0 %v7493
    %11301 = vmatpush.bf16.msra.mxu0 %v7477
    %11302 = vmatmul.bf16.gmra.mxu0 %v386
    %v11303 = vpop.f32.mrf.mxu0
    %v11304 = vadd.f32 %v11291, %v11303
    %v11305 = vpop.f32.mrf.mxu0
    %11306 = vdwg.mxu0
    %11307 = vmatpush.bf16.msra.mxu0 %v7717
    %11308 = vmatpush.bf16.msra.mxu0 %v7701
    %11309 = vmatpush.bf16.msra.mxu0 %v7685
    %11310 = vmatpush.bf16.msra.mxu0 %v7669
    %11311 = vmatpush.bf16.msra.mxu0 %v7653
    %11312 = vmatpush.bf16.msra.mxu0 %v7637
    %11313 = vmatpush.bf16.msra.mxu0 %v7621
    %11314 = vmatpush.bf16.msra.mxu0 %v7605
    %11315 = vmatmul.bf16.gmra.mxu0 %v387
    %v11316 = vpop.f32.mrf.mxu0
    %v11317 = vadd.f32 %v11304, %v11316
    %v11318 = vpop.f32.mrf.mxu0
    %11319 = vdwg.mxu0
    %11320 = vmatpush.bf16.msra.mxu0 %v7845
    %11321 = vmatpush.bf16.msra.mxu0 %v7829
    %11322 = vmatpush.bf16.msra.mxu0 %v7813
    %11323 = vmatpush.bf16.msra.mxu0 %v7797
    %11324 = vmatpush.bf16.msra.mxu0 %v7781
    %11325 = vmatpush.bf16.msra.mxu0 %v7765
    %11326 = vmatpush.bf16.msra.mxu0 %v7749
    %11327 = vmatpush.bf16.msra.mxu0 %v7733
    %11328 = vmatmul.bf16.gmra.mxu0 %v388
    %v11329 = vpop.f32.mrf.mxu0
    %v11330 = vadd.f32 %v11317, %v11329
    %v11331 = vpop.f32.mrf.mxu0
    %11332 = vdwg.mxu0
    %11333 = vmatpush.bf16.msra.mxu0 %v7973
    %11334 = vmatpush.bf16.msra.mxu0 %v7957
    %11335 = vmatpush.bf16.msra.mxu0 %v7941
    %11336 = vmatpush.bf16.msra.mxu0 %v7925
    %11337 = vmatpush.bf16.msra.mxu0 %v7909
    %11338 = vmatpush.bf16.msra.mxu0 %v7893
    %11339 = vmatpush.bf16.msra.mxu0 %v7877
    %11340 = vmatpush.bf16.msra.mxu0 %v7861
    %11341 = vmatmul.bf16.gmra.mxu0 %v389
    %v11342 = vpop.f32.mrf.mxu0
    %v11343 = vadd.f32 %v11330, %v11342
    %v11344 = vpop.f32.mrf.mxu0
    %11345 = vdwg.mxu0
    %11346 = vmatpush.bf16.msra.mxu0 %v8101
    %11347 = vmatpush.bf16.msra.mxu0 %v8085
    %11348 = vmatpush.bf16.msra.mxu0 %v8069
    %11349 = vmatpush.bf16.msra.mxu0 %v8053
    %11350 = vmatpush.bf16.msra.mxu0 %v8037
    %11351 = vmatpush.bf16.msra.mxu0 %v8021
    %11352 = vmatpush.bf16.msra.mxu0 %v8005
    %11353 = vmatpush.bf16.msra.mxu0 %v7989
    %11354 = vmatmul.bf16.gmra.mxu0 %v390
    %v11355 = vpop.f32.mrf.mxu0
    %v11356 = vadd.f32 %v11343, %v11355
    %v11357 = vpop.f32.mrf.mxu0
    %11358 = vdwg.mxu0
    %11359 = vmatpush.bf16.msra.mxu0 %v6694
    %11360 = vmatpush.bf16.msra.mxu0 %v6678
    %11361 = vmatpush.bf16.msra.mxu0 %v6662
    %11362 = vmatpush.bf16.msra.mxu0 %v6646
    %11363 = vmatpush.bf16.msra.mxu0 %v6630
    %11364 = vmatpush.bf16.msra.mxu0 %v6614
    %11365 = vmatpush.bf16.msra.mxu0 %v6598
    %11366 = vmatpush.bf16.msra.mxu0 %v6582
    %11367 = vmatmul.bf16.gmra.mxu0 %v379
    %v11368 = vpop.f32.mrf.mxu0
    %v11369 = vadd.f32 %v1942, %v11368
    %v11370 = vpop.f32.mrf.mxu0
    %11371 = vdwg.mxu0
    %11372 = vmatpush.bf16.msra.mxu0 %v6822
    %11373 = vmatpush.bf16.msra.mxu0 %v6806
    %11374 = vmatpush.bf16.msra.mxu0 %v6790
    %11375 = vmatpush.bf16.msra.mxu0 %v6774
    %11376 = vmatpush.bf16.msra.mxu0 %v6758
    %11377 = vmatpush.bf16.msra.mxu0 %v6742
    %11378 = vmatpush.bf16.msra.mxu0 %v6726
    %11379 = vmatpush.bf16.msra.mxu0 %v6710
    %11380 = vmatmul.bf16.gmra.mxu0 %v380
    %v11381 = vpop.f32.mrf.mxu0
    %v11382 = vadd.f32 %v11369, %v11381
    %v11383 = vpop.f32.mrf.mxu0
    %11384 = vdwg.mxu0
    %11385 = vmatpush.bf16.msra.mxu0 %v6950
    %11386 = vmatpush.bf16.msra.mxu0 %v6934
    %11387 = vmatpush.bf16.msra.mxu0 %v6918
    %11388 = vmatpush.bf16.msra.mxu0 %v6902
    %11389 = vmatpush.bf16.msra.mxu0 %v6886
    %11390 = vmatpush.bf16.msra.mxu0 %v6870
    %11391 = vmatpush.bf16.msra.mxu0 %v6854
    %11392 = vmatpush.bf16.msra.mxu0 %v6838
    %11393 = vmatmul.bf16.gmra.mxu0 %v381
    %v11394 = vpop.f32.mrf.mxu0
    %v11395 = vadd.f32 %v11382, %v11394
    %v11396 = vpop.f32.mrf.mxu0
    %11397 = vdwg.mxu0
    %11398 = vmatpush.bf16.msra.mxu0 %v7078
    %11399 = vmatpush.bf16.msra.mxu0 %v7062
    %11400 = vmatpush.bf16.msra.mxu0 %v7046
    %11401 = vmatpush.bf16.msra.mxu0 %v7030
    %11402 = vmatpush.bf16.msra.mxu0 %v7014
    %11403 = vmatpush.bf16.msra.mxu0 %v6998
    %11404 = vmatpush.bf16.msra.mxu0 %v6982
    %11405 = vmatpush.bf16.msra.mxu0 %v6966
    %11406 = vmatmul.bf16.gmra.mxu0 %v382
    %v11407 = vpop.f32.mrf.mxu0
    %v11408 = vadd.f32 %v11395, %v11407
    %v11409 = vpop.f32.mrf.mxu0
    %11410 = vdwg.mxu0
    %11411 = vmatpush.bf16.msra.mxu0 %v7206
    %11412 = vmatpush.bf16.msra.mxu0 %v7190
    %11413 = vmatpush.bf16.msra.mxu0 %v7174
    %11414 = vmatpush.bf16.msra.mxu0 %v7158
    %11415 = vmatpush.bf16.msra.mxu0 %v7142
    %11416 = vmatpush.bf16.msra.mxu0 %v7126
    %11417 = vmatpush.bf16.msra.mxu0 %v7110
    %11418 = vmatpush.bf16.msra.mxu0 %v7094
    %11419 = vmatmul.bf16.gmra.mxu0 %v383
    %v11420 = vpop.f32.mrf.mxu0
    %v11421 = vadd.f32 %v11408, %v11420
    %v11422 = vpop.f32.mrf.mxu0
    %11423 = vdwg.mxu0
    %11424 = vmatpush.bf16.msra.mxu0 %v7334
    %11425 = vmatpush.bf16.msra.mxu0 %v7318
    %11426 = vmatpush.bf16.msra.mxu0 %v7302
    %11427 = vmatpush.bf16.msra.mxu0 %v7286
    %11428 = vmatpush.bf16.msra.mxu0 %v7270
    %11429 = vmatpush.bf16.msra.mxu0 %v7254
    %11430 = vmatpush.bf16.msra.mxu0 %v7238
    %11431 = vmatpush.bf16.msra.mxu0 %v7222
    %11432 = vmatmul.bf16.gmra.mxu0 %v384
    %v11433 = vpop.f32.mrf.mxu0
    %v11434 = vadd.f32 %v11421, %v11433
    %v11435 = vpop.f32.mrf.mxu0
    %11436 = vdwg.mxu0
    %11437 = vmatpush.bf16.msra.mxu0 %v7462
    %11438 = vmatpush.bf16.msra.mxu0 %v7446
    %11439 = vmatpush.bf16.msra.mxu0 %v7430
    %11440 = vmatpush.bf16.msra.mxu0 %v7414
    %11441 = vmatpush.bf16.msra.mxu0 %v7398
    %11442 = vmatpush.bf16.msra.mxu0 %v7382
    %11443 = vmatpush.bf16.msra.mxu0 %v7366
    %11444 = vmatpush.bf16.msra.mxu0 %v7350
    %11445 = vmatmul.bf16.gmra.mxu0 %v385
    %v11446 = vpop.f32.mrf.mxu0
    %v11447 = vadd.f32 %v11434, %v11446
    %v11448 = vpop.f32.mrf.mxu0
    %11449 = vdwg.mxu0
    %11450 = vmatpush.bf16.msra.mxu0 %v7590
    %11451 = vmatpush.bf16.msra.mxu0 %v7574
    %11452 = vmatpush.bf16.msra.mxu0 %v7558
    %11453 = vmatpush.bf16.msra.mxu0 %v7542
    %11454 = vmatpush.bf16.msra.mxu0 %v7526
    %11455 = vmatpush.bf16.msra.mxu0 %v7510
    %11456 = vmatpush.bf16.msra.mxu0 %v7494
    %11457 = vmatpush.bf16.msra.mxu0 %v7478
    %11458 = vmatmul.bf16.gmra.mxu0 %v386
    %v11459 = vpop.f32.mrf.mxu0
    %v11460 = vadd.f32 %v11447, %v11459
    %v11461 = vpop.f32.mrf.mxu0
    %11462 = vdwg.mxu0
    %11463 = vmatpush.bf16.msra.mxu0 %v7718
    %11464 = vmatpush.bf16.msra.mxu0 %v7702
    %11465 = vmatpush.bf16.msra.mxu0 %v7686
    %11466 = vmatpush.bf16.msra.mxu0 %v7670
    %11467 = vmatpush.bf16.msra.mxu0 %v7654
    %11468 = vmatpush.bf16.msra.mxu0 %v7638
    %11469 = vmatpush.bf16.msra.mxu0 %v7622
    %11470 = vmatpush.bf16.msra.mxu0 %v7606
    %11471 = vmatmul.bf16.gmra.mxu0 %v387
    %v11472 = vpop.f32.mrf.mxu0
    %v11473 = vadd.f32 %v11460, %v11472
    %v11474 = vpop.f32.mrf.mxu0
    %11475 = vdwg.mxu0
    %11476 = vmatpush.bf16.msra.mxu0 %v7846
    %11477 = vmatpush.bf16.msra.mxu0 %v7830
    %11478 = vmatpush.bf16.msra.mxu0 %v7814
    %11479 = vmatpush.bf16.msra.mxu0 %v7798
    %11480 = vmatpush.bf16.msra.mxu0 %v7782
    %11481 = vmatpush.bf16.msra.mxu0 %v7766
    %11482 = vmatpush.bf16.msra.mxu0 %v7750
    %11483 = vmatpush.bf16.msra.mxu0 %v7734
    %11484 = vmatmul.bf16.gmra.mxu0 %v388
    %v11485 = vpop.f32.mrf.mxu0
    %v11486 = vadd.f32 %v11473, %v11485
    %v11487 = vpop.f32.mrf.mxu0
    %11488 = vdwg.mxu0
    %11489 = vmatpush.bf16.msra.mxu0 %v7974
    %11490 = vmatpush.bf16.msra.mxu0 %v7958
    %11491 = vmatpush.bf16.msra.mxu0 %v7942
    %11492 = vmatpush.bf16.msra.mxu0 %v7926
    %11493 = vmatpush.bf16.msra.mxu0 %v7910
    %11494 = vmatpush.bf16.msra.mxu0 %v7894
    %11495 = vmatpush.bf16.msra.mxu0 %v7878
    %11496 = vmatpush.bf16.msra.mxu0 %v7862
    %11497 = vmatmul.bf16.gmra.mxu0 %v389
    %v11498 = vpop.f32.mrf.mxu0
    %v11499 = vadd.f32 %v11486, %v11498
    %v11500 = vpop.f32.mrf.mxu0
    %11501 = vdwg.mxu0
    %11502 = vmatpush.bf16.msra.mxu0 %v8102
    %11503 = vmatpush.bf16.msra.mxu0 %v8086
    %11504 = vmatpush.bf16.msra.mxu0 %v8070
    %11505 = vmatpush.bf16.msra.mxu0 %v8054
    %11506 = vmatpush.bf16.msra.mxu0 %v8038
    %11507 = vmatpush.bf16.msra.mxu0 %v8022
    %11508 = vmatpush.bf16.msra.mxu0 %v8006
    %11509 = vmatpush.bf16.msra.mxu0 %v7990
    %11510 = vmatmul.bf16.gmra.mxu0 %v390
    %v11511 = vpop.f32.mrf.mxu0
    %v11512 = vadd.f32 %v11499, %v11511
    %v11513 = vpop.f32.mrf.mxu0
    %11514 = vdwg.mxu0
    %11515 = vmatpush.bf16.msra.mxu0 %v6695
    %11516 = vmatpush.bf16.msra.mxu0 %v6679
    %11517 = vmatpush.bf16.msra.mxu0 %v6663
    %11518 = vmatpush.bf16.msra.mxu0 %v6647
    %11519 = vmatpush.bf16.msra.mxu0 %v6631
    %11520 = vmatpush.bf16.msra.mxu0 %v6615
    %11521 = vmatpush.bf16.msra.mxu0 %v6599
    %11522 = vmatpush.bf16.msra.mxu0 %v6583
    %11523 = vmatmul.bf16.gmra.mxu0 %v379
    %v11524 = vpop.f32.mrf.mxu0
    %v11525 = vadd.f32 %v1943, %v11524
    %v11526 = vpop.f32.mrf.mxu0
    %11527 = vdwg.mxu0
    %11528 = vmatpush.bf16.msra.mxu0 %v6823
    %11529 = vmatpush.bf16.msra.mxu0 %v6807
    %11530 = vmatpush.bf16.msra.mxu0 %v6791
    %11531 = vmatpush.bf16.msra.mxu0 %v6775
    %11532 = vmatpush.bf16.msra.mxu0 %v6759
    %11533 = vmatpush.bf16.msra.mxu0 %v6743
    %11534 = vmatpush.bf16.msra.mxu0 %v6727
    %11535 = vmatpush.bf16.msra.mxu0 %v6711
    %11536 = vmatmul.bf16.gmra.mxu0 %v380
    %v11537 = vpop.f32.mrf.mxu0
    %v11538 = vadd.f32 %v11525, %v11537
    %v11539 = vpop.f32.mrf.mxu0
    %11540 = vdwg.mxu0
    %11541 = vmatpush.bf16.msra.mxu0 %v6951
    %11542 = vmatpush.bf16.msra.mxu0 %v6935
    %11543 = vmatpush.bf16.msra.mxu0 %v6919
    %11544 = vmatpush.bf16.msra.mxu0 %v6903
    %11545 = vmatpush.bf16.msra.mxu0 %v6887
    %11546 = vmatpush.bf16.msra.mxu0 %v6871
    %11547 = vmatpush.bf16.msra.mxu0 %v6855
    %11548 = vmatpush.bf16.msra.mxu0 %v6839
    %11549 = vmatmul.bf16.gmra.mxu0 %v381
    %v11550 = vpop.f32.mrf.mxu0
    %v11551 = vadd.f32 %v11538, %v11550
    %v11552 = vpop.f32.mrf.mxu0
    %11553 = vdwg.mxu0
    %11554 = vmatpush.bf16.msra.mxu0 %v7079
    %11555 = vmatpush.bf16.msra.mxu0 %v7063
    %11556 = vmatpush.bf16.msra.mxu0 %v7047
    %11557 = vmatpush.bf16.msra.mxu0 %v7031
    %11558 = vmatpush.bf16.msra.mxu0 %v7015
    %11559 = vmatpush.bf16.msra.mxu0 %v6999
    %11560 = vmatpush.bf16.msra.mxu0 %v6983
    %11561 = vmatpush.bf16.msra.mxu0 %v6967
    %11562 = vmatmul.bf16.gmra.mxu0 %v382
    %v11563 = vpop.f32.mrf.mxu0
    %v11564 = vadd.f32 %v11551, %v11563
    %v11565 = vpop.f32.mrf.mxu0
    %11566 = vdwg.mxu0
    %11567 = vmatpush.bf16.msra.mxu0 %v7207
    %11568 = vmatpush.bf16.msra.mxu0 %v7191
    %11569 = vmatpush.bf16.msra.mxu0 %v7175
    %11570 = vmatpush.bf16.msra.mxu0 %v7159
    %11571 = vmatpush.bf16.msra.mxu0 %v7143
    %11572 = vmatpush.bf16.msra.mxu0 %v7127
    %11573 = vmatpush.bf16.msra.mxu0 %v7111
    %11574 = vmatpush.bf16.msra.mxu0 %v7095
    %11575 = vmatmul.bf16.gmra.mxu0 %v383
    %v11576 = vpop.f32.mrf.mxu0
    %v11577 = vadd.f32 %v11564, %v11576
    %v11578 = vpop.f32.mrf.mxu0
    %11579 = vdwg.mxu0
    %11580 = vmatpush.bf16.msra.mxu0 %v7335
    %11581 = vmatpush.bf16.msra.mxu0 %v7319
    %11582 = vmatpush.bf16.msra.mxu0 %v7303
    %11583 = vmatpush.bf16.msra.mxu0 %v7287
    %11584 = vmatpush.bf16.msra.mxu0 %v7271
    %11585 = vmatpush.bf16.msra.mxu0 %v7255
    %11586 = vmatpush.bf16.msra.mxu0 %v7239
    %11587 = vmatpush.bf16.msra.mxu0 %v7223
    %11588 = vmatmul.bf16.gmra.mxu0 %v384
    %v11589 = vpop.f32.mrf.mxu0
    %v11590 = vadd.f32 %v11577, %v11589
    %v11591 = vpop.f32.mrf.mxu0
    %11592 = vdwg.mxu0
    %11593 = vmatpush.bf16.msra.mxu0 %v7463
    %11594 = vmatpush.bf16.msra.mxu0 %v7447
    %11595 = vmatpush.bf16.msra.mxu0 %v7431
    %11596 = vmatpush.bf16.msra.mxu0 %v7415
    %11597 = vmatpush.bf16.msra.mxu0 %v7399
    %11598 = vmatpush.bf16.msra.mxu0 %v7383
    %11599 = vmatpush.bf16.msra.mxu0 %v7367
    %11600 = vmatpush.bf16.msra.mxu0 %v7351
    %11601 = vmatmul.bf16.gmra.mxu0 %v385
    %v11602 = vpop.f32.mrf.mxu0
    %v11603 = vadd.f32 %v11590, %v11602
    %v11604 = vpop.f32.mrf.mxu0
    %11605 = vdwg.mxu0
    %11606 = vmatpush.bf16.msra.mxu0 %v7591
    %11607 = vmatpush.bf16.msra.mxu0 %v7575
    %11608 = vmatpush.bf16.msra.mxu0 %v7559
    %11609 = vmatpush.bf16.msra.mxu0 %v7543
    %11610 = vmatpush.bf16.msra.mxu0 %v7527
    %11611 = vmatpush.bf16.msra.mxu0 %v7511
    %11612 = vmatpush.bf16.msra.mxu0 %v7495
    %11613 = vmatpush.bf16.msra.mxu0 %v7479
    %11614 = vmatmul.bf16.gmra.mxu0 %v386
    %v11615 = vpop.f32.mrf.mxu0
    %v11616 = vadd.f32 %v11603, %v11615
    %v11617 = vpop.f32.mrf.mxu0
    %11618 = vdwg.mxu0
    %11619 = vmatpush.bf16.msra.mxu0 %v7719
    %11620 = vmatpush.bf16.msra.mxu0 %v7703
    %11621 = vmatpush.bf16.msra.mxu0 %v7687
    %11622 = vmatpush.bf16.msra.mxu0 %v7671
    %11623 = vmatpush.bf16.msra.mxu0 %v7655
    %11624 = vmatpush.bf16.msra.mxu0 %v7639
    %11625 = vmatpush.bf16.msra.mxu0 %v7623
    %11626 = vmatpush.bf16.msra.mxu0 %v7607
    %11627 = vmatmul.bf16.gmra.mxu0 %v387
    %v11628 = vpop.f32.mrf.mxu0
    %v11629 = vadd.f32 %v11616, %v11628
    %v11630 = vpop.f32.mrf.mxu0
    %11631 = vdwg.mxu0
    %11632 = vmatpush.bf16.msra.mxu0 %v7847
    %11633 = vmatpush.bf16.msra.mxu0 %v7831
    %11634 = vmatpush.bf16.msra.mxu0 %v7815
    %11635 = vmatpush.bf16.msra.mxu0 %v7799
    %11636 = vmatpush.bf16.msra.mxu0 %v7783
    %11637 = vmatpush.bf16.msra.mxu0 %v7767
    %11638 = vmatpush.bf16.msra.mxu0 %v7751
    %11639 = vmatpush.bf16.msra.mxu0 %v7735
    %11640 = vmatmul.bf16.gmra.mxu0 %v388
    %v11641 = vpop.f32.mrf.mxu0
    %v11642 = vadd.f32 %v11629, %v11641
    %v11643 = vpop.f32.mrf.mxu0
    %11644 = vdwg.mxu0
    %11645 = vmatpush.bf16.msra.mxu0 %v7975
    %11646 = vmatpush.bf16.msra.mxu0 %v7959
    %11647 = vmatpush.bf16.msra.mxu0 %v7943
    %11648 = vmatpush.bf16.msra.mxu0 %v7927
    %11649 = vmatpush.bf16.msra.mxu0 %v7911
    %11650 = vmatpush.bf16.msra.mxu0 %v7895
    %11651 = vmatpush.bf16.msra.mxu0 %v7879
    %11652 = vmatpush.bf16.msra.mxu0 %v7863
    %11653 = vmatmul.bf16.gmra.mxu0 %v389
    %v11654 = vpop.f32.mrf.mxu0
    %v11655 = vadd.f32 %v11642, %v11654
    %v11656 = vpop.f32.mrf.mxu0
    %11657 = vdwg.mxu0
    %11658 = vmatpush.bf16.msra.mxu0 %v8103
    %11659 = vmatpush.bf16.msra.mxu0 %v8087
    %11660 = vmatpush.bf16.msra.mxu0 %v8071
    %11661 = vmatpush.bf16.msra.mxu0 %v8055
    %11662 = vmatpush.bf16.msra.mxu0 %v8039
    %11663 = vmatpush.bf16.msra.mxu0 %v8023
    %11664 = vmatpush.bf16.msra.mxu0 %v8007
    %11665 = vmatpush.bf16.msra.mxu0 %v7991
    %11666 = vmatmul.bf16.gmra.mxu0 %v390
    %v11667 = vpop.f32.mrf.mxu0
    %v11668 = vadd.f32 %v11655, %v11667
    %v11669 = vpop.f32.mrf.mxu0
    %11670 = vdwg.mxu0
    %11671 = vmatpush.bf16.msra.mxu0 %v6696
    %11672 = vmatpush.bf16.msra.mxu0 %v6680
    %11673 = vmatpush.bf16.msra.mxu0 %v6664
    %11674 = vmatpush.bf16.msra.mxu0 %v6648
    %11675 = vmatpush.bf16.msra.mxu0 %v6632
    %11676 = vmatpush.bf16.msra.mxu0 %v6616
    %11677 = vmatpush.bf16.msra.mxu0 %v6600
    %11678 = vmatpush.bf16.msra.mxu0 %v6584
    %11679 = vmatmul.bf16.gmra.mxu0 %v379
    %v11680 = vpop.f32.mrf.mxu0
    %v11681 = vadd.f32 %v1944, %v11680
    %v11682 = vpop.f32.mrf.mxu0
    %11683 = vdwg.mxu0
    %11684 = vmatpush.bf16.msra.mxu0 %v6824
    %11685 = vmatpush.bf16.msra.mxu0 %v6808
    %11686 = vmatpush.bf16.msra.mxu0 %v6792
    %11687 = vmatpush.bf16.msra.mxu0 %v6776
    %11688 = vmatpush.bf16.msra.mxu0 %v6760
    %11689 = vmatpush.bf16.msra.mxu0 %v6744
    %11690 = vmatpush.bf16.msra.mxu0 %v6728
    %11691 = vmatpush.bf16.msra.mxu0 %v6712
    %11692 = vmatmul.bf16.gmra.mxu0 %v380
    %v11693 = vpop.f32.mrf.mxu0
    %v11694 = vadd.f32 %v11681, %v11693
    %v11695 = vpop.f32.mrf.mxu0
    %11696 = vdwg.mxu0
    %11697 = vmatpush.bf16.msra.mxu0 %v6952
    %11698 = vmatpush.bf16.msra.mxu0 %v6936
    %11699 = vmatpush.bf16.msra.mxu0 %v6920
    %11700 = vmatpush.bf16.msra.mxu0 %v6904
    %11701 = vmatpush.bf16.msra.mxu0 %v6888
    %11702 = vmatpush.bf16.msra.mxu0 %v6872
    %11703 = vmatpush.bf16.msra.mxu0 %v6856
    %11704 = vmatpush.bf16.msra.mxu0 %v6840
    %11705 = vmatmul.bf16.gmra.mxu0 %v381
    %v11706 = vpop.f32.mrf.mxu0
    %v11707 = vadd.f32 %v11694, %v11706
    %v11708 = vpop.f32.mrf.mxu0
    %11709 = vdwg.mxu0
    %11710 = vmatpush.bf16.msra.mxu0 %v7080
    %11711 = vmatpush.bf16.msra.mxu0 %v7064
    %11712 = vmatpush.bf16.msra.mxu0 %v7048
    %11713 = vmatpush.bf16.msra.mxu0 %v7032
    %11714 = vmatpush.bf16.msra.mxu0 %v7016
    %11715 = vmatpush.bf16.msra.mxu0 %v7000
    %11716 = vmatpush.bf16.msra.mxu0 %v6984
    %11717 = vmatpush.bf16.msra.mxu0 %v6968
    %11718 = vmatmul.bf16.gmra.mxu0 %v382
    %v11719 = vpop.f32.mrf.mxu0
    %v11720 = vadd.f32 %v11707, %v11719
    %v11721 = vpop.f32.mrf.mxu0
    %11722 = vdwg.mxu0
    %11723 = vmatpush.bf16.msra.mxu0 %v7208
    %11724 = vmatpush.bf16.msra.mxu0 %v7192
    %11725 = vmatpush.bf16.msra.mxu0 %v7176
    %11726 = vmatpush.bf16.msra.mxu0 %v7160
    %11727 = vmatpush.bf16.msra.mxu0 %v7144
    %11728 = vmatpush.bf16.msra.mxu0 %v7128
    %11729 = vmatpush.bf16.msra.mxu0 %v7112
    %11730 = vmatpush.bf16.msra.mxu0 %v7096
    %11731 = vmatmul.bf16.gmra.mxu0 %v383
    %v11732 = vpop.f32.mrf.mxu0
    %v11733 = vadd.f32 %v11720, %v11732
    %v11734 = vpop.f32.mrf.mxu0
    %11735 = vdwg.mxu0
    %11736 = vmatpush.bf16.msra.mxu0 %v7336
    %11737 = vmatpush.bf16.msra.mxu0 %v7320
    %11738 = vmatpush.bf16.msra.mxu0 %v7304
    %11739 = vmatpush.bf16.msra.mxu0 %v7288
    %11740 = vmatpush.bf16.msra.mxu0 %v7272
    %11741 = vmatpush.bf16.msra.mxu0 %v7256
    %11742 = vmatpush.bf16.msra.mxu0 %v7240
    %11743 = vmatpush.bf16.msra.mxu0 %v7224
    %11744 = vmatmul.bf16.gmra.mxu0 %v384
    %v11745 = vpop.f32.mrf.mxu0
    %v11746 = vadd.f32 %v11733, %v11745
    %v11747 = vpop.f32.mrf.mxu0
    %11748 = vdwg.mxu0
    %11749 = vmatpush.bf16.msra.mxu0 %v7464
    %11750 = vmatpush.bf16.msra.mxu0 %v7448
    %11751 = vmatpush.bf16.msra.mxu0 %v7432
    %11752 = vmatpush.bf16.msra.mxu0 %v7416
    %11753 = vmatpush.bf16.msra.mxu0 %v7400
    %11754 = vmatpush.bf16.msra.mxu0 %v7384
    %11755 = vmatpush.bf16.msra.mxu0 %v7368
    %11756 = vmatpush.bf16.msra.mxu0 %v7352
    %11757 = vmatmul.bf16.gmra.mxu0 %v385
    %v11758 = vpop.f32.mrf.mxu0
    %v11759 = vadd.f32 %v11746, %v11758
    %v11760 = vpop.f32.mrf.mxu0
    %11761 = vdwg.mxu0
    %11762 = vmatpush.bf16.msra.mxu0 %v7592
    %11763 = vmatpush.bf16.msra.mxu0 %v7576
    %11764 = vmatpush.bf16.msra.mxu0 %v7560
    %11765 = vmatpush.bf16.msra.mxu0 %v7544
    %11766 = vmatpush.bf16.msra.mxu0 %v7528
    %11767 = vmatpush.bf16.msra.mxu0 %v7512
    %11768 = vmatpush.bf16.msra.mxu0 %v7496
    %11769 = vmatpush.bf16.msra.mxu0 %v7480
    %11770 = vmatmul.bf16.gmra.mxu0 %v386
    %v11771 = vpop.f32.mrf.mxu0
    %v11772 = vadd.f32 %v11759, %v11771
    %v11773 = vpop.f32.mrf.mxu0
    %11774 = vdwg.mxu0
    %11775 = vmatpush.bf16.msra.mxu0 %v7720
    %11776 = vmatpush.bf16.msra.mxu0 %v7704
    %11777 = vmatpush.bf16.msra.mxu0 %v7688
    %11778 = vmatpush.bf16.msra.mxu0 %v7672
    %11779 = vmatpush.bf16.msra.mxu0 %v7656
    %11780 = vmatpush.bf16.msra.mxu0 %v7640
    %11781 = vmatpush.bf16.msra.mxu0 %v7624
    %11782 = vmatpush.bf16.msra.mxu0 %v7608
    %11783 = vmatmul.bf16.gmra.mxu0 %v387
    %v11784 = vpop.f32.mrf.mxu0
    %v11785 = vadd.f32 %v11772, %v11784
    %v11786 = vpop.f32.mrf.mxu0
    %11787 = vdwg.mxu0
    %11788 = vmatpush.bf16.msra.mxu0 %v7848
    %11789 = vmatpush.bf16.msra.mxu0 %v7832
    %11790 = vmatpush.bf16.msra.mxu0 %v7816
    %11791 = vmatpush.bf16.msra.mxu0 %v7800
    %11792 = vmatpush.bf16.msra.mxu0 %v7784
    %11793 = vmatpush.bf16.msra.mxu0 %v7768
    %11794 = vmatpush.bf16.msra.mxu0 %v7752
    %11795 = vmatpush.bf16.msra.mxu0 %v7736
    %11796 = vmatmul.bf16.gmra.mxu0 %v388
    %v11797 = vpop.f32.mrf.mxu0
    %v11798 = vadd.f32 %v11785, %v11797
    %v11799 = vpop.f32.mrf.mxu0
    %11800 = vdwg.mxu0
    %11801 = vmatpush.bf16.msra.mxu0 %v7976
    %11802 = vmatpush.bf16.msra.mxu0 %v7960
    %11803 = vmatpush.bf16.msra.mxu0 %v7944
    %11804 = vmatpush.bf16.msra.mxu0 %v7928
    %11805 = vmatpush.bf16.msra.mxu0 %v7912
    %11806 = vmatpush.bf16.msra.mxu0 %v7896
    %11807 = vmatpush.bf16.msra.mxu0 %v7880
    %11808 = vmatpush.bf16.msra.mxu0 %v7864
    %11809 = vmatmul.bf16.gmra.mxu0 %v389
    %v11810 = vpop.f32.mrf.mxu0
    %v11811 = vadd.f32 %v11798, %v11810
    %v11812 = vpop.f32.mrf.mxu0
    %11813 = vdwg.mxu0
    %11814 = vmatpush.bf16.msra.mxu0 %v8104
    %11815 = vmatpush.bf16.msra.mxu0 %v8088
    %11816 = vmatpush.bf16.msra.mxu0 %v8072
    %11817 = vmatpush.bf16.msra.mxu0 %v8056
    %11818 = vmatpush.bf16.msra.mxu0 %v8040
    %11819 = vmatpush.bf16.msra.mxu0 %v8024
    %11820 = vmatpush.bf16.msra.mxu0 %v8008
    %11821 = vmatpush.bf16.msra.mxu0 %v7992
    %11822 = vmatmul.bf16.gmra.mxu0 %v390
    %v11823 = vpop.f32.mrf.mxu0
    %v11824 = vadd.f32 %v11811, %v11823
    %v11825 = vpop.f32.mrf.mxu0
    %11826 = vdwg.mxu0
    %11827 = vmatpush.bf16.msra.mxu0 %v6697
    %11828 = vmatpush.bf16.msra.mxu0 %v6681
    %11829 = vmatpush.bf16.msra.mxu0 %v6665
    %11830 = vmatpush.bf16.msra.mxu0 %v6649
    %11831 = vmatpush.bf16.msra.mxu0 %v6633
    %11832 = vmatpush.bf16.msra.mxu0 %v6617
    %11833 = vmatpush.bf16.msra.mxu0 %v6601
    %11834 = vmatpush.bf16.msra.mxu0 %v6585
    %11835 = vmatmul.bf16.gmra.mxu0 %v379
    %v11836 = vpop.f32.mrf.mxu0
    %v11837 = vadd.f32 %v1945, %v11836
    %v11838 = vpop.f32.mrf.mxu0
    %11839 = vdwg.mxu0
    %11840 = vmatpush.bf16.msra.mxu0 %v6825
    %11841 = vmatpush.bf16.msra.mxu0 %v6809
    %11842 = vmatpush.bf16.msra.mxu0 %v6793
    %11843 = vmatpush.bf16.msra.mxu0 %v6777
    %11844 = vmatpush.bf16.msra.mxu0 %v6761
    %11845 = vmatpush.bf16.msra.mxu0 %v6745
    %11846 = vmatpush.bf16.msra.mxu0 %v6729
    %11847 = vmatpush.bf16.msra.mxu0 %v6713
    %11848 = vmatmul.bf16.gmra.mxu0 %v380
    %v11849 = vpop.f32.mrf.mxu0
    %v11850 = vadd.f32 %v11837, %v11849
    %v11851 = vpop.f32.mrf.mxu0
    %11852 = vdwg.mxu0
    %11853 = vmatpush.bf16.msra.mxu0 %v6953
    %11854 = vmatpush.bf16.msra.mxu0 %v6937
    %11855 = vmatpush.bf16.msra.mxu0 %v6921
    %11856 = vmatpush.bf16.msra.mxu0 %v6905
    %11857 = vmatpush.bf16.msra.mxu0 %v6889
    %11858 = vmatpush.bf16.msra.mxu0 %v6873
    %11859 = vmatpush.bf16.msra.mxu0 %v6857
    %11860 = vmatpush.bf16.msra.mxu0 %v6841
    %11861 = vmatmul.bf16.gmra.mxu0 %v381
    %v11862 = vpop.f32.mrf.mxu0
    %v11863 = vadd.f32 %v11850, %v11862
    %v11864 = vpop.f32.mrf.mxu0
    %11865 = vdwg.mxu0
    %11866 = vmatpush.bf16.msra.mxu0 %v7081
    %11867 = vmatpush.bf16.msra.mxu0 %v7065
    %11868 = vmatpush.bf16.msra.mxu0 %v7049
    %11869 = vmatpush.bf16.msra.mxu0 %v7033
    %11870 = vmatpush.bf16.msra.mxu0 %v7017
    %11871 = vmatpush.bf16.msra.mxu0 %v7001
    %11872 = vmatpush.bf16.msra.mxu0 %v6985
    %11873 = vmatpush.bf16.msra.mxu0 %v6969
    %11874 = vmatmul.bf16.gmra.mxu0 %v382
    %v11875 = vpop.f32.mrf.mxu0
    %v11876 = vadd.f32 %v11863, %v11875
    %v11877 = vpop.f32.mrf.mxu0
    %11878 = vdwg.mxu0
    %11879 = vmatpush.bf16.msra.mxu0 %v7209
    %11880 = vmatpush.bf16.msra.mxu0 %v7193
    %11881 = vmatpush.bf16.msra.mxu0 %v7177
    %11882 = vmatpush.bf16.msra.mxu0 %v7161
    %11883 = vmatpush.bf16.msra.mxu0 %v7145
    %11884 = vmatpush.bf16.msra.mxu0 %v7129
    %11885 = vmatpush.bf16.msra.mxu0 %v7113
    %11886 = vmatpush.bf16.msra.mxu0 %v7097
    %11887 = vmatmul.bf16.gmra.mxu0 %v383
    %v11888 = vpop.f32.mrf.mxu0
    %v11889 = vadd.f32 %v11876, %v11888
    %v11890 = vpop.f32.mrf.mxu0
    %11891 = vdwg.mxu0
    %11892 = vmatpush.bf16.msra.mxu0 %v7337
    %11893 = vmatpush.bf16.msra.mxu0 %v7321
    %11894 = vmatpush.bf16.msra.mxu0 %v7305
    %11895 = vmatpush.bf16.msra.mxu0 %v7289
    %11896 = vmatpush.bf16.msra.mxu0 %v7273
    %11897 = vmatpush.bf16.msra.mxu0 %v7257
    %11898 = vmatpush.bf16.msra.mxu0 %v7241
    %11899 = vmatpush.bf16.msra.mxu0 %v7225
    %11900 = vmatmul.bf16.gmra.mxu0 %v384
    %v11901 = vpop.f32.mrf.mxu0
    %v11902 = vadd.f32 %v11889, %v11901
    %v11903 = vpop.f32.mrf.mxu0
    %11904 = vdwg.mxu0
    %11905 = vmatpush.bf16.msra.mxu0 %v7465
    %11906 = vmatpush.bf16.msra.mxu0 %v7449
    %11907 = vmatpush.bf16.msra.mxu0 %v7433
    %11908 = vmatpush.bf16.msra.mxu0 %v7417
    %11909 = vmatpush.bf16.msra.mxu0 %v7401
    %11910 = vmatpush.bf16.msra.mxu0 %v7385
    %11911 = vmatpush.bf16.msra.mxu0 %v7369
    %11912 = vmatpush.bf16.msra.mxu0 %v7353
    %11913 = vmatmul.bf16.gmra.mxu0 %v385
    %v11914 = vpop.f32.mrf.mxu0
    %v11915 = vadd.f32 %v11902, %v11914
    %v11916 = vpop.f32.mrf.mxu0
    %11917 = vdwg.mxu0
    %11918 = vmatpush.bf16.msra.mxu0 %v7593
    %11919 = vmatpush.bf16.msra.mxu0 %v7577
    %11920 = vmatpush.bf16.msra.mxu0 %v7561
    %11921 = vmatpush.bf16.msra.mxu0 %v7545
    %11922 = vmatpush.bf16.msra.mxu0 %v7529
    %11923 = vmatpush.bf16.msra.mxu0 %v7513
    %11924 = vmatpush.bf16.msra.mxu0 %v7497
    %11925 = vmatpush.bf16.msra.mxu0 %v7481
    %11926 = vmatmul.bf16.gmra.mxu0 %v386
    %v11927 = vpop.f32.mrf.mxu0
    %v11928 = vadd.f32 %v11915, %v11927
    %v11929 = vpop.f32.mrf.mxu0
    %11930 = vdwg.mxu0
    %11931 = vmatpush.bf16.msra.mxu0 %v7721
    %11932 = vmatpush.bf16.msra.mxu0 %v7705
    %11933 = vmatpush.bf16.msra.mxu0 %v7689
    %11934 = vmatpush.bf16.msra.mxu0 %v7673
    %11935 = vmatpush.bf16.msra.mxu0 %v7657
    %11936 = vmatpush.bf16.msra.mxu0 %v7641
    %11937 = vmatpush.bf16.msra.mxu0 %v7625
    %11938 = vmatpush.bf16.msra.mxu0 %v7609
    %11939 = vmatmul.bf16.gmra.mxu0 %v387
    %v11940 = vpop.f32.mrf.mxu0
    %v11941 = vadd.f32 %v11928, %v11940
    %v11942 = vpop.f32.mrf.mxu0
    %11943 = vdwg.mxu0
    %11944 = vmatpush.bf16.msra.mxu0 %v7849
    %11945 = vmatpush.bf16.msra.mxu0 %v7833
    %11946 = vmatpush.bf16.msra.mxu0 %v7817
    %11947 = vmatpush.bf16.msra.mxu0 %v7801
    %11948 = vmatpush.bf16.msra.mxu0 %v7785
    %11949 = vmatpush.bf16.msra.mxu0 %v7769
    %11950 = vmatpush.bf16.msra.mxu0 %v7753
    %11951 = vmatpush.bf16.msra.mxu0 %v7737
    %11952 = vmatmul.bf16.gmra.mxu0 %v388
    %v11953 = vpop.f32.mrf.mxu0
    %v11954 = vadd.f32 %v11941, %v11953
    %v11955 = vpop.f32.mrf.mxu0
    %11956 = vdwg.mxu0
    %11957 = vmatpush.bf16.msra.mxu0 %v7977
    %11958 = vmatpush.bf16.msra.mxu0 %v7961
    %11959 = vmatpush.bf16.msra.mxu0 %v7945
    %11960 = vmatpush.bf16.msra.mxu0 %v7929
    %11961 = vmatpush.bf16.msra.mxu0 %v7913
    %11962 = vmatpush.bf16.msra.mxu0 %v7897
    %11963 = vmatpush.bf16.msra.mxu0 %v7881
    %11964 = vmatpush.bf16.msra.mxu0 %v7865
    %11965 = vmatmul.bf16.gmra.mxu0 %v389
    %v11966 = vpop.f32.mrf.mxu0
    %v11967 = vadd.f32 %v11954, %v11966
    %v11968 = vpop.f32.mrf.mxu0
    %11969 = vdwg.mxu0
    %11970 = vmatpush.bf16.msra.mxu0 %v8105
    %11971 = vmatpush.bf16.msra.mxu0 %v8089
    %11972 = vmatpush.bf16.msra.mxu0 %v8073
    %11973 = vmatpush.bf16.msra.mxu0 %v8057
    %11974 = vmatpush.bf16.msra.mxu0 %v8041
    %11975 = vmatpush.bf16.msra.mxu0 %v8025
    %11976 = vmatpush.bf16.msra.mxu0 %v8009
    %11977 = vmatpush.bf16.msra.mxu0 %v7993
    %11978 = vmatmul.bf16.gmra.mxu0 %v390
    %v11979 = vpop.f32.mrf.mxu0
    %v11980 = vadd.f32 %v11967, %v11979
    %v11981 = vpop.f32.mrf.mxu0
    %11982 = vdwg.mxu0
    %11983 = vmatpush.bf16.msra.mxu0 %v6698
    %11984 = vmatpush.bf16.msra.mxu0 %v6682
    %11985 = vmatpush.bf16.msra.mxu0 %v6666
    %11986 = vmatpush.bf16.msra.mxu0 %v6650
    %11987 = vmatpush.bf16.msra.mxu0 %v6634
    %11988 = vmatpush.bf16.msra.mxu0 %v6618
    %11989 = vmatpush.bf16.msra.mxu0 %v6602
    %11990 = vmatpush.bf16.msra.mxu0 %v6586
    %11991 = vmatmul.bf16.gmra.mxu0 %v379
    %v11992 = vpop.f32.mrf.mxu0
    %v11993 = vadd.f32 %v1946, %v11992
    %v11994 = vpop.f32.mrf.mxu0
    %11995 = vdwg.mxu0
    %11996 = vmatpush.bf16.msra.mxu0 %v6826
    %11997 = vmatpush.bf16.msra.mxu0 %v6810
    %11998 = vmatpush.bf16.msra.mxu0 %v6794
    %11999 = vmatpush.bf16.msra.mxu0 %v6778
    %12000 = vmatpush.bf16.msra.mxu0 %v6762
    %12001 = vmatpush.bf16.msra.mxu0 %v6746
    %12002 = vmatpush.bf16.msra.mxu0 %v6730
    %12003 = vmatpush.bf16.msra.mxu0 %v6714
    %12004 = vmatmul.bf16.gmra.mxu0 %v380
    %v12005 = vpop.f32.mrf.mxu0
    %v12006 = vadd.f32 %v11993, %v12005
    %v12007 = vpop.f32.mrf.mxu0
    %12008 = vdwg.mxu0
    %12009 = vmatpush.bf16.msra.mxu0 %v6954
    %12010 = vmatpush.bf16.msra.mxu0 %v6938
    %12011 = vmatpush.bf16.msra.mxu0 %v6922
    %12012 = vmatpush.bf16.msra.mxu0 %v6906
    %12013 = vmatpush.bf16.msra.mxu0 %v6890
    %12014 = vmatpush.bf16.msra.mxu0 %v6874
    %12015 = vmatpush.bf16.msra.mxu0 %v6858
    %12016 = vmatpush.bf16.msra.mxu0 %v6842
    %12017 = vmatmul.bf16.gmra.mxu0 %v381
    %v12018 = vpop.f32.mrf.mxu0
    %v12019 = vadd.f32 %v12006, %v12018
    %v12020 = vpop.f32.mrf.mxu0
    %12021 = vdwg.mxu0
    %12022 = vmatpush.bf16.msra.mxu0 %v7082
    %12023 = vmatpush.bf16.msra.mxu0 %v7066
    %12024 = vmatpush.bf16.msra.mxu0 %v7050
    %12025 = vmatpush.bf16.msra.mxu0 %v7034
    %12026 = vmatpush.bf16.msra.mxu0 %v7018
    %12027 = vmatpush.bf16.msra.mxu0 %v7002
    %12028 = vmatpush.bf16.msra.mxu0 %v6986
    %12029 = vmatpush.bf16.msra.mxu0 %v6970
    %12030 = vmatmul.bf16.gmra.mxu0 %v382
    %v12031 = vpop.f32.mrf.mxu0
    %v12032 = vadd.f32 %v12019, %v12031
    %v12033 = vpop.f32.mrf.mxu0
    %12034 = vdwg.mxu0
    %12035 = vmatpush.bf16.msra.mxu0 %v7210
    %12036 = vmatpush.bf16.msra.mxu0 %v7194
    %12037 = vmatpush.bf16.msra.mxu0 %v7178
    %12038 = vmatpush.bf16.msra.mxu0 %v7162
    %12039 = vmatpush.bf16.msra.mxu0 %v7146
    %12040 = vmatpush.bf16.msra.mxu0 %v7130
    %12041 = vmatpush.bf16.msra.mxu0 %v7114
    %12042 = vmatpush.bf16.msra.mxu0 %v7098
    %12043 = vmatmul.bf16.gmra.mxu0 %v383
    %v12044 = vpop.f32.mrf.mxu0
    %v12045 = vadd.f32 %v12032, %v12044
    %v12046 = vpop.f32.mrf.mxu0
    %12047 = vdwg.mxu0
    %12048 = vmatpush.bf16.msra.mxu0 %v7338
    %12049 = vmatpush.bf16.msra.mxu0 %v7322
    %12050 = vmatpush.bf16.msra.mxu0 %v7306
    %12051 = vmatpush.bf16.msra.mxu0 %v7290
    %12052 = vmatpush.bf16.msra.mxu0 %v7274
    %12053 = vmatpush.bf16.msra.mxu0 %v7258
    %12054 = vmatpush.bf16.msra.mxu0 %v7242
    %12055 = vmatpush.bf16.msra.mxu0 %v7226
    %12056 = vmatmul.bf16.gmra.mxu0 %v384
    %v12057 = vpop.f32.mrf.mxu0
    %v12058 = vadd.f32 %v12045, %v12057
    %v12059 = vpop.f32.mrf.mxu0
    %12060 = vdwg.mxu0
    %12061 = vmatpush.bf16.msra.mxu0 %v7466
    %12062 = vmatpush.bf16.msra.mxu0 %v7450
    %12063 = vmatpush.bf16.msra.mxu0 %v7434
    %12064 = vmatpush.bf16.msra.mxu0 %v7418
    %12065 = vmatpush.bf16.msra.mxu0 %v7402
    %12066 = vmatpush.bf16.msra.mxu0 %v7386
    %12067 = vmatpush.bf16.msra.mxu0 %v7370
    %12068 = vmatpush.bf16.msra.mxu0 %v7354
    %12069 = vmatmul.bf16.gmra.mxu0 %v385
    %v12070 = vpop.f32.mrf.mxu0
    %v12071 = vadd.f32 %v12058, %v12070
    %v12072 = vpop.f32.mrf.mxu0
    %12073 = vdwg.mxu0
    %12074 = vmatpush.bf16.msra.mxu0 %v7594
    %12075 = vmatpush.bf16.msra.mxu0 %v7578
    %12076 = vmatpush.bf16.msra.mxu0 %v7562
    %12077 = vmatpush.bf16.msra.mxu0 %v7546
    %12078 = vmatpush.bf16.msra.mxu0 %v7530
    %12079 = vmatpush.bf16.msra.mxu0 %v7514
    %12080 = vmatpush.bf16.msra.mxu0 %v7498
    %12081 = vmatpush.bf16.msra.mxu0 %v7482
    %12082 = vmatmul.bf16.gmra.mxu0 %v386
    %v12083 = vpop.f32.mrf.mxu0
    %v12084 = vadd.f32 %v12071, %v12083
    %v12085 = vpop.f32.mrf.mxu0
    %12086 = vdwg.mxu0
    %12087 = vmatpush.bf16.msra.mxu0 %v7722
    %12088 = vmatpush.bf16.msra.mxu0 %v7706
    %12089 = vmatpush.bf16.msra.mxu0 %v7690
    %12090 = vmatpush.bf16.msra.mxu0 %v7674
    %12091 = vmatpush.bf16.msra.mxu0 %v7658
    %12092 = vmatpush.bf16.msra.mxu0 %v7642
    %12093 = vmatpush.bf16.msra.mxu0 %v7626
    %12094 = vmatpush.bf16.msra.mxu0 %v7610
    %12095 = vmatmul.bf16.gmra.mxu0 %v387
    %v12096 = vpop.f32.mrf.mxu0
    %v12097 = vadd.f32 %v12084, %v12096
    %v12098 = vpop.f32.mrf.mxu0
    %12099 = vdwg.mxu0
    %12100 = vmatpush.bf16.msra.mxu0 %v7850
    %12101 = vmatpush.bf16.msra.mxu0 %v7834
    %12102 = vmatpush.bf16.msra.mxu0 %v7818
    %12103 = vmatpush.bf16.msra.mxu0 %v7802
    %12104 = vmatpush.bf16.msra.mxu0 %v7786
    %12105 = vmatpush.bf16.msra.mxu0 %v7770
    %12106 = vmatpush.bf16.msra.mxu0 %v7754
    %12107 = vmatpush.bf16.msra.mxu0 %v7738
    %12108 = vmatmul.bf16.gmra.mxu0 %v388
    %v12109 = vpop.f32.mrf.mxu0
    %v12110 = vadd.f32 %v12097, %v12109
    %v12111 = vpop.f32.mrf.mxu0
    %12112 = vdwg.mxu0
    %12113 = vmatpush.bf16.msra.mxu0 %v7978
    %12114 = vmatpush.bf16.msra.mxu0 %v7962
    %12115 = vmatpush.bf16.msra.mxu0 %v7946
    %12116 = vmatpush.bf16.msra.mxu0 %v7930
    %12117 = vmatpush.bf16.msra.mxu0 %v7914
    %12118 = vmatpush.bf16.msra.mxu0 %v7898
    %12119 = vmatpush.bf16.msra.mxu0 %v7882
    %12120 = vmatpush.bf16.msra.mxu0 %v7866
    %12121 = vmatmul.bf16.gmra.mxu0 %v389
    %v12122 = vpop.f32.mrf.mxu0
    %v12123 = vadd.f32 %v12110, %v12122
    %v12124 = vpop.f32.mrf.mxu0
    %12125 = vdwg.mxu0
    %12126 = vmatpush.bf16.msra.mxu0 %v8106
    %12127 = vmatpush.bf16.msra.mxu0 %v8090
    %12128 = vmatpush.bf16.msra.mxu0 %v8074
    %12129 = vmatpush.bf16.msra.mxu0 %v8058
    %12130 = vmatpush.bf16.msra.mxu0 %v8042
    %12131 = vmatpush.bf16.msra.mxu0 %v8026
    %12132 = vmatpush.bf16.msra.mxu0 %v8010
    %12133 = vmatpush.bf16.msra.mxu0 %v7994
    %12134 = vmatmul.bf16.gmra.mxu0 %v390
    %v12135 = vpop.f32.mrf.mxu0
    %v12136 = vadd.f32 %v12123, %v12135
    %v12137 = vpop.f32.mrf.mxu0
    %12138 = vdwg.mxu0
    %v12139 = vmax.f32 %v9796, 0.0
    %v12140 = vmax.f32 %v9952, 0.0
    %v12141 = vmax.f32 %v10108, 0.0
    %v12142 = vmax.f32 %v10264, 0.0
    %v12143 = vmax.f32 %v10420, 0.0
    %v12144 = vmax.f32 %v10576, 0.0
    %v12145 = vmax.f32 %v10732, 0.0
    %v12146 = vmax.f32 %v10888, 0.0
    %v12147 = vmax.f32 %v11044, 0.0
    %v12148 = vmax.f32 %v11200, 0.0
    %v12149 = vmax.f32 %v11356, 0.0
    %v12150 = vmax.f32 %v11512, 0.0
    %v12151 = vmax.f32 %v11668, 0.0
    %v12152 = vmax.f32 %v11824, 0.0
    %v12153 = vmax.f32 %v11980, 0.0
    %v12154 = vmax.f32 %v12136, 0.0
    %12155 = vst [vmem:[%s5] sm:$0xff] %v12139
    %12156 = vst [vmem:[%s5 + $0x8] sm:$0xff] %v12140
    %12157 = vst [vmem:[%s5 + $0x10] sm:$0xff] %v12141
    %12158 = vst [vmem:[%s5 + $0x18] sm:$0xff] %v12142
    %12159 = vst [vmem:[%s5 + $0x20] sm:$0xff] %v12143
    %12160 = vst [vmem:[%s5 + $0x28] sm:$0xff] %v12144
    %12161 = vst [vmem:[%s5 + $0x30] sm:$0xff] %v12145
    %12162 = vst [vmem:[%s5 + $0x38] sm:$0xff] %v12146
    %12163 = vst [vmem:[%s5 + $0x40] sm:$0xff] %v12147
    %12164 = vst [vmem:[%s5 + $0x48] sm:$0xff] %v12148
    %12165 = vst [vmem:[%s5 + $0x50] sm:$0xff] %v12149
    %12166 = vst [vmem:[%s5 + $0x58] sm:$0xff] %v12150
    %12167 = vst [vmem:[%s5 + $0x60] sm:$0xff] %v12151
    %12168 = vst [vmem:[%s5 + $0x68] sm:$0xff] %v12152
    %12169 = vst [vmem:[%s5 + $0x70] sm:$0xff] %v12153
    %12170 = vst [vmem:[%s5 + $0x78] sm:$0xff] %v12154
    // Predicated region
    $region38: #{generator_forward.1} parent=1 // pred_check
      _
    $region39: #{generator_forward.1} parent=1 // pred_check_branch
      %12172 = sbr.rel (0) target = $region41
    $region40: #{generator_forward.1} parent=1 // pred_region
      _
    $region41: #{generator_forward.1} parent=1 // pred_fallthru
      _
    // Predicated region
    $region42: #{generator_forward.1} parent=1 // pred_check
      _
    $region43: #{generator_forward.1} parent=1 // pred_check_branch
      %12174 = sbr.rel (0) target = $region45
    $region44: #{generator_forward.1} parent=1 // pred_region
      _
    $region45: #{generator_forward.1} parent=1 // pred_fallthru
      _
    %12175 = vsyncpa [#allocation3], 1
    %12176 = vsyncpa [#allocation5], 1
    %12177 = vsyncpa [#allocation8], 1

</llo_original>
